<compile_context>
chip_gen: v7x
topology: tpu7x:2x2x1
jax: 0.10.0
libtpu: 0.0.40
codegen_flags: <defaults>
</compile_context>

<pallas_src>
import functools

import jax
import jax.numpy as jnp
from jax.experimental import pallas as pl
from jax.experimental.pallas import tpu as pltpu


def _silu(v):
    return v * jax.nn.sigmoid(v)


def _softsign(v):
    return v / (1.0 + jnp.abs(v))


def _round_up(a, b):
    return ((a + b - 1) // b) * b


def _vmem_limit_bytes():
    # Generation-aware budget: ~3/4 of physical VMEM, capped at 96 MiB.
    #   v7x: 64 MiB / TC -> 48 MiB;  v5e / v6e: 128 MiB -> 96 MiB.
    try:
        cap = int(pltpu.get_tpu_info().vmem_capacity_bytes)
    except Exception:
        cap = 64 * 1024 * 1024
    return int(min((cap * 3) // 4, 96 * 1024 * 1024))


def _const_spec(shape):
    """Grid-invariant input block: constant index; single-buffered when supported."""
    idx = lambda k: (0,) * len(shape)
    try:
        return pl.BlockSpec(shape, idx, pipeline_mode=pl.Buffered(1))
    except Exception:
        return pl.BlockSpec(shape, idx)


def l_gcl_kernel(
    rowT_ref,                  # [TILE_E, 1] int32  row ids (column layout, gather select)
    colT_ref,                  # [TILE_E, 1] int32  col ids (column layout, gather select)
    rowL_ref,                  # [1, TILE_E] int32  row ids (row layout, scatter one-hot)
    gsrc_ref,                  # [2*N_pad, 2*gw] bf16  stacked gather source [hi | lo]
    ea_ref,                    # [TILE_E, F_edge]
    hproj_ref,                 # [N_pad, M]   h @ w3_h
    xnode_ref,                 # [N_pad, 4]   x
    w1e_ref, w1r_ref, b1_ref,  # edge_mlp layer 1 (edge_attr weight, radial rank-1, bias)
    w2_ref, b2_ref,            # edge_mlp layer 2
    w3m_ref, b3_ref,           # feature_mlp layer 1 (message part + bias)
    w4_ref, b4_ref,            # feature_mlp layer 2
    w5_ref, b5_ref, w6_ref,    # coordinate_mlp
    out_ref,                   # [N_pad, OUT_W]  packed [h_out | x_out | 0]
    acc_msg_ref,               # VMEM [N_pad, M]  segment-summed messages
    acc_w_ref,                 # VMEM [N_pad, 4]  segment-summed weighted coordinates
    acc_cnt_ref,               # VMEM [N_pad, 1]  segment counts
):
    f32 = jnp.float32
    k = pl.program_id(0)                       # edge tile (reduction axis)

    tile_e = rowT_ref.shape[0]
    n_pad = xnode_ref.shape[0]
    msg = w2_ref.shape[0]
    f_out = w4_ref.shape[1]
    gw = msg + 8
    out_w = out_ref.shape[1]

    @pl.when(k == 0)
    def _init():
        acc_msg_ref[...] = jnp.zeros_like(acc_msg_ref)
        acc_w_ref[...] = jnp.zeros_like(acc_w_ref)
        acc_cnt_ref[...] = jnp.zeros_like(acc_cnt_ref)

    # ---- fused two-hot gather (bf16 MXU, hi/lo split reconstructs ~f32 accuracy) -------
    # row-source occupies lanes [0, N_pad), col-source lanes [N_pad, 2*N_pad).
    lane2 = jax.lax.broadcasted_iota(jnp.int32, (tile_e, 2 * n_pad), 1)
    sel = jnp.logical_or(lane2 == rowT_ref[...],
                         lane2 == (colT_ref[...] + n_pad)).astype(jnp.bfloat16)
    g2 = jnp.dot(sel, gsrc_ref[...], preferred_element_type=f32)    # [TILE_E, 2*gw]
    g = g2[:, :gw] + g2[:, gw:]                                     # hi + lo

    hsum = g[:, :msg]                 # h[row] @ w1_hs + h[col] @ w1_ht
    lin_comb = g[:, msg:msg + 4]      # x[row] @ wc_a + x[col] @ wc_b
    diff = g[:, msg + 4:msg + 8]      # x[row] - x[col]   (col-source stores -x)

    # ---- Minkowski radial, signature (-,+,+,+):  sum(d^2) - 2*d_t^2 --------------------
    d2 = diff * diff
    radial = jnp.sum(d2, axis=1, keepdims=True) - 2.0 * d2[:, 0:1]  # [TILE_E, 1]

    # ---- edge MLP (layer-1 h terms already folded into the gather) ---------------------
    pre1 = (hsum
            + radial * w1r_ref[...]
            + jnp.dot(ea_ref[...], w1e_ref[...], preferred_element_type=f32)
            + b1_ref[...])
    hid = _silu(pre1)
    m_pre = jnp.dot(hid, w2_ref[...], preferred_element_type=f32) + b2_ref[...]
    messages = _softsign(m_pre)                                     # [TILE_E, M]

    # ---- per-edge coordinate update terms ----------------------------------------------
    c1 = _silu(jnp.dot(messages, w5_ref[...], preferred_element_type=f32) + b5_ref[...])
    phi = jnp.sum(c1 * w6_ref[...], axis=1, keepdims=True)          # [TILE_E, 1]
    weighted = lin_comb * phi                                       # [TILE_E, 4]

    # ---- segment aggregation into full-N accumulators (no per-step concat) -------------
    node_iota = jax.lax.broadcasted_iota(jnp.int32, (n_pad, tile_e), 0)
    onehot = (node_iota == rowL_ref[...]).astype(f32)               # [N_pad, TILE_E]
    acc_msg_ref[...] += jnp.dot(onehot, messages, preferred_element_type=f32)
    acc_w_ref[...] += jnp.dot(onehot, weighted, preferred_element_type=f32)
    acc_cnt_ref[...] += jnp.sum(onehot, axis=1, keepdims=True)

    # ---- finalize once: node updates, packed lane-dense store ---------------------------
    @pl.when(k == pl.num_programs(0) - 1)
    def _finalize():
        inv_count = pl.reciprocal(jnp.maximum(acc_cnt_ref[...], 1.0), approx=True)
        x_new = xnode_ref[...] + acc_w_ref[...] * inv_count         # segment-mean update

        pre3 = (hproj_ref[...]
                + jnp.dot(acc_msg_ref[...], w3m_ref[...], preferred_element_type=f32)
                + b3_ref[...])
        f1 = _silu(pre3)
        h_pre = jnp.dot(f1, w4_ref[...], preferred_element_type=f32) + b4_ref[...]
        h_new = _softsign(h_pre)

        out_ref[...] = jnp.concatenate(
            [h_new, x_new, jnp.zeros((n_pad, out_w - f_out - 4), f32)], axis=1)


def init_params(key, f_in, msg, f_out, f_edge):
    """Deterministic synthetic parameters (matching the PyTorch module's shapes)."""
    ks = jax.random.split(key, 20)

    def lin(k, fan_in, fan_out, scale=None):
        s = scale if scale is not None else 1.0 / jnp.sqrt(fan_in)
        return (jax.random.normal(k, (fan_in, fan_out), jnp.float32) * s).astype(jnp.float32)

    def bias(k, fan_out):
        return (jax.random.normal(k, (1, fan_out), jnp.float32) * 0.1).astype(jnp.float32)

    p = {}
    # edge_mlp: Linear(2*f_in + 1 + f_edge, msg) -> SiLU -> Linear(msg, msg) -> Softsign
    p["w1_hs"] = lin(ks[0], f_in, msg)
    p["w1_ht"] = lin(ks[1], f_in, msg)
    p["w1_r"] = lin(ks[2], 1, msg)              # stored as [1, M]
    p["w1_e"] = lin(ks[3], f_edge, msg)
    p["b1"] = bias(ks[11], msg)
    p["w2"] = lin(ks[4], msg, msg)
    p["b2"] = bias(ks[12], msg)
    # feature_mlp: Linear(f_in + msg, msg) -> SiLU -> Linear(msg, f_out) -> Softsign
    p["w3_h"] = lin(ks[5], f_in, msg)
    p["w3_m"] = lin(ks[6], msg, msg)
    p["b3"] = bias(ks[13], msg)
    p["w4"] = lin(ks[7], msg, f_out)
    p["b4"] = bias(ks[14], f_out)
    # coordinate_mlp: Linear(msg, msg) -> SiLU -> Linear(msg, 1, bias=False) (xavier gain=1e-3)
    p["w5"] = lin(ks[8], msg, msg)
    p["b5"] = bias(ks[15], msg)
    p["w6"] = lin(ks[9], msg, 1, scale=1e-3).reshape(1, msg)   # stored as [1, M]
    # coordinate_linear_combination_mlp: Linear(8, 4, bias=False)
    wc = lin(ks[10], 8, 4)
    p["wc_a"] = wc[:4, :]
    p["wc_b"] = wc[4:, :]
    return p


@functools.partial(jax.jit, static_argnames=("tile_e_max",))
def l_gcl_forward(params, h, x, row, col, edge_attr, tile_e_max=1024):
    n, f_in = h.shape
    e = row.shape[0]
    f_edge = edge_attr.shape[1]
    msg = params["w2"].shape[0]
    f_out = params["w4"].shape[1]
    gw = msg + 8

    # ---- padding (sublane / lane aligned) ----
    n_pad = _round_up(n, 8)
    tile_e = min(_round_up(e, 128), tile_e_max)
    e_pad = _round_up(e, tile_e)
    out_w = _round_up(f_out + 4, 128)

    h_p = jnp.pad(h, ((0, n_pad - n), (0, 0)))
    x_p = jnp.pad(x, ((0, n_pad - n), (0, 0)))
    ea_p = jnp.pad(edge_attr, ((0, e_pad - e), (0, 0)))

    # Padded edges get a sentinel outside [0, 2*n_pad) so both their gather one-hot and
    # their scatter one-hot columns are all zero.
    sentinel = jnp.int32(2 * n_pad)
    row_p = jnp.concatenate(
        [row.astype(jnp.int32), jnp.full((e_pad - e,), sentinel, jnp.int32)])
    col_p = jnp.concatenate(
        [col.astype(jnp.int32), jnp.full((e_pad - e,), sentinel, jnp.int32)])

    # ---- per-node projections folded into the fused in-kernel gather ----
    #   row-source: [h @ w1_hs | x @ wc_a |  x]
    #   col-source: [h @ w1_ht | x @ wc_b | -x]   (so the two-hot sum yields x_row - x_col)
    src_row = jnp.concatenate([h_p @ params["w1_hs"], x_p @ params["wc_a"], x_p], axis=1)
    src_col = jnp.concatenate([h_p @ params["w1_ht"], x_p @ params["wc_b"], -x_p], axis=1)
    src = jnp.concatenate([src_row, src_col], axis=0).astype(jnp.float32)   # [2*N_pad, gw]
    src_hi = src.astype(jnp.bfloat16)
    src_lo = (src - src_hi.astype(jnp.float32)).astype(jnp.bfloat16)
    gsrc = jnp.concatenate([src_hi, src_lo], axis=1)                        # [2*N_pad, 2*gw] bf16

    hproj = h_p @ params["w3_h"]

    rowT = row_p.reshape(e_pad, 1)
    colT = col_p.reshape(e_pad, 1)
    rowL = row_p.reshape(1, e_pad)

    operands = (
        rowT, colT, rowL, gsrc, ea_p, hproj, x_p,
        params["w1_e"], params["w1_r"], params["b1"],
        params["w2"], params["b2"],
        params["w3_m"], params["b3"],
        params["w4"], params["b4"],
        params["w5"], params["b5"], params["w6"],
    )

    in_specs = [
        pl.BlockSpec((tile_e, 1), lambda k: (k, 0)),         # rowT
        pl.BlockSpec((tile_e, 1), lambda k: (k, 0)),         # colT
        pl.BlockSpec((1, tile_e), lambda k: (0, k)),         # rowL
        _const_spec((2 * n_pad, 2 * gw)),                    # gather source (hi|lo, bf16)
        pl.BlockSpec((tile_e, f_edge), lambda k: (k, 0)),    # edge_attr
        _const_spec((n_pad, msg)),                           # h @ w3_h
        _const_spec((n_pad, 4)),                             # x
        _const_spec((f_edge, msg)), _const_spec((1, msg)), _const_spec((1, msg)),  # w1_e, w1_r, b1
        _const_spec((msg, msg)), _const_spec((1, msg)),      # w2, b2
        _const_spec((msg, msg)), _const_spec((1, msg)),      # w3_m, b3
        _const_spec((msg, f_out)), _const_spec((1, f_out)),  # w4, b4
        _const_spec((msg, msg)), _const_spec((1, msg)),      # w5, b5
        _const_spec((1, msg)),                               # w6
    ]

    packed = pl.pallas_call(
        l_gcl_kernel,
        out_shape=jax.ShapeDtypeStruct((n_pad, out_w), jnp.float32),
        grid=(e_pad // tile_e,),
        in_specs=in_specs,
        out_specs=pl.BlockSpec((n_pad, out_w), lambda k: (0, 0)),
        scratch_shapes=[
            pltpu.VMEM((n_pad, msg), jnp.float32),
            pltpu.VMEM((n_pad, 4), jnp.float32),
            pltpu.VMEM((n_pad, 1), jnp.float32),
        ],
        compiler_params=pltpu.CompilerParams(
            dimension_semantics=("arbitrary",),
            vmem_limit_bytes=_vmem_limit_bytes(),
        ),
    )(*operands)

    h_upd = packed[:n, :f_out]
    x_upd = packed[:n, f_out:f_out + 4]
    return h_upd, x_upd


def l_gcl_reference(params, h, x, row, col, edge_attr):
    """Pure-JAX reference mirroring the PyTorch forward semantics."""
    diff = x[row] - x[col]
    d2 = diff ** 2
    radial = jnp.sum(d2, axis=1, keepdims=True) - 2.0 * d2[:, 0:1]

    pre1 = (h[row] @ params["w1_hs"] + h[col] @ params["w1_ht"]
            + radial @ params["w1_r"] + edge_attr @ params["w1_e"] + params["b1"])
    m_pre = _silu(pre1) @ params["w2"] + params["b2"]
    messages = m_pre / (1.0 + jnp.abs(m_pre))

    lin_comb = x[row] @ params["wc_a"] + x[col] @ params["wc_b"]
    phi = _silu(messages @ params["w5"] + params["b5"]) @ params["w6"].T
    weighted = lin_comb * phi
    agg_w = jax.ops.segment_sum(weighted, row, num_segments=h.shape[0])
    count = jax.ops.segment_sum(jnp.ones_like(weighted), row, num_segments=h.shape[0])
    x_upd = x + agg_w / jnp.maximum(count, 1.0)

    agg_msg = jax.ops.segment_sum(messages, row, num_segments=h.shape[0])
    pre3 = h @ params["w3_h"] + agg_msg @ params["w3_m"] + params["b3"]
    h_pre = _silu(pre3) @ params["w4"] + params["b4"]
    h_upd = h_pre / (1.0 + jnp.abs(h_pre))
    return h_upd, x_upd


if __name__ == "__main__":
    # Small but non-trivial: two edge tiles are exercised (init / accumulate / finalize).
    N, E = 200, 700
    F_IN, MSG, F_OUT, F_EDGE = 16, 32, 16, 8

    key = jax.random.PRNGKey(0)
    k_par, k_h, k_x, k_row, k_col, k_ea = jax.random.split(key, 6)

    params = init_params(k_par, F_IN, MSG, F_OUT, F_EDGE)
    h = jax.random.normal(k_h, (N, F_IN), jnp.float32)
    x = jax.random.normal(k_x, (N, 4), jnp.float32)
    row = jax.random.randint(k_row, (E,), 0, N, dtype=jnp.int32)
    col = jax.random.randint(k_col, (E,), 0, N, dtype=jnp.int32)
    edge_attr = jax.random.normal(k_ea, (E, F_EDGE), jnp.float32)

    h_upd, x_upd = l_gcl_forward(params, h, x, row, col, edge_attr, tile_e_max=512)
    jax.block_until_ready((h_upd, x_upd))

    h_ref, x_ref = l_gcl_reference(params, h, x, row, col, edge_attr)
    assert h_upd.shape == (N, F_OUT) and x_upd.shape == (N, 4)
    assert jnp.allclose(h_upd, h_ref, atol=2e-3, rtol=2e-3), \
        float(jnp.max(jnp.abs(h_upd - h_ref)))
    assert jnp.allclose(x_upd, x_ref, atol=2e-3, rtol=2e-3), \
        float(jnp.max(jnp.abs(x_upd - x_ref)))

    print("KERNEL_OK")
</pallas_src>

<mosaic_0001>
module attributes {stable_mosaic.version = 11 : i64} {
  func.func @l_gcl_kernel(%arg0: i32, %arg1: memref<512x1xi32, #tpu.memory_space<vmem>>, %arg2: memref<512x1xi32, #tpu.memory_space<vmem>>, %arg3: memref<1x512xi32, #tpu.memory_space<vmem>>, %arg4: memref<400x80xbf16, #tpu.memory_space<vmem>>, %arg5: memref<512x8xf32, #tpu.memory_space<vmem>>, %arg6: memref<200x32xf32, #tpu.memory_space<vmem>>, %arg7: memref<200x4xf32, #tpu.memory_space<vmem>>, %arg8: memref<8x32xf32, #tpu.memory_space<vmem>>, %arg9: memref<1x32xf32, #tpu.memory_space<vmem>>, %arg10: memref<1x32xf32, #tpu.memory_space<vmem>>, %arg11: memref<32x32xf32, #tpu.memory_space<vmem>>, %arg12: memref<1x32xf32, #tpu.memory_space<vmem>>, %arg13: memref<32x32xf32, #tpu.memory_space<vmem>>, %arg14: memref<1x32xf32, #tpu.memory_space<vmem>>, %arg15: memref<32x16xf32, #tpu.memory_space<vmem>>, %arg16: memref<1x16xf32, #tpu.memory_space<vmem>>, %arg17: memref<32x32xf32, #tpu.memory_space<vmem>>, %arg18: memref<1x32xf32, #tpu.memory_space<vmem>>, %arg19: memref<1x32xf32, #tpu.memory_space<vmem>>, %arg20: memref<200x128xf32, #tpu.memory_space<vmem>>, %arg21: memref<200x32xf32, #tpu.memory_space<vmem>>, %arg22: memref<200x4xf32, #tpu.memory_space<vmem>>, %arg23: memref<200x1xf32, #tpu.memory_space<vmem>>) attributes {dimension_semantics = [#tpu.dimension_semantics<arbitrary>], iteration_bounds = array<i64: 2>, scalar_prefetch = 0 : i64, scratch_operands = 3 : i64, tpu.core_type = #tpu.core_type<tc>, window_params = [{transform_indices = @transform_0, window_bounds = array<i64: 512, 1>}, {transform_indices = @transform_1, window_bounds = array<i64: 512, 1>}, {transform_indices = @transform_2, window_bounds = array<i64: 1, 512>}, {pipeline_mode = #tpu.pipeline_mode<synchronous>, transform_indices = @transform_3, window_bounds = array<i64: 400, 80>}, {transform_indices = @transform_4, window_bounds = array<i64: 512, 8>}, {pipeline_mode = #tpu.pipeline_mode<synchronous>, transform_indices = @transform_5, window_bounds = array<i64: 200, 32>}, {pipeline_mode = #tpu.pipeline_mode<synchronous>, transform_indices = @transform_6, window_bounds = array<i64: 200, 4>}, {pipeline_mode = #tpu.pipeline_mode<synchronous>, transform_indices = @transform_7, window_bounds = array<i64: 8, 32>}, {pipeline_mode = #tpu.pipeline_mode<synchronous>, transform_indices = @transform_8, window_bounds = array<i64: 1, 32>}, {pipeline_mode = #tpu.pipeline_mode<synchronous>, transform_indices = @transform_9, window_bounds = array<i64: 1, 32>}, {pipeline_mode = #tpu.pipeline_mode<synchronous>, transform_indices = @transform_10, window_bounds = array<i64: 32, 32>}, {pipeline_mode = #tpu.pipeline_mode<synchronous>, transform_indices = @transform_11, window_bounds = array<i64: 1, 32>}, {pipeline_mode = #tpu.pipeline_mode<synchronous>, transform_indices = @transform_12, window_bounds = array<i64: 32, 32>}, {pipeline_mode = #tpu.pipeline_mode<synchronous>, transform_indices = @transform_13, window_bounds = array<i64: 1, 32>}, {pipeline_mode = #tpu.pipeline_mode<synchronous>, transform_indices = @transform_14, window_bounds = array<i64: 32, 16>}, {pipeline_mode = #tpu.pipeline_mode<synchronous>, transform_indices = @transform_15, window_bounds = array<i64: 1, 16>}, {pipeline_mode = #tpu.pipeline_mode<synchronous>, transform_indices = @transform_16, window_bounds = array<i64: 32, 32>}, {pipeline_mode = #tpu.pipeline_mode<synchronous>, transform_indices = @transform_17, window_bounds = array<i64: 1, 32>}, {pipeline_mode = #tpu.pipeline_mode<synchronous>, transform_indices = @transform_18, window_bounds = array<i64: 1, 32>}, {pipeline_mode = #tpu.pipeline_mode<synchronous>, transform_indices = @transform_19, window_bounds = array<i64: 200, 128>}]} {
    %c0_i32 = arith.constant 0 : i32
    %0 = arith.cmpi eq, %arg0, %c0_i32 : i32
    %1 = arith.extui %0 : i1 to i32
    %c0_i32_0 = arith.constant 0 : i32
    %2 = arith.cmpi ne, %1, %c0_i32_0 : i32
    scf.if %2 {
      %cst_51 = arith.constant 0.000000e+00 : f32
      %98 = vector.broadcast %cst_51 : f32 to vector<200x32xf32>
      %c0_52 = arith.constant 0 : index
      %c0_53 = arith.constant 0 : index
      %99 = vector.load %arg21[%c0_52, %c0_53] : memref<200x32xf32, #tpu.memory_space<vmem>>, vector<200x32xf32>
      tpu.vector_store %arg21[%c0_52, %c0_53], %98 {strides = array<i32>} : memref<200x32xf32, #tpu.memory_space<vmem>>, vector<200x32xf32>,
      %cst_54 = arith.constant 0.000000e+00 : f32
      %100 = vector.broadcast %cst_54 : f32 to vector<200x4xf32>
      %c0_55 = arith.constant 0 : index
      %c0_56 = arith.constant 0 : index
      %101 = vector.load %arg22[%c0_55, %c0_56] : memref<200x4xf32, #tpu.memory_space<vmem>>, vector<200x4xf32>
      tpu.vector_store %arg22[%c0_55, %c0_56], %100 {strides = array<i32>} : memref<200x4xf32, #tpu.memory_space<vmem>>, vector<200x4xf32>,
      %cst_57 = arith.constant 0.000000e+00 : f32
      %102 = vector.broadcast %cst_57 : f32 to vector<200x1xf32>
      %c0_58 = arith.constant 0 : index
      %c0_59 = arith.constant 0 : index
      %103 = vector.load %arg23[%c0_58, %c0_59] : memref<200x1xf32, #tpu.memory_space<vmem>>, vector<200x1xf32>
      tpu.vector_store %arg23[%c0_58, %c0_59], %102 {strides = array<i32>} : memref<200x1xf32, #tpu.memory_space<vmem>>, vector<200x1xf32>,
    } else {
    }
    %3 = tpu.iota {dimensions = array<i32: 1>} : vector<512x400xi32>
    %c0 = arith.constant 0 : index
    %c0_1 = arith.constant 0 : index
    %4 = vector.load %arg1[%c0, %c0_1] : memref<512x1xi32, #tpu.memory_space<vmem>>, vector<512x1xi32>
    %5 = vector.broadcast %4 : vector<512x1xi32> to vector<512x400xi32>
    %6 = arith.cmpi eq, %3, %5 : vector<512x400xi32>
    %c0_2 = arith.constant 0 : index
    %c0_3 = arith.constant 0 : index
    %7 = vector.load %arg2[%c0_2, %c0_3] : memref<512x1xi32, #tpu.memory_space<vmem>>, vector<512x1xi32>
    %c200_i32 = arith.constant 200 : i32
    %8 = vector.broadcast %c200_i32 : i32 to vector<512x1xi32>
    %9 = arith.addi %7, %8 : vector<512x1xi32>
    %10 = vector.broadcast %9 : vector<512x1xi32> to vector<512x400xi32>
    %11 = arith.cmpi eq, %3, %10 : vector<512x400xi32>
    %12 = arith.ori %6, %11 : vector<512x400xi1>
    %13 = arith.extui %12 : vector<512x400xi1> to vector<512x400xi32>
    %14 = arith.sitofp %13 : vector<512x400xi32> to vector<512x400xf32>
    %15 = arith.truncf %14 : vector<512x400xf32> to vector<512x400xbf16>
    %c0_4 = arith.constant 0 : index
    %c0_5 = arith.constant 0 : index
    %16 = vector.load %arg4[%c0_4, %c0_5] : memref<400x80xbf16, #tpu.memory_space<vmem>>, vector<400x80xbf16>
    %cst = arith.constant dense<0.000000e+00> : vector<512x80xf32>
    %17 = tpu.matmul %15, %16, %cst {dimension_numbers = #tpu.dot_dimension_numbers<[1], [0], [0], [1], [0, 0, 1, 1], [], []>} : vector<512x400xbf16>, vector<400x80xbf16>, vector<512x80xf32> -> vector<512x80xf32>
    %18 = vector.extract_strided_slice %17 {offsets = [0, 0], sizes = [512, 40], strides = [1, 1]} : vector<512x80xf32> to vector<512x40xf32>
    %19 = vector.extract_strided_slice %17 {offsets = [0, 40], sizes = [512, 40], strides = [1, 1]} : vector<512x80xf32> to vector<512x40xf32>
    %20 = arith.addf %18, %19 : vector<512x40xf32>
    %21 = vector.extract_strided_slice %20 {offsets = [0, 0], sizes = [512, 32], strides = [1, 1]} : vector<512x40xf32> to vector<512x32xf32>
    %22 = vector.extract_strided_slice %20 {offsets = [0, 32], sizes = [512, 4], strides = [1, 1]} : vector<512x40xf32> to vector<512x4xf32>
    %23 = vector.extract_strided_slice %20 {offsets = [0, 36], sizes = [512, 4], strides = [1, 1]} : vector<512x40xf32> to vector<512x4xf32>
    %24 = arith.mulf %23, %23 : vector<512x4xf32>
    %cst_6 = arith.constant dense<0.000000e+00> : vector<512xf32>
    %25 = vector.multi_reduction <add>, %24, %cst_6 [1] : vector<512x4xf32> to vector<512xf32>
    %26 = vector.shape_cast %25 : vector<512xf32> to vector<512x1xf32>
    %27 = vector.extract_strided_slice %24 {offsets = [0, 0], sizes = [512, 1], strides = [1, 1]} : vector<512x4xf32> to vector<512x1xf32>
    %cst_7 = arith.constant 2.000000e+00 : f32
    %28 = vector.broadcast %cst_7 : f32 to vector<512x1xf32>
    %29 = arith.mulf %28, %27 : vector<512x1xf32>
    %30 = arith.subf %26, %29 : vector<512x1xf32>
    %c0_8 = arith.constant 0 : index
    %c0_9 = arith.constant 0 : index
    %31 = vector.load %arg9[%c0_8, %c0_9] : memref<1x32xf32, #tpu.memory_space<vmem>>, vector<1x32xf32>
    %32 = vector.broadcast %30 : vector<512x1xf32> to vector<512x32xf32>
    %33 = vector.broadcast %31 : vector<1x32xf32> to vector<512x32xf32>
    %34 = arith.mulf %32, %33 : vector<512x32xf32>
    %35 = arith.addf %21, %34 : vector<512x32xf32>
    %c0_10 = arith.constant 0 : index
    %c0_11 = arith.constant 0 : index
    %36 = vector.load %arg5[%c0_10, %c0_11] : memref<512x8xf32, #tpu.memory_space<vmem>>, vector<512x8xf32>
    %c0_12 = arith.constant 0 : index
    %c0_13 = arith.constant 0 : index
    %37 = vector.load %arg8[%c0_12, %c0_13] : memref<8x32xf32, #tpu.memory_space<vmem>>, vector<8x32xf32>
    %cst_14 = arith.constant dense<0.000000e+00> : vector<512x32xf32>
    %38 = tpu.matmul %36, %37, %cst_14 {dimension_numbers = #tpu.dot_dimension_numbers<[1], [0], [0], [1], [0, 0, 1, 1], [], []>} : vector<512x8xf32>, vector<8x32xf32>, vector<512x32xf32> -> vector<512x32xf32>
    %39 = arith.addf %35, %38 : vector<512x32xf32>
    %c0_15 = arith.constant 0 : index
    %c0_16 = arith.constant 0 : index
    %40 = vector.load %arg10[%c0_15, %c0_16] : memref<1x32xf32, #tpu.memory_space<vmem>>, vector<1x32xf32>
    %41 = vector.broadcast %40 : vector<1x32xf32> to vector<512x32xf32>
    %42 = arith.addf %39, %41 : vector<512x32xf32>
    %43 = arith.negf %42 : vector<512x32xf32>
    %44 = math.exp %43 : vector<512x32xf32>
    %cst_17 = arith.constant 1.000000e+00 : f32
    %45 = vector.broadcast %cst_17 : f32 to vector<512x32xf32>
    %46 = arith.addf %45, %44 : vector<512x32xf32>
    %47 = arith.divf %45, %46 : vector<512x32xf32>
    %48 = arith.mulf %42, %47 : vector<512x32xf32>
    %c0_18 = arith.constant 0 : index
    %c0_19 = arith.constant 0 : index
    %49 = vector.load %arg11[%c0_18, %c0_19] : memref<32x32xf32, #tpu.memory_space<vmem>>, vector<32x32xf32>
    %cst_20 = arith.constant dense<0.000000e+00> : vector<512x32xf32>
    %50 = tpu.matmul %48, %49, %cst_20 {dimension_numbers = #tpu.dot_dimension_numbers<[1], [0], [0], [1], [0, 0, 1, 1], [], []>} : vector<512x32xf32>, vector<32x32xf32>, vector<512x32xf32> -> vector<512x32xf32>
    %c0_21 = arith.constant 0 : index
    %c0_22 = arith.constant 0 : index
    %51 = vector.load %arg12[%c0_21, %c0_22] : memref<1x32xf32, #tpu.memory_space<vmem>>, vector<1x32xf32>
    %52 = vector.broadcast %51 : vector<1x32xf32> to vector<512x32xf32>
    %53 = arith.addf %50, %52 : vector<512x32xf32>
    %54 = math.absf %53 : vector<512x32xf32>
    %cst_23 = arith.constant 1.000000e+00 : f32
    %55 = vector.broadcast %cst_23 : f32 to vector<512x32xf32>
    %56 = arith.addf %55, %54 : vector<512x32xf32>
    %57 = arith.divf %53, %56 : vector<512x32xf32>
    %c0_24 = arith.constant 0 : index
    %c0_25 = arith.constant 0 : index
    %58 = vector.load %arg17[%c0_24, %c0_25] : memref<32x32xf32, #tpu.memory_space<vmem>>, vector<32x32xf32>
    %cst_26 = arith.constant dense<0.000000e+00> : vector<512x32xf32>
    %59 = tpu.matmul %57, %58, %cst_26 {dimension_numbers = #tpu.dot_dimension_numbers<[1], [0], [0], [1], [0, 0, 1, 1], [], []>} : vector<512x32xf32>, vector<32x32xf32>, vector<512x32xf32> -> vector<512x32xf32>
    %c0_27 = arith.constant 0 : index
    %c0_28 = arith.constant 0 : index
    %60 = vector.load %arg18[%c0_27, %c0_28] : memref<1x32xf32, #tpu.memory_space<vmem>>, vector<1x32xf32>
    %61 = vector.broadcast %60 : vector<1x32xf32> to vector<512x32xf32>
    %62 = arith.addf %59, %61 : vector<512x32xf32>
    %63 = arith.negf %62 : vector<512x32xf32>
    %64 = math.exp %63 : vector<512x32xf32>
    %cst_29 = arith.constant 1.000000e+00 : f32
    %65 = vector.broadcast %cst_29 : f32 to vector<512x32xf32>
    %66 = arith.addf %65, %64 : vector<512x32xf32>
    %67 = arith.divf %65, %66 : vector<512x32xf32>
    %68 = arith.mulf %62, %67 : vector<512x32xf32>
    %c0_30 = arith.constant 0 : index
    %c0_31 = arith.constant 0 : index
    %69 = vector.load %arg19[%c0_30, %c0_31] : memref<1x32xf32, #tpu.memory_space<vmem>>, vector<1x32xf32>
    %70 = vector.broadcast %69 : vector<1x32xf32> to vector<512x32xf32>
    %71 = arith.mulf %68, %70 : vector<512x32xf32>
    %cst_32 = arith.constant dense<0.000000e+00> : vector<512xf32>
    %72 = vector.multi_reduction <add>, %71, %cst_32 [1] : vector<512x32xf32> to vector<512xf32>
    %73 = vector.shape_cast %72 : vector<512xf32> to vector<512x1xf32>
    %74 = vector.broadcast %73 : vector<512x1xf32> to vector<512x4xf32>
    %75 = arith.mulf %22, %74 : vector<512x4xf32>
    %76 = tpu.iota {dimensions = array<i32: 0>} : vector<200x512xi32>
    %c0_33 = arith.constant 0 : index
    %c0_34 = arith.constant 0 : index
    %77 = vector.load %arg3[%c0_33, %c0_34] : memref<1x512xi32, #tpu.memory_space<vmem>>, vector<1x512xi32>
    %78 = vector.broadcast %77 : vector<1x512xi32> to vector<200x512xi32>
    %79 = arith.cmpi eq, %76, %78 : vector<200x512xi32>
    %80 = arith.extui %79 : vector<200x512xi1> to vector<200x512xi32>
    %81 = arith.sitofp %80 : vector<200x512xi32> to vector<200x512xf32>
    %c0_35 = arith.constant 0 : index
    %c0_36 = arith.constant 0 : index
    %82 = vector.load %arg21[%c0_35, %c0_36] : memref<200x32xf32, #tpu.memory_space<vmem>>, vector<200x32xf32>
    %cst_37 = arith.constant dense<0.000000e+00> : vector<200x32xf32>
    %83 = tpu.matmul %81, %57, %cst_37 {dimension_numbers = #tpu.dot_dimension_numbers<[1], [0], [0], [1], [0, 0, 1, 1], [], []>} : vector<200x512xf32>, vector<512x32xf32>, vector<200x32xf32> -> vector<200x32xf32>
    %84 = arith.addf %82, %83 : vector<200x32xf32>
    %c0_38 = arith.constant 0 : index
    %c0_39 = arith.constant 0 : index
    %85 = vector.load %arg21[%c0_38, %c0_39] : memref<200x32xf32, #tpu.memory_space<vmem>>, vector<200x32xf32>
    tpu.vector_store %arg21[%c0_38, %c0_39], %84 {strides = array<i32>} : memref<200x32xf32, #tpu.memory_space<vmem>>, vector<200x32xf32>,
    %c0_40 = arith.constant 0 : index
    %c0_41 = arith.constant 0 : index
    %86 = vector.load %arg22[%c0_40, %c0_41] : memref<200x4xf32, #tpu.memory_space<vmem>>, vector<200x4xf32>
    %cst_42 = arith.constant dense<0.000000e+00> : vector<200x4xf32>
    %87 = tpu.matmul %81, %75, %cst_42 {dimension_numbers = #tpu.dot_dimension_numbers<[1], [0], [0], [1], [0, 0, 1, 1], [], []>} : vector<200x512xf32>, vector<512x4xf32>, vector<200x4xf32> -> vector<200x4xf32>
    %88 = arith.addf %86, %87 : vector<200x4xf32>
    %c0_43 = arith.constant 0 : index
    %c0_44 = arith.constant 0 : index
    %89 = vector.load %arg22[%c0_43, %c0_44] : memref<200x4xf32, #tpu.memory_space<vmem>>, vector<200x4xf32>
    tpu.vector_store %arg22[%c0_43, %c0_44], %88 {strides = array<i32>} : memref<200x4xf32, #tpu.memory_space<vmem>>, vector<200x4xf32>,
    %c0_45 = arith.constant 0 : index
    %c0_46 = arith.constant 0 : index
    %90 = vector.load %arg23[%c0_45, %c0_46] : memref<200x1xf32, #tpu.memory_space<vmem>>, vector<200x1xf32>
    %cst_47 = arith.constant dense<0.000000e+00> : vector<200xf32>
    %91 = vector.multi_reduction <add>, %81, %cst_47 [1] : vector<200x512xf32> to vector<200xf32>
    %92 = vector.shape_cast %91 : vector<200xf32> to vector<200x1xf32>
    %93 = arith.addf %90, %92 : vector<200x1xf32>
    %c0_48 = arith.constant 0 : index
    %c0_49 = arith.constant 0 : index
    %94 = vector.load %arg23[%c0_48, %c0_49] : memref<200x1xf32, #tpu.memory_space<vmem>>, vector<200x1xf32>
    tpu.vector_store %arg23[%c0_48, %c0_49], %93 {strides = array<i32>} : memref<200x1xf32, #tpu.memory_space<vmem>>, vector<200x1xf32>,
    %c1_i32 = arith.constant 1 : i32
    %95 = arith.cmpi eq, %arg0, %c1_i32 : i32
    %96 = arith.extui %95 : i1 to i32
    %c0_i32_50 = arith.constant 0 : i32
    %97 = arith.cmpi ne, %96, %c0_i32_50 : i32
    scf.if %97 {
      %c0_51 = arith.constant 0 : index
      %c0_52 = arith.constant 0 : index
      %98 = vector.load %arg23[%c0_51, %c0_52] : memref<200x1xf32, #tpu.memory_space<vmem>>, vector<200x1xf32>
      %cst_53 = arith.constant 1.000000e+00 : f32
      %99 = vector.broadcast %cst_53 : f32 to vector<200x1xf32>
      %100 = arith.maximumf %98, %99 : vector<200x1xf32>
      %101 = tpu.reciprocal %100 {approx = true} : vector<200x1xf32> -> vector<200x1xf32>
      %c0_54 = arith.constant 0 : index
      %c0_55 = arith.constant 0 : index
      %102 = vector.load %arg7[%c0_54, %c0_55] : memref<200x4xf32, #tpu.memory_space<vmem>>, vector<200x4xf32>
      %c0_56 = arith.constant 0 : index
      %c0_57 = arith.constant 0 : index
      %103 = vector.load %arg22[%c0_56, %c0_57] : memref<200x4xf32, #tpu.memory_space<vmem>>, vector<200x4xf32>
      %104 = vector.broadcast %101 : vector<200x1xf32> to vector<200x4xf32>
      %105 = arith.mulf %103, %104 : vector<200x4xf32>
      %106 = arith.addf %102, %105 : vector<200x4xf32>
      %c0_58 = arith.constant 0 : index
      %c0_59 = arith.constant 0 : index
      %107 = vector.load %arg6[%c0_58, %c0_59] : memref<200x32xf32, #tpu.memory_space<vmem>>, vector<200x32xf32>
      %c0_60 = arith.constant 0 : index
      %c0_61 = arith.constant 0 : index
      %108 = vector.load %arg21[%c0_60, %c0_61] : memref<200x32xf32, #tpu.memory_space<vmem>>, vector<200x32xf32>
      %c0_62 = arith.constant 0 : index
      %c0_63 = arith.constant 0 : index
      %109 = vector.load %arg13[%c0_62, %c0_63] : memref<32x32xf32, #tpu.memory_space<vmem>>, vector<32x32xf32>
      %cst_64 = arith.constant dense<0.000000e+00> : vector<200x32xf32>
      %110 = tpu.matmul %108, %109, %cst_64 {dimension_numbers = #tpu.dot_dimension_numbers<[1], [0], [0], [1], [0, 0, 1, 1], [], []>} : vector<200x32xf32>, vector<32x32xf32>, vector<200x32xf32> -> vector<200x32xf32>
      %111 = arith.addf %107, %110 : vector<200x32xf32>
      %c0_65 = arith.constant 0 : index
      %c0_66 = arith.constant 0 : index
      %112 = vector.load %arg14[%c0_65, %c0_66] : memref<1x32xf32, #tpu.memory_space<vmem>>, vector<1x32xf32>
      %113 = vector.broadcast %112 : vector<1x32xf32> to vector<200x32xf32>
      %114 = arith.addf %111, %113 : vector<200x32xf32>
      %115 = arith.negf %114 : vector<200x32xf32>
      %116 = math.exp %115 : vector<200x32xf32>
      %cst_67 = arith.constant 1.000000e+00 : f32
      %117 = vector.broadcast %cst_67 : f32 to vector<200x32xf32>
      %118 = arith.addf %117, %116 : vector<200x32xf32>
      %119 = arith.divf %117, %118 : vector<200x32xf32>
      %120 = arith.mulf %114, %119 : vector<200x32xf32>
      %c0_68 = arith.constant 0 : index
      %c0_69 = arith.constant 0 : index
      %121 = vector.load %arg15[%c0_68, %c0_69] : memref<32x16xf32, #tpu.memory_space<vmem>>, vector<32x16xf32>
      %cst_70 = arith.constant dense<0.000000e+00> : vector<200x16xf32>
      %122 = tpu.matmul %120, %121, %cst_70 {dimension_numbers = #tpu.dot_dimension_numbers<[1], [0], [0], [1], [0, 0, 1, 1], [], []>} : vector<200x32xf32>, vector<32x16xf32>, vector<200x16xf32> -> vector<200x16xf32>
      %c0_71 = arith.constant 0 : index
      %c0_72 = arith.constant 0 : index
      %123 = vector.load %arg16[%c0_71, %c0_72] : memref<1x16xf32, #tpu.memory_space<vmem>>, vector<1x16xf32>
      %124 = vector.broadcast %123 : vector<1x16xf32> to vector<200x16xf32>
      %125 = arith.addf %122, %124 : vector<200x16xf32>
      %126 = math.absf %125 : vector<200x16xf32>
      %cst_73 = arith.constant 1.000000e+00 : f32
      %127 = vector.broadcast %cst_73 : f32 to vector<200x16xf32>
      %128 = arith.addf %127, %126 : vector<200x16xf32>
      %129 = arith.divf %125, %128 : vector<200x16xf32>
      %cst_74 = arith.constant 0.000000e+00 : f32
      %130 = vector.broadcast %cst_74 : f32 to vector<200x108xf32>
      %131 = tpu.concatenate %129, %106, %130 in 1 : vector<200x16xf32>, vector<200x4xf32>, vector<200x108xf32> -> vector<200x128xf32>
      %c0_75 = arith.constant 0 : index
      %c0_76 = arith.constant 0 : index
      %132 = vector.load %arg20[%c0_75, %c0_76] : memref<200x128xf32, #tpu.memory_space<vmem>>, vector<200x128xf32>
      tpu.vector_store %arg20[%c0_75, %c0_76], %131 {strides = array<i32>} : memref<200x128xf32, #tpu.memory_space<vmem>>, vector<200x128xf32>,
    } else {
    }
    return
  }
  func.func @transform_0(%arg0: i32) -> (i32, i32) {
    %c0_i32 = arith.constant 0 : i32
    %c0_i32_0 = arith.constant 0 : i32
    return %arg0, %c0_i32 : i32, i32
  }
  func.func @transform_1(%arg0: i32) -> (i32, i32) {
    %c0_i32 = arith.constant 0 : i32
    %c0_i32_0 = arith.constant 0 : i32
    return %arg0, %c0_i32 : i32, i32
  }
  func.func @transform_2(%arg0: i32) -> (i32, i32) {
    %c0_i32 = arith.constant 0 : i32
    %c0_i32_0 = arith.constant 0 : i32
    return %c0_i32, %arg0 : i32, i32
  }
  func.func @transform_3(%arg0: i32) -> (i32, i32) {
    %c0_i32 = arith.constant 0 : i32
    %c0_i32_0 = arith.constant 0 : i32
    %c0_i32_1 = arith.constant 0 : i32
    return %c0_i32, %c0_i32_0 : i32, i32
  }
  func.func @transform_4(%arg0: i32) -> (i32, i32) {
    %c0_i32 = arith.constant 0 : i32
    %c0_i32_0 = arith.constant 0 : i32
    return %arg0, %c0_i32 : i32, i32
  }
  func.func @transform_5(%arg0: i32) -> (i32, i32) {
    %c0_i32 = arith.constant 0 : i32
    %c0_i32_0 = arith.constant 0 : i32
    %c0_i32_1 = arith.constant 0 : i32
    return %c0_i32, %c0_i32_0 : i32, i32
  }
  func.func @transform_6(%arg0: i32) -> (i32, i32) {
    %c0_i32 = arith.constant 0 : i32
    %c0_i32_0 = arith.constant 0 : i32
    %c0_i32_1 = arith.constant 0 : i32
    return %c0_i32, %c0_i32_0 : i32, i32
  }
  func.func @transform_7(%arg0: i32) -> (i32, i32) {
    %c0_i32 = arith.constant 0 : i32
    %c0_i32_0 = arith.constant 0 : i32
    %c0_i32_1 = arith.constant 0 : i32
    return %c0_i32, %c0_i32_0 : i32, i32
  }
  func.func @transform_8(%arg0: i32) -> (i32, i32) {
    %c0_i32 = arith.constant 0 : i32
    %c0_i32_0 = arith.constant 0 : i32
    %c0_i32_1 = arith.constant 0 : i32
    return %c0_i32, %c0_i32_0 : i32, i32
  }
  func.func @transform_9(%arg0: i32) -> (i32, i32) {
    %c0_i32 = arith.constant 0 : i32
    %c0_i32_0 = arith.constant 0 : i32
    %c0_i32_1 = arith.constant 0 : i32
    return %c0_i32, %c0_i32_0 : i32, i32
  }
  func.func @transform_10(%arg0: i32) -> (i32, i32) {
    %c0_i32 = arith.constant 0 : i32
    %c0_i32_0 = arith.constant 0 : i32
    %c0_i32_1 = arith.constant 0 : i32
    return %c0_i32, %c0_i32_0 : i32, i32
  }
  func.func @transform_11(%arg0: i32) -> (i32, i32) {
    %c0_i32 = arith.constant 0 : i32
    %c0_i32_0 = arith.constant 0 : i32
    %c0_i32_1 = arith.constant 0 : i32
    return %c0_i32, %c0_i32_0 : i32, i32
  }
  func.func @transform_12(%arg0: i32) -> (i32, i32) {
    %c0_i32 = arith.constant 0 : i32
    %c0_i32_0 = arith.constant 0 : i32
    %c0_i32_1 = arith.constant 0 : i32
    return %c0_i32, %c0_i32_0 : i32, i32
  }
  func.func @transform_13(%arg0: i32) -> (i32, i32) {
    %c0_i32 = arith.constant 0 : i32
    %c0_i32_0 = arith.constant 0 : i32
    %c0_i32_1 = arith.constant 0 : i32
    return %c0_i32, %c0_i32_0 : i32, i32
  }
  func.func @transform_14(%arg0: i32) -> (i32, i32) {
    %c0_i32 = arith.constant 0 : i32
    %c0_i32_0 = arith.constant 0 : i32
    %c0_i32_1 = arith.constant 0 : i32
    return %c0_i32, %c0_i32_0 : i32, i32
  }
  func.func @transform_15(%arg0: i32) -> (i32, i32) {
    %c0_i32 = arith.constant 0 : i32
    %c0_i32_0 = arith.constant 0 : i32
    %c0_i32_1 = arith.constant 0 : i32
    return %c0_i32, %c0_i32_0 : i32, i32
  }
  func.func @transform_16(%arg0: i32) -> (i32, i32) {
    %c0_i32 = arith.constant 0 : i32
    %c0_i32_0 = arith.constant 0 : i32
    %c0_i32_1 = arith.constant 0 : i32
    return %c0_i32, %c0_i32_0 : i32, i32
  }
  func.func @transform_17(%arg0: i32) -> (i32, i32) {
    %c0_i32 = arith.constant 0 : i32
    %c0_i32_0 = arith.constant 0 : i32
    %c0_i32_1 = arith.constant 0 : i32
    return %c0_i32, %c0_i32_0 : i32, i32
  }
  func.func @transform_18(%arg0: i32) -> (i32, i32) {
    %c0_i32 = arith.constant 0 : i32
    %c0_i32_0 = arith.constant 0 : i32
    %c0_i32_1 = arith.constant 0 : i32
    return %c0_i32, %c0_i32_0 : i32, i32
  }
  func.func @transform_19(%arg0: i32) -> (i32, i32) {
    %c0_i32 = arith.constant 0 : i32
    %c0_i32_0 = arith.constant 0 : i32
    %c0_i32_1 = arith.constant 0 : i32
    return %c0_i32, %c0_i32_0 : i32, i32
  }
}

</mosaic_0001>

<llo_original>
// kernel: neg.1
$region0: #{neg.1}
  #allocation0 [shape = 's32[1]{0}', space=sflag, size = 0x4, scoped, tag = 'scoped memory for neg.1']
  %s0 = inlined_call_operand.vmem [shape: f32[200,4], index: 0, kind: input, shape index: {}]
  %s1 = inlined_call_operand.vmem [shape: f32[200,4], index: 1, kind: output, shape index: {}]
  %v2 = vld [vmem:[%s0] sm:$0xf]
  %3 = xla_tuple %v2
  %4 = xla_tuple %3
  %v5 = vxor.u32 %v2, 2147483648
  %6 = xla_tuple %v5
  %7 = vst [vmem:[%s1] sm:$0xf] %v5
  %s8 = scalar_lea.vmem %s0, 4
  %v9 = vld [vmem:[%s8] sm:$0xf]
  %10 = xla_tuple %v9
  %11 = xla_tuple %10
  %v12 = vxor.u32 %v9, 2147483648
  %13 = xla_tuple %v12
  %s14 = scalar_lea.vmem %s1, 4
  %15 = vst [vmem:[%s14] sm:$0xf] %v12

// kernel: l_gcl_forward.1
$region0: #{l_gcl_forward.1}
  #allocation0 [shape = 'u32[]', space=smem, size = 0x4, offset = 0x4, fixed_abs, tag = 'smem constant byte address 0x4 - core index']
  #allocation1 [shape = 'u32[144,128]{1,0:T(1,128)}', space=vmem, size = 0x12000, scoped, tag = 'internal scratch']
  #allocation2 [shape = 'f32[200,32]{1,0:T(8,128)}', space=vmem, size = 0x19000, scoped, tag = 'scratch operand']
  #allocation3 [shape = 'f32[200,4]{1,0:T(8,128)}', space=vmem, size = 0x19000, scoped, tag = 'scratch operand']
  #allocation4 [shape = 'f32[200,1]{1,0:T(8,128)}', space=vmem, size = 0x19000, scoped, tag = 'scratch operand']
  %s0 = inlined_call_operand.vmem [shape: s32[1024,1], index: 0, kind: input, shape index: {}]
  %s1 = inlined_call_operand.vmem [shape: s32[1024,1], index: 1, kind: input, shape index: {}]
  %s2 = inlined_call_operand.vmem [shape: s32[1,1024], index: 2, kind: input, shape index: {}]
  %s3 = inlined_call_operand.vmem [shape: bf16[400,80], index: 3, kind: input, shape index: {}]
  %s4 = inlined_call_operand.vmem [shape: f32[1024,8], index: 4, kind: input, shape index: {}]
  %s5 = inlined_call_operand.vmem [shape: f32[200,32], index: 5, kind: input, shape index: {}]
  %s6 = inlined_call_operand.vmem [shape: f32[200,4], index: 6, kind: input, shape index: {}]
  %s7 = inlined_call_operand.vmem [shape: f32[8,32], index: 7, kind: input, shape index: {}]
  %s8 = inlined_call_operand.vmem [shape: f32[1,32], index: 8, kind: input, shape index: {}]
  %s9 = inlined_call_operand.vmem [shape: f32[1,32], index: 9, kind: input, shape index: {}]
  %s10 = inlined_call_operand.vmem [shape: f32[32,32], index: 10, kind: input, shape index: {}]
  %s11 = inlined_call_operand.vmem [shape: f32[1,32], index: 11, kind: input, shape index: {}]
  %s12 = inlined_call_operand.vmem [shape: f32[32,32], index: 12, kind: input, shape index: {}]
  %s13 = inlined_call_operand.vmem [shape: f32[1,32], index: 13, kind: input, shape index: {}]
  %s14 = inlined_call_operand.vmem [shape: f32[32,16], index: 14, kind: input, shape index: {}]
  %s15 = inlined_call_operand.vmem [shape: f32[1,16], index: 15, kind: input, shape index: {}]
  %s16 = inlined_call_operand.vmem [shape: f32[32,32], index: 16, kind: input, shape index: {}]
  %s17 = inlined_call_operand.vmem [shape: f32[1,32], index: 17, kind: input, shape index: {}]
  %s18 = inlined_call_operand.vmem [shape: f32[1,32], index: 18, kind: input, shape index: {}]
  %s19 = inlined_call_operand.vmem [shape: f32[200,128], index: 19, kind: output, shape index: {}]
  %s20 = sld [smem:[#allocation0]]
  $region117: #{l_gcl_forward.1} parent=0
    _
  %s22 = ssub.s32 1, %s20
  %s23 = scalar_select 0, %s22, %s20
  loop: start=0, step=1, limit=4
  $region2: #{l_gcl_forward.1} parent=0 // loop_pre_header
    _
  $region3: #{l_gcl_forward.1} parent=0 // loop_header
    %s25 = sphi 0, %s29
    %p26 = scmp.ge.s32.totalorder %s25, 4
    %s35 = sphi 0, %s37
    %s38 = sphi 0, %s35
    %s39 = sphi 0, %s38
    %s55 = sphi 0, %s39
    %s61 = sphi 0, %s63
    %s64 = sphi 0, %s61
    %s65 = sphi 0, %s64
    %s81 = sphi 0, %s65
    %s87 = sphi 0, %s89
    %s90 = sphi 0, %s87
    %s91 = sphi 0, %s90
    %s107 = sphi 0, %s91
    %s111 = sphi 0, %s111
    %s113 = sphi 0, %s111
    %s114 = sphi 0, %s113
    %s128 = sphi 0, %s114
    %s134 = sphi 0, %s136
    %s137 = sphi 0, %s134
    %s138 = sphi 0, %s137
    %s154 = sphi 0, %s138
    %s158 = sphi 0, %s158
    %s160 = sphi 0, %s158
    %s161 = sphi 0, %s160
    %s175 = sphi 0, %s161
    %s179 = sphi 0, %s179
    %s181 = sphi 0, %s179
    %s182 = sphi 0, %s181
    %s196 = sphi 0, %s182
    %s200 = sphi 0, %s200
    %s202 = sphi 0, %s200
    %s203 = sphi 0, %s202
    %s217 = sphi 0, %s203
    %s221 = sphi 0, %s221
    %s223 = sphi 0, %s221
    %s224 = sphi 0, %s223
    %s238 = sphi 0, %s224
    %s242 = sphi 0, %s242
    %s244 = sphi 0, %s242
    %s245 = sphi 0, %s244
    %s259 = sphi 0, %s245
    %s263 = sphi 0, %s263
    %s265 = sphi 0, %s263
    %s266 = sphi 0, %s265
    %s280 = sphi 0, %s266
    %s284 = sphi 0, %s284
    %s286 = sphi 0, %s284
    %s287 = sphi 0, %s286
    %s301 = sphi 0, %s287
    %s305 = sphi 0, %s305
    %s307 = sphi 0, %s305
    %s308 = sphi 0, %s307
    %s322 = sphi 0, %s308
    %s326 = sphi 0, %s326
    %s328 = sphi 0, %s326
    %s329 = sphi 0, %s328
    %s343 = sphi 0, %s329
    %s347 = sphi 0, %s347
    %s349 = sphi 0, %s347
    %s350 = sphi 0, %s349
    %s364 = sphi 0, %s350
    %s368 = sphi 0, %s368
    %s370 = sphi 0, %s368
    %s371 = sphi 0, %s370
    %s385 = sphi 0, %s371
    %s389 = sphi 0, %s389
    %s391 = sphi 0, %s389
    %s392 = sphi 0, %s391
    %s406 = sphi 0, %s392
    %s410 = sphi 0, %s410
    %s412 = sphi 0, %s410
    %s413 = sphi 0, %s412
    %s427 = sphi 0, %s413
    %s431 = sphi 0, %s431
    %s433 = sphi 0, %s431
    %s434 = sphi 0, %s433
    %s448 = sphi 0, %s434
    %s452 = sphi 0, %s452
    %s454 = sphi 0, %s452
    %s455 = sphi 0, %s454
    %s469 = sphi 0, %s455
  $region4: #{l_gcl_forward.1} parent=0 // loop_header_branch
    %28 = sbr.rel (%p26) target = $region8
  $region5: #{l_gcl_forward.1} parent=0 // loop_body
    %s30 = ssub.s32 %s25, 1
    %s31 = ssub.s32 %s25, 2
    %s32 = sadd.s32 %s25, 1
    %s33 = ssub.s32 %s25, %s32
    %p34 = scmp.eq.s32.totalorder %s33, 0
    %s36 = sadd.s32 %s35, 1
    %s37 = scalar_select %p34, %s35, %s36
    %p40 = pneg %p34
    %p41 = scmp.eq.s32.totalorder %s25, 1
    %p42 = por %p40, %p41
    %p43 = scmp.ne.s32.totalorder %s35, %s38
    %p44 = scmp.eq.s32.totalorder %s25, 0
    %p45 = por %p43, %p44
    %p46 = scmp.ne.s32.totalorder %s35, %s38
    %p47 = scmp.eq.s32.totalorder %s30, 1
    %p48 = por %p46, %p47
    %p49 = scmp.ne.s32.totalorder %s38, %s39
    %p50 = scmp.eq.s32.totalorder %s30, 0
    %p51 = por %p49, %p50
    %p52 = scmp.ne.s32.totalorder %s38, %s39
    %p53 = scmp.eq.s32.totalorder %s31, 1
    %p54 = por %p52, %p53
    %p56 = scmp.ne.s32.totalorder %s39, %s55
    %p57 = scmp.eq.s32.totalorder %s31, 0
    %p58 = por %p56, %p57
    %s59 = ssub.s32 %s25, %s32
    %p60 = scmp.eq.s32.totalorder %s59, 0
    %s62 = sadd.s32 %s61, 1
    %s63 = scalar_select %p60, %s61, %s62
    %p66 = pneg %p60
    %p67 = scmp.eq.s32.totalorder %s25, 1
    %p68 = por %p66, %p67
    %p69 = scmp.ne.s32.totalorder %s61, %s64
    %p70 = scmp.eq.s32.totalorder %s25, 0
    %p71 = por %p69, %p70
    %p72 = scmp.ne.s32.totalorder %s61, %s64
    %p73 = scmp.eq.s32.totalorder %s30, 1
    %p74 = por %p72, %p73
    %p75 = scmp.ne.s32.totalorder %s64, %s65
    %p76 = scmp.eq.s32.totalorder %s30, 0
    %p77 = por %p75, %p76
    %p78 = scmp.ne.s32.totalorder %s64, %s65
    %p79 = scmp.eq.s32.totalorder %s31, 1
    %p80 = por %p78, %p79
    %p82 = scmp.ne.s32.totalorder %s65, %s81
    %p83 = scmp.eq.s32.totalorder %s31, 0
    %p84 = por %p82, %p83
    %s85 = ssub.s32 %s25, %s32
    %p86 = scmp.eq.s32.totalorder %s85, 0
    %s88 = sadd.s32 %s87, 1
    %s89 = scalar_select %p86, %s87, %s88
    %p92 = pneg %p86
    %p93 = scmp.eq.s32.totalorder %s25, 1
    %p94 = por %p92, %p93
    %p95 = scmp.ne.s32.totalorder %s87, %s90
    %p96 = scmp.eq.s32.totalorder %s25, 0
    %p97 = por %p95, %p96
    %p98 = scmp.ne.s32.totalorder %s87, %s90
    %p99 = scmp.eq.s32.totalorder %s30, 1
    %p100 = por %p98, %p99
    %p101 = scmp.ne.s32.totalorder %s90, %s91
    %p102 = scmp.eq.s32.totalorder %s30, 0
    %p103 = por %p101, %p102
    %p104 = scmp.ne.s32.totalorder %s90, %s91
    %p105 = scmp.eq.s32.totalorder %s31, 1
    %p106 = por %p104, %p105
    %p108 = scmp.ne.s32.totalorder %s91, %s107
    %p109 = scmp.eq.s32.totalorder %s31, 0
    %p110 = por %p108, %p109
    %s112 = sadd.s32 %s111, 1
    %p115 = scmp.eq.s32.totalorder %s25, 1
    %p116 = scmp.ne.s32.totalorder %s111, %s113
    %p117 = scmp.eq.s32.totalorder %s25, 0
    %p118 = por %p116, %p117
    %p119 = scmp.ne.s32.totalorder %s111, %s113
    %p120 = scmp.eq.s32.totalorder %s30, 1
    %p121 = por %p119, %p120
    %p122 = scmp.ne.s32.totalorder %s113, %s114
    %p123 = scmp.eq.s32.totalorder %s30, 0
    %p124 = por %p122, %p123
    %p125 = scmp.ne.s32.totalorder %s113, %s114
    %p126 = scmp.eq.s32.totalorder %s31, 1
    %p127 = por %p125, %p126
    %p129 = scmp.ne.s32.totalorder %s114, %s128
    %p130 = scmp.eq.s32.totalorder %s31, 0
    %p131 = por %p129, %p130
    %s132 = ssub.s32 %s25, %s32
    %p133 = scmp.eq.s32.totalorder %s132, 0
    %s135 = sadd.s32 %s134, 1
    %s136 = scalar_select %p133, %s134, %s135
    %p139 = pneg %p133
    %p140 = scmp.eq.s32.totalorder %s25, 1
    %p141 = por %p139, %p140
    %p142 = scmp.ne.s32.totalorder %s134, %s137
    %p143 = scmp.eq.s32.totalorder %s25, 0
    %p144 = por %p142, %p143
    %p145 = scmp.ne.s32.totalorder %s134, %s137
    %p146 = scmp.eq.s32.totalorder %s30, 1
    %p147 = por %p145, %p146
    %p148 = scmp.ne.s32.totalorder %s137, %s138
    %p149 = scmp.eq.s32.totalorder %s30, 0
    %p150 = por %p148, %p149
    %p151 = scmp.ne.s32.totalorder %s137, %s138
    %p152 = scmp.eq.s32.totalorder %s31, 1
    %p153 = por %p151, %p152
    %p155 = scmp.ne.s32.totalorder %s138, %s154
    %p156 = scmp.eq.s32.totalorder %s31, 0
    %p157 = por %p155, %p156
    %s159 = sadd.s32 %s158, 1
    %p162 = scmp.eq.s32.totalorder %s25, 1
    %p163 = scmp.ne.s32.totalorder %s158, %s160
    %p164 = scmp.eq.s32.totalorder %s25, 0
    %p165 = por %p163, %p164
    %p166 = scmp.ne.s32.totalorder %s158, %s160
    %p167 = scmp.eq.s32.totalorder %s30, 1
    %p168 = por %p166, %p167
    %p169 = scmp.ne.s32.totalorder %s160, %s161
    %p170 = scmp.eq.s32.totalorder %s30, 0
    %p171 = por %p169, %p170
    %p172 = scmp.ne.s32.totalorder %s160, %s161
    %p173 = scmp.eq.s32.totalorder %s31, 1
    %p174 = por %p172, %p173
    %p176 = scmp.ne.s32.totalorder %s161, %s175
    %p177 = scmp.eq.s32.totalorder %s31, 0
    %p178 = por %p176, %p177
    %s180 = sadd.s32 %s179, 1
    %p183 = scmp.eq.s32.totalorder %s25, 1
    %p184 = scmp.ne.s32.totalorder %s179, %s181
    %p185 = scmp.eq.s32.totalorder %s25, 0
    %p186 = por %p184, %p185
    %p187 = scmp.ne.s32.totalorder %s179, %s181
    %p188 = scmp.eq.s32.totalorder %s30, 1
    %p189 = por %p187, %p188
    %p190 = scmp.ne.s32.totalorder %s181, %s182
    %p191 = scmp.eq.s32.totalorder %s30, 0
    %p192 = por %p190, %p191
    %p193 = scmp.ne.s32.totalorder %s181, %s182
    %p194 = scmp.eq.s32.totalorder %s31, 1
    %p195 = por %p193, %p194
    %p197 = scmp.ne.s32.totalorder %s182, %s196
    %p198 = scmp.eq.s32.totalorder %s31, 0
    %p199 = por %p197, %p198
    %s201 = sadd.s32 %s200, 1
    %p204 = scmp.eq.s32.totalorder %s25, 1
    %p205 = scmp.ne.s32.totalorder %s200, %s202
    %p206 = scmp.eq.s32.totalorder %s25, 0
    %p207 = por %p205, %p206
    %p208 = scmp.ne.s32.totalorder %s200, %s202
    %p209 = scmp.eq.s32.totalorder %s30, 1
    %p210 = por %p208, %p209
    %p211 = scmp.ne.s32.totalorder %s202, %s203
    %p212 = scmp.eq.s32.totalorder %s30, 0
    %p213 = por %p211, %p212
    %p214 = scmp.ne.s32.totalorder %s202, %s203
    %p215 = scmp.eq.s32.totalorder %s31, 1
    %p216 = por %p214, %p215
    %p218 = scmp.ne.s32.totalorder %s203, %s217
    %p219 = scmp.eq.s32.totalorder %s31, 0
    %p220 = por %p218, %p219
    %s222 = sadd.s32 %s221, 1
    %p225 = scmp.eq.s32.totalorder %s25, 1
    %p226 = scmp.ne.s32.totalorder %s221, %s223
    %p227 = scmp.eq.s32.totalorder %s25, 0
    %p228 = por %p226, %p227
    %p229 = scmp.ne.s32.totalorder %s221, %s223
    %p230 = scmp.eq.s32.totalorder %s30, 1
    %p231 = por %p229, %p230
    %p232 = scmp.ne.s32.totalorder %s223, %s224
    %p233 = scmp.eq.s32.totalorder %s30, 0
    %p234 = por %p232, %p233
    %p235 = scmp.ne.s32.totalorder %s223, %s224
    %p236 = scmp.eq.s32.totalorder %s31, 1
    %p237 = por %p235, %p236
    %p239 = scmp.ne.s32.totalorder %s224, %s238
    %p240 = scmp.eq.s32.totalorder %s31, 0
    %p241 = por %p239, %p240
    %s243 = sadd.s32 %s242, 1
    %p246 = scmp.eq.s32.totalorder %s25, 1
    %p247 = scmp.ne.s32.totalorder %s242, %s244
    %p248 = scmp.eq.s32.totalorder %s25, 0
    %p249 = por %p247, %p248
    %p250 = scmp.ne.s32.totalorder %s242, %s244
    %p251 = scmp.eq.s32.totalorder %s30, 1
    %p252 = por %p250, %p251
    %p253 = scmp.ne.s32.totalorder %s244, %s245
    %p254 = scmp.eq.s32.totalorder %s30, 0
    %p255 = por %p253, %p254
    %p256 = scmp.ne.s32.totalorder %s244, %s245
    %p257 = scmp.eq.s32.totalorder %s31, 1
    %p258 = por %p256, %p257
    %p260 = scmp.ne.s32.totalorder %s245, %s259
    %p261 = scmp.eq.s32.totalorder %s31, 0
    %p262 = por %p260, %p261
    %s264 = sadd.s32 %s263, 1
    %p267 = scmp.eq.s32.totalorder %s25, 1
    %p268 = scmp.ne.s32.totalorder %s263, %s265
    %p269 = scmp.eq.s32.totalorder %s25, 0
    %p270 = por %p268, %p269
    %p271 = scmp.ne.s32.totalorder %s263, %s265
    %p272 = scmp.eq.s32.totalorder %s30, 1
    %p273 = por %p271, %p272
    %p274 = scmp.ne.s32.totalorder %s265, %s266
    %p275 = scmp.eq.s32.totalorder %s30, 0
    %p276 = por %p274, %p275
    %p277 = scmp.ne.s32.totalorder %s265, %s266
    %p278 = scmp.eq.s32.totalorder %s31, 1
    %p279 = por %p277, %p278
    %p281 = scmp.ne.s32.totalorder %s266, %s280
    %p282 = scmp.eq.s32.totalorder %s31, 0
    %p283 = por %p281, %p282
    %s285 = sadd.s32 %s284, 1
    %p288 = scmp.eq.s32.totalorder %s25, 1
    %p289 = scmp.ne.s32.totalorder %s284, %s286
    %p290 = scmp.eq.s32.totalorder %s25, 0
    %p291 = por %p289, %p290
    %p292 = scmp.ne.s32.totalorder %s284, %s286
    %p293 = scmp.eq.s32.totalorder %s30, 1
    %p294 = por %p292, %p293
    %p295 = scmp.ne.s32.totalorder %s286, %s287
    %p296 = scmp.eq.s32.totalorder %s30, 0
    %p297 = por %p295, %p296
    %p298 = scmp.ne.s32.totalorder %s286, %s287
    %p299 = scmp.eq.s32.totalorder %s31, 1
    %p300 = por %p298, %p299
    %p302 = scmp.ne.s32.totalorder %s287, %s301
    %p303 = scmp.eq.s32.totalorder %s31, 0
    %p304 = por %p302, %p303
    %s306 = sadd.s32 %s305, 1
    %p309 = scmp.eq.s32.totalorder %s25, 1
    %p310 = scmp.ne.s32.totalorder %s305, %s307
    %p311 = scmp.eq.s32.totalorder %s25, 0
    %p312 = por %p310, %p311
    %p313 = scmp.ne.s32.totalorder %s305, %s307
    %p314 = scmp.eq.s32.totalorder %s30, 1
    %p315 = por %p313, %p314
    %p316 = scmp.ne.s32.totalorder %s307, %s308
    %p317 = scmp.eq.s32.totalorder %s30, 0
    %p318 = por %p316, %p317
    %p319 = scmp.ne.s32.totalorder %s307, %s308
    %p320 = scmp.eq.s32.totalorder %s31, 1
    %p321 = por %p319, %p320
    %p323 = scmp.ne.s32.totalorder %s308, %s322
    %p324 = scmp.eq.s32.totalorder %s31, 0
    %p325 = por %p323, %p324
    %s327 = sadd.s32 %s326, 1
    %p330 = scmp.eq.s32.totalorder %s25, 1
    %p331 = scmp.ne.s32.totalorder %s326, %s328
    %p332 = scmp.eq.s32.totalorder %s25, 0
    %p333 = por %p331, %p332
    %p334 = scmp.ne.s32.totalorder %s326, %s328
    %p335 = scmp.eq.s32.totalorder %s30, 1
    %p336 = por %p334, %p335
    %p337 = scmp.ne.s32.totalorder %s328, %s329
    %p338 = scmp.eq.s32.totalorder %s30, 0
    %p339 = por %p337, %p338
    %p340 = scmp.ne.s32.totalorder %s328, %s329
    %p341 = scmp.eq.s32.totalorder %s31, 1
    %p342 = por %p340, %p341
    %p344 = scmp.ne.s32.totalorder %s329, %s343
    %p345 = scmp.eq.s32.totalorder %s31, 0
    %p346 = por %p344, %p345
    %s348 = sadd.s32 %s347, 1
    %p351 = scmp.eq.s32.totalorder %s25, 1
    %p352 = scmp.ne.s32.totalorder %s347, %s349
    %p353 = scmp.eq.s32.totalorder %s25, 0
    %p354 = por %p352, %p353
    %p355 = scmp.ne.s32.totalorder %s347, %s349
    %p356 = scmp.eq.s32.totalorder %s30, 1
    %p357 = por %p355, %p356
    %p358 = scmp.ne.s32.totalorder %s349, %s350
    %p359 = scmp.eq.s32.totalorder %s30, 0
    %p360 = por %p358, %p359
    %p361 = scmp.ne.s32.totalorder %s349, %s350
    %p362 = scmp.eq.s32.totalorder %s31, 1
    %p363 = por %p361, %p362
    %p365 = scmp.ne.s32.totalorder %s350, %s364
    %p366 = scmp.eq.s32.totalorder %s31, 0
    %p367 = por %p365, %p366
    %s369 = sadd.s32 %s368, 1
    %p372 = scmp.eq.s32.totalorder %s25, 1
    %p373 = scmp.ne.s32.totalorder %s368, %s370
    %p374 = scmp.eq.s32.totalorder %s25, 0
    %p375 = por %p373, %p374
    %p376 = scmp.ne.s32.totalorder %s368, %s370
    %p377 = scmp.eq.s32.totalorder %s30, 1
    %p378 = por %p376, %p377
    %p379 = scmp.ne.s32.totalorder %s370, %s371
    %p380 = scmp.eq.s32.totalorder %s30, 0
    %p381 = por %p379, %p380
    %p382 = scmp.ne.s32.totalorder %s370, %s371
    %p383 = scmp.eq.s32.totalorder %s31, 1
    %p384 = por %p382, %p383
    %p386 = scmp.ne.s32.totalorder %s371, %s385
    %p387 = scmp.eq.s32.totalorder %s31, 0
    %p388 = por %p386, %p387
    %s390 = sadd.s32 %s389, 1
    %p393 = scmp.eq.s32.totalorder %s25, 1
    %p394 = scmp.ne.s32.totalorder %s389, %s391
    %p395 = scmp.eq.s32.totalorder %s25, 0
    %p396 = por %p394, %p395
    %p397 = scmp.ne.s32.totalorder %s389, %s391
    %p398 = scmp.eq.s32.totalorder %s30, 1
    %p399 = por %p397, %p398
    %p400 = scmp.ne.s32.totalorder %s391, %s392
    %p401 = scmp.eq.s32.totalorder %s30, 0
    %p402 = por %p400, %p401
    %p403 = scmp.ne.s32.totalorder %s391, %s392
    %p404 = scmp.eq.s32.totalorder %s31, 1
    %p405 = por %p403, %p404
    %p407 = scmp.ne.s32.totalorder %s392, %s406
    %p408 = scmp.eq.s32.totalorder %s31, 0
    %p409 = por %p407, %p408
    %s411 = sadd.s32 %s410, 1
    %p414 = scmp.eq.s32.totalorder %s25, 1
    %p415 = scmp.ne.s32.totalorder %s410, %s412
    %p416 = scmp.eq.s32.totalorder %s25, 0
    %p417 = por %p415, %p416
    %p418 = scmp.ne.s32.totalorder %s410, %s412
    %p419 = scmp.eq.s32.totalorder %s30, 1
    %p420 = por %p418, %p419
    %p421 = scmp.ne.s32.totalorder %s412, %s413
    %p422 = scmp.eq.s32.totalorder %s30, 0
    %p423 = por %p421, %p422
    %p424 = scmp.ne.s32.totalorder %s412, %s413
    %p425 = scmp.eq.s32.totalorder %s31, 1
    %p426 = por %p424, %p425
    %p428 = scmp.ne.s32.totalorder %s413, %s427
    %p429 = scmp.eq.s32.totalorder %s31, 0
    %p430 = por %p428, %p429
    %s432 = sadd.s32 %s431, 1
    %p435 = scmp.eq.s32.totalorder %s25, 1
    %p436 = scmp.ne.s32.totalorder %s431, %s433
    %p437 = scmp.eq.s32.totalorder %s25, 0
    %p438 = por %p436, %p437
    %p439 = scmp.ne.s32.totalorder %s431, %s433
    %p440 = scmp.eq.s32.totalorder %s30, 1
    %p441 = por %p439, %p440
    %p442 = scmp.ne.s32.totalorder %s433, %s434
    %p443 = scmp.eq.s32.totalorder %s30, 0
    %p444 = por %p442, %p443
    %p445 = scmp.ne.s32.totalorder %s433, %s434
    %p446 = scmp.eq.s32.totalorder %s31, 1
    %p447 = por %p445, %p446
    %p449 = scmp.ne.s32.totalorder %s434, %s448
    %p450 = scmp.eq.s32.totalorder %s31, 0
    %p451 = por %p449, %p450
    %s453 = sadd.s32 %s452, 1
    %p456 = scmp.eq.s32.totalorder %s25, 1
    %p457 = scmp.ne.s32.totalorder %s452, %s454
    %p458 = scmp.eq.s32.totalorder %s25, 0
    %p459 = por %p457, %p458
    %p460 = scmp.ne.s32.totalorder %s452, %s454
    %p461 = scmp.eq.s32.totalorder %s30, 1
    %p462 = por %p460, %p461
    %p463 = scmp.ne.s32.totalorder %s454, %s455
    %p464 = scmp.eq.s32.totalorder %s30, 0
    %p465 = por %p463, %p464
    %p466 = scmp.ne.s32.totalorder %s454, %s455
    %p467 = scmp.eq.s32.totalorder %s31, 1
    %p468 = por %p466, %p467
    %p470 = scmp.ne.s32.totalorder %s455, %s469
    %p471 = scmp.eq.s32.totalorder %s31, 0
    %p472 = por %p470, %p471
    %p473 = scmp.le.s32.totalorder 1, %s25
    %p474 = scmp.lt.s32.totalorder %s25, 3
    %p475 = pnand %p473, %p474
    %p476 = pneg %p475
    // Predicated region
    $region9: #{l_gcl_forward.1} parent=5 // pred_check
      _
    $region10: #{l_gcl_forward.1} parent=5 // pred_check_branch
      %478 = sbr.rel (%p475) target = $region12
    $region11: #{l_gcl_forward.1} parent=5 // pred_region
      %s479 = ssub.s32 %s25, 1
      // Predicated region
      $region13: #{l_gcl_forward.1} parent=11 // pred_check
        %p480 = pneg %p124
      $region14: #{l_gcl_forward.1} parent=11 // pred_check_branch
        %482 = sbr.rel (%p480) target = $region16
      $region15: #{l_gcl_forward.1} parent=11 // pred_region
        _
      $region16: #{l_gcl_forward.1} parent=11 // pred_fallthru
        _
      // Predicated region
      $region17: #{l_gcl_forward.1} parent=11 // pred_check
        %p483 = pneg %p171
      $region18: #{l_gcl_forward.1} parent=11 // pred_check_branch
        %485 = sbr.rel (%p483) target = $region20
      $region19: #{l_gcl_forward.1} parent=11 // pred_region
        _
      $region20: #{l_gcl_forward.1} parent=11 // pred_fallthru
        _
      // Predicated region
      $region21: #{l_gcl_forward.1} parent=11 // pred_check
        %p486 = pneg %p192
      $region22: #{l_gcl_forward.1} parent=11 // pred_check_branch
        %488 = sbr.rel (%p486) target = $region24
      $region23: #{l_gcl_forward.1} parent=11 // pred_region
        _
      $region24: #{l_gcl_forward.1} parent=11 // pred_fallthru
        _
      // Predicated region
      $region25: #{l_gcl_forward.1} parent=11 // pred_check
        %p489 = pneg %p213
      $region26: #{l_gcl_forward.1} parent=11 // pred_check_branch
        %491 = sbr.rel (%p489) target = $region28
      $region27: #{l_gcl_forward.1} parent=11 // pred_region
        _
      $region28: #{l_gcl_forward.1} parent=11 // pred_fallthru
        _
      // Predicated region
      $region29: #{l_gcl_forward.1} parent=11 // pred_check
        %p492 = pneg %p234
      $region30: #{l_gcl_forward.1} parent=11 // pred_check_branch
        %494 = sbr.rel (%p492) target = $region32
      $region31: #{l_gcl_forward.1} parent=11 // pred_region
        _
      $region32: #{l_gcl_forward.1} parent=11 // pred_fallthru
        _
      // Predicated region
      $region33: #{l_gcl_forward.1} parent=11 // pred_check
        %p495 = pneg %p255
      $region34: #{l_gcl_forward.1} parent=11 // pred_check_branch
        %497 = sbr.rel (%p495) target = $region36
      $region35: #{l_gcl_forward.1} parent=11 // pred_region
        _
      $region36: #{l_gcl_forward.1} parent=11 // pred_fallthru
        _
      // Predicated region
      $region37: #{l_gcl_forward.1} parent=11 // pred_check
        %p498 = pneg %p276
      $region38: #{l_gcl_forward.1} parent=11 // pred_check_branch
        %500 = sbr.rel (%p498) target = $region40
      $region39: #{l_gcl_forward.1} parent=11 // pred_region
        _
      $region40: #{l_gcl_forward.1} parent=11 // pred_fallthru
        _
      // Predicated region
      $region41: #{l_gcl_forward.1} parent=11 // pred_check
        %p501 = pneg %p297
      $region42: #{l_gcl_forward.1} parent=11 // pred_check_branch
        %503 = sbr.rel (%p501) target = $region44
      $region43: #{l_gcl_forward.1} parent=11 // pred_region
        _
      $region44: #{l_gcl_forward.1} parent=11 // pred_fallthru
        _
      // Predicated region
      $region45: #{l_gcl_forward.1} parent=11 // pred_check
        %p504 = pneg %p318
      $region46: #{l_gcl_forward.1} parent=11 // pred_check_branch
        %506 = sbr.rel (%p504) target = $region48
      $region47: #{l_gcl_forward.1} parent=11 // pred_region
        _
      $region48: #{l_gcl_forward.1} parent=11 // pred_fallthru
        _
      // Predicated region
      $region49: #{l_gcl_forward.1} parent=11 // pred_check
        %p507 = pneg %p339
      $region50: #{l_gcl_forward.1} parent=11 // pred_check_branch
        %509 = sbr.rel (%p507) target = $region52
      $region51: #{l_gcl_forward.1} parent=11 // pred_region
        _
      $region52: #{l_gcl_forward.1} parent=11 // pred_fallthru
        _
      // Predicated region
      $region53: #{l_gcl_forward.1} parent=11 // pred_check
        %p510 = pneg %p360
      $region54: #{l_gcl_forward.1} parent=11 // pred_check_branch
        %512 = sbr.rel (%p510) target = $region56
      $region55: #{l_gcl_forward.1} parent=11 // pred_region
        _
      $region56: #{l_gcl_forward.1} parent=11 // pred_fallthru
        _
      // Predicated region
      $region57: #{l_gcl_forward.1} parent=11 // pred_check
        %p513 = pneg %p381
      $region58: #{l_gcl_forward.1} parent=11 // pred_check_branch
        %515 = sbr.rel (%p513) target = $region60
      $region59: #{l_gcl_forward.1} parent=11 // pred_region
        _
      $region60: #{l_gcl_forward.1} parent=11 // pred_fallthru
        _
      // Predicated region
      $region61: #{l_gcl_forward.1} parent=11 // pred_check
        %p516 = pneg %p402
      $region62: #{l_gcl_forward.1} parent=11 // pred_check_branch
        %518 = sbr.rel (%p516) target = $region64
      $region63: #{l_gcl_forward.1} parent=11 // pred_region
        _
      $region64: #{l_gcl_forward.1} parent=11 // pred_fallthru
        _
      // Predicated region
      $region65: #{l_gcl_forward.1} parent=11 // pred_check
        %p519 = pneg %p423
      $region66: #{l_gcl_forward.1} parent=11 // pred_check_branch
        %521 = sbr.rel (%p519) target = $region68
      $region67: #{l_gcl_forward.1} parent=11 // pred_region
        _
      $region68: #{l_gcl_forward.1} parent=11 // pred_fallthru
        _
      // Predicated region
      $region69: #{l_gcl_forward.1} parent=11 // pred_check
        %p522 = pneg %p444
      $region70: #{l_gcl_forward.1} parent=11 // pred_check_branch
        %524 = sbr.rel (%p522) target = $region72
      $region71: #{l_gcl_forward.1} parent=11 // pred_region
        _
      $region72: #{l_gcl_forward.1} parent=11 // pred_fallthru
        _
    $region12: #{l_gcl_forward.1} parent=5 // pred_fallthru
      _
    %p525 = scmp.lt.s32.totalorder %s25, 2
    // Predicated region
    $region73: #{l_gcl_forward.1} parent=5 // pred_check
      %p526 = pneg %p525
    $region74: #{l_gcl_forward.1} parent=5 // pred_check_branch
      %528 = sbr.rel (%p526) target = $region76
    $region75: #{l_gcl_forward.1} parent=5 // pred_region
      // Predicated region
      $region77: #{l_gcl_forward.1} parent=75 // pred_check
        %p529 = pneg %p45
      $region78: #{l_gcl_forward.1} parent=75 // pred_check_branch
        %531 = sbr.rel (%p529) target = $region80
      $region79: #{l_gcl_forward.1} parent=75 // pred_region
        %s532 = smul.u32 64, %s25
        %p533 = scmp.lt.s32.totalorder %s532, 127
        %s534 = scalar_select %p533, %s532, 127
        %s535 = smul.addr %s534, 8
        %s536 = scalar_lea.vmem %s0, %s535
        %s537 = smul.u32 64, %s25
      $region80: #{l_gcl_forward.1} parent=75 // pred_fallthru
        _
      // Predicated region
      $region81: #{l_gcl_forward.1} parent=75 // pred_check
        %p538 = pneg %p71
      $region82: #{l_gcl_forward.1} parent=75 // pred_check_branch
        %540 = sbr.rel (%p538) target = $region84
      $region83: #{l_gcl_forward.1} parent=75 // pred_region
        %s541 = smul.u32 64, %s25
        %p542 = scmp.lt.s32.totalorder %s541, 127
        %s543 = scalar_select %p542, %s541, 127
        %s544 = smul.addr %s543, 8
        %s545 = scalar_lea.vmem %s1, %s544
        %s546 = smul.u32 64, %s25
      $region84: #{l_gcl_forward.1} parent=75 // pred_fallthru
        _
      // Predicated region
      $region85: #{l_gcl_forward.1} parent=75 // pred_check
        %p547 = pneg %p97
      $region86: #{l_gcl_forward.1} parent=75 // pred_check_branch
        %549 = sbr.rel (%p547) target = $region88
      $region87: #{l_gcl_forward.1} parent=75 // pred_region
        %s550 = smul.u32 4, %s25
        %p551 = scmp.lt.s32.totalorder %s550, 7
        %s552 = scalar_select %p551, %s550, 7
        %s553 = scalar_lea.vmem %s2, %s552
        %s554 = smul.u32 4, %s25
      $region88: #{l_gcl_forward.1} parent=75 // pred_fallthru
        _
      // Predicated region
      $region89: #{l_gcl_forward.1} parent=75 // pred_check
        %p555 = pneg %p144
      $region90: #{l_gcl_forward.1} parent=75 // pred_check_branch
        %557 = sbr.rel (%p555) target = $region92
      $region91: #{l_gcl_forward.1} parent=75 // pred_region
        %s558 = smul.u32 64, %s25
        %p559 = scmp.lt.s32.totalorder %s558, 127
        %s560 = scalar_select %p559, %s558, 127
        %s561 = smul.addr %s560, 8
        %s562 = scalar_lea.vmem %s4, %s561
        %s563 = smul.u32 64, %s25
      $region92: #{l_gcl_forward.1} parent=75 // pred_fallthru
        _
    $region76: #{l_gcl_forward.1} parent=5 // pred_fallthru
      _
    %p564 = scmp.le.s32.totalorder 1, %s25
    %p565 = scmp.lt.s32.totalorder %s25, 3
    %p566 = pnand %p564, %p565
    %p567 = pneg %p566
    // Predicated region
    $region93: #{l_gcl_forward.1} parent=5 // pred_check
      _
    $region94: #{l_gcl_forward.1} parent=5 // pred_check_branch
      %569 = sbr.rel (%p566) target = $region96
    $region95: #{l_gcl_forward.1} parent=5 // pred_region
      %s570 = ssub.s32 %s25, 1
      %s571 = smul.u32 64, %s30
      %p572 = scmp.lt.s32.totalorder %s571, 127
      %s573 = scalar_select %p572, %s571, 127
      %s574 = smul.addr %s573, 8
      %s575 = scalar_lea.vmem %s0, %s574
      %p576 = pneg %p51
      %p577 = pneg %p48
      %s578 = smul.u32 64, %s30
      %p579 = scmp.lt.s32.totalorder %s578, 127
      %s580 = scalar_select %p579, %s578, 127
      %s581 = smul.addr %s580, 8
      %s582 = scalar_lea.vmem %s1, %s581
      %p583 = pneg %p77
      %p584 = pneg %p74
      %s585 = smul.u32 4, %s30
      %p586 = scmp.lt.s32.totalorder %s585, 7
      %s587 = scalar_select %p586, %s585, 7
      %s588 = scalar_lea.vmem %s2, %s587
      %p589 = pneg %p103
      %p590 = pneg %p100
      %p591 = pneg %p124
      %p592 = pneg %p121
      %s593 = smul.u32 64, %s30
      %p594 = scmp.lt.s32.totalorder %s593, 127
      %s595 = scalar_select %p594, %s593, 127
      %s596 = smul.addr %s595, 8
      %s597 = scalar_lea.vmem %s4, %s596
      %p598 = pneg %p150
      %p599 = pneg %p147
      %p600 = pneg %p171
      %p601 = pneg %p168
      %p602 = pneg %p192
      %p603 = pneg %p189
      %p604 = pneg %p213
      %p605 = pneg %p210
      %p606 = pneg %p234
      %p607 = pneg %p231
      %p608 = pneg %p255
      %p609 = pneg %p252
      %p610 = pneg %p276
      %p611 = pneg %p273
      %p612 = pneg %p297
      %p613 = pneg %p294
      %p614 = pneg %p318
      %p615 = pneg %p315
      %p616 = pneg %p339
      %p617 = pneg %p336
      %p618 = pneg %p360
      %p619 = pneg %p357
      %p620 = pneg %p381
      %p621 = pneg %p378
      %p622 = pneg %p402
      %p623 = pneg %p399
      %p624 = pneg %p423
      %p625 = pneg %p420
      %p626 = pneg %p444
      %p627 = pneg %p441
      %p628 = pneg %p465
      %p629 = pneg %p462
      %s630 = smul.u32 64, %s30
      %p631 = scmp.lt.s32.totalorder %s630, 127
      %s632 = scalar_select %p631, %s630, 127
      %s633 = smul.addr %s632, 8
      %s634 = scalar_lea.vmem %s0, %s633
      %s635 = smul.u32 64, %s30
      %s636 = smul.u32 64, %s30
      %p637 = scmp.lt.s32.totalorder %s636, 127
      %s638 = scalar_select %p637, %s636, 127
      %s639 = smul.addr %s638, 8
      %s640 = scalar_lea.vmem %s1, %s639
      %s641 = smul.u32 64, %s30
      %s642 = smul.u32 4, %s30
      %p643 = scmp.lt.s32.totalorder %s642, 7
      %s644 = scalar_select %p643, %s642, 7
      %s645 = scalar_lea.vmem %s2, %s644
      %s646 = smul.u32 4, %s30
      %s647 = smul.u32 64, %s30
      %p648 = scmp.lt.s32.totalorder %s647, 127
      %s649 = scalar_select %p648, %s647, 127
      %s650 = smul.addr %s649, 8
      %s651 = scalar_lea.vmem %s4, %s650
      %s652 = smul.u32 64, %s30
      %p654 = scmp.eq.s32.totalorder %s30, 0
      // Predicated region
      $region97: #{l_gcl_forward.1} parent=95 // pred_check
        %p655 = pneg %p654
      $region98: #{l_gcl_forward.1} parent=95 // pred_check_branch
        %657 = sbr.rel (%p655) target = $region100
      $region99: #{l_gcl_forward.1} parent=95 // pred_region
        %vm658 = vcmask 261120
        %659 = vst.msk [vmem:[#allocation2] sm:$0xff] %vm658, 0.0
        %660 = vst.msk [vmem:[#allocation2 + $0x8] sm:$0xff] %vm658, 0.0
        %661 = vst.msk [vmem:[#allocation2 + $0x10] sm:$0xff] %vm658, 0.0
        %662 = vst.msk [vmem:[#allocation2 + $0x18] sm:$0xff] %vm658, 0.0
        %663 = vst.msk [vmem:[#allocation2 + $0x20] sm:$0xff] %vm658, 0.0
        %664 = vst.msk [vmem:[#allocation2 + $0x28] sm:$0xff] %vm658, 0.0
        %665 = vst.msk [vmem:[#allocation2 + $0x30] sm:$0xff] %vm658, 0.0
        %666 = vst.msk [vmem:[#allocation2 + $0x38] sm:$0xff] %vm658, 0.0
        %667 = vst.msk [vmem:[#allocation2 + $0x40] sm:$0xff] %vm658, 0.0
        %668 = vst.msk [vmem:[#allocation2 + $0x48] sm:$0xff] %vm658, 0.0
        %669 = vst.msk [vmem:[#allocation2 + $0x50] sm:$0xff] %vm658, 0.0
        %670 = vst.msk [vmem:[#allocation2 + $0x58] sm:$0xff] %vm658, 0.0
        %671 = vst.msk [vmem:[#allocation2 + $0x60] sm:$0xff] %vm658, 0.0
        %672 = vst.msk [vmem:[#allocation2 + $0x68] sm:$0xff] %vm658, 0.0
        %673 = vst.msk [vmem:[#allocation2 + $0x70] sm:$0xff] %vm658, 0.0
        %674 = vst.msk [vmem:[#allocation2 + $0x78] sm:$0xff] %vm658, 0.0
        %675 = vst.msk [vmem:[#allocation2 + $0x80] sm:$0xff] %vm658, 0.0
        %676 = vst.msk [vmem:[#allocation2 + $0x88] sm:$0xff] %vm658, 0.0
        %677 = vst.msk [vmem:[#allocation2 + $0x90] sm:$0xff] %vm658, 0.0
        %678 = vst.msk [vmem:[#allocation2 + $0x98] sm:$0xff] %vm658, 0.0
        %679 = vst.msk [vmem:[#allocation2 + $0xa0] sm:$0xff] %vm658, 0.0
        %680 = vst.msk [vmem:[#allocation2 + $0xa8] sm:$0xff] %vm658, 0.0
        %681 = vst.msk [vmem:[#allocation2 + $0xb0] sm:$0xff] %vm658, 0.0
        %682 = vst.msk [vmem:[#allocation2 + $0xb8] sm:$0xff] %vm658, 0.0
        %683 = vst.msk [vmem:[#allocation2 + $0xc0] sm:$0xff] %vm658, 0.0
        %vm684 = vcmask 31744
        %685 = vst.msk [vmem:[#allocation3] sm:$0xff] %vm684, 0.0
        %686 = vst.msk [vmem:[#allocation3 + $0x8] sm:$0xff] %vm684, 0.0
        %687 = vst.msk [vmem:[#allocation3 + $0x10] sm:$0xff] %vm684, 0.0
        %688 = vst.msk [vmem:[#allocation3 + $0x18] sm:$0xff] %vm684, 0.0
        %689 = vst.msk [vmem:[#allocation3 + $0x20] sm:$0xff] %vm684, 0.0
        %690 = vst.msk [vmem:[#allocation3 + $0x28] sm:$0xff] %vm684, 0.0
        %691 = vst.msk [vmem:[#allocation3 + $0x30] sm:$0xff] %vm684, 0.0
        %692 = vst.msk [vmem:[#allocation3 + $0x38] sm:$0xff] %vm684, 0.0
        %693 = vst.msk [vmem:[#allocation3 + $0x40] sm:$0xff] %vm684, 0.0
        %694 = vst.msk [vmem:[#allocation3 + $0x48] sm:$0xff] %vm684, 0.0
        %695 = vst.msk [vmem:[#allocation3 + $0x50] sm:$0xff] %vm684, 0.0
        %696 = vst.msk [vmem:[#allocation3 + $0x58] sm:$0xff] %vm684, 0.0
        %697 = vst.msk [vmem:[#allocation3 + $0x60] sm:$0xff] %vm684, 0.0
        %698 = vst.msk [vmem:[#allocation3 + $0x68] sm:$0xff] %vm684, 0.0
        %699 = vst.msk [vmem:[#allocation3 + $0x70] sm:$0xff] %vm684, 0.0
        %700 = vst.msk [vmem:[#allocation3 + $0x78] sm:$0xff] %vm684, 0.0
        %701 = vst.msk [vmem:[#allocation3 + $0x80] sm:$0xff] %vm684, 0.0
        %702 = vst.msk [vmem:[#allocation3 + $0x88] sm:$0xff] %vm684, 0.0
        %703 = vst.msk [vmem:[#allocation3 + $0x90] sm:$0xff] %vm684, 0.0
        %704 = vst.msk [vmem:[#allocation3 + $0x98] sm:$0xff] %vm684, 0.0
        %705 = vst.msk [vmem:[#allocation3 + $0xa0] sm:$0xff] %vm684, 0.0
        %706 = vst.msk [vmem:[#allocation3 + $0xa8] sm:$0xff] %vm684, 0.0
        %707 = vst.msk [vmem:[#allocation3 + $0xb0] sm:$0xff] %vm684, 0.0
        %708 = vst.msk [vmem:[#allocation3 + $0xb8] sm:$0xff] %vm684, 0.0
        %709 = vst.msk [vmem:[#allocation3 + $0xc0] sm:$0xff] %vm684, 0.0
        %vm710 = vcmask 7168
        %711 = vst.msk [vmem:[#allocation4] sm:$0xff] %vm710, 0.0
        %712 = vst.msk [vmem:[#allocation4 + $0x8] sm:$0xff] %vm710, 0.0
        %713 = vst.msk [vmem:[#allocation4 + $0x10] sm:$0xff] %vm710, 0.0
        %714 = vst.msk [vmem:[#allocation4 + $0x18] sm:$0xff] %vm710, 0.0
        %715 = vst.msk [vmem:[#allocation4 + $0x20] sm:$0xff] %vm710, 0.0
        %716 = vst.msk [vmem:[#allocation4 + $0x28] sm:$0xff] %vm710, 0.0
        %717 = vst.msk [vmem:[#allocation4 + $0x30] sm:$0xff] %vm710, 0.0
        %718 = vst.msk [vmem:[#allocation4 + $0x38] sm:$0xff] %vm710, 0.0
        %719 = vst.msk [vmem:[#allocation4 + $0x40] sm:$0xff] %vm710, 0.0
        %720 = vst.msk [vmem:[#allocation4 + $0x48] sm:$0xff] %vm710, 0.0
        %721 = vst.msk [vmem:[#allocation4 + $0x50] sm:$0xff] %vm710, 0.0
        %722 = vst.msk [vmem:[#allocation4 + $0x58] sm:$0xff] %vm710, 0.0
        %723 = vst.msk [vmem:[#allocation4 + $0x60] sm:$0xff] %vm710, 0.0
        %724 = vst.msk [vmem:[#allocation4 + $0x68] sm:$0xff] %vm710, 0.0
        %725 = vst.msk [vmem:[#allocation4 + $0x70] sm:$0xff] %vm710, 0.0
        %726 = vst.msk [vmem:[#allocation4 + $0x78] sm:$0xff] %vm710, 0.0
        %727 = vst.msk [vmem:[#allocation4 + $0x80] sm:$0xff] %vm710, 0.0
        %728 = vst.msk [vmem:[#allocation4 + $0x88] sm:$0xff] %vm710, 0.0
        %729 = vst.msk [vmem:[#allocation4 + $0x90] sm:$0xff] %vm710, 0.0
        %730 = vst.msk [vmem:[#allocation4 + $0x98] sm:$0xff] %vm710, 0.0
        %731 = vst.msk [vmem:[#allocation4 + $0xa0] sm:$0xff] %vm710, 0.0
        %732 = vst.msk [vmem:[#allocation4 + $0xa8] sm:$0xff] %vm710, 0.0
        %733 = vst.msk [vmem:[#allocation4 + $0xb0] sm:$0xff] %vm710, 0.0
        %734 = vst.msk [vmem:[#allocation4 + $0xb8] sm:$0xff] %vm710, 0.0
        %735 = vst.msk [vmem:[#allocation4 + $0xc0] sm:$0xff] %vm710, 0.0
      $region100: #{l_gcl_forward.1} parent=95 // pred_fallthru
        _
      %v736 = vlaneseq
      %v737 = vand.u32 %v736, 127
      %v738 = vadd.s32 %v737, 128
      %v739 = vadd.s32 %v737, 256
      %v740 = vadd.s32 %v737, 384
      %v741 = vld [vmem:[%s634] sm:$0xff]
      %v742 = vld [vmem:[%s634 + $0x8] sm:$0xff]
      %v743 = vld [vmem:[%s634 + $0x10] sm:$0xff]
      %v744 = vld [vmem:[%s634 + $0x18] sm:$0xff]
      %v745 = vld [vmem:[%s634 + $0x20] sm:$0xff]
      %v746 = vld [vmem:[%s634 + $0x28] sm:$0xff]
      %v747 = vld [vmem:[%s634 + $0x30] sm:$0xff]
      %v748 = vld [vmem:[%s634 + $0x38] sm:$0xff]
      %v749 = vld [vmem:[%s634 + $0x40] sm:$0xff]
      %v750 = vld [vmem:[%s634 + $0x48] sm:$0xff]
      %v751 = vld [vmem:[%s634 + $0x50] sm:$0xff]
      %v752 = vld [vmem:[%s634 + $0x58] sm:$0xff]
      %v753 = vld [vmem:[%s634 + $0x60] sm:$0xff]
      %v754 = vld [vmem:[%s634 + $0x68] sm:$0xff]
      %v755 = vld [vmem:[%s634 + $0x70] sm:$0xff]
      %v756 = vld [vmem:[%s634 + $0x78] sm:$0xff]
      %v757 = vld [vmem:[%s634 + $0x80] sm:$0xff]
      %v758 = vld [vmem:[%s634 + $0x88] sm:$0xff]
      %v759 = vld [vmem:[%s634 + $0x90] sm:$0xff]
      %v760 = vld [vmem:[%s634 + $0x98] sm:$0xff]
      %v761 = vld [vmem:[%s634 + $0xa0] sm:$0xff]
      %v762 = vld [vmem:[%s634 + $0xa8] sm:$0xff]
      %v763 = vld [vmem:[%s634 + $0xb0] sm:$0xff]
      %v764 = vld [vmem:[%s634 + $0xb8] sm:$0xff]
      %v765 = vld [vmem:[%s634 + $0xc0] sm:$0xff]
      %v766 = vld [vmem:[%s634 + $0xc8] sm:$0xff]
      %v767 = vld [vmem:[%s634 + $0xd0] sm:$0xff]
      %v768 = vld [vmem:[%s634 + $0xd8] sm:$0xff]
      %v769 = vld [vmem:[%s634 + $0xe0] sm:$0xff]
      %v770 = vld [vmem:[%s634 + $0xe8] sm:$0xff]
      %v771 = vld [vmem:[%s634 + $0xf0] sm:$0xff]
      %v772 = vld [vmem:[%s634 + $0xf8] sm:$0xff]
      %v773 = vld [vmem:[%s634 + $0x100] sm:$0xff]
      %v774 = vld [vmem:[%s634 + $0x108] sm:$0xff]
      %v775 = vld [vmem:[%s634 + $0x110] sm:$0xff]
      %v776 = vld [vmem:[%s634 + $0x118] sm:$0xff]
      %v777 = vld [vmem:[%s634 + $0x120] sm:$0xff]
      %v778 = vld [vmem:[%s634 + $0x128] sm:$0xff]
      %v779 = vld [vmem:[%s634 + $0x130] sm:$0xff]
      %v780 = vld [vmem:[%s634 + $0x138] sm:$0xff]
      %v781 = vld [vmem:[%s634 + $0x140] sm:$0xff]
      %v782 = vld [vmem:[%s634 + $0x148] sm:$0xff]
      %v783 = vld [vmem:[%s634 + $0x150] sm:$0xff]
      %v784 = vld [vmem:[%s634 + $0x158] sm:$0xff]
      %v785 = vld [vmem:[%s634 + $0x160] sm:$0xff]
      %v786 = vld [vmem:[%s634 + $0x168] sm:$0xff]
      %v787 = vld [vmem:[%s634 + $0x170] sm:$0xff]
      %v788 = vld [vmem:[%s634 + $0x178] sm:$0xff]
      %v789 = vld [vmem:[%s634 + $0x180] sm:$0xff]
      %v790 = vld [vmem:[%s634 + $0x188] sm:$0xff]
      %v791 = vld [vmem:[%s634 + $0x190] sm:$0xff]
      %v792 = vld [vmem:[%s634 + $0x198] sm:$0xff]
      %v793 = vld [vmem:[%s634 + $0x1a0] sm:$0xff]
      %v794 = vld [vmem:[%s634 + $0x1a8] sm:$0xff]
      %v795 = vld [vmem:[%s634 + $0x1b0] sm:$0xff]
      %v796 = vld [vmem:[%s634 + $0x1b8] sm:$0xff]
      %v797 = vld [vmem:[%s634 + $0x1c0] sm:$0xff]
      %v798 = vld [vmem:[%s634 + $0x1c8] sm:$0xff]
      %v799 = vld [vmem:[%s634 + $0x1d0] sm:$0xff]
      %v800 = vld [vmem:[%s634 + $0x1d8] sm:$0xff]
      %v801 = vld [vmem:[%s634 + $0x1e0] sm:$0xff]
      %v802 = vld [vmem:[%s634 + $0x1e8] sm:$0xff]
      %v803 = vld [vmem:[%s634 + $0x1f0] sm:$0xff]
      %v804 = vld [vmem:[%s634 + $0x1f8] sm:$0xff]
      %805 = vset.pattern.permute.xlu0 0
      %806 = vperm.xlu0 %805, %v741
      %v807 = vpop.permute.xlu0 %806
      %808 = vset.pattern.permute.xlu0 0
      %809 = vperm.xlu0 %808, %v742
      %v810 = vpop.permute.xlu0 %809
      %811 = vset.pattern.permute.xlu0 0
      %812 = vperm.xlu0 %811, %v743
      %v813 = vpop.permute.xlu0 %812
      %814 = vset.pattern.permute.xlu0 0
      %815 = vperm.xlu0 %814, %v744
      %v816 = vpop.permute.xlu0 %815
      %817 = vset.pattern.permute.xlu0 0
      %818 = vperm.xlu0 %817, %v745
      %v819 = vpop.permute.xlu0 %818
      %820 = vset.pattern.permute.xlu0 0
      %821 = vperm.xlu0 %820, %v746
      %v822 = vpop.permute.xlu0 %821
      %823 = vset.pattern.permute.xlu0 0
      %824 = vperm.xlu0 %823, %v747
      %v825 = vpop.permute.xlu0 %824
      %826 = vset.pattern.permute.xlu0 0
      %827 = vperm.xlu0 %826, %v748
      %v828 = vpop.permute.xlu0 %827
      %829 = vset.pattern.permute.xlu0 0
      %830 = vperm.xlu0 %829, %v749
      %v831 = vpop.permute.xlu0 %830
      %832 = vset.pattern.permute.xlu0 0
      %833 = vperm.xlu0 %832, %v750
      %v834 = vpop.permute.xlu0 %833
      %835 = vset.pattern.permute.xlu0 0
      %836 = vperm.xlu0 %835, %v751
      %v837 = vpop.permute.xlu0 %836
      %838 = vset.pattern.permute.xlu0 0
      %839 = vperm.xlu0 %838, %v752
      %v840 = vpop.permute.xlu0 %839
      %841 = vset.pattern.permute.xlu0 0
      %842 = vperm.xlu0 %841, %v753
      %v843 = vpop.permute.xlu0 %842
      %844 = vset.pattern.permute.xlu0 0
      %845 = vperm.xlu0 %844, %v754
      %v846 = vpop.permute.xlu0 %845
      %847 = vset.pattern.permute.xlu0 0
      %848 = vperm.xlu0 %847, %v755
      %v849 = vpop.permute.xlu0 %848
      %850 = vset.pattern.permute.xlu0 0
      %851 = vperm.xlu0 %850, %v756
      %v852 = vpop.permute.xlu0 %851
      %853 = vset.pattern.permute.xlu0 0
      %854 = vperm.xlu0 %853, %v757
      %v855 = vpop.permute.xlu0 %854
      %856 = vset.pattern.permute.xlu0 0
      %857 = vperm.xlu0 %856, %v758
      %v858 = vpop.permute.xlu0 %857
      %859 = vset.pattern.permute.xlu0 0
      %860 = vperm.xlu0 %859, %v759
      %v861 = vpop.permute.xlu0 %860
      %862 = vset.pattern.permute.xlu0 0
      %863 = vperm.xlu0 %862, %v760
      %v864 = vpop.permute.xlu0 %863
      %865 = vset.pattern.permute.xlu0 0
      %866 = vperm.xlu0 %865, %v761
      %v867 = vpop.permute.xlu0 %866
      %868 = vset.pattern.permute.xlu0 0
      %869 = vperm.xlu0 %868, %v762
      %v870 = vpop.permute.xlu0 %869
      %871 = vset.pattern.permute.xlu0 0
      %872 = vperm.xlu0 %871, %v763
      %v873 = vpop.permute.xlu0 %872
      %874 = vset.pattern.permute.xlu0 0
      %875 = vperm.xlu0 %874, %v764
      %v876 = vpop.permute.xlu0 %875
      %877 = vset.pattern.permute.xlu0 0
      %878 = vperm.xlu0 %877, %v765
      %v879 = vpop.permute.xlu0 %878
      %880 = vset.pattern.permute.xlu0 0
      %881 = vperm.xlu0 %880, %v766
      %v882 = vpop.permute.xlu0 %881
      %883 = vset.pattern.permute.xlu0 0
      %884 = vperm.xlu0 %883, %v767
      %v885 = vpop.permute.xlu0 %884
      %886 = vset.pattern.permute.xlu0 0
      %887 = vperm.xlu0 %886, %v768
      %v888 = vpop.permute.xlu0 %887
      %889 = vset.pattern.permute.xlu0 0
      %890 = vperm.xlu0 %889, %v769
      %v891 = vpop.permute.xlu0 %890
      %892 = vset.pattern.permute.xlu0 0
      %893 = vperm.xlu0 %892, %v770
      %v894 = vpop.permute.xlu0 %893
      %895 = vset.pattern.permute.xlu0 0
      %896 = vperm.xlu0 %895, %v771
      %v897 = vpop.permute.xlu0 %896
      %898 = vset.pattern.permute.xlu0 0
      %899 = vperm.xlu0 %898, %v772
      %v900 = vpop.permute.xlu0 %899
      %901 = vset.pattern.permute.xlu0 0
      %902 = vperm.xlu0 %901, %v773
      %v903 = vpop.permute.xlu0 %902
      %904 = vset.pattern.permute.xlu0 0
      %905 = vperm.xlu0 %904, %v774
      %v906 = vpop.permute.xlu0 %905
      %907 = vset.pattern.permute.xlu0 0
      %908 = vperm.xlu0 %907, %v775
      %v909 = vpop.permute.xlu0 %908
      %910 = vset.pattern.permute.xlu0 0
      %911 = vperm.xlu0 %910, %v776
      %v912 = vpop.permute.xlu0 %911
      %913 = vset.pattern.permute.xlu0 0
      %914 = vperm.xlu0 %913, %v777
      %v915 = vpop.permute.xlu0 %914
      %916 = vset.pattern.permute.xlu0 0
      %917 = vperm.xlu0 %916, %v778
      %v918 = vpop.permute.xlu0 %917
      %919 = vset.pattern.permute.xlu0 0
      %920 = vperm.xlu0 %919, %v779
      %v921 = vpop.permute.xlu0 %920
      %922 = vset.pattern.permute.xlu0 0
      %923 = vperm.xlu0 %922, %v780
      %v924 = vpop.permute.xlu0 %923
      %925 = vset.pattern.permute.xlu0 0
      %926 = vperm.xlu0 %925, %v781
      %v927 = vpop.permute.xlu0 %926
      %928 = vset.pattern.permute.xlu0 0
      %929 = vperm.xlu0 %928, %v782
      %v930 = vpop.permute.xlu0 %929
      %931 = vset.pattern.permute.xlu0 0
      %932 = vperm.xlu0 %931, %v783
      %v933 = vpop.permute.xlu0 %932
      %934 = vset.pattern.permute.xlu0 0
      %935 = vperm.xlu0 %934, %v784
      %v936 = vpop.permute.xlu0 %935
      %937 = vset.pattern.permute.xlu0 0
      %938 = vperm.xlu0 %937, %v785
      %v939 = vpop.permute.xlu0 %938
      %940 = vset.pattern.permute.xlu0 0
      %941 = vperm.xlu0 %940, %v786
      %v942 = vpop.permute.xlu0 %941
      %943 = vset.pattern.permute.xlu0 0
      %944 = vperm.xlu0 %943, %v787
      %v945 = vpop.permute.xlu0 %944
      %946 = vset.pattern.permute.xlu0 0
      %947 = vperm.xlu0 %946, %v788
      %v948 = vpop.permute.xlu0 %947
      %949 = vset.pattern.permute.xlu0 0
      %950 = vperm.xlu0 %949, %v789
      %v951 = vpop.permute.xlu0 %950
      %952 = vset.pattern.permute.xlu0 0
      %953 = vperm.xlu0 %952, %v790
      %v954 = vpop.permute.xlu0 %953
      %955 = vset.pattern.permute.xlu0 0
      %956 = vperm.xlu0 %955, %v791
      %v957 = vpop.permute.xlu0 %956
      %958 = vset.pattern.permute.xlu0 0
      %959 = vperm.xlu0 %958, %v792
      %v960 = vpop.permute.xlu0 %959
      %961 = vset.pattern.permute.xlu0 0
      %962 = vperm.xlu0 %961, %v793
      %v963 = vpop.permute.xlu0 %962
      %964 = vset.pattern.permute.xlu0 0
      %965 = vperm.xlu0 %964, %v794
      %v966 = vpop.permute.xlu0 %965
      %967 = vset.pattern.permute.xlu0 0
      %968 = vperm.xlu0 %967, %v795
      %v969 = vpop.permute.xlu0 %968
      %970 = vset.pattern.permute.xlu0 0
      %971 = vperm.xlu0 %970, %v796
      %v972 = vpop.permute.xlu0 %971
      %973 = vset.pattern.permute.xlu0 0
      %974 = vperm.xlu0 %973, %v797
      %v975 = vpop.permute.xlu0 %974
      %976 = vset.pattern.permute.xlu0 0
      %977 = vperm.xlu0 %976, %v798
      %v978 = vpop.permute.xlu0 %977
      %979 = vset.pattern.permute.xlu0 0
      %980 = vperm.xlu0 %979, %v799
      %v981 = vpop.permute.xlu0 %980
      %982 = vset.pattern.permute.xlu0 0
      %983 = vperm.xlu0 %982, %v800
      %v984 = vpop.permute.xlu0 %983
      %985 = vset.pattern.permute.xlu0 0
      %986 = vperm.xlu0 %985, %v801
      %v987 = vpop.permute.xlu0 %986
      %988 = vset.pattern.permute.xlu0 0
      %989 = vperm.xlu0 %988, %v802
      %v990 = vpop.permute.xlu0 %989
      %991 = vset.pattern.permute.xlu0 0
      %992 = vperm.xlu0 %991, %v803
      %v993 = vpop.permute.xlu0 %992
      %994 = vset.pattern.permute.xlu0 0
      %995 = vperm.xlu0 %994, %v804
      %v996 = vpop.permute.xlu0 %995
      %vm997 = vcmp.eq.s32.totalorder %v737, %v807
      %vm998 = vcmp.eq.s32.totalorder %v738, %v807
      %vm999 = vcmp.eq.s32.totalorder %v739, %v807
      %vm1000 = vcmp.eq.s32.totalorder %v740, %v807
      %vm1001 = vcmp.eq.s32.totalorder %v737, %v810
      %vm1002 = vcmp.eq.s32.totalorder %v738, %v810
      %vm1003 = vcmp.eq.s32.totalorder %v739, %v810
      %vm1004 = vcmp.eq.s32.totalorder %v740, %v810
      %vm1005 = vcmp.eq.s32.totalorder %v737, %v813
      %vm1006 = vcmp.eq.s32.totalorder %v738, %v813
      %vm1007 = vcmp.eq.s32.totalorder %v739, %v813
      %vm1008 = vcmp.eq.s32.totalorder %v740, %v813
      %vm1009 = vcmp.eq.s32.totalorder %v737, %v816
      %vm1010 = vcmp.eq.s32.totalorder %v738, %v816
      %vm1011 = vcmp.eq.s32.totalorder %v739, %v816
      %vm1012 = vcmp.eq.s32.totalorder %v740, %v816
      %vm1013 = vcmp.eq.s32.totalorder %v737, %v819
      %vm1014 = vcmp.eq.s32.totalorder %v738, %v819
      %vm1015 = vcmp.eq.s32.totalorder %v739, %v819
      %vm1016 = vcmp.eq.s32.totalorder %v740, %v819
      %vm1017 = vcmp.eq.s32.totalorder %v737, %v822
      %vm1018 = vcmp.eq.s32.totalorder %v738, %v822
      %vm1019 = vcmp.eq.s32.totalorder %v739, %v822
      %vm1020 = vcmp.eq.s32.totalorder %v740, %v822
      %vm1021 = vcmp.eq.s32.totalorder %v737, %v825
      %vm1022 = vcmp.eq.s32.totalorder %v738, %v825
      %vm1023 = vcmp.eq.s32.totalorder %v739, %v825
      %vm1024 = vcmp.eq.s32.totalorder %v740, %v825
      %vm1025 = vcmp.eq.s32.totalorder %v737, %v828
      %vm1026 = vcmp.eq.s32.totalorder %v738, %v828
      %vm1027 = vcmp.eq.s32.totalorder %v739, %v828
      %vm1028 = vcmp.eq.s32.totalorder %v740, %v828
      %vm1029 = vcmp.eq.s32.totalorder %v737, %v831
      %vm1030 = vcmp.eq.s32.totalorder %v738, %v831
      %vm1031 = vcmp.eq.s32.totalorder %v739, %v831
      %vm1032 = vcmp.eq.s32.totalorder %v740, %v831
      %vm1033 = vcmp.eq.s32.totalorder %v737, %v834
      %vm1034 = vcmp.eq.s32.totalorder %v738, %v834
      %vm1035 = vcmp.eq.s32.totalorder %v739, %v834
      %vm1036 = vcmp.eq.s32.totalorder %v740, %v834
      %vm1037 = vcmp.eq.s32.totalorder %v737, %v837
      %vm1038 = vcmp.eq.s32.totalorder %v738, %v837
      %vm1039 = vcmp.eq.s32.totalorder %v739, %v837
      %vm1040 = vcmp.eq.s32.totalorder %v740, %v837
      %vm1041 = vcmp.eq.s32.totalorder %v737, %v840
      %vm1042 = vcmp.eq.s32.totalorder %v738, %v840
      %vm1043 = vcmp.eq.s32.totalorder %v739, %v840
      %vm1044 = vcmp.eq.s32.totalorder %v740, %v840
      %vm1045 = vcmp.eq.s32.totalorder %v737, %v843
      %vm1046 = vcmp.eq.s32.totalorder %v738, %v843
      %vm1047 = vcmp.eq.s32.totalorder %v739, %v843
      %vm1048 = vcmp.eq.s32.totalorder %v740, %v843
      %vm1049 = vcmp.eq.s32.totalorder %v737, %v846
      %vm1050 = vcmp.eq.s32.totalorder %v738, %v846
      %vm1051 = vcmp.eq.s32.totalorder %v739, %v846
      %vm1052 = vcmp.eq.s32.totalorder %v740, %v846
      %vm1053 = vcmp.eq.s32.totalorder %v737, %v849
      %vm1054 = vcmp.eq.s32.totalorder %v738, %v849
      %vm1055 = vcmp.eq.s32.totalorder %v739, %v849
      %vm1056 = vcmp.eq.s32.totalorder %v740, %v849
      %vm1057 = vcmp.eq.s32.totalorder %v737, %v852
      %vm1058 = vcmp.eq.s32.totalorder %v738, %v852
      %vm1059 = vcmp.eq.s32.totalorder %v739, %v852
      %vm1060 = vcmp.eq.s32.totalorder %v740, %v852
      %vm1061 = vcmp.eq.s32.totalorder %v737, %v855
      %vm1062 = vcmp.eq.s32.totalorder %v738, %v855
      %vm1063 = vcmp.eq.s32.totalorder %v739, %v855
      %vm1064 = vcmp.eq.s32.totalorder %v740, %v855
      %vm1065 = vcmp.eq.s32.totalorder %v737, %v858
      %vm1066 = vcmp.eq.s32.totalorder %v738, %v858
      %vm1067 = vcmp.eq.s32.totalorder %v739, %v858
      %vm1068 = vcmp.eq.s32.totalorder %v740, %v858
      %vm1069 = vcmp.eq.s32.totalorder %v737, %v861
      %vm1070 = vcmp.eq.s32.totalorder %v738, %v861
      %vm1071 = vcmp.eq.s32.totalorder %v739, %v861
      %vm1072 = vcmp.eq.s32.totalorder %v740, %v861
      %vm1073 = vcmp.eq.s32.totalorder %v737, %v864
      %vm1074 = vcmp.eq.s32.totalorder %v738, %v864
      %vm1075 = vcmp.eq.s32.totalorder %v739, %v864
      %vm1076 = vcmp.eq.s32.totalorder %v740, %v864
      %vm1077 = vcmp.eq.s32.totalorder %v737, %v867
      %vm1078 = vcmp.eq.s32.totalorder %v738, %v867
      %vm1079 = vcmp.eq.s32.totalorder %v739, %v867
      %vm1080 = vcmp.eq.s32.totalorder %v740, %v867
      %vm1081 = vcmp.eq.s32.totalorder %v737, %v870
      %vm1082 = vcmp.eq.s32.totalorder %v738, %v870
      %vm1083 = vcmp.eq.s32.totalorder %v739, %v870
      %vm1084 = vcmp.eq.s32.totalorder %v740, %v870
      %vm1085 = vcmp.eq.s32.totalorder %v737, %v873
      %vm1086 = vcmp.eq.s32.totalorder %v738, %v873
      %vm1087 = vcmp.eq.s32.totalorder %v739, %v873
      %vm1088 = vcmp.eq.s32.totalorder %v740, %v873
      %vm1089 = vcmp.eq.s32.totalorder %v737, %v876
      %vm1090 = vcmp.eq.s32.totalorder %v738, %v876
      %vm1091 = vcmp.eq.s32.totalorder %v739, %v876
      %vm1092 = vcmp.eq.s32.totalorder %v740, %v876
      %vm1093 = vcmp.eq.s32.totalorder %v737, %v879
      %vm1094 = vcmp.eq.s32.totalorder %v738, %v879
      %vm1095 = vcmp.eq.s32.totalorder %v739, %v879
      %vm1096 = vcmp.eq.s32.totalorder %v740, %v879
      %vm1097 = vcmp.eq.s32.totalorder %v737, %v882
      %vm1098 = vcmp.eq.s32.totalorder %v738, %v882
      %vm1099 = vcmp.eq.s32.totalorder %v739, %v882
      %vm1100 = vcmp.eq.s32.totalorder %v740, %v882
      %vm1101 = vcmp.eq.s32.totalorder %v737, %v885
      %vm1102 = vcmp.eq.s32.totalorder %v738, %v885
      %vm1103 = vcmp.eq.s32.totalorder %v739, %v885
      %vm1104 = vcmp.eq.s32.totalorder %v740, %v885
      %vm1105 = vcmp.eq.s32.totalorder %v737, %v888
      %vm1106 = vcmp.eq.s32.totalorder %v738, %v888
      %vm1107 = vcmp.eq.s32.totalorder %v739, %v888
      %vm1108 = vcmp.eq.s32.totalorder %v740, %v888
      %vm1109 = vcmp.eq.s32.totalorder %v737, %v891
      %vm1110 = vcmp.eq.s32.totalorder %v738, %v891
      %vm1111 = vcmp.eq.s32.totalorder %v739, %v891
      %vm1112 = vcmp.eq.s32.totalorder %v740, %v891
      %vm1113 = vcmp.eq.s32.totalorder %v737, %v894
      %vm1114 = vcmp.eq.s32.totalorder %v738, %v894
      %vm1115 = vcmp.eq.s32.totalorder %v739, %v894
      %vm1116 = vcmp.eq.s32.totalorder %v740, %v894
      %vm1117 = vcmp.eq.s32.totalorder %v737, %v897
      %vm1118 = vcmp.eq.s32.totalorder %v738, %v897
      %vm1119 = vcmp.eq.s32.totalorder %v739, %v897
      %vm1120 = vcmp.eq.s32.totalorder %v740, %v897
      %vm1121 = vcmp.eq.s32.totalorder %v737, %v900
      %vm1122 = vcmp.eq.s32.totalorder %v738, %v900
      %vm1123 = vcmp.eq.s32.totalorder %v739, %v900
      %vm1124 = vcmp.eq.s32.totalorder %v740, %v900
      %vm1125 = vcmp.eq.s32.totalorder %v737, %v903
      %vm1126 = vcmp.eq.s32.totalorder %v738, %v903
      %vm1127 = vcmp.eq.s32.totalorder %v739, %v903
      %vm1128 = vcmp.eq.s32.totalorder %v740, %v903
      %vm1129 = vcmp.eq.s32.totalorder %v737, %v906
      %vm1130 = vcmp.eq.s32.totalorder %v738, %v906
      %vm1131 = vcmp.eq.s32.totalorder %v739, %v906
      %vm1132 = vcmp.eq.s32.totalorder %v740, %v906
      %vm1133 = vcmp.eq.s32.totalorder %v737, %v909
      %vm1134 = vcmp.eq.s32.totalorder %v738, %v909
      %vm1135 = vcmp.eq.s32.totalorder %v739, %v909
      %vm1136 = vcmp.eq.s32.totalorder %v740, %v909
      %vm1137 = vcmp.eq.s32.totalorder %v737, %v912
      %vm1138 = vcmp.eq.s32.totalorder %v738, %v912
      %vm1139 = vcmp.eq.s32.totalorder %v739, %v912
      %vm1140 = vcmp.eq.s32.totalorder %v740, %v912
      %vm1141 = vcmp.eq.s32.totalorder %v737, %v915
      %vm1142 = vcmp.eq.s32.totalorder %v738, %v915
      %vm1143 = vcmp.eq.s32.totalorder %v739, %v915
      %vm1144 = vcmp.eq.s32.totalorder %v740, %v915
      %vm1145 = vcmp.eq.s32.totalorder %v737, %v918
      %vm1146 = vcmp.eq.s32.totalorder %v738, %v918
      %vm1147 = vcmp.eq.s32.totalorder %v739, %v918
      %vm1148 = vcmp.eq.s32.totalorder %v740, %v918
      %vm1149 = vcmp.eq.s32.totalorder %v737, %v921
      %vm1150 = vcmp.eq.s32.totalorder %v738, %v921
      %vm1151 = vcmp.eq.s32.totalorder %v739, %v921
      %vm1152 = vcmp.eq.s32.totalorder %v740, %v921
      %vm1153 = vcmp.eq.s32.totalorder %v737, %v924
      %vm1154 = vcmp.eq.s32.totalorder %v738, %v924
      %vm1155 = vcmp.eq.s32.totalorder %v739, %v924
      %vm1156 = vcmp.eq.s32.totalorder %v740, %v924
      %vm1157 = vcmp.eq.s32.totalorder %v737, %v927
      %vm1158 = vcmp.eq.s32.totalorder %v738, %v927
      %vm1159 = vcmp.eq.s32.totalorder %v739, %v927
      %vm1160 = vcmp.eq.s32.totalorder %v740, %v927
      %vm1161 = vcmp.eq.s32.totalorder %v737, %v930
      %vm1162 = vcmp.eq.s32.totalorder %v738, %v930
      %vm1163 = vcmp.eq.s32.totalorder %v739, %v930
      %vm1164 = vcmp.eq.s32.totalorder %v740, %v930
      %vm1165 = vcmp.eq.s32.totalorder %v737, %v933
      %vm1166 = vcmp.eq.s32.totalorder %v738, %v933
      %vm1167 = vcmp.eq.s32.totalorder %v739, %v933
      %vm1168 = vcmp.eq.s32.totalorder %v740, %v933
      %vm1169 = vcmp.eq.s32.totalorder %v737, %v936
      %vm1170 = vcmp.eq.s32.totalorder %v738, %v936
      %vm1171 = vcmp.eq.s32.totalorder %v739, %v936
      %vm1172 = vcmp.eq.s32.totalorder %v740, %v936
      %vm1173 = vcmp.eq.s32.totalorder %v737, %v939
      %vm1174 = vcmp.eq.s32.totalorder %v738, %v939
      %vm1175 = vcmp.eq.s32.totalorder %v739, %v939
      %vm1176 = vcmp.eq.s32.totalorder %v740, %v939
      %vm1177 = vcmp.eq.s32.totalorder %v737, %v942
      %vm1178 = vcmp.eq.s32.totalorder %v738, %v942
      %vm1179 = vcmp.eq.s32.totalorder %v739, %v942
      %vm1180 = vcmp.eq.s32.totalorder %v740, %v942
      %vm1181 = vcmp.eq.s32.totalorder %v737, %v945
      %vm1182 = vcmp.eq.s32.totalorder %v738, %v945
      %vm1183 = vcmp.eq.s32.totalorder %v739, %v945
      %vm1184 = vcmp.eq.s32.totalorder %v740, %v945
      %vm1185 = vcmp.eq.s32.totalorder %v737, %v948
      %vm1186 = vcmp.eq.s32.totalorder %v738, %v948
      %vm1187 = vcmp.eq.s32.totalorder %v739, %v948
      %vm1188 = vcmp.eq.s32.totalorder %v740, %v948
      %vm1189 = vcmp.eq.s32.totalorder %v737, %v951
      %vm1190 = vcmp.eq.s32.totalorder %v738, %v951
      %vm1191 = vcmp.eq.s32.totalorder %v739, %v951
      %vm1192 = vcmp.eq.s32.totalorder %v740, %v951
      %vm1193 = vcmp.eq.s32.totalorder %v737, %v954
      %vm1194 = vcmp.eq.s32.totalorder %v738, %v954
      %vm1195 = vcmp.eq.s32.totalorder %v739, %v954
      %vm1196 = vcmp.eq.s32.totalorder %v740, %v954
      %vm1197 = vcmp.eq.s32.totalorder %v737, %v957
      %vm1198 = vcmp.eq.s32.totalorder %v738, %v957
      %vm1199 = vcmp.eq.s32.totalorder %v739, %v957
      %vm1200 = vcmp.eq.s32.totalorder %v740, %v957
      %vm1201 = vcmp.eq.s32.totalorder %v737, %v960
      %vm1202 = vcmp.eq.s32.totalorder %v738, %v960
      %vm1203 = vcmp.eq.s32.totalorder %v739, %v960
      %vm1204 = vcmp.eq.s32.totalorder %v740, %v960
      %vm1205 = vcmp.eq.s32.totalorder %v737, %v963
      %vm1206 = vcmp.eq.s32.totalorder %v738, %v963
      %vm1207 = vcmp.eq.s32.totalorder %v739, %v963
      %vm1208 = vcmp.eq.s32.totalorder %v740, %v963
      %vm1209 = vcmp.eq.s32.totalorder %v737, %v966
      %vm1210 = vcmp.eq.s32.totalorder %v738, %v966
      %vm1211 = vcmp.eq.s32.totalorder %v739, %v966
      %vm1212 = vcmp.eq.s32.totalorder %v740, %v966
      %vm1213 = vcmp.eq.s32.totalorder %v737, %v969
      %vm1214 = vcmp.eq.s32.totalorder %v738, %v969
      %vm1215 = vcmp.eq.s32.totalorder %v739, %v969
      %vm1216 = vcmp.eq.s32.totalorder %v740, %v969
      %vm1217 = vcmp.eq.s32.totalorder %v737, %v972
      %vm1218 = vcmp.eq.s32.totalorder %v738, %v972
      %vm1219 = vcmp.eq.s32.totalorder %v739, %v972
      %vm1220 = vcmp.eq.s32.totalorder %v740, %v972
      %vm1221 = vcmp.eq.s32.totalorder %v737, %v975
      %vm1222 = vcmp.eq.s32.totalorder %v738, %v975
      %vm1223 = vcmp.eq.s32.totalorder %v739, %v975
      %vm1224 = vcmp.eq.s32.totalorder %v740, %v975
      %vm1225 = vcmp.eq.s32.totalorder %v737, %v978
      %vm1226 = vcmp.eq.s32.totalorder %v738, %v978
      %vm1227 = vcmp.eq.s32.totalorder %v739, %v978
      %vm1228 = vcmp.eq.s32.totalorder %v740, %v978
      %vm1229 = vcmp.eq.s32.totalorder %v737, %v981
      %vm1230 = vcmp.eq.s32.totalorder %v738, %v981
      %vm1231 = vcmp.eq.s32.totalorder %v739, %v981
      %vm1232 = vcmp.eq.s32.totalorder %v740, %v981
      %vm1233 = vcmp.eq.s32.totalorder %v737, %v984
      %vm1234 = vcmp.eq.s32.totalorder %v738, %v984
      %vm1235 = vcmp.eq.s32.totalorder %v739, %v984
      %vm1236 = vcmp.eq.s32.totalorder %v740, %v984
      %vm1237 = vcmp.eq.s32.totalorder %v737, %v987
      %vm1238 = vcmp.eq.s32.totalorder %v738, %v987
      %vm1239 = vcmp.eq.s32.totalorder %v739, %v987
      %vm1240 = vcmp.eq.s32.totalorder %v740, %v987
      %vm1241 = vcmp.eq.s32.totalorder %v737, %v990
      %vm1242 = vcmp.eq.s32.totalorder %v738, %v990
      %vm1243 = vcmp.eq.s32.totalorder %v739, %v990
      %vm1244 = vcmp.eq.s32.totalorder %v740, %v990
      %vm1245 = vcmp.eq.s32.totalorder %v737, %v993
      %vm1246 = vcmp.eq.s32.totalorder %v738, %v993
      %vm1247 = vcmp.eq.s32.totalorder %v739, %v993
      %vm1248 = vcmp.eq.s32.totalorder %v740, %v993
      %vm1249 = vcmp.eq.s32.totalorder %v737, %v996
      %vm1250 = vcmp.eq.s32.totalorder %v738, %v996
      %vm1251 = vcmp.eq.s32.totalorder %v739, %v996
      %vm1252 = vcmp.eq.s32.totalorder %v740, %v996
      %v1253 = vld [vmem:[%s640] sm:$0xff]
      %v1254 = vld [vmem:[%s640 + $0x8] sm:$0xff]
      %v1255 = vld [vmem:[%s640 + $0x10] sm:$0xff]
      %v1256 = vld [vmem:[%s640 + $0x18] sm:$0xff]
      %v1257 = vld [vmem:[%s640 + $0x20] sm:$0xff]
      %v1258 = vld [vmem:[%s640 + $0x28] sm:$0xff]
      %v1259 = vld [vmem:[%s640 + $0x30] sm:$0xff]
      %v1260 = vld [vmem:[%s640 + $0x38] sm:$0xff]
      %v1261 = vld [vmem:[%s640 + $0x40] sm:$0xff]
      %v1262 = vld [vmem:[%s640 + $0x48] sm:$0xff]
      %v1263 = vld [vmem:[%s640 + $0x50] sm:$0xff]
      %v1264 = vld [vmem:[%s640 + $0x58] sm:$0xff]
      %v1265 = vld [vmem:[%s640 + $0x60] sm:$0xff]
      %v1266 = vld [vmem:[%s640 + $0x68] sm:$0xff]
      %v1267 = vld [vmem:[%s640 + $0x70] sm:$0xff]
      %v1268 = vld [vmem:[%s640 + $0x78] sm:$0xff]
      %v1269 = vld [vmem:[%s640 + $0x80] sm:$0xff]
      %v1270 = vld [vmem:[%s640 + $0x88] sm:$0xff]
      %v1271 = vld [vmem:[%s640 + $0x90] sm:$0xff]
      %v1272 = vld [vmem:[%s640 + $0x98] sm:$0xff]
      %v1273 = vld [vmem:[%s640 + $0xa0] sm:$0xff]
      %v1274 = vld [vmem:[%s640 + $0xa8] sm:$0xff]
      %v1275 = vld [vmem:[%s640 + $0xb0] sm:$0xff]
      %v1276 = vld [vmem:[%s640 + $0xb8] sm:$0xff]
      %v1277 = vld [vmem:[%s640 + $0xc0] sm:$0xff]
      %v1278 = vld [vmem:[%s640 + $0xc8] sm:$0xff]
      %v1279 = vld [vmem:[%s640 + $0xd0] sm:$0xff]
      %v1280 = vld [vmem:[%s640 + $0xd8] sm:$0xff]
      %v1281 = vld [vmem:[%s640 + $0xe0] sm:$0xff]
      %v1282 = vld [vmem:[%s640 + $0xe8] sm:$0xff]
      %v1283 = vld [vmem:[%s640 + $0xf0] sm:$0xff]
      %v1284 = vld [vmem:[%s640 + $0xf8] sm:$0xff]
      %v1285 = vld [vmem:[%s640 + $0x100] sm:$0xff]
      %v1286 = vld [vmem:[%s640 + $0x108] sm:$0xff]
      %v1287 = vld [vmem:[%s640 + $0x110] sm:$0xff]
      %v1288 = vld [vmem:[%s640 + $0x118] sm:$0xff]
      %v1289 = vld [vmem:[%s640 + $0x120] sm:$0xff]
      %v1290 = vld [vmem:[%s640 + $0x128] sm:$0xff]
      %v1291 = vld [vmem:[%s640 + $0x130] sm:$0xff]
      %v1292 = vld [vmem:[%s640 + $0x138] sm:$0xff]
      %v1293 = vld [vmem:[%s640 + $0x140] sm:$0xff]
      %v1294 = vld [vmem:[%s640 + $0x148] sm:$0xff]
      %v1295 = vld [vmem:[%s640 + $0x150] sm:$0xff]
      %v1296 = vld [vmem:[%s640 + $0x158] sm:$0xff]
      %v1297 = vld [vmem:[%s640 + $0x160] sm:$0xff]
      %v1298 = vld [vmem:[%s640 + $0x168] sm:$0xff]
      %v1299 = vld [vmem:[%s640 + $0x170] sm:$0xff]
      %v1300 = vld [vmem:[%s640 + $0x178] sm:$0xff]
      %v1301 = vld [vmem:[%s640 + $0x180] sm:$0xff]
      %v1302 = vld [vmem:[%s640 + $0x188] sm:$0xff]
      %v1303 = vld [vmem:[%s640 + $0x190] sm:$0xff]
      %v1304 = vld [vmem:[%s640 + $0x198] sm:$0xff]
      %v1305 = vld [vmem:[%s640 + $0x1a0] sm:$0xff]
      %v1306 = vld [vmem:[%s640 + $0x1a8] sm:$0xff]
      %v1307 = vld [vmem:[%s640 + $0x1b0] sm:$0xff]
      %v1308 = vld [vmem:[%s640 + $0x1b8] sm:$0xff]
      %v1309 = vld [vmem:[%s640 + $0x1c0] sm:$0xff]
      %v1310 = vld [vmem:[%s640 + $0x1c8] sm:$0xff]
      %v1311 = vld [vmem:[%s640 + $0x1d0] sm:$0xff]
      %v1312 = vld [vmem:[%s640 + $0x1d8] sm:$0xff]
      %v1313 = vld [vmem:[%s640 + $0x1e0] sm:$0xff]
      %v1314 = vld [vmem:[%s640 + $0x1e8] sm:$0xff]
      %v1315 = vld [vmem:[%s640 + $0x1f0] sm:$0xff]
      %v1316 = vld [vmem:[%s640 + $0x1f8] sm:$0xff]
      %v1317 = vadd.s32 %v1253, 200
      %v1318 = vadd.s32 %v1254, 200
      %v1319 = vadd.s32 %v1255, 200
      %v1320 = vadd.s32 %v1256, 200
      %v1321 = vadd.s32 %v1257, 200
      %v1322 = vadd.s32 %v1258, 200
      %v1323 = vadd.s32 %v1259, 200
      %v1324 = vadd.s32 %v1260, 200
      %v1325 = vadd.s32 %v1261, 200
      %v1326 = vadd.s32 %v1262, 200
      %v1327 = vadd.s32 %v1263, 200
      %v1328 = vadd.s32 %v1264, 200
      %v1329 = vadd.s32 %v1265, 200
      %v1330 = vadd.s32 %v1266, 200
      %v1331 = vadd.s32 %v1267, 200
      %v1332 = vadd.s32 %v1268, 200
      %v1333 = vadd.s32 %v1269, 200
      %v1334 = vadd.s32 %v1270, 200
      %v1335 = vadd.s32 %v1271, 200
      %v1336 = vadd.s32 %v1272, 200
      %v1337 = vadd.s32 %v1273, 200
      %v1338 = vadd.s32 %v1274, 200
      %v1339 = vadd.s32 %v1275, 200
      %v1340 = vadd.s32 %v1276, 200
      %v1341 = vadd.s32 %v1277, 200
      %v1342 = vadd.s32 %v1278, 200
      %v1343 = vadd.s32 %v1279, 200
      %v1344 = vadd.s32 %v1280, 200
      %v1345 = vadd.s32 %v1281, 200
      %v1346 = vadd.s32 %v1282, 200
      %v1347 = vadd.s32 %v1283, 200
      %v1348 = vadd.s32 %v1284, 200
      %v1349 = vadd.s32 %v1285, 200
      %v1350 = vadd.s32 %v1286, 200
      %v1351 = vadd.s32 %v1287, 200
      %v1352 = vadd.s32 %v1288, 200
      %v1353 = vadd.s32 %v1289, 200
      %v1354 = vadd.s32 %v1290, 200
      %v1355 = vadd.s32 %v1291, 200
      %v1356 = vadd.s32 %v1292, 200
      %v1357 = vadd.s32 %v1293, 200
      %v1358 = vadd.s32 %v1294, 200
      %v1359 = vadd.s32 %v1295, 200
      %v1360 = vadd.s32 %v1296, 200
      %v1361 = vadd.s32 %v1297, 200
      %v1362 = vadd.s32 %v1298, 200
      %v1363 = vadd.s32 %v1299, 200
      %v1364 = vadd.s32 %v1300, 200
      %v1365 = vadd.s32 %v1301, 200
      %v1366 = vadd.s32 %v1302, 200
      %v1367 = vadd.s32 %v1303, 200
      %v1368 = vadd.s32 %v1304, 200
      %v1369 = vadd.s32 %v1305, 200
      %v1370 = vadd.s32 %v1306, 200
      %v1371 = vadd.s32 %v1307, 200
      %v1372 = vadd.s32 %v1308, 200
      %v1373 = vadd.s32 %v1309, 200
      %v1374 = vadd.s32 %v1310, 200
      %v1375 = vadd.s32 %v1311, 200
      %v1376 = vadd.s32 %v1312, 200
      %v1377 = vadd.s32 %v1313, 200
      %v1378 = vadd.s32 %v1314, 200
      %v1379 = vadd.s32 %v1315, 200
      %v1380 = vadd.s32 %v1316, 200
      %1381 = vset.pattern.permute.xlu0 0
      %1382 = vperm.xlu0 %1381, %v1317
      %v1383 = vpop.permute.xlu0 %1382
      %1384 = vset.pattern.permute.xlu0 0
      %1385 = vperm.xlu0 %1384, %v1318
      %v1386 = vpop.permute.xlu0 %1385
      %1387 = vset.pattern.permute.xlu0 0
      %1388 = vperm.xlu0 %1387, %v1319
      %v1389 = vpop.permute.xlu0 %1388
      %1390 = vset.pattern.permute.xlu0 0
      %1391 = vperm.xlu0 %1390, %v1320
      %v1392 = vpop.permute.xlu0 %1391
      %1393 = vset.pattern.permute.xlu0 0
      %1394 = vperm.xlu0 %1393, %v1321
      %v1395 = vpop.permute.xlu0 %1394
      %1396 = vset.pattern.permute.xlu0 0
      %1397 = vperm.xlu0 %1396, %v1322
      %v1398 = vpop.permute.xlu0 %1397
      %1399 = vset.pattern.permute.xlu0 0
      %1400 = vperm.xlu0 %1399, %v1323
      %v1401 = vpop.permute.xlu0 %1400
      %1402 = vset.pattern.permute.xlu0 0
      %1403 = vperm.xlu0 %1402, %v1324
      %v1404 = vpop.permute.xlu0 %1403
      %1405 = vset.pattern.permute.xlu0 0
      %1406 = vperm.xlu0 %1405, %v1325
      %v1407 = vpop.permute.xlu0 %1406
      %1408 = vset.pattern.permute.xlu0 0
      %1409 = vperm.xlu0 %1408, %v1326
      %v1410 = vpop.permute.xlu0 %1409
      %1411 = vset.pattern.permute.xlu0 0
      %1412 = vperm.xlu0 %1411, %v1327
      %v1413 = vpop.permute.xlu0 %1412
      %1414 = vset.pattern.permute.xlu0 0
      %1415 = vperm.xlu0 %1414, %v1328
      %v1416 = vpop.permute.xlu0 %1415
      %1417 = vset.pattern.permute.xlu0 0
      %1418 = vperm.xlu0 %1417, %v1329
      %v1419 = vpop.permute.xlu0 %1418
      %1420 = vset.pattern.permute.xlu0 0
      %1421 = vperm.xlu0 %1420, %v1330
      %v1422 = vpop.permute.xlu0 %1421
      %1423 = vset.pattern.permute.xlu0 0
      %1424 = vperm.xlu0 %1423, %v1331
      %v1425 = vpop.permute.xlu0 %1424
      %1426 = vset.pattern.permute.xlu0 0
      %1427 = vperm.xlu0 %1426, %v1332
      %v1428 = vpop.permute.xlu0 %1427
      %1429 = vset.pattern.permute.xlu0 0
      %1430 = vperm.xlu0 %1429, %v1333
      %v1431 = vpop.permute.xlu0 %1430
      %1432 = vset.pattern.permute.xlu0 0
      %1433 = vperm.xlu0 %1432, %v1334
      %v1434 = vpop.permute.xlu0 %1433
      %1435 = vset.pattern.permute.xlu0 0
      %1436 = vperm.xlu0 %1435, %v1335
      %v1437 = vpop.permute.xlu0 %1436
      %1438 = vset.pattern.permute.xlu0 0
      %1439 = vperm.xlu0 %1438, %v1336
      %v1440 = vpop.permute.xlu0 %1439
      %1441 = vset.pattern.permute.xlu0 0
      %1442 = vperm.xlu0 %1441, %v1337
      %v1443 = vpop.permute.xlu0 %1442
      %1444 = vset.pattern.permute.xlu0 0
      %1445 = vperm.xlu0 %1444, %v1338
      %v1446 = vpop.permute.xlu0 %1445
      %1447 = vset.pattern.permute.xlu0 0
      %1448 = vperm.xlu0 %1447, %v1339
      %v1449 = vpop.permute.xlu0 %1448
      %1450 = vset.pattern.permute.xlu0 0
      %1451 = vperm.xlu0 %1450, %v1340
      %v1452 = vpop.permute.xlu0 %1451
      %1453 = vset.pattern.permute.xlu0 0
      %1454 = vperm.xlu0 %1453, %v1341
      %v1455 = vpop.permute.xlu0 %1454
      %1456 = vset.pattern.permute.xlu0 0
      %1457 = vperm.xlu0 %1456, %v1342
      %v1458 = vpop.permute.xlu0 %1457
      %1459 = vset.pattern.permute.xlu0 0
      %1460 = vperm.xlu0 %1459, %v1343
      %v1461 = vpop.permute.xlu0 %1460
      %1462 = vset.pattern.permute.xlu0 0
      %1463 = vperm.xlu0 %1462, %v1344
      %v1464 = vpop.permute.xlu0 %1463
      %1465 = vset.pattern.permute.xlu0 0
      %1466 = vperm.xlu0 %1465, %v1345
      %v1467 = vpop.permute.xlu0 %1466
      %1468 = vset.pattern.permute.xlu0 0
      %1469 = vperm.xlu0 %1468, %v1346
      %v1470 = vpop.permute.xlu0 %1469
      %1471 = vset.pattern.permute.xlu0 0
      %1472 = vperm.xlu0 %1471, %v1347
      %v1473 = vpop.permute.xlu0 %1472
      %1474 = vset.pattern.permute.xlu0 0
      %1475 = vperm.xlu0 %1474, %v1348
      %v1476 = vpop.permute.xlu0 %1475
      %1477 = vset.pattern.permute.xlu0 0
      %1478 = vperm.xlu0 %1477, %v1349
      %v1479 = vpop.permute.xlu0 %1478
      %1480 = vset.pattern.permute.xlu0 0
      %1481 = vperm.xlu0 %1480, %v1350
      %v1482 = vpop.permute.xlu0 %1481
      %1483 = vset.pattern.permute.xlu0 0
      %1484 = vperm.xlu0 %1483, %v1351
      %v1485 = vpop.permute.xlu0 %1484
      %1486 = vset.pattern.permute.xlu0 0
      %1487 = vperm.xlu0 %1486, %v1352
      %v1488 = vpop.permute.xlu0 %1487
      %1489 = vset.pattern.permute.xlu0 0
      %1490 = vperm.xlu0 %1489, %v1353
      %v1491 = vpop.permute.xlu0 %1490
      %1492 = vset.pattern.permute.xlu0 0
      %1493 = vperm.xlu0 %1492, %v1354
      %v1494 = vpop.permute.xlu0 %1493
      %1495 = vset.pattern.permute.xlu0 0
      %1496 = vperm.xlu0 %1495, %v1355
      %v1497 = vpop.permute.xlu0 %1496
      %1498 = vset.pattern.permute.xlu0 0
      %1499 = vperm.xlu0 %1498, %v1356
      %v1500 = vpop.permute.xlu0 %1499
      %1501 = vset.pattern.permute.xlu0 0
      %1502 = vperm.xlu0 %1501, %v1357
      %v1503 = vpop.permute.xlu0 %1502
      %1504 = vset.pattern.permute.xlu0 0
      %1505 = vperm.xlu0 %1504, %v1358
      %v1506 = vpop.permute.xlu0 %1505
      %1507 = vset.pattern.permute.xlu0 0
      %1508 = vperm.xlu0 %1507, %v1359
      %v1509 = vpop.permute.xlu0 %1508
      %1510 = vset.pattern.permute.xlu0 0
      %1511 = vperm.xlu0 %1510, %v1360
      %v1512 = vpop.permute.xlu0 %1511
      %1513 = vset.pattern.permute.xlu0 0
      %1514 = vperm.xlu0 %1513, %v1361
      %v1515 = vpop.permute.xlu0 %1514
      %1516 = vset.pattern.permute.xlu0 0
      %1517 = vperm.xlu0 %1516, %v1362
      %v1518 = vpop.permute.xlu0 %1517
      %1519 = vset.pattern.permute.xlu0 0
      %1520 = vperm.xlu0 %1519, %v1363
      %v1521 = vpop.permute.xlu0 %1520
      %1522 = vset.pattern.permute.xlu0 0
      %1523 = vperm.xlu0 %1522, %v1364
      %v1524 = vpop.permute.xlu0 %1523
      %1525 = vset.pattern.permute.xlu0 0
      %1526 = vperm.xlu0 %1525, %v1365
      %v1527 = vpop.permute.xlu0 %1526
      %1528 = vset.pattern.permute.xlu0 0
      %1529 = vperm.xlu0 %1528, %v1366
      %v1530 = vpop.permute.xlu0 %1529
      %1531 = vset.pattern.permute.xlu0 0
      %1532 = vperm.xlu0 %1531, %v1367
      %v1533 = vpop.permute.xlu0 %1532
      %1534 = vset.pattern.permute.xlu0 0
      %1535 = vperm.xlu0 %1534, %v1368
      %v1536 = vpop.permute.xlu0 %1535
      %1537 = vset.pattern.permute.xlu0 0
      %1538 = vperm.xlu0 %1537, %v1369
      %v1539 = vpop.permute.xlu0 %1538
      %1540 = vset.pattern.permute.xlu0 0
      %1541 = vperm.xlu0 %1540, %v1370
      %v1542 = vpop.permute.xlu0 %1541
      %1543 = vset.pattern.permute.xlu0 0
      %1544 = vperm.xlu0 %1543, %v1371
      %v1545 = vpop.permute.xlu0 %1544
      %1546 = vset.pattern.permute.xlu0 0
      %1547 = vperm.xlu0 %1546, %v1372
      %v1548 = vpop.permute.xlu0 %1547
      %1549 = vset.pattern.permute.xlu0 0
      %1550 = vperm.xlu0 %1549, %v1373
      %v1551 = vpop.permute.xlu0 %1550
      %1552 = vset.pattern.permute.xlu0 0
      %1553 = vperm.xlu0 %1552, %v1374
      %v1554 = vpop.permute.xlu0 %1553
      %1555 = vset.pattern.permute.xlu0 0
      %1556 = vperm.xlu0 %1555, %v1375
      %v1557 = vpop.permute.xlu0 %1556
      %1558 = vset.pattern.permute.xlu0 0
      %1559 = vperm.xlu0 %1558, %v1376
      %v1560 = vpop.permute.xlu0 %1559
      %1561 = vset.pattern.permute.xlu0 0
      %1562 = vperm.xlu0 %1561, %v1377
      %v1563 = vpop.permute.xlu0 %1562
      %1564 = vset.pattern.permute.xlu0 0
      %1565 = vperm.xlu0 %1564, %v1378
      %v1566 = vpop.permute.xlu0 %1565
      %1567 = vset.pattern.permute.xlu0 0
      %1568 = vperm.xlu0 %1567, %v1379
      %v1569 = vpop.permute.xlu0 %1568
      %1570 = vset.pattern.permute.xlu0 0
      %1571 = vperm.xlu0 %1570, %v1380
      %v1572 = vpop.permute.xlu0 %1571
      %vm1573 = vcmp.eq.s32.totalorder %v737, %v1383
      %vm1574 = vcmp.eq.s32.totalorder %v738, %v1383
      %vm1575 = vcmp.eq.s32.totalorder %v739, %v1383
      %vm1576 = vcmp.eq.s32.totalorder %v740, %v1383
      %vm1577 = vcmp.eq.s32.totalorder %v737, %v1386
      %vm1578 = vcmp.eq.s32.totalorder %v738, %v1386
      %vm1579 = vcmp.eq.s32.totalorder %v739, %v1386
      %vm1580 = vcmp.eq.s32.totalorder %v740, %v1386
      %vm1581 = vcmp.eq.s32.totalorder %v737, %v1389
      %vm1582 = vcmp.eq.s32.totalorder %v738, %v1389
      %vm1583 = vcmp.eq.s32.totalorder %v739, %v1389
      %vm1584 = vcmp.eq.s32.totalorder %v740, %v1389
      %vm1585 = vcmp.eq.s32.totalorder %v737, %v1392
      %vm1586 = vcmp.eq.s32.totalorder %v738, %v1392
      %vm1587 = vcmp.eq.s32.totalorder %v739, %v1392
      %vm1588 = vcmp.eq.s32.totalorder %v740, %v1392
      %vm1589 = vcmp.eq.s32.totalorder %v737, %v1395
      %vm1590 = vcmp.eq.s32.totalorder %v738, %v1395
      %vm1591 = vcmp.eq.s32.totalorder %v739, %v1395
      %vm1592 = vcmp.eq.s32.totalorder %v740, %v1395
      %vm1593 = vcmp.eq.s32.totalorder %v737, %v1398
      %vm1594 = vcmp.eq.s32.totalorder %v738, %v1398
      %vm1595 = vcmp.eq.s32.totalorder %v739, %v1398
      %vm1596 = vcmp.eq.s32.totalorder %v740, %v1398
      %vm1597 = vcmp.eq.s32.totalorder %v737, %v1401
      %vm1598 = vcmp.eq.s32.totalorder %v738, %v1401
      %vm1599 = vcmp.eq.s32.totalorder %v739, %v1401
      %vm1600 = vcmp.eq.s32.totalorder %v740, %v1401
      %vm1601 = vcmp.eq.s32.totalorder %v737, %v1404
      %vm1602 = vcmp.eq.s32.totalorder %v738, %v1404
      %vm1603 = vcmp.eq.s32.totalorder %v739, %v1404
      %vm1604 = vcmp.eq.s32.totalorder %v740, %v1404
      %vm1605 = vcmp.eq.s32.totalorder %v737, %v1407
      %vm1606 = vcmp.eq.s32.totalorder %v738, %v1407
      %vm1607 = vcmp.eq.s32.totalorder %v739, %v1407
      %vm1608 = vcmp.eq.s32.totalorder %v740, %v1407
      %vm1609 = vcmp.eq.s32.totalorder %v737, %v1410
      %vm1610 = vcmp.eq.s32.totalorder %v738, %v1410
      %vm1611 = vcmp.eq.s32.totalorder %v739, %v1410
      %vm1612 = vcmp.eq.s32.totalorder %v740, %v1410
      %vm1613 = vcmp.eq.s32.totalorder %v737, %v1413
      %vm1614 = vcmp.eq.s32.totalorder %v738, %v1413
      %vm1615 = vcmp.eq.s32.totalorder %v739, %v1413
      %vm1616 = vcmp.eq.s32.totalorder %v740, %v1413
      %vm1617 = vcmp.eq.s32.totalorder %v737, %v1416
      %vm1618 = vcmp.eq.s32.totalorder %v738, %v1416
      %vm1619 = vcmp.eq.s32.totalorder %v739, %v1416
      %vm1620 = vcmp.eq.s32.totalorder %v740, %v1416
      %vm1621 = vcmp.eq.s32.totalorder %v737, %v1419
      %vm1622 = vcmp.eq.s32.totalorder %v738, %v1419
      %vm1623 = vcmp.eq.s32.totalorder %v739, %v1419
      %vm1624 = vcmp.eq.s32.totalorder %v740, %v1419
      %vm1625 = vcmp.eq.s32.totalorder %v737, %v1422
      %vm1626 = vcmp.eq.s32.totalorder %v738, %v1422
      %vm1627 = vcmp.eq.s32.totalorder %v739, %v1422
      %vm1628 = vcmp.eq.s32.totalorder %v740, %v1422
      %vm1629 = vcmp.eq.s32.totalorder %v737, %v1425
      %vm1630 = vcmp.eq.s32.totalorder %v738, %v1425
      %vm1631 = vcmp.eq.s32.totalorder %v739, %v1425
      %vm1632 = vcmp.eq.s32.totalorder %v740, %v1425
      %vm1633 = vcmp.eq.s32.totalorder %v737, %v1428
      %vm1634 = vcmp.eq.s32.totalorder %v738, %v1428
      %vm1635 = vcmp.eq.s32.totalorder %v739, %v1428
      %vm1636 = vcmp.eq.s32.totalorder %v740, %v1428
      %vm1637 = vcmp.eq.s32.totalorder %v737, %v1431
      %vm1638 = vcmp.eq.s32.totalorder %v738, %v1431
      %vm1639 = vcmp.eq.s32.totalorder %v739, %v1431
      %vm1640 = vcmp.eq.s32.totalorder %v740, %v1431
      %vm1641 = vcmp.eq.s32.totalorder %v737, %v1434
      %vm1642 = vcmp.eq.s32.totalorder %v738, %v1434
      %vm1643 = vcmp.eq.s32.totalorder %v739, %v1434
      %vm1644 = vcmp.eq.s32.totalorder %v740, %v1434
      %vm1645 = vcmp.eq.s32.totalorder %v737, %v1437
      %vm1646 = vcmp.eq.s32.totalorder %v738, %v1437
      %vm1647 = vcmp.eq.s32.totalorder %v739, %v1437
      %vm1648 = vcmp.eq.s32.totalorder %v740, %v1437
      %vm1649 = vcmp.eq.s32.totalorder %v737, %v1440
      %vm1650 = vcmp.eq.s32.totalorder %v738, %v1440
      %vm1651 = vcmp.eq.s32.totalorder %v739, %v1440
      %vm1652 = vcmp.eq.s32.totalorder %v740, %v1440
      %vm1653 = vcmp.eq.s32.totalorder %v737, %v1443
      %vm1654 = vcmp.eq.s32.totalorder %v738, %v1443
      %vm1655 = vcmp.eq.s32.totalorder %v739, %v1443
      %vm1656 = vcmp.eq.s32.totalorder %v740, %v1443
      %vm1657 = vcmp.eq.s32.totalorder %v737, %v1446
      %vm1658 = vcmp.eq.s32.totalorder %v738, %v1446
      %vm1659 = vcmp.eq.s32.totalorder %v739, %v1446
      %vm1660 = vcmp.eq.s32.totalorder %v740, %v1446
      %vm1661 = vcmp.eq.s32.totalorder %v737, %v1449
      %vm1662 = vcmp.eq.s32.totalorder %v738, %v1449
      %vm1663 = vcmp.eq.s32.totalorder %v739, %v1449
      %vm1664 = vcmp.eq.s32.totalorder %v740, %v1449
      %vm1665 = vcmp.eq.s32.totalorder %v737, %v1452
      %vm1666 = vcmp.eq.s32.totalorder %v738, %v1452
      %vm1667 = vcmp.eq.s32.totalorder %v739, %v1452
      %vm1668 = vcmp.eq.s32.totalorder %v740, %v1452
      %vm1669 = vcmp.eq.s32.totalorder %v737, %v1455
      %vm1670 = vcmp.eq.s32.totalorder %v738, %v1455
      %vm1671 = vcmp.eq.s32.totalorder %v739, %v1455
      %vm1672 = vcmp.eq.s32.totalorder %v740, %v1455
      %vm1673 = vcmp.eq.s32.totalorder %v737, %v1458
      %vm1674 = vcmp.eq.s32.totalorder %v738, %v1458
      %vm1675 = vcmp.eq.s32.totalorder %v739, %v1458
      %vm1676 = vcmp.eq.s32.totalorder %v740, %v1458
      %vm1677 = vcmp.eq.s32.totalorder %v737, %v1461
      %vm1678 = vcmp.eq.s32.totalorder %v738, %v1461
      %vm1679 = vcmp.eq.s32.totalorder %v739, %v1461
      %vm1680 = vcmp.eq.s32.totalorder %v740, %v1461
      %vm1681 = vcmp.eq.s32.totalorder %v737, %v1464
      %vm1682 = vcmp.eq.s32.totalorder %v738, %v1464
      %vm1683 = vcmp.eq.s32.totalorder %v739, %v1464
      %vm1684 = vcmp.eq.s32.totalorder %v740, %v1464
      %vm1685 = vcmp.eq.s32.totalorder %v737, %v1467
      %vm1686 = vcmp.eq.s32.totalorder %v738, %v1467
      %vm1687 = vcmp.eq.s32.totalorder %v739, %v1467
      %vm1688 = vcmp.eq.s32.totalorder %v740, %v1467
      %vm1689 = vcmp.eq.s32.totalorder %v737, %v1470
      %vm1690 = vcmp.eq.s32.totalorder %v738, %v1470
      %vm1691 = vcmp.eq.s32.totalorder %v739, %v1470
      %vm1692 = vcmp.eq.s32.totalorder %v740, %v1470
      %vm1693 = vcmp.eq.s32.totalorder %v737, %v1473
      %vm1694 = vcmp.eq.s32.totalorder %v738, %v1473
      %vm1695 = vcmp.eq.s32.totalorder %v739, %v1473
      %vm1696 = vcmp.eq.s32.totalorder %v740, %v1473
      %vm1697 = vcmp.eq.s32.totalorder %v737, %v1476
      %vm1698 = vcmp.eq.s32.totalorder %v738, %v1476
      %vm1699 = vcmp.eq.s32.totalorder %v739, %v1476
      %vm1700 = vcmp.eq.s32.totalorder %v740, %v1476
      %vm1701 = vcmp.eq.s32.totalorder %v737, %v1479
      %vm1702 = vcmp.eq.s32.totalorder %v738, %v1479
      %vm1703 = vcmp.eq.s32.totalorder %v739, %v1479
      %vm1704 = vcmp.eq.s32.totalorder %v740, %v1479
      %vm1705 = vcmp.eq.s32.totalorder %v737, %v1482
      %vm1706 = vcmp.eq.s32.totalorder %v738, %v1482
      %vm1707 = vcmp.eq.s32.totalorder %v739, %v1482
      %vm1708 = vcmp.eq.s32.totalorder %v740, %v1482
      %vm1709 = vcmp.eq.s32.totalorder %v737, %v1485
      %vm1710 = vcmp.eq.s32.totalorder %v738, %v1485
      %vm1711 = vcmp.eq.s32.totalorder %v739, %v1485
      %vm1712 = vcmp.eq.s32.totalorder %v740, %v1485
      %vm1713 = vcmp.eq.s32.totalorder %v737, %v1488
      %vm1714 = vcmp.eq.s32.totalorder %v738, %v1488
      %vm1715 = vcmp.eq.s32.totalorder %v739, %v1488
      %vm1716 = vcmp.eq.s32.totalorder %v740, %v1488
      %vm1717 = vcmp.eq.s32.totalorder %v737, %v1491
      %vm1718 = vcmp.eq.s32.totalorder %v738, %v1491
      %vm1719 = vcmp.eq.s32.totalorder %v739, %v1491
      %vm1720 = vcmp.eq.s32.totalorder %v740, %v1491
      %vm1721 = vcmp.eq.s32.totalorder %v737, %v1494
      %vm1722 = vcmp.eq.s32.totalorder %v738, %v1494
      %vm1723 = vcmp.eq.s32.totalorder %v739, %v1494
      %vm1724 = vcmp.eq.s32.totalorder %v740, %v1494
      %vm1725 = vcmp.eq.s32.totalorder %v737, %v1497
      %vm1726 = vcmp.eq.s32.totalorder %v738, %v1497
      %vm1727 = vcmp.eq.s32.totalorder %v739, %v1497
      %vm1728 = vcmp.eq.s32.totalorder %v740, %v1497
      %vm1729 = vcmp.eq.s32.totalorder %v737, %v1500
      %vm1730 = vcmp.eq.s32.totalorder %v738, %v1500
      %vm1731 = vcmp.eq.s32.totalorder %v739, %v1500
      %vm1732 = vcmp.eq.s32.totalorder %v740, %v1500
      %vm1733 = vcmp.eq.s32.totalorder %v737, %v1503
      %vm1734 = vcmp.eq.s32.totalorder %v738, %v1503
      %vm1735 = vcmp.eq.s32.totalorder %v739, %v1503
      %vm1736 = vcmp.eq.s32.totalorder %v740, %v1503
      %vm1737 = vcmp.eq.s32.totalorder %v737, %v1506
      %vm1738 = vcmp.eq.s32.totalorder %v738, %v1506
      %vm1739 = vcmp.eq.s32.totalorder %v739, %v1506
      %vm1740 = vcmp.eq.s32.totalorder %v740, %v1506
      %vm1741 = vcmp.eq.s32.totalorder %v737, %v1509
      %vm1742 = vcmp.eq.s32.totalorder %v738, %v1509
      %vm1743 = vcmp.eq.s32.totalorder %v739, %v1509
      %vm1744 = vcmp.eq.s32.totalorder %v740, %v1509
      %vm1745 = vcmp.eq.s32.totalorder %v737, %v1512
      %vm1746 = vcmp.eq.s32.totalorder %v738, %v1512
      %vm1747 = vcmp.eq.s32.totalorder %v739, %v1512
      %vm1748 = vcmp.eq.s32.totalorder %v740, %v1512
      %vm1749 = vcmp.eq.s32.totalorder %v737, %v1515
      %vm1750 = vcmp.eq.s32.totalorder %v738, %v1515
      %vm1751 = vcmp.eq.s32.totalorder %v739, %v1515
      %vm1752 = vcmp.eq.s32.totalorder %v740, %v1515
      %vm1753 = vcmp.eq.s32.totalorder %v737, %v1518
      %vm1754 = vcmp.eq.s32.totalorder %v738, %v1518
      %vm1755 = vcmp.eq.s32.totalorder %v739, %v1518
      %vm1756 = vcmp.eq.s32.totalorder %v740, %v1518
      %vm1757 = vcmp.eq.s32.totalorder %v737, %v1521
      %vm1758 = vcmp.eq.s32.totalorder %v738, %v1521
      %vm1759 = vcmp.eq.s32.totalorder %v739, %v1521
      %vm1760 = vcmp.eq.s32.totalorder %v740, %v1521
      %vm1761 = vcmp.eq.s32.totalorder %v737, %v1524
      %vm1762 = vcmp.eq.s32.totalorder %v738, %v1524
      %vm1763 = vcmp.eq.s32.totalorder %v739, %v1524
      %vm1764 = vcmp.eq.s32.totalorder %v740, %v1524
      %vm1765 = vcmp.eq.s32.totalorder %v737, %v1527
      %vm1766 = vcmp.eq.s32.totalorder %v738, %v1527
      %vm1767 = vcmp.eq.s32.totalorder %v739, %v1527
      %vm1768 = vcmp.eq.s32.totalorder %v740, %v1527
      %vm1769 = vcmp.eq.s32.totalorder %v737, %v1530
      %vm1770 = vcmp.eq.s32.totalorder %v738, %v1530
      %vm1771 = vcmp.eq.s32.totalorder %v739, %v1530
      %vm1772 = vcmp.eq.s32.totalorder %v740, %v1530
      %vm1773 = vcmp.eq.s32.totalorder %v737, %v1533
      %vm1774 = vcmp.eq.s32.totalorder %v738, %v1533
      %vm1775 = vcmp.eq.s32.totalorder %v739, %v1533
      %vm1776 = vcmp.eq.s32.totalorder %v740, %v1533
      %vm1777 = vcmp.eq.s32.totalorder %v737, %v1536
      %vm1778 = vcmp.eq.s32.totalorder %v738, %v1536
      %vm1779 = vcmp.eq.s32.totalorder %v739, %v1536
      %vm1780 = vcmp.eq.s32.totalorder %v740, %v1536
      %vm1781 = vcmp.eq.s32.totalorder %v737, %v1539
      %vm1782 = vcmp.eq.s32.totalorder %v738, %v1539
      %vm1783 = vcmp.eq.s32.totalorder %v739, %v1539
      %vm1784 = vcmp.eq.s32.totalorder %v740, %v1539
      %vm1785 = vcmp.eq.s32.totalorder %v737, %v1542
      %vm1786 = vcmp.eq.s32.totalorder %v738, %v1542
      %vm1787 = vcmp.eq.s32.totalorder %v739, %v1542
      %vm1788 = vcmp.eq.s32.totalorder %v740, %v1542
      %vm1789 = vcmp.eq.s32.totalorder %v737, %v1545
      %vm1790 = vcmp.eq.s32.totalorder %v738, %v1545
      %vm1791 = vcmp.eq.s32.totalorder %v739, %v1545
      %vm1792 = vcmp.eq.s32.totalorder %v740, %v1545
      %vm1793 = vcmp.eq.s32.totalorder %v737, %v1548
      %vm1794 = vcmp.eq.s32.totalorder %v738, %v1548
      %vm1795 = vcmp.eq.s32.totalorder %v739, %v1548
      %vm1796 = vcmp.eq.s32.totalorder %v740, %v1548
      %vm1797 = vcmp.eq.s32.totalorder %v737, %v1551
      %vm1798 = vcmp.eq.s32.totalorder %v738, %v1551
      %vm1799 = vcmp.eq.s32.totalorder %v739, %v1551
      %vm1800 = vcmp.eq.s32.totalorder %v740, %v1551
      %vm1801 = vcmp.eq.s32.totalorder %v737, %v1554
      %vm1802 = vcmp.eq.s32.totalorder %v738, %v1554
      %vm1803 = vcmp.eq.s32.totalorder %v739, %v1554
      %vm1804 = vcmp.eq.s32.totalorder %v740, %v1554
      %vm1805 = vcmp.eq.s32.totalorder %v737, %v1557
      %vm1806 = vcmp.eq.s32.totalorder %v738, %v1557
      %vm1807 = vcmp.eq.s32.totalorder %v739, %v1557
      %vm1808 = vcmp.eq.s32.totalorder %v740, %v1557
      %vm1809 = vcmp.eq.s32.totalorder %v737, %v1560
      %vm1810 = vcmp.eq.s32.totalorder %v738, %v1560
      %vm1811 = vcmp.eq.s32.totalorder %v739, %v1560
      %vm1812 = vcmp.eq.s32.totalorder %v740, %v1560
      %vm1813 = vcmp.eq.s32.totalorder %v737, %v1563
      %vm1814 = vcmp.eq.s32.totalorder %v738, %v1563
      %vm1815 = vcmp.eq.s32.totalorder %v739, %v1563
      %vm1816 = vcmp.eq.s32.totalorder %v740, %v1563
      %vm1817 = vcmp.eq.s32.totalorder %v737, %v1566
      %vm1818 = vcmp.eq.s32.totalorder %v738, %v1566
      %vm1819 = vcmp.eq.s32.totalorder %v739, %v1566
      %vm1820 = vcmp.eq.s32.totalorder %v740, %v1566
      %vm1821 = vcmp.eq.s32.totalorder %v737, %v1569
      %vm1822 = vcmp.eq.s32.totalorder %v738, %v1569
      %vm1823 = vcmp.eq.s32.totalorder %v739, %v1569
      %vm1824 = vcmp.eq.s32.totalorder %v740, %v1569
      %vm1825 = vcmp.eq.s32.totalorder %v737, %v1572
      %vm1826 = vcmp.eq.s32.totalorder %v738, %v1572
      %vm1827 = vcmp.eq.s32.totalorder %v739, %v1572
      %vm1828 = vcmp.eq.s32.totalorder %v740, %v1572
      %vm1829 = vmor %vm997, %vm1573
      %vm1830 = vmor %vm998, %vm1574
      %vm1831 = vmor %vm999, %vm1575
      %vm1832 = vmor %vm1000, %vm1576
      %vm1833 = vmor %vm1001, %vm1577
      %vm1834 = vmor %vm1002, %vm1578
      %vm1835 = vmor %vm1003, %vm1579
      %vm1836 = vmor %vm1004, %vm1580
      %vm1837 = vmor %vm1005, %vm1581
      %vm1838 = vmor %vm1006, %vm1582
      %vm1839 = vmor %vm1007, %vm1583
      %vm1840 = vmor %vm1008, %vm1584
      %vm1841 = vmor %vm1009, %vm1585
      %vm1842 = vmor %vm1010, %vm1586
      %vm1843 = vmor %vm1011, %vm1587
      %vm1844 = vmor %vm1012, %vm1588
      %vm1845 = vmor %vm1013, %vm1589
      %vm1846 = vmor %vm1014, %vm1590
      %vm1847 = vmor %vm1015, %vm1591
      %vm1848 = vmor %vm1016, %vm1592
      %vm1849 = vmor %vm1017, %vm1593
      %vm1850 = vmor %vm1018, %vm1594
      %vm1851 = vmor %vm1019, %vm1595
      %vm1852 = vmor %vm1020, %vm1596
      %vm1853 = vmor %vm1021, %vm1597
      %vm1854 = vmor %vm1022, %vm1598
      %vm1855 = vmor %vm1023, %vm1599
      %vm1856 = vmor %vm1024, %vm1600
      %vm1857 = vmor %vm1025, %vm1601
      %vm1858 = vmor %vm1026, %vm1602
      %vm1859 = vmor %vm1027, %vm1603
      %vm1860 = vmor %vm1028, %vm1604
      %vm1861 = vmor %vm1029, %vm1605
      %vm1862 = vmor %vm1030, %vm1606
      %vm1863 = vmor %vm1031, %vm1607
      %vm1864 = vmor %vm1032, %vm1608
      %vm1865 = vmor %vm1033, %vm1609
      %vm1866 = vmor %vm1034, %vm1610
      %vm1867 = vmor %vm1035, %vm1611
      %vm1868 = vmor %vm1036, %vm1612
      %vm1869 = vmor %vm1037, %vm1613
      %vm1870 = vmor %vm1038, %vm1614
      %vm1871 = vmor %vm1039, %vm1615
      %vm1872 = vmor %vm1040, %vm1616
      %vm1873 = vmor %vm1041, %vm1617
      %vm1874 = vmor %vm1042, %vm1618
      %vm1875 = vmor %vm1043, %vm1619
      %vm1876 = vmor %vm1044, %vm1620
      %vm1877 = vmor %vm1045, %vm1621
      %vm1878 = vmor %vm1046, %vm1622
      %vm1879 = vmor %vm1047, %vm1623
      %vm1880 = vmor %vm1048, %vm1624
      %vm1881 = vmor %vm1049, %vm1625
      %vm1882 = vmor %vm1050, %vm1626
      %vm1883 = vmor %vm1051, %vm1627
      %vm1884 = vmor %vm1052, %vm1628
      %vm1885 = vmor %vm1053, %vm1629
      %vm1886 = vmor %vm1054, %vm1630
      %vm1887 = vmor %vm1055, %vm1631
      %vm1888 = vmor %vm1056, %vm1632
      %vm1889 = vmor %vm1057, %vm1633
      %vm1890 = vmor %vm1058, %vm1634
      %vm1891 = vmor %vm1059, %vm1635
      %vm1892 = vmor %vm1060, %vm1636
      %vm1893 = vmor %vm1061, %vm1637
      %vm1894 = vmor %vm1062, %vm1638
      %vm1895 = vmor %vm1063, %vm1639
      %vm1896 = vmor %vm1064, %vm1640
      %vm1897 = vmor %vm1065, %vm1641
      %vm1898 = vmor %vm1066, %vm1642
      %vm1899 = vmor %vm1067, %vm1643
      %vm1900 = vmor %vm1068, %vm1644
      %vm1901 = vmor %vm1069, %vm1645
      %vm1902 = vmor %vm1070, %vm1646
      %vm1903 = vmor %vm1071, %vm1647
      %vm1904 = vmor %vm1072, %vm1648
      %vm1905 = vmor %vm1073, %vm1649
      %vm1906 = vmor %vm1074, %vm1650
      %vm1907 = vmor %vm1075, %vm1651
      %vm1908 = vmor %vm1076, %vm1652
      %vm1909 = vmor %vm1077, %vm1653
      %vm1910 = vmor %vm1078, %vm1654
      %vm1911 = vmor %vm1079, %vm1655
      %vm1912 = vmor %vm1080, %vm1656
      %vm1913 = vmor %vm1081, %vm1657
      %vm1914 = vmor %vm1082, %vm1658
      %vm1915 = vmor %vm1083, %vm1659
      %vm1916 = vmor %vm1084, %vm1660
      %vm1917 = vmor %vm1085, %vm1661
      %vm1918 = vmor %vm1086, %vm1662
      %vm1919 = vmor %vm1087, %vm1663
      %vm1920 = vmor %vm1088, %vm1664
      %vm1921 = vmor %vm1089, %vm1665
      %vm1922 = vmor %vm1090, %vm1666
      %vm1923 = vmor %vm1091, %vm1667
      %vm1924 = vmor %vm1092, %vm1668
      %vm1925 = vmor %vm1093, %vm1669
      %vm1926 = vmor %vm1094, %vm1670
      %vm1927 = vmor %vm1095, %vm1671
      %vm1928 = vmor %vm1096, %vm1672
      %vm1929 = vmor %vm1097, %vm1673
      %vm1930 = vmor %vm1098, %vm1674
      %vm1931 = vmor %vm1099, %vm1675
      %vm1932 = vmor %vm1100, %vm1676
      %vm1933 = vmor %vm1101, %vm1677
      %vm1934 = vmor %vm1102, %vm1678
      %vm1935 = vmor %vm1103, %vm1679
      %vm1936 = vmor %vm1104, %vm1680
      %vm1937 = vmor %vm1105, %vm1681
      %vm1938 = vmor %vm1106, %vm1682
      %vm1939 = vmor %vm1107, %vm1683
      %vm1940 = vmor %vm1108, %vm1684
      %vm1941 = vmor %vm1109, %vm1685
      %vm1942 = vmor %vm1110, %vm1686
      %vm1943 = vmor %vm1111, %vm1687
      %vm1944 = vmor %vm1112, %vm1688
      %vm1945 = vmor %vm1113, %vm1689
      %vm1946 = vmor %vm1114, %vm1690
      %vm1947 = vmor %vm1115, %vm1691
      %vm1948 = vmor %vm1116, %vm1692
      %vm1949 = vmor %vm1117, %vm1693
      %vm1950 = vmor %vm1118, %vm1694
      %vm1951 = vmor %vm1119, %vm1695
      %vm1952 = vmor %vm1120, %vm1696
      %vm1953 = vmor %vm1121, %vm1697
      %vm1954 = vmor %vm1122, %vm1698
      %vm1955 = vmor %vm1123, %vm1699
      %vm1956 = vmor %vm1124, %vm1700
      %vm1957 = vmor %vm1125, %vm1701
      %vm1958 = vmor %vm1126, %vm1702
      %vm1959 = vmor %vm1127, %vm1703
      %vm1960 = vmor %vm1128, %vm1704
      %vm1961 = vmor %vm1129, %vm1705
      %vm1962 = vmor %vm1130, %vm1706
      %vm1963 = vmor %vm1131, %vm1707
      %vm1964 = vmor %vm1132, %vm1708
      %vm1965 = vmor %vm1133, %vm1709
      %vm1966 = vmor %vm1134, %vm1710
      %vm1967 = vmor %vm1135, %vm1711
      %vm1968 = vmor %vm1136, %vm1712
      %vm1969 = vmor %vm1137, %vm1713
      %vm1970 = vmor %vm1138, %vm1714
      %vm1971 = vmor %vm1139, %vm1715
      %vm1972 = vmor %vm1140, %vm1716
      %vm1973 = vmor %vm1141, %vm1717
      %vm1974 = vmor %vm1142, %vm1718
      %vm1975 = vmor %vm1143, %vm1719
      %vm1976 = vmor %vm1144, %vm1720
      %vm1977 = vmor %vm1145, %vm1721
      %vm1978 = vmor %vm1146, %vm1722
      %vm1979 = vmor %vm1147, %vm1723
      %vm1980 = vmor %vm1148, %vm1724
      %vm1981 = vmor %vm1149, %vm1725
      %vm1982 = vmor %vm1150, %vm1726
      %vm1983 = vmor %vm1151, %vm1727
      %vm1984 = vmor %vm1152, %vm1728
      %vm1985 = vmor %vm1153, %vm1729
      %vm1986 = vmor %vm1154, %vm1730
      %vm1987 = vmor %vm1155, %vm1731
      %vm1988 = vmor %vm1156, %vm1732
      %vm1989 = vmor %vm1157, %vm1733
      %vm1990 = vmor %vm1158, %vm1734
      %vm1991 = vmor %vm1159, %vm1735
      %vm1992 = vmor %vm1160, %vm1736
      %vm1993 = vmor %vm1161, %vm1737
      %vm1994 = vmor %vm1162, %vm1738
      %vm1995 = vmor %vm1163, %vm1739
      %vm1996 = vmor %vm1164, %vm1740
      %vm1997 = vmor %vm1165, %vm1741
      %vm1998 = vmor %vm1166, %vm1742
      %vm1999 = vmor %vm1167, %vm1743
      %vm2000 = vmor %vm1168, %vm1744
      %vm2001 = vmor %vm1169, %vm1745
      %vm2002 = vmor %vm1170, %vm1746
      %vm2003 = vmor %vm1171, %vm1747
      %vm2004 = vmor %vm1172, %vm1748
      %vm2005 = vmor %vm1173, %vm1749
      %vm2006 = vmor %vm1174, %vm1750
      %vm2007 = vmor %vm1175, %vm1751
      %vm2008 = vmor %vm1176, %vm1752
      %vm2009 = vmor %vm1177, %vm1753
      %vm2010 = vmor %vm1178, %vm1754
      %vm2011 = vmor %vm1179, %vm1755
      %vm2012 = vmor %vm1180, %vm1756
      %vm2013 = vmor %vm1181, %vm1757
      %vm2014 = vmor %vm1182, %vm1758
      %vm2015 = vmor %vm1183, %vm1759
      %vm2016 = vmor %vm1184, %vm1760
      %vm2017 = vmor %vm1185, %vm1761
      %vm2018 = vmor %vm1186, %vm1762
      %vm2019 = vmor %vm1187, %vm1763
      %vm2020 = vmor %vm1188, %vm1764
      %vm2021 = vmor %vm1189, %vm1765
      %vm2022 = vmor %vm1190, %vm1766
      %vm2023 = vmor %vm1191, %vm1767
      %vm2024 = vmor %vm1192, %vm1768
      %vm2025 = vmor %vm1193, %vm1769
      %vm2026 = vmor %vm1194, %vm1770
      %vm2027 = vmor %vm1195, %vm1771
      %vm2028 = vmor %vm1196, %vm1772
      %vm2029 = vmor %vm1197, %vm1773
      %vm2030 = vmor %vm1198, %vm1774
      %vm2031 = vmor %vm1199, %vm1775
      %vm2032 = vmor %vm1200, %vm1776
      %vm2033 = vmor %vm1201, %vm1777
      %vm2034 = vmor %vm1202, %vm1778
      %vm2035 = vmor %vm1203, %vm1779
      %vm2036 = vmor %vm1204, %vm1780
      %vm2037 = vmor %vm1205, %vm1781
      %vm2038 = vmor %vm1206, %vm1782
      %vm2039 = vmor %vm1207, %vm1783
      %vm2040 = vmor %vm1208, %vm1784
      %vm2041 = vmor %vm1209, %vm1785
      %vm2042 = vmor %vm1210, %vm1786
      %vm2043 = vmor %vm1211, %vm1787
      %vm2044 = vmor %vm1212, %vm1788
      %vm2045 = vmor %vm1213, %vm1789
      %vm2046 = vmor %vm1214, %vm1790
      %vm2047 = vmor %vm1215, %vm1791
      %vm2048 = vmor %vm1216, %vm1792
      %vm2049 = vmor %vm1217, %vm1793
      %vm2050 = vmor %vm1218, %vm1794
      %vm2051 = vmor %vm1219, %vm1795
      %vm2052 = vmor %vm1220, %vm1796
      %vm2053 = vmor %vm1221, %vm1797
      %vm2054 = vmor %vm1222, %vm1798
      %vm2055 = vmor %vm1223, %vm1799
      %vm2056 = vmor %vm1224, %vm1800
      %vm2057 = vmor %vm1225, %vm1801
      %vm2058 = vmor %vm1226, %vm1802
      %vm2059 = vmor %vm1227, %vm1803
      %vm2060 = vmor %vm1228, %vm1804
      %vm2061 = vmor %vm1229, %vm1805
      %vm2062 = vmor %vm1230, %vm1806
      %vm2063 = vmor %vm1231, %vm1807
      %vm2064 = vmor %vm1232, %vm1808
      %vm2065 = vmor %vm1233, %vm1809
      %vm2066 = vmor %vm1234, %vm1810
      %vm2067 = vmor %vm1235, %vm1811
      %vm2068 = vmor %vm1236, %vm1812
      %vm2069 = vmor %vm1237, %vm1813
      %vm2070 = vmor %vm1238, %vm1814
      %vm2071 = vmor %vm1239, %vm1815
      %vm2072 = vmor %vm1240, %vm1816
      %vm2073 = vmor %vm1241, %vm1817
      %vm2074 = vmor %vm1242, %vm1818
      %vm2075 = vmor %vm1243, %vm1819
      %vm2076 = vmor %vm1244, %vm1820
      %vm2077 = vmor %vm1245, %vm1821
      %vm2078 = vmor %vm1246, %vm1822
      %vm2079 = vmor %vm1247, %vm1823
      %vm2080 = vmor %vm1248, %vm1824
      %vm2081 = vmor %vm1249, %vm1825
      %vm2082 = vmor %vm1250, %vm1826
      %vm2083 = vmor %vm1251, %vm1827
      %vm2084 = vmor %vm1252, %vm1828
      %v2085 = vsel %vm1829, 1, 0
      %v2086 = vsel %vm1830, 1, 0
      %v2087 = vsel %vm1831, 1, 0
      %v2088 = vsel %vm1832, 1, 0
      %v2089 = vsel %vm1833, 1, 0
      %v2090 = vsel %vm1834, 1, 0
      %v2091 = vsel %vm1835, 1, 0
      %v2092 = vsel %vm1836, 1, 0
      %v2093 = vsel %vm1837, 1, 0
      %v2094 = vsel %vm1838, 1, 0
      %v2095 = vsel %vm1839, 1, 0
      %v2096 = vsel %vm1840, 1, 0
      %v2097 = vsel %vm1841, 1, 0
      %v2098 = vsel %vm1842, 1, 0
      %v2099 = vsel %vm1843, 1, 0
      %v2100 = vsel %vm1844, 1, 0
      %v2101 = vsel %vm1845, 1, 0
      %v2102 = vsel %vm1846, 1, 0
      %v2103 = vsel %vm1847, 1, 0
      %v2104 = vsel %vm1848, 1, 0
      %v2105 = vsel %vm1849, 1, 0
      %v2106 = vsel %vm1850, 1, 0
      %v2107 = vsel %vm1851, 1, 0
      %v2108 = vsel %vm1852, 1, 0
      %v2109 = vsel %vm1853, 1, 0
      %v2110 = vsel %vm1854, 1, 0
      %v2111 = vsel %vm1855, 1, 0
      %v2112 = vsel %vm1856, 1, 0
      %v2113 = vsel %vm1857, 1, 0
      %v2114 = vsel %vm1858, 1, 0
      %v2115 = vsel %vm1859, 1, 0
      %v2116 = vsel %vm1860, 1, 0
      %v2117 = vsel %vm1861, 1, 0
      %v2118 = vsel %vm1862, 1, 0
      %v2119 = vsel %vm1863, 1, 0
      %v2120 = vsel %vm1864, 1, 0
      %v2121 = vsel %vm1865, 1, 0
      %v2122 = vsel %vm1866, 1, 0
      %v2123 = vsel %vm1867, 1, 0
      %v2124 = vsel %vm1868, 1, 0
      %v2125 = vsel %vm1869, 1, 0
      %v2126 = vsel %vm1870, 1, 0
      %v2127 = vsel %vm1871, 1, 0
      %v2128 = vsel %vm1872, 1, 0
      %v2129 = vsel %vm1873, 1, 0
      %v2130 = vsel %vm1874, 1, 0
      %v2131 = vsel %vm1875, 1, 0
      %v2132 = vsel %vm1876, 1, 0
      %v2133 = vsel %vm1877, 1, 0
      %v2134 = vsel %vm1878, 1, 0
      %v2135 = vsel %vm1879, 1, 0
      %v2136 = vsel %vm1880, 1, 0
      %v2137 = vsel %vm1881, 1, 0
      %v2138 = vsel %vm1882, 1, 0
      %v2139 = vsel %vm1883, 1, 0
      %v2140 = vsel %vm1884, 1, 0
      %v2141 = vsel %vm1885, 1, 0
      %v2142 = vsel %vm1886, 1, 0
      %v2143 = vsel %vm1887, 1, 0
      %v2144 = vsel %vm1888, 1, 0
      %v2145 = vsel %vm1889, 1, 0
      %v2146 = vsel %vm1890, 1, 0
      %v2147 = vsel %vm1891, 1, 0
      %v2148 = vsel %vm1892, 1, 0
      %v2149 = vsel %vm1893, 1, 0
      %v2150 = vsel %vm1894, 1, 0
      %v2151 = vsel %vm1895, 1, 0
      %v2152 = vsel %vm1896, 1, 0
      %v2153 = vsel %vm1897, 1, 0
      %v2154 = vsel %vm1898, 1, 0
      %v2155 = vsel %vm1899, 1, 0
      %v2156 = vsel %vm1900, 1, 0
      %v2157 = vsel %vm1901, 1, 0
      %v2158 = vsel %vm1902, 1, 0
      %v2159 = vsel %vm1903, 1, 0
      %v2160 = vsel %vm1904, 1, 0
      %v2161 = vsel %vm1905, 1, 0
      %v2162 = vsel %vm1906, 1, 0
      %v2163 = vsel %vm1907, 1, 0
      %v2164 = vsel %vm1908, 1, 0
      %v2165 = vsel %vm1909, 1, 0
      %v2166 = vsel %vm1910, 1, 0
      %v2167 = vsel %vm1911, 1, 0
      %v2168 = vsel %vm1912, 1, 0
      %v2169 = vsel %vm1913, 1, 0
      %v2170 = vsel %vm1914, 1, 0
      %v2171 = vsel %vm1915, 1, 0
      %v2172 = vsel %vm1916, 1, 0
      %v2173 = vsel %vm1917, 1, 0
      %v2174 = vsel %vm1918, 1, 0
      %v2175 = vsel %vm1919, 1, 0
      %v2176 = vsel %vm1920, 1, 0
      %v2177 = vsel %vm1921, 1, 0
      %v2178 = vsel %vm1922, 1, 0
      %v2179 = vsel %vm1923, 1, 0
      %v2180 = vsel %vm1924, 1, 0
      %v2181 = vsel %vm1925, 1, 0
      %v2182 = vsel %vm1926, 1, 0
      %v2183 = vsel %vm1927, 1, 0
      %v2184 = vsel %vm1928, 1, 0
      %v2185 = vsel %vm1929, 1, 0
      %v2186 = vsel %vm1930, 1, 0
      %v2187 = vsel %vm1931, 1, 0
      %v2188 = vsel %vm1932, 1, 0
      %v2189 = vsel %vm1933, 1, 0
      %v2190 = vsel %vm1934, 1, 0
      %v2191 = vsel %vm1935, 1, 0
      %v2192 = vsel %vm1936, 1, 0
      %v2193 = vsel %vm1937, 1, 0
      %v2194 = vsel %vm1938, 1, 0
      %v2195 = vsel %vm1939, 1, 0
      %v2196 = vsel %vm1940, 1, 0
      %v2197 = vsel %vm1941, 1, 0
      %v2198 = vsel %vm1942, 1, 0
      %v2199 = vsel %vm1943, 1, 0
      %v2200 = vsel %vm1944, 1, 0
      %v2201 = vsel %vm1945, 1, 0
      %v2202 = vsel %vm1946, 1, 0
      %v2203 = vsel %vm1947, 1, 0
      %v2204 = vsel %vm1948, 1, 0
      %v2205 = vsel %vm1949, 1, 0
      %v2206 = vsel %vm1950, 1, 0
      %v2207 = vsel %vm1951, 1, 0
      %v2208 = vsel %vm1952, 1, 0
      %v2209 = vsel %vm1953, 1, 0
      %v2210 = vsel %vm1954, 1, 0
      %v2211 = vsel %vm1955, 1, 0
      %v2212 = vsel %vm1956, 1, 0
      %v2213 = vsel %vm1957, 1, 0
      %v2214 = vsel %vm1958, 1, 0
      %v2215 = vsel %vm1959, 1, 0
      %v2216 = vsel %vm1960, 1, 0
      %v2217 = vsel %vm1961, 1, 0
      %v2218 = vsel %vm1962, 1, 0
      %v2219 = vsel %vm1963, 1, 0
      %v2220 = vsel %vm1964, 1, 0
      %v2221 = vsel %vm1965, 1, 0
      %v2222 = vsel %vm1966, 1, 0
      %v2223 = vsel %vm1967, 1, 0
      %v2224 = vsel %vm1968, 1, 0
      %v2225 = vsel %vm1969, 1, 0
      %v2226 = vsel %vm1970, 1, 0
      %v2227 = vsel %vm1971, 1, 0
      %v2228 = vsel %vm1972, 1, 0
      %v2229 = vsel %vm1973, 1, 0
      %v2230 = vsel %vm1974, 1, 0
      %v2231 = vsel %vm1975, 1, 0
      %v2232 = vsel %vm1976, 1, 0
      %v2233 = vsel %vm1977, 1, 0
      %v2234 = vsel %vm1978, 1, 0
      %v2235 = vsel %vm1979, 1, 0
      %v2236 = vsel %vm1980, 1, 0
      %v2237 = vsel %vm1981, 1, 0
      %v2238 = vsel %vm1982, 1, 0
      %v2239 = vsel %vm1983, 1, 0
      %v2240 = vsel %vm1984, 1, 0
      %v2241 = vsel %vm1985, 1, 0
      %v2242 = vsel %vm1986, 1, 0
      %v2243 = vsel %vm1987, 1, 0
      %v2244 = vsel %vm1988, 1, 0
      %v2245 = vsel %vm1989, 1, 0
      %v2246 = vsel %vm1990, 1, 0
      %v2247 = vsel %vm1991, 1, 0
      %v2248 = vsel %vm1992, 1, 0
      %v2249 = vsel %vm1993, 1, 0
      %v2250 = vsel %vm1994, 1, 0
      %v2251 = vsel %vm1995, 1, 0
      %v2252 = vsel %vm1996, 1, 0
      %v2253 = vsel %vm1997, 1, 0
      %v2254 = vsel %vm1998, 1, 0
      %v2255 = vsel %vm1999, 1, 0
      %v2256 = vsel %vm2000, 1, 0
      %v2257 = vsel %vm2001, 1, 0
      %v2258 = vsel %vm2002, 1, 0
      %v2259 = vsel %vm2003, 1, 0
      %v2260 = vsel %vm2004, 1, 0
      %v2261 = vsel %vm2005, 1, 0
      %v2262 = vsel %vm2006, 1, 0
      %v2263 = vsel %vm2007, 1, 0
      %v2264 = vsel %vm2008, 1, 0
      %v2265 = vsel %vm2009, 1, 0
      %v2266 = vsel %vm2010, 1, 0
      %v2267 = vsel %vm2011, 1, 0
      %v2268 = vsel %vm2012, 1, 0
      %v2269 = vsel %vm2013, 1, 0
      %v2270 = vsel %vm2014, 1, 0
      %v2271 = vsel %vm2015, 1, 0
      %v2272 = vsel %vm2016, 1, 0
      %v2273 = vsel %vm2017, 1, 0
      %v2274 = vsel %vm2018, 1, 0
      %v2275 = vsel %vm2019, 1, 0
      %v2276 = vsel %vm2020, 1, 0
      %v2277 = vsel %vm2021, 1, 0
      %v2278 = vsel %vm2022, 1, 0
      %v2279 = vsel %vm2023, 1, 0
      %v2280 = vsel %vm2024, 1, 0
      %v2281 = vsel %vm2025, 1, 0
      %v2282 = vsel %vm2026, 1, 0
      %v2283 = vsel %vm2027, 1, 0
      %v2284 = vsel %vm2028, 1, 0
      %v2285 = vsel %vm2029, 1, 0
      %v2286 = vsel %vm2030, 1, 0
      %v2287 = vsel %vm2031, 1, 0
      %v2288 = vsel %vm2032, 1, 0
      %v2289 = vsel %vm2033, 1, 0
      %v2290 = vsel %vm2034, 1, 0
      %v2291 = vsel %vm2035, 1, 0
      %v2292 = vsel %vm2036, 1, 0
      %v2293 = vsel %vm2037, 1, 0
      %v2294 = vsel %vm2038, 1, 0
      %v2295 = vsel %vm2039, 1, 0
      %v2296 = vsel %vm2040, 1, 0
      %v2297 = vsel %vm2041, 1, 0
      %v2298 = vsel %vm2042, 1, 0
      %v2299 = vsel %vm2043, 1, 0
      %v2300 = vsel %vm2044, 1, 0
      %v2301 = vsel %vm2045, 1, 0
      %v2302 = vsel %vm2046, 1, 0
      %v2303 = vsel %vm2047, 1, 0
      %v2304 = vsel %vm2048, 1, 0
      %v2305 = vsel %vm2049, 1, 0
      %v2306 = vsel %vm2050, 1, 0
      %v2307 = vsel %vm2051, 1, 0
      %v2308 = vsel %vm2052, 1, 0
      %v2309 = vsel %vm2053, 1, 0
      %v2310 = vsel %vm2054, 1, 0
      %v2311 = vsel %vm2055, 1, 0
      %v2312 = vsel %vm2056, 1, 0
      %v2313 = vsel %vm2057, 1, 0
      %v2314 = vsel %vm2058, 1, 0
      %v2315 = vsel %vm2059, 1, 0
      %v2316 = vsel %vm2060, 1, 0
      %v2317 = vsel %vm2061, 1, 0
      %v2318 = vsel %vm2062, 1, 0
      %v2319 = vsel %vm2063, 1, 0
      %v2320 = vsel %vm2064, 1, 0
      %v2321 = vsel %vm2065, 1, 0
      %v2322 = vsel %vm2066, 1, 0
      %v2323 = vsel %vm2067, 1, 0
      %v2324 = vsel %vm2068, 1, 0
      %v2325 = vsel %vm2069, 1, 0
      %v2326 = vsel %vm2070, 1, 0
      %v2327 = vsel %vm2071, 1, 0
      %v2328 = vsel %vm2072, 1, 0
      %v2329 = vsel %vm2073, 1, 0
      %v2330 = vsel %vm2074, 1, 0
      %v2331 = vsel %vm2075, 1, 0
      %v2332 = vsel %vm2076, 1, 0
      %v2333 = vsel %vm2077, 1, 0
      %v2334 = vsel %vm2078, 1, 0
      %v2335 = vsel %vm2079, 1, 0
      %v2336 = vsel %vm2080, 1, 0
      %v2337 = vsel %vm2081, 1, 0
      %v2338 = vsel %vm2082, 1, 0
      %v2339 = vsel %vm2083, 1, 0
      %v2340 = vsel %vm2084, 1, 0
      %v2341 = vcvt.s32.f32 %v2085
      %v2342 = vcvt.s32.f32 %v2086
      %v2343 = vcvt.s32.f32 %v2087
      %v2344 = vcvt.s32.f32 %v2088
      %v2345 = vcvt.s32.f32 %v2089
      %v2346 = vcvt.s32.f32 %v2090
      %v2347 = vcvt.s32.f32 %v2091
      %v2348 = vcvt.s32.f32 %v2092
      %v2349 = vcvt.s32.f32 %v2093
      %v2350 = vcvt.s32.f32 %v2094
      %v2351 = vcvt.s32.f32 %v2095
      %v2352 = vcvt.s32.f32 %v2096
      %v2353 = vcvt.s32.f32 %v2097
      %v2354 = vcvt.s32.f32 %v2098
      %v2355 = vcvt.s32.f32 %v2099
      %v2356 = vcvt.s32.f32 %v2100
      %v2357 = vcvt.s32.f32 %v2101
      %v2358 = vcvt.s32.f32 %v2102
      %v2359 = vcvt.s32.f32 %v2103
      %v2360 = vcvt.s32.f32 %v2104
      %v2361 = vcvt.s32.f32 %v2105
      %v2362 = vcvt.s32.f32 %v2106
      %v2363 = vcvt.s32.f32 %v2107
      %v2364 = vcvt.s32.f32 %v2108
      %v2365 = vcvt.s32.f32 %v2109
      %v2366 = vcvt.s32.f32 %v2110
      %v2367 = vcvt.s32.f32 %v2111
      %v2368 = vcvt.s32.f32 %v2112
      %v2369 = vcvt.s32.f32 %v2113
      %v2370 = vcvt.s32.f32 %v2114
      %v2371 = vcvt.s32.f32 %v2115
      %v2372 = vcvt.s32.f32 %v2116
      %v2373 = vcvt.s32.f32 %v2117
      %v2374 = vcvt.s32.f32 %v2118
      %v2375 = vcvt.s32.f32 %v2119
      %v2376 = vcvt.s32.f32 %v2120
      %v2377 = vcvt.s32.f32 %v2121
      %v2378 = vcvt.s32.f32 %v2122
      %v2379 = vcvt.s32.f32 %v2123
      %v2380 = vcvt.s32.f32 %v2124
      %v2381 = vcvt.s32.f32 %v2125
      %v2382 = vcvt.s32.f32 %v2126
      %v2383 = vcvt.s32.f32 %v2127
      %v2384 = vcvt.s32.f32 %v2128
      %v2385 = vcvt.s32.f32 %v2129
      %v2386 = vcvt.s32.f32 %v2130
      %v2387 = vcvt.s32.f32 %v2131
      %v2388 = vcvt.s32.f32 %v2132
      %v2389 = vcvt.s32.f32 %v2133
      %v2390 = vcvt.s32.f32 %v2134
      %v2391 = vcvt.s32.f32 %v2135
      %v2392 = vcvt.s32.f32 %v2136
      %v2393 = vcvt.s32.f32 %v2137
      %v2394 = vcvt.s32.f32 %v2138
      %v2395 = vcvt.s32.f32 %v2139
      %v2396 = vcvt.s32.f32 %v2140
      %v2397 = vcvt.s32.f32 %v2141
      %v2398 = vcvt.s32.f32 %v2142
      %v2399 = vcvt.s32.f32 %v2143
      %v2400 = vcvt.s32.f32 %v2144
      %v2401 = vcvt.s32.f32 %v2145
      %v2402 = vcvt.s32.f32 %v2146
      %v2403 = vcvt.s32.f32 %v2147
      %v2404 = vcvt.s32.f32 %v2148
      %v2405 = vcvt.s32.f32 %v2149
      %v2406 = vcvt.s32.f32 %v2150
      %v2407 = vcvt.s32.f32 %v2151
      %v2408 = vcvt.s32.f32 %v2152
      %v2409 = vcvt.s32.f32 %v2153
      %v2410 = vcvt.s32.f32 %v2154
      %v2411 = vcvt.s32.f32 %v2155
      %v2412 = vcvt.s32.f32 %v2156
      %v2413 = vcvt.s32.f32 %v2157
      %v2414 = vcvt.s32.f32 %v2158
      %v2415 = vcvt.s32.f32 %v2159
      %v2416 = vcvt.s32.f32 %v2160
      %v2417 = vcvt.s32.f32 %v2161
      %v2418 = vcvt.s32.f32 %v2162
      %v2419 = vcvt.s32.f32 %v2163
      %v2420 = vcvt.s32.f32 %v2164
      %v2421 = vcvt.s32.f32 %v2165
      %v2422 = vcvt.s32.f32 %v2166
      %v2423 = vcvt.s32.f32 %v2167
      %v2424 = vcvt.s32.f32 %v2168
      %v2425 = vcvt.s32.f32 %v2169
      %v2426 = vcvt.s32.f32 %v2170
      %v2427 = vcvt.s32.f32 %v2171
      %v2428 = vcvt.s32.f32 %v2172
      %v2429 = vcvt.s32.f32 %v2173
      %v2430 = vcvt.s32.f32 %v2174
      %v2431 = vcvt.s32.f32 %v2175
      %v2432 = vcvt.s32.f32 %v2176
      %v2433 = vcvt.s32.f32 %v2177
      %v2434 = vcvt.s32.f32 %v2178
      %v2435 = vcvt.s32.f32 %v2179
      %v2436 = vcvt.s32.f32 %v2180
      %v2437 = vcvt.s32.f32 %v2181
      %v2438 = vcvt.s32.f32 %v2182
      %v2439 = vcvt.s32.f32 %v2183
      %v2440 = vcvt.s32.f32 %v2184
      %v2441 = vcvt.s32.f32 %v2185
      %v2442 = vcvt.s32.f32 %v2186
      %v2443 = vcvt.s32.f32 %v2187
      %v2444 = vcvt.s32.f32 %v2188
      %v2445 = vcvt.s32.f32 %v2189
      %v2446 = vcvt.s32.f32 %v2190
      %v2447 = vcvt.s32.f32 %v2191
      %v2448 = vcvt.s32.f32 %v2192
      %v2449 = vcvt.s32.f32 %v2193
      %v2450 = vcvt.s32.f32 %v2194
      %v2451 = vcvt.s32.f32 %v2195
      %v2452 = vcvt.s32.f32 %v2196
      %v2453 = vcvt.s32.f32 %v2197
      %v2454 = vcvt.s32.f32 %v2198
      %v2455 = vcvt.s32.f32 %v2199
      %v2456 = vcvt.s32.f32 %v2200
      %v2457 = vcvt.s32.f32 %v2201
      %v2458 = vcvt.s32.f32 %v2202
      %v2459 = vcvt.s32.f32 %v2203
      %v2460 = vcvt.s32.f32 %v2204
      %v2461 = vcvt.s32.f32 %v2205
      %v2462 = vcvt.s32.f32 %v2206
      %v2463 = vcvt.s32.f32 %v2207
      %v2464 = vcvt.s32.f32 %v2208
      %v2465 = vcvt.s32.f32 %v2209
      %v2466 = vcvt.s32.f32 %v2210
      %v2467 = vcvt.s32.f32 %v2211
      %v2468 = vcvt.s32.f32 %v2212
      %v2469 = vcvt.s32.f32 %v2213
      %v2470 = vcvt.s32.f32 %v2214
      %v2471 = vcvt.s32.f32 %v2215
      %v2472 = vcvt.s32.f32 %v2216
      %v2473 = vcvt.s32.f32 %v2217
      %v2474 = vcvt.s32.f32 %v2218
      %v2475 = vcvt.s32.f32 %v2219
      %v2476 = vcvt.s32.f32 %v2220
      %v2477 = vcvt.s32.f32 %v2221
      %v2478 = vcvt.s32.f32 %v2222
      %v2479 = vcvt.s32.f32 %v2223
      %v2480 = vcvt.s32.f32 %v2224
      %v2481 = vcvt.s32.f32 %v2225
      %v2482 = vcvt.s32.f32 %v2226
      %v2483 = vcvt.s32.f32 %v2227
      %v2484 = vcvt.s32.f32 %v2228
      %v2485 = vcvt.s32.f32 %v2229
      %v2486 = vcvt.s32.f32 %v2230
      %v2487 = vcvt.s32.f32 %v2231
      %v2488 = vcvt.s32.f32 %v2232
      %v2489 = vcvt.s32.f32 %v2233
      %v2490 = vcvt.s32.f32 %v2234
      %v2491 = vcvt.s32.f32 %v2235
      %v2492 = vcvt.s32.f32 %v2236
      %v2493 = vcvt.s32.f32 %v2237
      %v2494 = vcvt.s32.f32 %v2238
      %v2495 = vcvt.s32.f32 %v2239
      %v2496 = vcvt.s32.f32 %v2240
      %v2497 = vcvt.s32.f32 %v2241
      %v2498 = vcvt.s32.f32 %v2242
      %v2499 = vcvt.s32.f32 %v2243
      %v2500 = vcvt.s32.f32 %v2244
      %v2501 = vcvt.s32.f32 %v2245
      %v2502 = vcvt.s32.f32 %v2246
      %v2503 = vcvt.s32.f32 %v2247
      %v2504 = vcvt.s32.f32 %v2248
      %v2505 = vcvt.s32.f32 %v2249
      %v2506 = vcvt.s32.f32 %v2250
      %v2507 = vcvt.s32.f32 %v2251
      %v2508 = vcvt.s32.f32 %v2252
      %v2509 = vcvt.s32.f32 %v2253
      %v2510 = vcvt.s32.f32 %v2254
      %v2511 = vcvt.s32.f32 %v2255
      %v2512 = vcvt.s32.f32 %v2256
      %v2513 = vcvt.s32.f32 %v2257
      %v2514 = vcvt.s32.f32 %v2258
      %v2515 = vcvt.s32.f32 %v2259
      %v2516 = vcvt.s32.f32 %v2260
      %v2517 = vcvt.s32.f32 %v2261
      %v2518 = vcvt.s32.f32 %v2262
      %v2519 = vcvt.s32.f32 %v2263
      %v2520 = vcvt.s32.f32 %v2264
      %v2521 = vcvt.s32.f32 %v2265
      %v2522 = vcvt.s32.f32 %v2266
      %v2523 = vcvt.s32.f32 %v2267
      %v2524 = vcvt.s32.f32 %v2268
      %v2525 = vcvt.s32.f32 %v2269
      %v2526 = vcvt.s32.f32 %v2270
      %v2527 = vcvt.s32.f32 %v2271
      %v2528 = vcvt.s32.f32 %v2272
      %v2529 = vcvt.s32.f32 %v2273
      %v2530 = vcvt.s32.f32 %v2274
      %v2531 = vcvt.s32.f32 %v2275
      %v2532 = vcvt.s32.f32 %v2276
      %v2533 = vcvt.s32.f32 %v2277
      %v2534 = vcvt.s32.f32 %v2278
      %v2535 = vcvt.s32.f32 %v2279
      %v2536 = vcvt.s32.f32 %v2280
      %v2537 = vcvt.s32.f32 %v2281
      %v2538 = vcvt.s32.f32 %v2282
      %v2539 = vcvt.s32.f32 %v2283
      %v2540 = vcvt.s32.f32 %v2284
      %v2541 = vcvt.s32.f32 %v2285
      %v2542 = vcvt.s32.f32 %v2286
      %v2543 = vcvt.s32.f32 %v2287
      %v2544 = vcvt.s32.f32 %v2288
      %v2545 = vcvt.s32.f32 %v2289
      %v2546 = vcvt.s32.f32 %v2290
      %v2547 = vcvt.s32.f32 %v2291
      %v2548 = vcvt.s32.f32 %v2292
      %v2549 = vcvt.s32.f32 %v2293
      %v2550 = vcvt.s32.f32 %v2294
      %v2551 = vcvt.s32.f32 %v2295
      %v2552 = vcvt.s32.f32 %v2296
      %v2553 = vcvt.s32.f32 %v2297
      %v2554 = vcvt.s32.f32 %v2298
      %v2555 = vcvt.s32.f32 %v2299
      %v2556 = vcvt.s32.f32 %v2300
      %v2557 = vcvt.s32.f32 %v2301
      %v2558 = vcvt.s32.f32 %v2302
      %v2559 = vcvt.s32.f32 %v2303
      %v2560 = vcvt.s32.f32 %v2304
      %v2561 = vcvt.s32.f32 %v2305
      %v2562 = vcvt.s32.f32 %v2306
      %v2563 = vcvt.s32.f32 %v2307
      %v2564 = vcvt.s32.f32 %v2308
      %v2565 = vcvt.s32.f32 %v2309
      %v2566 = vcvt.s32.f32 %v2310
      %v2567 = vcvt.s32.f32 %v2311
      %v2568 = vcvt.s32.f32 %v2312
      %v2569 = vcvt.s32.f32 %v2313
      %v2570 = vcvt.s32.f32 %v2314
      %v2571 = vcvt.s32.f32 %v2315
      %v2572 = vcvt.s32.f32 %v2316
      %v2573 = vcvt.s32.f32 %v2317
      %v2574 = vcvt.s32.f32 %v2318
      %v2575 = vcvt.s32.f32 %v2319
      %v2576 = vcvt.s32.f32 %v2320
      %v2577 = vcvt.s32.f32 %v2321
      %v2578 = vcvt.s32.f32 %v2322
      %v2579 = vcvt.s32.f32 %v2323
      %v2580 = vcvt.s32.f32 %v2324
      %v2581 = vcvt.s32.f32 %v2325
      %v2582 = vcvt.s32.f32 %v2326
      %v2583 = vcvt.s32.f32 %v2327
      %v2584 = vcvt.s32.f32 %v2328
      %v2585 = vcvt.s32.f32 %v2329
      %v2586 = vcvt.s32.f32 %v2330
      %v2587 = vcvt.s32.f32 %v2331
      %v2588 = vcvt.s32.f32 %v2332
      %v2589 = vcvt.s32.f32 %v2333
      %v2590 = vcvt.s32.f32 %v2334
      %v2591 = vcvt.s32.f32 %v2335
      %v2592 = vcvt.s32.f32 %v2336
      %v2593 = vcvt.s32.f32 %v2337
      %v2594 = vcvt.s32.f32 %v2338
      %v2595 = vcvt.s32.f32 %v2339
      %v2596 = vcvt.s32.f32 %v2340
      %v2597 = vpack.c.bf16 %v2345, %v2341
      %v2598 = vpack.c.bf16 %v2346, %v2342
      %v2599 = vpack.c.bf16 %v2347, %v2343
      %v2600 = vpack.c.bf16 %v2348, %v2344
      %v2601 = vpack.c.bf16 %v2353, %v2349
      %v2602 = vpack.c.bf16 %v2354, %v2350
      %v2603 = vpack.c.bf16 %v2355, %v2351
      %v2604 = vpack.c.bf16 %v2356, %v2352
      %v2605 = vpack.c.bf16 %v2361, %v2357
      %v2606 = vpack.c.bf16 %v2362, %v2358
      %v2607 = vpack.c.bf16 %v2363, %v2359
      %v2608 = vpack.c.bf16 %v2364, %v2360
      %v2609 = vpack.c.bf16 %v2369, %v2365
      %v2610 = vpack.c.bf16 %v2370, %v2366
      %v2611 = vpack.c.bf16 %v2371, %v2367
      %v2612 = vpack.c.bf16 %v2372, %v2368
      %v2613 = vpack.c.bf16 %v2377, %v2373
      %v2614 = vpack.c.bf16 %v2378, %v2374
      %v2615 = vpack.c.bf16 %v2379, %v2375
      %v2616 = vpack.c.bf16 %v2380, %v2376
      %v2617 = vpack.c.bf16 %v2385, %v2381
      %v2618 = vpack.c.bf16 %v2386, %v2382
      %v2619 = vpack.c.bf16 %v2387, %v2383
      %v2620 = vpack.c.bf16 %v2388, %v2384
      %v2621 = vpack.c.bf16 %v2393, %v2389
      %v2622 = vpack.c.bf16 %v2394, %v2390
      %v2623 = vpack.c.bf16 %v2395, %v2391
      %v2624 = vpack.c.bf16 %v2396, %v2392
      %v2625 = vpack.c.bf16 %v2401, %v2397
      %v2626 = vpack.c.bf16 %v2402, %v2398
      %v2627 = vpack.c.bf16 %v2403, %v2399
      %v2628 = vpack.c.bf16 %v2404, %v2400
      %v2629 = vpack.c.bf16 %v2409, %v2405
      %v2630 = vpack.c.bf16 %v2410, %v2406
      %v2631 = vpack.c.bf16 %v2411, %v2407
      %v2632 = vpack.c.bf16 %v2412, %v2408
      %v2633 = vpack.c.bf16 %v2417, %v2413
      %v2634 = vpack.c.bf16 %v2418, %v2414
      %v2635 = vpack.c.bf16 %v2419, %v2415
      %v2636 = vpack.c.bf16 %v2420, %v2416
      %v2637 = vpack.c.bf16 %v2425, %v2421
      %v2638 = vpack.c.bf16 %v2426, %v2422
      %v2639 = vpack.c.bf16 %v2427, %v2423
      %v2640 = vpack.c.bf16 %v2428, %v2424
      %v2641 = vpack.c.bf16 %v2433, %v2429
      %v2642 = vpack.c.bf16 %v2434, %v2430
      %v2643 = vpack.c.bf16 %v2435, %v2431
      %v2644 = vpack.c.bf16 %v2436, %v2432
      %v2645 = vpack.c.bf16 %v2441, %v2437
      %v2646 = vpack.c.bf16 %v2442, %v2438
      %v2647 = vpack.c.bf16 %v2443, %v2439
      %v2648 = vpack.c.bf16 %v2444, %v2440
      %v2649 = vpack.c.bf16 %v2449, %v2445
      %v2650 = vpack.c.bf16 %v2450, %v2446
      %v2651 = vpack.c.bf16 %v2451, %v2447
      %v2652 = vpack.c.bf16 %v2452, %v2448
      %v2653 = vpack.c.bf16 %v2457, %v2453
      %v2654 = vpack.c.bf16 %v2458, %v2454
      %v2655 = vpack.c.bf16 %v2459, %v2455
      %v2656 = vpack.c.bf16 %v2460, %v2456
      %v2657 = vpack.c.bf16 %v2465, %v2461
      %v2658 = vpack.c.bf16 %v2466, %v2462
      %v2659 = vpack.c.bf16 %v2467, %v2463
      %v2660 = vpack.c.bf16 %v2468, %v2464
      %v2661 = vpack.c.bf16 %v2473, %v2469
      %v2662 = vpack.c.bf16 %v2474, %v2470
      %v2663 = vpack.c.bf16 %v2475, %v2471
      %v2664 = vpack.c.bf16 %v2476, %v2472
      %v2665 = vpack.c.bf16 %v2481, %v2477
      %v2666 = vpack.c.bf16 %v2482, %v2478
      %v2667 = vpack.c.bf16 %v2483, %v2479
      %v2668 = vpack.c.bf16 %v2484, %v2480
      %v2669 = vpack.c.bf16 %v2489, %v2485
      %v2670 = vpack.c.bf16 %v2490, %v2486
      %v2671 = vpack.c.bf16 %v2491, %v2487
      %v2672 = vpack.c.bf16 %v2492, %v2488
      %v2673 = vpack.c.bf16 %v2497, %v2493
      %v2674 = vpack.c.bf16 %v2498, %v2494
      %v2675 = vpack.c.bf16 %v2499, %v2495
      %v2676 = vpack.c.bf16 %v2500, %v2496
      %v2677 = vpack.c.bf16 %v2505, %v2501
      %v2678 = vpack.c.bf16 %v2506, %v2502
      %v2679 = vpack.c.bf16 %v2507, %v2503
      %v2680 = vpack.c.bf16 %v2508, %v2504
      %v2681 = vpack.c.bf16 %v2513, %v2509
      %v2682 = vpack.c.bf16 %v2514, %v2510
      %v2683 = vpack.c.bf16 %v2515, %v2511
      %v2684 = vpack.c.bf16 %v2516, %v2512
      %v2685 = vpack.c.bf16 %v2521, %v2517
      %v2686 = vpack.c.bf16 %v2522, %v2518
      %v2687 = vpack.c.bf16 %v2523, %v2519
      %v2688 = vpack.c.bf16 %v2524, %v2520
      %v2689 = vpack.c.bf16 %v2529, %v2525
      %v2690 = vpack.c.bf16 %v2530, %v2526
      %v2691 = vpack.c.bf16 %v2531, %v2527
      %v2692 = vpack.c.bf16 %v2532, %v2528
      %v2693 = vpack.c.bf16 %v2537, %v2533
      %v2694 = vpack.c.bf16 %v2538, %v2534
      %v2695 = vpack.c.bf16 %v2539, %v2535
      %v2696 = vpack.c.bf16 %v2540, %v2536
      %v2697 = vpack.c.bf16 %v2545, %v2541
      %v2698 = vpack.c.bf16 %v2546, %v2542
      %v2699 = vpack.c.bf16 %v2547, %v2543
      %v2700 = vpack.c.bf16 %v2548, %v2544
      %v2701 = vpack.c.bf16 %v2553, %v2549
      %v2702 = vpack.c.bf16 %v2554, %v2550
      %v2703 = vpack.c.bf16 %v2555, %v2551
      %v2704 = vpack.c.bf16 %v2556, %v2552
      %v2705 = vpack.c.bf16 %v2561, %v2557
      %v2706 = vpack.c.bf16 %v2562, %v2558
      %v2707 = vpack.c.bf16 %v2563, %v2559
      %v2708 = vpack.c.bf16 %v2564, %v2560
      %v2709 = vpack.c.bf16 %v2569, %v2565
      %v2710 = vpack.c.bf16 %v2570, %v2566
      %v2711 = vpack.c.bf16 %v2571, %v2567
      %v2712 = vpack.c.bf16 %v2572, %v2568
      %v2713 = vpack.c.bf16 %v2577, %v2573
      %v2714 = vpack.c.bf16 %v2578, %v2574
      %v2715 = vpack.c.bf16 %v2579, %v2575
      %v2716 = vpack.c.bf16 %v2580, %v2576
      %v2717 = vpack.c.bf16 %v2585, %v2581
      %v2718 = vpack.c.bf16 %v2586, %v2582
      %v2719 = vpack.c.bf16 %v2587, %v2583
      %v2720 = vpack.c.bf16 %v2588, %v2584
      %v2721 = vpack.c.bf16 %v2593, %v2589
      %v2722 = vpack.c.bf16 %v2594, %v2590
      %v2723 = vpack.c.bf16 %v2595, %v2591
      %v2724 = vpack.c.bf16 %v2596, %v2592
      %v2725 = vld [vmem:[%s3] sm:$0xf]
      %v2726 = vld [vmem:[%s3 + $0x4] sm:$0xf]
      %v2727 = vld [vmem:[%s3 + $0x8] sm:$0xf]
      %v2728 = vld [vmem:[%s3 + $0xc] sm:$0xf]
      %v2729 = vld [vmem:[%s3 + $0x10] sm:$0xf]
      %v2730 = vld [vmem:[%s3 + $0x14] sm:$0xf]
      %v2731 = vld [vmem:[%s3 + $0x18] sm:$0xf]
      %v2732 = vld [vmem:[%s3 + $0x1c] sm:$0xf]
      %v2733 = vld [vmem:[%s3 + $0x20] sm:$0xf]
      %v2734 = vld [vmem:[%s3 + $0x24] sm:$0xf]
      %v2735 = vld [vmem:[%s3 + $0x28] sm:$0xf]
      %v2736 = vld [vmem:[%s3 + $0x2c] sm:$0xf]
      %v2737 = vld [vmem:[%s3 + $0x30] sm:$0xf]
      %v2738 = vld [vmem:[%s3 + $0x34] sm:$0xf]
      %v2739 = vld [vmem:[%s3 + $0x38] sm:$0xf]
      %v2740 = vld [vmem:[%s3 + $0x3c] sm:$0xf]
      %v2741 = vld [vmem:[%s3 + $0x40] sm:$0xf]
      %v2742 = vld [vmem:[%s3 + $0x44] sm:$0xf]
      %v2743 = vld [vmem:[%s3 + $0x48] sm:$0xf]
      %v2744 = vld [vmem:[%s3 + $0x4c] sm:$0xf]
      %v2745 = vld [vmem:[%s3 + $0x50] sm:$0xf]
      %v2746 = vld [vmem:[%s3 + $0x54] sm:$0xf]
      %v2747 = vld [vmem:[%s3 + $0x58] sm:$0xf]
      %v2748 = vld [vmem:[%s3 + $0x5c] sm:$0xf]
      %v2749 = vld [vmem:[%s3 + $0x60] sm:$0xf]
      %v2750 = vld [vmem:[%s3 + $0x64] sm:$0xf]
      %v2751 = vld [vmem:[%s3 + $0x68] sm:$0xf]
      %v2752 = vld [vmem:[%s3 + $0x6c] sm:$0xf]
      %v2753 = vld [vmem:[%s3 + $0x70] sm:$0xf]
      %v2754 = vld [vmem:[%s3 + $0x74] sm:$0xf]
      %v2755 = vld [vmem:[%s3 + $0x78] sm:$0xf]
      %v2756 = vld [vmem:[%s3 + $0x7c] sm:$0xf]
      %v2757 = vld [vmem:[%s3 + $0x80] sm:$0xf]
      %v2758 = vld [vmem:[%s3 + $0x84] sm:$0xf]
      %v2759 = vld [vmem:[%s3 + $0x88] sm:$0xf]
      %v2760 = vld [vmem:[%s3 + $0x8c] sm:$0xf]
      %v2761 = vld [vmem:[%s3 + $0x90] sm:$0xf]
      %v2762 = vld [vmem:[%s3 + $0x94] sm:$0xf]
      %v2763 = vld [vmem:[%s3 + $0x98] sm:$0xf]
      %v2764 = vld [vmem:[%s3 + $0x9c] sm:$0xf]
      %v2765 = vld [vmem:[%s3 + $0xa0] sm:$0xf]
      %v2766 = vld [vmem:[%s3 + $0xa4] sm:$0xf]
      %v2767 = vld [vmem:[%s3 + $0xa8] sm:$0xf]
      %v2768 = vld [vmem:[%s3 + $0xac] sm:$0xf]
      %v2769 = vld [vmem:[%s3 + $0xb0] sm:$0xf]
      %v2770 = vld [vmem:[%s3 + $0xb4] sm:$0xf]
      %v2771 = vld [vmem:[%s3 + $0xb8] sm:$0xf]
      %v2772 = vld [vmem:[%s3 + $0xbc] sm:$0xf]
      %v2773 = vld [vmem:[%s3 + $0xc0] sm:$0xf]
      %v2774 = vld [vmem:[%s3 + $0xc4] sm:$0xf]
      %v2825 = vunpack.c.l.b16 %v2725
      %v2826 = vunpack.c.l.b16 %v2726
      %v2827 = vunpack.c.l.b16 %v2727
      %v2828 = vunpack.c.l.b16 %v2728
      %v2829 = vunpack.c.l.b16 %v2729
      %v2830 = vunpack.c.l.b16 %v2730
      %v2831 = vunpack.c.l.b16 %v2731
      %v2832 = vunpack.c.l.b16 %v2732
      %v2833 = vunpack.c.l.b16 %v2733
      %v2834 = vunpack.c.l.b16 %v2734
      %v2835 = vunpack.c.l.b16 %v2735
      %v2836 = vunpack.c.l.b16 %v2736
      %v2837 = vunpack.c.l.b16 %v2737
      %v2838 = vunpack.c.l.b16 %v2738
      %v2839 = vunpack.c.l.b16 %v2739
      %v2840 = vunpack.c.l.b16 %v2740
      %v2841 = vunpack.c.l.b16 %v2741
      %v2842 = vunpack.c.l.b16 %v2742
      %v2843 = vunpack.c.l.b16 %v2743
      %v2844 = vunpack.c.l.b16 %v2744
      %v2845 = vunpack.c.l.b16 %v2745
      %v2846 = vunpack.c.l.b16 %v2746
      %v2847 = vunpack.c.l.b16 %v2747
      %v2848 = vunpack.c.l.b16 %v2748
      %v2849 = vunpack.c.l.b16 %v2749
      %v2850 = vunpack.c.l.b16 %v2750
      %v2851 = vunpack.c.l.b16 %v2751
      %v2852 = vunpack.c.l.b16 %v2752
      %v2853 = vunpack.c.l.b16 %v2753
      %v2854 = vunpack.c.l.b16 %v2754
      %v2855 = vunpack.c.l.b16 %v2755
      %v2856 = vunpack.c.l.b16 %v2756
      %v2857 = vunpack.c.l.b16 %v2757
      %v2858 = vunpack.c.l.b16 %v2758
      %v2859 = vunpack.c.l.b16 %v2759
      %v2860 = vunpack.c.l.b16 %v2760
      %v2861 = vunpack.c.l.b16 %v2761
      %v2862 = vunpack.c.l.b16 %v2762
      %v2863 = vunpack.c.l.b16 %v2763
      %v2864 = vunpack.c.l.b16 %v2764
      %v2865 = vunpack.c.l.b16 %v2765
      %v2866 = vunpack.c.l.b16 %v2766
      %v2867 = vunpack.c.l.b16 %v2767
      %v2868 = vunpack.c.l.b16 %v2768
      %v2869 = vunpack.c.l.b16 %v2769
      %v2870 = vunpack.c.l.b16 %v2770
      %v2871 = vunpack.c.l.b16 %v2771
      %v2872 = vunpack.c.l.b16 %v2772
      %v2873 = vunpack.c.l.b16 %v2773
      %v2874 = vunpack.c.l.b16 %v2774
      %v2875 = vpack.c.b16 %v2826, %v2825
      %v2876 = vpack.c.b16 %v2828, %v2827
      %v2877 = vpack.c.b16 %v2830, %v2829
      %v2878 = vpack.c.b16 %v2832, %v2831
      %v2879 = vpack.c.b16 %v2834, %v2833
      %v2880 = vpack.c.b16 %v2836, %v2835
      %v2881 = vpack.c.b16 %v2838, %v2837
      %v2882 = vpack.c.b16 %v2840, %v2839
      %v2883 = vpack.c.b16 %v2842, %v2841
      %v2884 = vpack.c.b16 %v2844, %v2843
      %v2885 = vpack.c.b16 %v2846, %v2845
      %v2886 = vpack.c.b16 %v2848, %v2847
      %v2887 = vpack.c.b16 %v2850, %v2849
      %v2888 = vpack.c.b16 %v2852, %v2851
      %v2889 = vpack.c.b16 %v2854, %v2853
      %v2890 = vpack.c.b16 %v2856, %v2855
      %v2891 = vpack.c.b16 %v2858, %v2857
      %v2892 = vpack.c.b16 %v2860, %v2859
      %v2893 = vpack.c.b16 %v2862, %v2861
      %v2894 = vpack.c.b16 %v2864, %v2863
      %v2895 = vpack.c.b16 %v2866, %v2865
      %v2896 = vpack.c.b16 %v2868, %v2867
      %v2897 = vpack.c.b16 %v2870, %v2869
      %v2898 = vpack.c.b16 %v2872, %v2871
      %v2899 = vpack.c.b16 %v2874, %v2873
      %vm2925 = vcmask 130048
      %v2927 = vsel %vm2925, %v2600, 0
      %v2930 = vsel %vm2925, %v2604, 0
      %v2933 = vsel %vm2925, %v2608, 0
      %v2936 = vsel %vm2925, %v2612, 0
      %v2939 = vsel %vm2925, %v2616, 0
      %v2942 = vsel %vm2925, %v2620, 0
      %v2945 = vsel %vm2925, %v2624, 0
      %v2948 = vsel %vm2925, %v2628, 0
      %v2951 = vsel %vm2925, %v2632, 0
      %v2954 = vsel %vm2925, %v2636, 0
      %v2957 = vsel %vm2925, %v2640, 0
      %v2960 = vsel %vm2925, %v2644, 0
      %v2963 = vsel %vm2925, %v2648, 0
      %v2966 = vsel %vm2925, %v2652, 0
      %v2969 = vsel %vm2925, %v2656, 0
      %v2972 = vsel %vm2925, %v2660, 0
      %v2975 = vsel %vm2925, %v2664, 0
      %v2978 = vsel %vm2925, %v2668, 0
      %v2981 = vsel %vm2925, %v2672, 0
      %v2984 = vsel %vm2925, %v2676, 0
      %v2987 = vsel %vm2925, %v2680, 0
      %v2990 = vsel %vm2925, %v2684, 0
      %v2993 = vsel %vm2925, %v2688, 0
      %v2996 = vsel %vm2925, %v2692, 0
      %v2999 = vsel %vm2925, %v2696, 0
      %v3002 = vsel %vm2925, %v2700, 0
      %v3005 = vsel %vm2925, %v2704, 0
      %v3008 = vsel %vm2925, %v2708, 0
      %v3011 = vsel %vm2925, %v2712, 0
      %v3014 = vsel %vm2925, %v2716, 0
      %v3017 = vsel %vm2925, %v2720, 0
      %v3020 = vsel %vm2925, %v2724, 0
      %3022 = vmatprep.subr.bf16.mxu0 0
      %3023 = vmatpush1.bf16.msra.mxu0 %v2875
      %3024 = vmatprep.subr.bf16.mxu0 0
      %3025 = vmatpush1.bf16.msra.mxu0 %v2876
      %3026 = vmatprep.subr.bf16.mxu0 0
      %3027 = vmatpush1.bf16.msra.mxu0 %v2877
      %3028 = vmatprep.subr.bf16.mxu0 0
      %3029 = vmatpush1.bf16.msra.mxu0 %v2878
      %3030 = vmatprep.subr.bf16.mxu0 0
      %3031 = vmatpush1.bf16.msra.mxu0 %v2879
      %3032 = vmatprep.subr.bf16.mxu0 0
      %3033 = vmatpush1.bf16.msra.mxu0 %v2880
      %3034 = vmatprep.subr.bf16.mxu0 0
      %3035 = vmatpush1.bf16.msra.mxu0 %v2881
      %3036 = vmatprep.subr.bf16.mxu0 0
      %3037 = vmatpush1.bf16.msra.mxu0 %v2882
      %3038 = vmatprep.subr.bf16.mxu0 0
      %3039 = vmatpush1.bf16.msra.mxu0 %v2883
      %3040 = vmatprep.subr.bf16.mxu0 0
      %3041 = vmatpush1.bf16.msra.mxu0 %v2884
      %3042 = vmatprep.subr.bf16.mxu0 0
      %3043 = vmatpush1.bf16.msra.mxu0 %v2885
      %3044 = vmatprep.subr.bf16.mxu0 0
      %3045 = vmatpush1.bf16.msra.mxu0 %v2886
      %3046 = vmatprep.subr.bf16.mxu0 0
      %3047 = vmatpush1.bf16.msra.mxu0 %v2887
      %3048 = vmatprep.subr.bf16.mxu0 0
      %3049 = vmatpush1.bf16.msra.mxu0 %v2888
      %3050 = vmatprep.subr.bf16.mxu0 0
      %3051 = vmatpush1.bf16.msra.mxu0 %v2889
      %3052 = vmatprep.subr.bf16.mxu0 0
      %3053 = vmatpush1.bf16.msra.mxu0 %v2890
      %3054 = vmatprep.mubr.bf16.mxu0 %v2598
      %3055 = vmatmul.mubr.bf16.gmra.mrb[0].mxu0 %v2597
      %v3056 = vpop.f32.mrb[0].mxu0
      %v3057 = vadd.f32 0.0, %v3056
      %v3058 = vpop.f32.mrb[0].mxu0
      %v3059 = vpop.f32.mrb[0].mxu0
      %v3060 = vadd.f32 0.0, %v3059
      %v3061 = vpop.f32.mrb[0].mxu0
      %3062 = vmatprep.mubr.bf16.mxu0 %v2602
      %3063 = vmatmul.mubr.bf16.gmra.mrb[0].mxu0 %v2601
      %v3064 = vpop.f32.mrb[0].mxu0
      %v3065 = vadd.f32 0.0, %v3064
      %v3066 = vpop.f32.mrb[0].mxu0
      %v3067 = vpop.f32.mrb[0].mxu0
      %v3068 = vadd.f32 0.0, %v3067
      %v3069 = vpop.f32.mrb[0].mxu0
      %3070 = vmatprep.mubr.bf16.mxu0 %v2606
      %3071 = vmatmul.mubr.bf16.gmra.mrb[0].mxu0 %v2605
      %v3072 = vpop.f32.mrb[0].mxu0
      %v3073 = vadd.f32 0.0, %v3072
      %v3074 = vpop.f32.mrb[0].mxu0
      %v3075 = vpop.f32.mrb[0].mxu0
      %v3076 = vadd.f32 0.0, %v3075
      %v3077 = vpop.f32.mrb[0].mxu0
      %3078 = vmatprep.mubr.bf16.mxu0 %v2610
      %3079 = vmatmul.mubr.bf16.gmra.mrb[0].mxu0 %v2609
      %v3080 = vpop.f32.mrb[0].mxu0
      %v3081 = vadd.f32 0.0, %v3080
      %v3082 = vpop.f32.mrb[0].mxu0
      %v3083 = vpop.f32.mrb[0].mxu0
      %v3084 = vadd.f32 0.0, %v3083
      %v3085 = vpop.f32.mrb[0].mxu0
      %3086 = vmatprep.mubr.bf16.mxu0 %v2614
      %3087 = vmatmul.mubr.bf16.gmra.mrb[0].mxu0 %v2613
      %v3088 = vpop.f32.mrb[0].mxu0
      %v3089 = vadd.f32 0.0, %v3088
      %v3090 = vpop.f32.mrb[0].mxu0
      %v3091 = vpop.f32.mrb[0].mxu0
      %v3092 = vadd.f32 0.0, %v3091
      %v3093 = vpop.f32.mrb[0].mxu0
      %3094 = vmatprep.mubr.bf16.mxu0 %v2618
      %3095 = vmatmul.mubr.bf16.gmra.mrb[0].mxu0 %v2617
      %v3096 = vpop.f32.mrb[0].mxu0
      %v3097 = vadd.f32 0.0, %v3096
      %v3098 = vpop.f32.mrb[0].mxu0
      %v3099 = vpop.f32.mrb[0].mxu0
      %v3100 = vadd.f32 0.0, %v3099
      %v3101 = vpop.f32.mrb[0].mxu0
      %3102 = vmatprep.mubr.bf16.mxu0 %v2622
      %3103 = vmatmul.mubr.bf16.gmra.mrb[0].mxu0 %v2621
      %v3104 = vpop.f32.mrb[0].mxu0
      %v3105 = vadd.f32 0.0, %v3104
      %v3106 = vpop.f32.mrb[0].mxu0
      %v3107 = vpop.f32.mrb[0].mxu0
      %v3108 = vadd.f32 0.0, %v3107
      %v3109 = vpop.f32.mrb[0].mxu0
      %3110 = vmatprep.mubr.bf16.mxu0 %v2626
      %3111 = vmatmul.mubr.bf16.gmra.mrb[0].mxu0 %v2625
      %v3112 = vpop.f32.mrb[0].mxu0
      %v3113 = vadd.f32 0.0, %v3112
      %v3114 = vpop.f32.mrb[0].mxu0
      %v3115 = vpop.f32.mrb[0].mxu0
      %v3116 = vadd.f32 0.0, %v3115
      %v3117 = vpop.f32.mrb[0].mxu0
      %3118 = vmatprep.mubr.bf16.mxu0 %v2630
      %3119 = vmatmul.mubr.bf16.gmra.mrb[0].mxu0 %v2629
      %v3120 = vpop.f32.mrb[0].mxu0
      %v3121 = vadd.f32 0.0, %v3120
      %v3122 = vpop.f32.mrb[0].mxu0
      %v3123 = vpop.f32.mrb[0].mxu0
      %v3124 = vadd.f32 0.0, %v3123
      %v3125 = vpop.f32.mrb[0].mxu0
      %3126 = vmatprep.mubr.bf16.mxu0 %v2634
      %3127 = vmatmul.mubr.bf16.gmra.mrb[0].mxu0 %v2633
      %v3128 = vpop.f32.mrb[0].mxu0
      %v3129 = vadd.f32 0.0, %v3128
      %v3130 = vpop.f32.mrb[0].mxu0
      %v3131 = vpop.f32.mrb[0].mxu0
      %v3132 = vadd.f32 0.0, %v3131
      %v3133 = vpop.f32.mrb[0].mxu0
      %3134 = vmatprep.mubr.bf16.mxu0 %v2638
      %3135 = vmatmul.mubr.bf16.gmra.mrb[0].mxu0 %v2637
      %v3136 = vpop.f32.mrb[0].mxu0
      %v3137 = vadd.f32 0.0, %v3136
      %v3138 = vpop.f32.mrb[0].mxu0
      %v3139 = vpop.f32.mrb[0].mxu0
      %v3140 = vadd.f32 0.0, %v3139
      %v3141 = vpop.f32.mrb[0].mxu0
      %3142 = vmatprep.mubr.bf16.mxu0 %v2642
      %3143 = vmatmul.mubr.bf16.gmra.mrb[0].mxu0 %v2641
      %v3144 = vpop.f32.mrb[0].mxu0
      %v3145 = vadd.f32 0.0, %v3144
      %v3146 = vpop.f32.mrb[0].mxu0
      %v3147 = vpop.f32.mrb[0].mxu0
      %v3148 = vadd.f32 0.0, %v3147
      %v3149 = vpop.f32.mrb[0].mxu0
      %3150 = vmatprep.mubr.bf16.mxu0 %v2646
      %3151 = vmatmul.mubr.bf16.gmra.mrb[0].mxu0 %v2645
      %v3152 = vpop.f32.mrb[0].mxu0
      %v3153 = vadd.f32 0.0, %v3152
      %v3154 = vpop.f32.mrb[0].mxu0
      %v3155 = vpop.f32.mrb[0].mxu0
      %v3156 = vadd.f32 0.0, %v3155
      %v3157 = vpop.f32.mrb[0].mxu0
      %3158 = vmatprep.mubr.bf16.mxu0 %v2650
      %3159 = vmatmul.mubr.bf16.gmra.mrb[0].mxu0 %v2649
      %v3160 = vpop.f32.mrb[0].mxu0
      %v3161 = vadd.f32 0.0, %v3160
      %v3162 = vpop.f32.mrb[0].mxu0
      %v3163 = vpop.f32.mrb[0].mxu0
      %v3164 = vadd.f32 0.0, %v3163
      %v3165 = vpop.f32.mrb[0].mxu0
      %3166 = vmatprep.mubr.bf16.mxu0 %v2654
      %3167 = vmatmul.mubr.bf16.gmra.mrb[0].mxu0 %v2653
      %v3168 = vpop.f32.mrb[0].mxu0
      %v3169 = vadd.f32 0.0, %v3168
      %v3170 = vpop.f32.mrb[0].mxu0
      %v3171 = vpop.f32.mrb[0].mxu0
      %v3172 = vadd.f32 0.0, %v3171
      %v3173 = vpop.f32.mrb[0].mxu0
      %3174 = vmatprep.mubr.bf16.mxu0 %v2658
      %3175 = vmatmul.mubr.bf16.gmra.mrb[0].mxu0 %v2657
      %v3176 = vpop.f32.mrb[0].mxu0
      %v3177 = vadd.f32 0.0, %v3176
      %v3178 = vpop.f32.mrb[0].mxu0
      %v3179 = vpop.f32.mrb[0].mxu0
      %v3180 = vadd.f32 0.0, %v3179
      %v3181 = vpop.f32.mrb[0].mxu0
      %3182 = vmatprep.mubr.bf16.mxu0 %v2662
      %3183 = vmatmul.mubr.bf16.gmra.mrb[0].mxu0 %v2661
      %v3184 = vpop.f32.mrb[0].mxu0
      %v3185 = vadd.f32 0.0, %v3184
      %v3186 = vpop.f32.mrb[0].mxu0
      %v3187 = vpop.f32.mrb[0].mxu0
      %v3188 = vadd.f32 0.0, %v3187
      %v3189 = vpop.f32.mrb[0].mxu0
      %3190 = vmatprep.mubr.bf16.mxu0 %v2666
      %3191 = vmatmul.mubr.bf16.gmra.mrb[0].mxu0 %v2665
      %v3192 = vpop.f32.mrb[0].mxu0
      %v3193 = vadd.f32 0.0, %v3192
      %v3194 = vpop.f32.mrb[0].mxu0
      %v3195 = vpop.f32.mrb[0].mxu0
      %v3196 = vadd.f32 0.0, %v3195
      %v3197 = vpop.f32.mrb[0].mxu0
      %3198 = vmatprep.mubr.bf16.mxu0 %v2670
      %3199 = vmatmul.mubr.bf16.gmra.mrb[0].mxu0 %v2669
      %v3200 = vpop.f32.mrb[0].mxu0
      %v3201 = vadd.f32 0.0, %v3200
      %v3202 = vpop.f32.mrb[0].mxu0
      %v3203 = vpop.f32.mrb[0].mxu0
      %v3204 = vadd.f32 0.0, %v3203
      %v3205 = vpop.f32.mrb[0].mxu0
      %3206 = vmatprep.mubr.bf16.mxu0 %v2674
      %3207 = vmatmul.mubr.bf16.gmra.mrb[0].mxu0 %v2673
      %v3208 = vpop.f32.mrb[0].mxu0
      %v3209 = vadd.f32 0.0, %v3208
      %v3210 = vpop.f32.mrb[0].mxu0
      %v3211 = vpop.f32.mrb[0].mxu0
      %v3212 = vadd.f32 0.0, %v3211
      %v3213 = vpop.f32.mrb[0].mxu0
      %3214 = vmatprep.mubr.bf16.mxu0 %v2678
      %3215 = vmatmul.mubr.bf16.gmra.mrb[0].mxu0 %v2677
      %v3216 = vpop.f32.mrb[0].mxu0
      %v3217 = vadd.f32 0.0, %v3216
      %v3218 = vpop.f32.mrb[0].mxu0
      %v3219 = vpop.f32.mrb[0].mxu0
      %v3220 = vadd.f32 0.0, %v3219
      %v3221 = vpop.f32.mrb[0].mxu0
      %3222 = vmatprep.mubr.bf16.mxu0 %v2682
      %3223 = vmatmul.mubr.bf16.gmra.mrb[0].mxu0 %v2681
      %v3224 = vpop.f32.mrb[0].mxu0
      %v3225 = vadd.f32 0.0, %v3224
      %v3226 = vpop.f32.mrb[0].mxu0
      %v3227 = vpop.f32.mrb[0].mxu0
      %v3228 = vadd.f32 0.0, %v3227
      %v3229 = vpop.f32.mrb[0].mxu0
      %3230 = vmatprep.mubr.bf16.mxu0 %v2686
      %3231 = vmatmul.mubr.bf16.gmra.mrb[0].mxu0 %v2685
      %v3232 = vpop.f32.mrb[0].mxu0
      %v3233 = vadd.f32 0.0, %v3232
      %v3234 = vpop.f32.mrb[0].mxu0
      %v3235 = vpop.f32.mrb[0].mxu0
      %v3236 = vadd.f32 0.0, %v3235
      %v3237 = vpop.f32.mrb[0].mxu0
      %3238 = vmatprep.mubr.bf16.mxu0 %v2690
      %3239 = vmatmul.mubr.bf16.gmra.mrb[0].mxu0 %v2689
      %v3240 = vpop.f32.mrb[0].mxu0
      %v3241 = vadd.f32 0.0, %v3240
      %v3242 = vpop.f32.mrb[0].mxu0
      %v3243 = vpop.f32.mrb[0].mxu0
      %v3244 = vadd.f32 0.0, %v3243
      %v3245 = vpop.f32.mrb[0].mxu0
      %3246 = vmatprep.mubr.bf16.mxu0 %v2694
      %3247 = vmatmul.mubr.bf16.gmra.mrb[0].mxu0 %v2693
      %v3248 = vpop.f32.mrb[0].mxu0
      %v3249 = vadd.f32 0.0, %v3248
      %v3250 = vpop.f32.mrb[0].mxu0
      %v3251 = vpop.f32.mrb[0].mxu0
      %v3252 = vadd.f32 0.0, %v3251
      %v3253 = vpop.f32.mrb[0].mxu0
      %3254 = vmatprep.mubr.bf16.mxu0 %v2698
      %3255 = vmatmul.mubr.bf16.gmra.mrb[0].mxu0 %v2697
      %v3256 = vpop.f32.mrb[0].mxu0
      %v3257 = vadd.f32 0.0, %v3256
      %v3258 = vpop.f32.mrb[0].mxu0
      %v3259 = vpop.f32.mrb[0].mxu0
      %v3260 = vadd.f32 0.0, %v3259
      %v3261 = vpop.f32.mrb[0].mxu0
      %3262 = vmatprep.mubr.bf16.mxu0 %v2702
      %3263 = vmatmul.mubr.bf16.gmra.mrb[0].mxu0 %v2701
      %v3264 = vpop.f32.mrb[0].mxu0
      %v3265 = vadd.f32 0.0, %v3264
      %v3266 = vpop.f32.mrb[0].mxu0
      %v3267 = vpop.f32.mrb[0].mxu0
      %v3268 = vadd.f32 0.0, %v3267
      %v3269 = vpop.f32.mrb[0].mxu0
      %3270 = vmatprep.mubr.bf16.mxu0 %v2706
      %3271 = vmatmul.mubr.bf16.gmra.mrb[0].mxu0 %v2705
      %v3272 = vpop.f32.mrb[0].mxu0
      %v3273 = vadd.f32 0.0, %v3272
      %v3274 = vpop.f32.mrb[0].mxu0
      %v3275 = vpop.f32.mrb[0].mxu0
      %v3276 = vadd.f32 0.0, %v3275
      %v3277 = vpop.f32.mrb[0].mxu0
      %3278 = vmatprep.mubr.bf16.mxu0 %v2710
      %3279 = vmatmul.mubr.bf16.gmra.mrb[0].mxu0 %v2709
      %v3280 = vpop.f32.mrb[0].mxu0
      %v3281 = vadd.f32 0.0, %v3280
      %v3282 = vpop.f32.mrb[0].mxu0
      %v3283 = vpop.f32.mrb[0].mxu0
      %v3284 = vadd.f32 0.0, %v3283
      %v3285 = vpop.f32.mrb[0].mxu0
      %3286 = vmatprep.mubr.bf16.mxu0 %v2714
      %3287 = vmatmul.mubr.bf16.gmra.mrb[0].mxu0 %v2713
      %v3288 = vpop.f32.mrb[0].mxu0
      %v3289 = vadd.f32 0.0, %v3288
      %v3290 = vpop.f32.mrb[0].mxu0
      %v3291 = vpop.f32.mrb[0].mxu0
      %v3292 = vadd.f32 0.0, %v3291
      %v3293 = vpop.f32.mrb[0].mxu0
      %3294 = vmatprep.mubr.bf16.mxu0 %v2718
      %3295 = vmatmul.mubr.bf16.gmra.mrb[0].mxu0 %v2717
      %v3296 = vpop.f32.mrb[0].mxu0
      %v3297 = vadd.f32 0.0, %v3296
      %v3298 = vpop.f32.mrb[0].mxu0
      %v3299 = vpop.f32.mrb[0].mxu0
      %v3300 = vadd.f32 0.0, %v3299
      %v3301 = vpop.f32.mrb[0].mxu0
      %3302 = vmatprep.mubr.bf16.mxu0 %v2722
      %3303 = vmatmul.mubr.bf16.gmra.mrb[0].mxu0 %v2721
      %v3304 = vpop.f32.mrb[0].mxu0
      %v3305 = vadd.f32 0.0, %v3304
      %v3306 = vpop.f32.mrb[0].mxu0
      %v3307 = vpop.f32.mrb[0].mxu0
      %v3308 = vadd.f32 0.0, %v3307
      %v3309 = vpop.f32.mrb[0].mxu0
      %3310 = vdwg.mxu0
      %3311 = vmatprep.subr.bf16.mxu0 0
      %3312 = vmatpush1.bf16.msra.mxu0 %v2891
      %3313 = vmatprep.subr.bf16.mxu0 0
      %3314 = vmatpush1.bf16.msra.mxu0 %v2892
      %3315 = vmatprep.subr.bf16.mxu0 0
      %3316 = vmatpush1.bf16.msra.mxu0 %v2893
      %3317 = vmatprep.subr.bf16.mxu0 0
      %3318 = vmatpush1.bf16.msra.mxu0 %v2894
      %3319 = vmatprep.subr.bf16.mxu0 0
      %3320 = vmatpush1.bf16.msra.mxu0 %v2895
      %3321 = vmatprep.subr.bf16.mxu0 0
      %3322 = vmatpush1.bf16.msra.mxu0 %v2896
      %3323 = vmatprep.subr.bf16.mxu0 0
      %3324 = vmatpush1.bf16.msra.mxu0 %v2897
      %3325 = vmatprep.subr.bf16.mxu0 0
      %3326 = vmatpush1.bf16.msra.mxu0 %v2898
      %3327 = vmatprep.subr.bf16.mxu0 0
      %3328 = vmatpush1.bf16.msra.mxu0 %v2899
      %3329 = vmatprep.subr.bf16.mxu0 0
      %3330 = vmatpush1.bf16.msra.mxu0 0
      %3331 = vmatprep.subr.bf16.mxu0 0
      %3332 = vmatpush1.bf16.msra.mxu0 0
      %3333 = vmatprep.subr.bf16.mxu0 0
      %3334 = vmatpush1.bf16.msra.mxu0 0
      %3335 = vmatprep.subr.bf16.mxu0 0
      %3336 = vmatpush1.bf16.msra.mxu0 0
      %3337 = vmatprep.subr.bf16.mxu0 0
      %3338 = vmatpush1.bf16.msra.mxu0 0
      %3339 = vmatprep.subr.bf16.mxu0 0
      %3340 = vmatpush1.bf16.msra.mxu0 0
      %3341 = vmatprep.subr.bf16.mxu0 0
      %3342 = vmatpush1.bf16.msra.mxu0 0
      %3343 = vmatprep.mubr.bf16.mxu0 %v2927
      %3344 = vmatmul.mubr.bf16.gmra.mrb[0].mxu0 %v2599
      %v3345 = vpop.f32.mrb[0].mxu0
      %v3346 = vadd.f32 %v3057, %v3345
      %v3347 = vpop.f32.mrb[0].mxu0
      %v3348 = vpop.f32.mrb[0].mxu0
      %v3349 = vadd.f32 %v3060, %v3348
      %v3350 = vpop.f32.mrb[0].mxu0
      %3351 = vmatprep.mubr.bf16.mxu0 %v2930
      %3352 = vmatmul.mubr.bf16.gmra.mrb[0].mxu0 %v2603
      %v3353 = vpop.f32.mrb[0].mxu0
      %v3354 = vadd.f32 %v3065, %v3353
      %v3355 = vpop.f32.mrb[0].mxu0
      %v3356 = vpop.f32.mrb[0].mxu0
      %v3357 = vadd.f32 %v3068, %v3356
      %v3358 = vpop.f32.mrb[0].mxu0
      %3359 = vmatprep.mubr.bf16.mxu0 %v2933
      %3360 = vmatmul.mubr.bf16.gmra.mrb[0].mxu0 %v2607
      %v3361 = vpop.f32.mrb[0].mxu0
      %v3362 = vadd.f32 %v3073, %v3361
      %v3363 = vpop.f32.mrb[0].mxu0
      %v3364 = vpop.f32.mrb[0].mxu0
      %v3365 = vadd.f32 %v3076, %v3364
      %v3366 = vpop.f32.mrb[0].mxu0
      %3367 = vmatprep.mubr.bf16.mxu0 %v2936
      %3368 = vmatmul.mubr.bf16.gmra.mrb[0].mxu0 %v2611
      %v3369 = vpop.f32.mrb[0].mxu0
      %v3370 = vadd.f32 %v3081, %v3369
      %v3371 = vpop.f32.mrb[0].mxu0
      %v3372 = vpop.f32.mrb[0].mxu0
      %v3373 = vadd.f32 %v3084, %v3372
      %v3374 = vpop.f32.mrb[0].mxu0
      %3375 = vmatprep.mubr.bf16.mxu0 %v2939
      %3376 = vmatmul.mubr.bf16.gmra.mrb[0].mxu0 %v2615
      %v3377 = vpop.f32.mrb[0].mxu0
      %v3378 = vadd.f32 %v3089, %v3377
      %v3379 = vpop.f32.mrb[0].mxu0
      %v3380 = vpop.f32.mrb[0].mxu0
      %v3381 = vadd.f32 %v3092, %v3380
      %v3382 = vpop.f32.mrb[0].mxu0
      %3383 = vmatprep.mubr.bf16.mxu0 %v2942
      %3384 = vmatmul.mubr.bf16.gmra.mrb[0].mxu0 %v2619
      %v3385 = vpop.f32.mrb[0].mxu0
      %v3386 = vadd.f32 %v3097, %v3385
      %v3387 = vpop.f32.mrb[0].mxu0
      %v3388 = vpop.f32.mrb[0].mxu0
      %v3389 = vadd.f32 %v3100, %v3388
      %v3390 = vpop.f32.mrb[0].mxu0
      %3391 = vmatprep.mubr.bf16.mxu0 %v2945
      %3392 = vmatmul.mubr.bf16.gmra.mrb[0].mxu0 %v2623
      %v3393 = vpop.f32.mrb[0].mxu0
      %v3394 = vadd.f32 %v3105, %v3393
      %v3395 = vpop.f32.mrb[0].mxu0
      %v3396 = vpop.f32.mrb[0].mxu0
      %v3397 = vadd.f32 %v3108, %v3396
      %v3398 = vpop.f32.mrb[0].mxu0
      %3399 = vmatprep.mubr.bf16.mxu0 %v2948
      %3400 = vmatmul.mubr.bf16.gmra.mrb[0].mxu0 %v2627
      %v3401 = vpop.f32.mrb[0].mxu0
      %v3402 = vadd.f32 %v3113, %v3401
      %v3403 = vpop.f32.mrb[0].mxu0
      %v3404 = vpop.f32.mrb[0].mxu0
      %v3405 = vadd.f32 %v3116, %v3404
      %v3406 = vpop.f32.mrb[0].mxu0
      %3407 = vmatprep.mubr.bf16.mxu0 %v2951
      %3408 = vmatmul.mubr.bf16.gmra.mrb[0].mxu0 %v2631
      %v3409 = vpop.f32.mrb[0].mxu0
      %v3410 = vadd.f32 %v3121, %v3409
      %v3411 = vpop.f32.mrb[0].mxu0
      %v3412 = vpop.f32.mrb[0].mxu0
      %v3413 = vadd.f32 %v3124, %v3412
      %v3414 = vpop.f32.mrb[0].mxu0
      %3415 = vmatprep.mubr.bf16.mxu0 %v2954
      %3416 = vmatmul.mubr.bf16.gmra.mrb[0].mxu0 %v2635
      %v3417 = vpop.f32.mrb[0].mxu0
      %v3418 = vadd.f32 %v3129, %v3417
      %v3419 = vpop.f32.mrb[0].mxu0
      %v3420 = vpop.f32.mrb[0].mxu0
      %v3421 = vadd.f32 %v3132, %v3420
      %v3422 = vpop.f32.mrb[0].mxu0
      %3423 = vmatprep.mubr.bf16.mxu0 %v2957
      %3424 = vmatmul.mubr.bf16.gmra.mrb[0].mxu0 %v2639
      %v3425 = vpop.f32.mrb[0].mxu0
      %v3426 = vadd.f32 %v3137, %v3425
      %v3427 = vpop.f32.mrb[0].mxu0
      %v3428 = vpop.f32.mrb[0].mxu0
      %v3429 = vadd.f32 %v3140, %v3428
      %v3430 = vpop.f32.mrb[0].mxu0
      %3431 = vmatprep.mubr.bf16.mxu0 %v2960
      %3432 = vmatmul.mubr.bf16.gmra.mrb[0].mxu0 %v2643
      %v3433 = vpop.f32.mrb[0].mxu0
      %v3434 = vadd.f32 %v3145, %v3433
      %v3435 = vpop.f32.mrb[0].mxu0
      %v3436 = vpop.f32.mrb[0].mxu0
      %v3437 = vadd.f32 %v3148, %v3436
      %v3438 = vpop.f32.mrb[0].mxu0
      %3439 = vmatprep.mubr.bf16.mxu0 %v2963
      %3440 = vmatmul.mubr.bf16.gmra.mrb[0].mxu0 %v2647
      %v3441 = vpop.f32.mrb[0].mxu0
      %v3442 = vadd.f32 %v3153, %v3441
      %v3443 = vpop.f32.mrb[0].mxu0
      %v3444 = vpop.f32.mrb[0].mxu0
      %v3445 = vadd.f32 %v3156, %v3444
      %v3446 = vpop.f32.mrb[0].mxu0
      %3447 = vmatprep.mubr.bf16.mxu0 %v2966
      %3448 = vmatmul.mubr.bf16.gmra.mrb[0].mxu0 %v2651
      %v3449 = vpop.f32.mrb[0].mxu0
      %v3450 = vadd.f32 %v3161, %v3449
      %v3451 = vpop.f32.mrb[0].mxu0
      %v3452 = vpop.f32.mrb[0].mxu0
      %v3453 = vadd.f32 %v3164, %v3452
      %v3454 = vpop.f32.mrb[0].mxu0
      %3455 = vmatprep.mubr.bf16.mxu0 %v2969
      %3456 = vmatmul.mubr.bf16.gmra.mrb[0].mxu0 %v2655
      %v3457 = vpop.f32.mrb[0].mxu0
      %v3458 = vadd.f32 %v3169, %v3457
      %v3459 = vpop.f32.mrb[0].mxu0
      %v3460 = vpop.f32.mrb[0].mxu0
      %v3461 = vadd.f32 %v3172, %v3460
      %v3462 = vpop.f32.mrb[0].mxu0
      %3463 = vmatprep.mubr.bf16.mxu0 %v2972
      %3464 = vmatmul.mubr.bf16.gmra.mrb[0].mxu0 %v2659
      %v3465 = vpop.f32.mrb[0].mxu0
      %v3466 = vadd.f32 %v3177, %v3465
      %v3467 = vpop.f32.mrb[0].mxu0
      %v3468 = vpop.f32.mrb[0].mxu0
      %v3469 = vadd.f32 %v3180, %v3468
      %v3470 = vpop.f32.mrb[0].mxu0
      %3471 = vmatprep.mubr.bf16.mxu0 %v2975
      %3472 = vmatmul.mubr.bf16.gmra.mrb[0].mxu0 %v2663
      %v3473 = vpop.f32.mrb[0].mxu0
      %v3474 = vadd.f32 %v3185, %v3473
      %v3475 = vpop.f32.mrb[0].mxu0
      %v3476 = vpop.f32.mrb[0].mxu0
      %v3477 = vadd.f32 %v3188, %v3476
      %v3478 = vpop.f32.mrb[0].mxu0
      %3479 = vmatprep.mubr.bf16.mxu0 %v2978
      %3480 = vmatmul.mubr.bf16.gmra.mrb[0].mxu0 %v2667
      %v3481 = vpop.f32.mrb[0].mxu0
      %v3482 = vadd.f32 %v3193, %v3481
      %v3483 = vpop.f32.mrb[0].mxu0
      %v3484 = vpop.f32.mrb[0].mxu0
      %v3485 = vadd.f32 %v3196, %v3484
      %v3486 = vpop.f32.mrb[0].mxu0
      %3487 = vmatprep.mubr.bf16.mxu0 %v2981
      %3488 = vmatmul.mubr.bf16.gmra.mrb[0].mxu0 %v2671
      %v3489 = vpop.f32.mrb[0].mxu0
      %v3490 = vadd.f32 %v3201, %v3489
      %v3491 = vpop.f32.mrb[0].mxu0
      %v3492 = vpop.f32.mrb[0].mxu0
      %v3493 = vadd.f32 %v3204, %v3492
      %v3494 = vpop.f32.mrb[0].mxu0
      %3495 = vmatprep.mubr.bf16.mxu0 %v2984
      %3496 = vmatmul.mubr.bf16.gmra.mrb[0].mxu0 %v2675
      %v3497 = vpop.f32.mrb[0].mxu0
      %v3498 = vadd.f32 %v3209, %v3497
      %v3499 = vpop.f32.mrb[0].mxu0
      %v3500 = vpop.f32.mrb[0].mxu0
      %v3501 = vadd.f32 %v3212, %v3500
      %v3502 = vpop.f32.mrb[0].mxu0
      %3503 = vmatprep.mubr.bf16.mxu0 %v2987
      %3504 = vmatmul.mubr.bf16.gmra.mrb[0].mxu0 %v2679
      %v3505 = vpop.f32.mrb[0].mxu0
      %v3506 = vadd.f32 %v3217, %v3505
      %v3507 = vpop.f32.mrb[0].mxu0
      %v3508 = vpop.f32.mrb[0].mxu0
      %v3509 = vadd.f32 %v3220, %v3508
      %v3510 = vpop.f32.mrb[0].mxu0
      %3511 = vmatprep.mubr.bf16.mxu0 %v2990
      %3512 = vmatmul.mubr.bf16.gmra.mrb[0].mxu0 %v2683
      %v3513 = vpop.f32.mrb[0].mxu0
      %v3514 = vadd.f32 %v3225, %v3513
      %v3515 = vpop.f32.mrb[0].mxu0
      %v3516 = vpop.f32.mrb[0].mxu0
      %v3517 = vadd.f32 %v3228, %v3516
      %v3518 = vpop.f32.mrb[0].mxu0
      %3519 = vmatprep.mubr.bf16.mxu0 %v2993
      %3520 = vmatmul.mubr.bf16.gmra.mrb[0].mxu0 %v2687
      %v3521 = vpop.f32.mrb[0].mxu0
      %v3522 = vadd.f32 %v3233, %v3521
      %v3523 = vpop.f32.mrb[0].mxu0
      %v3524 = vpop.f32.mrb[0].mxu0
      %v3525 = vadd.f32 %v3236, %v3524
      %v3526 = vpop.f32.mrb[0].mxu0
      %3527 = vmatprep.mubr.bf16.mxu0 %v2996
      %3528 = vmatmul.mubr.bf16.gmra.mrb[0].mxu0 %v2691
      %v3529 = vpop.f32.mrb[0].mxu0
      %v3530 = vadd.f32 %v3241, %v3529
      %v3531 = vpop.f32.mrb[0].mxu0
      %v3532 = vpop.f32.mrb[0].mxu0
      %v3533 = vadd.f32 %v3244, %v3532
      %v3534 = vpop.f32.mrb[0].mxu0
      %3535 = vmatprep.mubr.bf16.mxu0 %v2999
      %3536 = vmatmul.mubr.bf16.gmra.mrb[0].mxu0 %v2695
      %v3537 = vpop.f32.mrb[0].mxu0
      %v3538 = vadd.f32 %v3249, %v3537
      %v3539 = vpop.f32.mrb[0].mxu0
      %v3540 = vpop.f32.mrb[0].mxu0
      %v3541 = vadd.f32 %v3252, %v3540
      %v3542 = vpop.f32.mrb[0].mxu0
      %3543 = vmatprep.mubr.bf16.mxu0 %v3002
      %3544 = vmatmul.mubr.bf16.gmra.mrb[0].mxu0 %v2699
      %v3545 = vpop.f32.mrb[0].mxu0
      %v3546 = vadd.f32 %v3257, %v3545
      %v3547 = vpop.f32.mrb[0].mxu0
      %v3548 = vpop.f32.mrb[0].mxu0
      %v3549 = vadd.f32 %v3260, %v3548
      %v3550 = vpop.f32.mrb[0].mxu0
      %3551 = vmatprep.mubr.bf16.mxu0 %v3005
      %3552 = vmatmul.mubr.bf16.gmra.mrb[0].mxu0 %v2703
      %v3553 = vpop.f32.mrb[0].mxu0
      %v3554 = vadd.f32 %v3265, %v3553
      %v3555 = vpop.f32.mrb[0].mxu0
      %v3556 = vpop.f32.mrb[0].mxu0
      %v3557 = vadd.f32 %v3268, %v3556
      %v3558 = vpop.f32.mrb[0].mxu0
      %3559 = vmatprep.mubr.bf16.mxu0 %v3008
      %3560 = vmatmul.mubr.bf16.gmra.mrb[0].mxu0 %v2707
      %v3561 = vpop.f32.mrb[0].mxu0
      %v3562 = vadd.f32 %v3273, %v3561
      %v3563 = vpop.f32.mrb[0].mxu0
      %v3564 = vpop.f32.mrb[0].mxu0
      %v3565 = vadd.f32 %v3276, %v3564
      %v3566 = vpop.f32.mrb[0].mxu0
      %3567 = vmatprep.mubr.bf16.mxu0 %v3011
      %3568 = vmatmul.mubr.bf16.gmra.mrb[0].mxu0 %v2711
      %v3569 = vpop.f32.mrb[0].mxu0
      %v3570 = vadd.f32 %v3281, %v3569
      %v3571 = vpop.f32.mrb[0].mxu0
      %v3572 = vpop.f32.mrb[0].mxu0
      %v3573 = vadd.f32 %v3284, %v3572
      %v3574 = vpop.f32.mrb[0].mxu0
      %3575 = vmatprep.mubr.bf16.mxu0 %v3014
      %3576 = vmatmul.mubr.bf16.gmra.mrb[0].mxu0 %v2715
      %v3577 = vpop.f32.mrb[0].mxu0
      %v3578 = vadd.f32 %v3289, %v3577
      %v3579 = vpop.f32.mrb[0].mxu0
      %v3580 = vpop.f32.mrb[0].mxu0
      %v3581 = vadd.f32 %v3292, %v3580
      %v3582 = vpop.f32.mrb[0].mxu0
      %3583 = vmatprep.mubr.bf16.mxu0 %v3017
      %3584 = vmatmul.mubr.bf16.gmra.mrb[0].mxu0 %v2719
      %v3585 = vpop.f32.mrb[0].mxu0
      %v3586 = vadd.f32 %v3297, %v3585
      %v3587 = vpop.f32.mrb[0].mxu0
      %v3588 = vpop.f32.mrb[0].mxu0
      %v3589 = vadd.f32 %v3300, %v3588
      %v3590 = vpop.f32.mrb[0].mxu0
      %3591 = vmatprep.mubr.bf16.mxu0 %v3020
      %3592 = vmatmul.mubr.bf16.gmra.mrb[0].mxu0 %v2723
      %v3593 = vpop.f32.mrb[0].mxu0
      %v3594 = vadd.f32 %v3305, %v3593
      %v3595 = vpop.f32.mrb[0].mxu0
      %v3596 = vpop.f32.mrb[0].mxu0
      %v3597 = vadd.f32 %v3308, %v3596
      %v3598 = vpop.f32.mrb[0].mxu0
      %3599 = vdwg.mxu0
      %3664 = vrot.lane.b32.xlu0 %v3346, 88
      %v3665 = vpop.permute.xlu0 %3664
      %3666 = vrot.lane.b32.xlu0 %v3349, 88
      %v3667 = vpop.permute.xlu0 %3666
      %3668 = vrot.lane.b32.xlu0 %v3354, 88
      %v3669 = vpop.permute.xlu0 %3668
      %3670 = vrot.lane.b32.xlu0 %v3357, 88
      %v3671 = vpop.permute.xlu0 %3670
      %3672 = vrot.lane.b32.xlu0 %v3362, 88
      %v3673 = vpop.permute.xlu0 %3672
      %3674 = vrot.lane.b32.xlu0 %v3365, 88
      %v3675 = vpop.permute.xlu0 %3674
      %3676 = vrot.lane.b32.xlu0 %v3370, 88
      %v3677 = vpop.permute.xlu0 %3676
      %3678 = vrot.lane.b32.xlu0 %v3373, 88
      %v3679 = vpop.permute.xlu0 %3678
      %3680 = vrot.lane.b32.xlu0 %v3378, 88
      %v3681 = vpop.permute.xlu0 %3680
      %3682 = vrot.lane.b32.xlu0 %v3381, 88
      %v3683 = vpop.permute.xlu0 %3682
      %3684 = vrot.lane.b32.xlu0 %v3386, 88
      %v3685 = vpop.permute.xlu0 %3684
      %3686 = vrot.lane.b32.xlu0 %v3389, 88
      %v3687 = vpop.permute.xlu0 %3686
      %3688 = vrot.lane.b32.xlu0 %v3394, 88
      %v3689 = vpop.permute.xlu0 %3688
      %3690 = vrot.lane.b32.xlu0 %v3397, 88
      %v3691 = vpop.permute.xlu0 %3690
      %3692 = vrot.lane.b32.xlu0 %v3402, 88
      %v3693 = vpop.permute.xlu0 %3692
      %3694 = vrot.lane.b32.xlu0 %v3405, 88
      %v3695 = vpop.permute.xlu0 %3694
      %3696 = vrot.lane.b32.xlu0 %v3410, 88
      %v3697 = vpop.permute.xlu0 %3696
      %3698 = vrot.lane.b32.xlu0 %v3413, 88
      %v3699 = vpop.permute.xlu0 %3698
      %3700 = vrot.lane.b32.xlu0 %v3418, 88
      %v3701 = vpop.permute.xlu0 %3700
      %3702 = vrot.lane.b32.xlu0 %v3421, 88
      %v3703 = vpop.permute.xlu0 %3702
      %3704 = vrot.lane.b32.xlu0 %v3426, 88
      %v3705 = vpop.permute.xlu0 %3704
      %3706 = vrot.lane.b32.xlu0 %v3429, 88
      %v3707 = vpop.permute.xlu0 %3706
      %3708 = vrot.lane.b32.xlu0 %v3434, 88
      %v3709 = vpop.permute.xlu0 %3708
      %3710 = vrot.lane.b32.xlu0 %v3437, 88
      %v3711 = vpop.permute.xlu0 %3710
      %3712 = vrot.lane.b32.xlu0 %v3442, 88
      %v3713 = vpop.permute.xlu0 %3712
      %3714 = vrot.lane.b32.xlu0 %v3445, 88
      %v3715 = vpop.permute.xlu0 %3714
      %3716 = vrot.lane.b32.xlu0 %v3450, 88
      %v3717 = vpop.permute.xlu0 %3716
      %3718 = vrot.lane.b32.xlu0 %v3453, 88
      %v3719 = vpop.permute.xlu0 %3718
      %3720 = vrot.lane.b32.xlu0 %v3458, 88
      %v3721 = vpop.permute.xlu0 %3720
      %3722 = vrot.lane.b32.xlu0 %v3461, 88
      %v3723 = vpop.permute.xlu0 %3722
      %3724 = vrot.lane.b32.xlu0 %v3466, 88
      %v3725 = vpop.permute.xlu0 %3724
      %3726 = vrot.lane.b32.xlu0 %v3469, 88
      %v3727 = vpop.permute.xlu0 %3726
      %3728 = vrot.lane.b32.xlu0 %v3474, 88
      %v3729 = vpop.permute.xlu0 %3728
      %3730 = vrot.lane.b32.xlu0 %v3477, 88
      %v3731 = vpop.permute.xlu0 %3730
      %3732 = vrot.lane.b32.xlu0 %v3482, 88
      %v3733 = vpop.permute.xlu0 %3732
      %3734 = vrot.lane.b32.xlu0 %v3485, 88
      %v3735 = vpop.permute.xlu0 %3734
      %3736 = vrot.lane.b32.xlu0 %v3490, 88
      %v3737 = vpop.permute.xlu0 %3736
      %3738 = vrot.lane.b32.xlu0 %v3493, 88
      %v3739 = vpop.permute.xlu0 %3738
      %3740 = vrot.lane.b32.xlu0 %v3498, 88
      %v3741 = vpop.permute.xlu0 %3740
      %3742 = vrot.lane.b32.xlu0 %v3501, 88
      %v3743 = vpop.permute.xlu0 %3742
      %3744 = vrot.lane.b32.xlu0 %v3506, 88
      %v3745 = vpop.permute.xlu0 %3744
      %3746 = vrot.lane.b32.xlu0 %v3509, 88
      %v3747 = vpop.permute.xlu0 %3746
      %3748 = vrot.lane.b32.xlu0 %v3514, 88
      %v3749 = vpop.permute.xlu0 %3748
      %3750 = vrot.lane.b32.xlu0 %v3517, 88
      %v3751 = vpop.permute.xlu0 %3750
      %3752 = vrot.lane.b32.xlu0 %v3522, 88
      %v3753 = vpop.permute.xlu0 %3752
      %3754 = vrot.lane.b32.xlu0 %v3525, 88
      %v3755 = vpop.permute.xlu0 %3754
      %3756 = vrot.lane.b32.xlu0 %v3530, 88
      %v3757 = vpop.permute.xlu0 %3756
      %3758 = vrot.lane.b32.xlu0 %v3533, 88
      %v3759 = vpop.permute.xlu0 %3758
      %3760 = vrot.lane.b32.xlu0 %v3538, 88
      %v3761 = vpop.permute.xlu0 %3760
      %3762 = vrot.lane.b32.xlu0 %v3541, 88
      %v3763 = vpop.permute.xlu0 %3762
      %3764 = vrot.lane.b32.xlu0 %v3546, 88
      %v3765 = vpop.permute.xlu0 %3764
      %3766 = vrot.lane.b32.xlu0 %v3549, 88
      %v3767 = vpop.permute.xlu0 %3766
      %3768 = vrot.lane.b32.xlu0 %v3554, 88
      %v3769 = vpop.permute.xlu0 %3768
      %3770 = vrot.lane.b32.xlu0 %v3557, 88
      %v3771 = vpop.permute.xlu0 %3770
      %3772 = vrot.lane.b32.xlu0 %v3562, 88
      %v3773 = vpop.permute.xlu0 %3772
      %3774 = vrot.lane.b32.xlu0 %v3565, 88
      %v3775 = vpop.permute.xlu0 %3774
      %3776 = vrot.lane.b32.xlu0 %v3570, 88
      %v3777 = vpop.permute.xlu0 %3776
      %3778 = vrot.lane.b32.xlu0 %v3573, 88
      %v3779 = vpop.permute.xlu0 %3778
      %3780 = vrot.lane.b32.xlu0 %v3578, 88
      %v3781 = vpop.permute.xlu0 %3780
      %3782 = vrot.lane.b32.xlu0 %v3581, 88
      %v3783 = vpop.permute.xlu0 %3782
      %3784 = vrot.lane.b32.xlu0 %v3586, 88
      %v3785 = vpop.permute.xlu0 %3784
      %3786 = vrot.lane.b32.xlu0 %v3589, 88
      %v3787 = vpop.permute.xlu0 %3786
      %3788 = vrot.lane.b32.xlu0 %v3594, 88
      %v3789 = vpop.permute.xlu0 %3788
      %3790 = vrot.lane.b32.xlu0 %v3597, 88
      %v3791 = vpop.permute.xlu0 %3790
      %v3856 = vadd.f32 %v3346, %v3665
      %v3857 = vadd.f32 %v3349, %v3667
      %v3858 = vadd.f32 %v3354, %v3669
      %v3859 = vadd.f32 %v3357, %v3671
      %v3860 = vadd.f32 %v3362, %v3673
      %v3861 = vadd.f32 %v3365, %v3675
      %v3862 = vadd.f32 %v3370, %v3677
      %v3863 = vadd.f32 %v3373, %v3679
      %v3864 = vadd.f32 %v3378, %v3681
      %v3865 = vadd.f32 %v3381, %v3683
      %v3866 = vadd.f32 %v3386, %v3685
      %v3867 = vadd.f32 %v3389, %v3687
      %v3868 = vadd.f32 %v3394, %v3689
      %v3869 = vadd.f32 %v3397, %v3691
      %v3870 = vadd.f32 %v3402, %v3693
      %v3871 = vadd.f32 %v3405, %v3695
      %v3872 = vadd.f32 %v3410, %v3697
      %v3873 = vadd.f32 %v3413, %v3699
      %v3874 = vadd.f32 %v3418, %v3701
      %v3875 = vadd.f32 %v3421, %v3703
      %v3876 = vadd.f32 %v3426, %v3705
      %v3877 = vadd.f32 %v3429, %v3707
      %v3878 = vadd.f32 %v3434, %v3709
      %v3879 = vadd.f32 %v3437, %v3711
      %v3880 = vadd.f32 %v3442, %v3713
      %v3881 = vadd.f32 %v3445, %v3715
      %v3882 = vadd.f32 %v3450, %v3717
      %v3883 = vadd.f32 %v3453, %v3719
      %v3884 = vadd.f32 %v3458, %v3721
      %v3885 = vadd.f32 %v3461, %v3723
      %v3886 = vadd.f32 %v3466, %v3725
      %v3887 = vadd.f32 %v3469, %v3727
      %v3888 = vadd.f32 %v3474, %v3729
      %v3889 = vadd.f32 %v3477, %v3731
      %v3890 = vadd.f32 %v3482, %v3733
      %v3891 = vadd.f32 %v3485, %v3735
      %v3892 = vadd.f32 %v3490, %v3737
      %v3893 = vadd.f32 %v3493, %v3739
      %v3894 = vadd.f32 %v3498, %v3741
      %v3895 = vadd.f32 %v3501, %v3743
      %v3896 = vadd.f32 %v3506, %v3745
      %v3897 = vadd.f32 %v3509, %v3747
      %v3898 = vadd.f32 %v3514, %v3749
      %v3899 = vadd.f32 %v3517, %v3751
      %v3900 = vadd.f32 %v3522, %v3753
      %v3901 = vadd.f32 %v3525, %v3755
      %v3902 = vadd.f32 %v3530, %v3757
      %v3903 = vadd.f32 %v3533, %v3759
      %v3904 = vadd.f32 %v3538, %v3761
      %v3905 = vadd.f32 %v3541, %v3763
      %v3906 = vadd.f32 %v3546, %v3765
      %v3907 = vadd.f32 %v3549, %v3767
      %v3908 = vadd.f32 %v3554, %v3769
      %v3909 = vadd.f32 %v3557, %v3771
      %v3910 = vadd.f32 %v3562, %v3773
      %v3911 = vadd.f32 %v3565, %v3775
      %v3912 = vadd.f32 %v3570, %v3777
      %v3913 = vadd.f32 %v3573, %v3779
      %v3914 = vadd.f32 %v3578, %v3781
      %v3915 = vadd.f32 %v3581, %v3783
      %v3916 = vadd.f32 %v3586, %v3785
      %v3917 = vadd.f32 %v3589, %v3787
      %v3918 = vadd.f32 %v3594, %v3789
      %v3919 = vadd.f32 %v3597, %v3791
      %v3920 = vmul.f32 %v3856, %v3856
      %v3921 = vmul.f32 %v3857, %v3857
      %v3922 = vmul.f32 %v3858, %v3858
      %v3923 = vmul.f32 %v3859, %v3859
      %v3924 = vmul.f32 %v3860, %v3860
      %v3925 = vmul.f32 %v3861, %v3861
      %v3926 = vmul.f32 %v3862, %v3862
      %v3927 = vmul.f32 %v3863, %v3863
      %v3928 = vmul.f32 %v3864, %v3864
      %v3929 = vmul.f32 %v3865, %v3865
      %v3930 = vmul.f32 %v3866, %v3866
      %v3931 = vmul.f32 %v3867, %v3867
      %v3932 = vmul.f32 %v3868, %v3868
      %v3933 = vmul.f32 %v3869, %v3869
      %v3934 = vmul.f32 %v3870, %v3870
      %v3935 = vmul.f32 %v3871, %v3871
      %v3936 = vmul.f32 %v3872, %v3872
      %v3937 = vmul.f32 %v3873, %v3873
      %v3938 = vmul.f32 %v3874, %v3874
      %v3939 = vmul.f32 %v3875, %v3875
      %v3940 = vmul.f32 %v3876, %v3876
      %v3941 = vmul.f32 %v3877, %v3877
      %v3942 = vmul.f32 %v3878, %v3878
      %v3943 = vmul.f32 %v3879, %v3879
      %v3944 = vmul.f32 %v3880, %v3880
      %v3945 = vmul.f32 %v3881, %v3881
      %v3946 = vmul.f32 %v3882, %v3882
      %v3947 = vmul.f32 %v3883, %v3883
      %v3948 = vmul.f32 %v3884, %v3884
      %v3949 = vmul.f32 %v3885, %v3885
      %v3950 = vmul.f32 %v3886, %v3886
      %v3951 = vmul.f32 %v3887, %v3887
      %v3952 = vmul.f32 %v3888, %v3888
      %v3953 = vmul.f32 %v3889, %v3889
      %v3954 = vmul.f32 %v3890, %v3890
      %v3955 = vmul.f32 %v3891, %v3891
      %v3956 = vmul.f32 %v3892, %v3892
      %v3957 = vmul.f32 %v3893, %v3893
      %v3958 = vmul.f32 %v3894, %v3894
      %v3959 = vmul.f32 %v3895, %v3895
      %v3960 = vmul.f32 %v3896, %v3896
      %v3961 = vmul.f32 %v3897, %v3897
      %v3962 = vmul.f32 %v3898, %v3898
      %v3963 = vmul.f32 %v3899, %v3899
      %v3964 = vmul.f32 %v3900, %v3900
      %v3965 = vmul.f32 %v3901, %v3901
      %v3966 = vmul.f32 %v3902, %v3902
      %v3967 = vmul.f32 %v3903, %v3903
      %v3968 = vmul.f32 %v3904, %v3904
      %v3969 = vmul.f32 %v3905, %v3905
      %v3970 = vmul.f32 %v3906, %v3906
      %v3971 = vmul.f32 %v3907, %v3907
      %v3972 = vmul.f32 %v3908, %v3908
      %v3973 = vmul.f32 %v3909, %v3909
      %v3974 = vmul.f32 %v3910, %v3910
      %v3975 = vmul.f32 %v3911, %v3911
      %v3976 = vmul.f32 %v3912, %v3912
      %v3977 = vmul.f32 %v3913, %v3913
      %v3978 = vmul.f32 %v3914, %v3914
      %v3979 = vmul.f32 %v3915, %v3915
      %v3980 = vmul.f32 %v3916, %v3916
      %v3981 = vmul.f32 %v3917, %v3917
      %v3982 = vmul.f32 %v3918, %v3918
      %v3983 = vmul.f32 %v3919, %v3919
      %4048 = vrot.lane.b32.xlu0 %v3920, 92
      %v4049 = vpop.permute.xlu0 %4048
      %4050 = vrot.lane.b32.xlu0 %v3921, 92
      %v4051 = vpop.permute.xlu0 %4050
      %4052 = vrot.lane.b32.xlu0 %v3922, 92
      %v4053 = vpop.permute.xlu0 %4052
      %4054 = vrot.lane.b32.xlu0 %v3923, 92
      %v4055 = vpop.permute.xlu0 %4054
      %4056 = vrot.lane.b32.xlu0 %v3924, 92
      %v4057 = vpop.permute.xlu0 %4056
      %4058 = vrot.lane.b32.xlu0 %v3925, 92
      %v4059 = vpop.permute.xlu0 %4058
      %4060 = vrot.lane.b32.xlu0 %v3926, 92
      %v4061 = vpop.permute.xlu0 %4060
      %4062 = vrot.lane.b32.xlu0 %v3927, 92
      %v4063 = vpop.permute.xlu0 %4062
      %4064 = vrot.lane.b32.xlu0 %v3928, 92
      %v4065 = vpop.permute.xlu0 %4064
      %4066 = vrot.lane.b32.xlu0 %v3929, 92
      %v4067 = vpop.permute.xlu0 %4066
      %4068 = vrot.lane.b32.xlu0 %v3930, 92
      %v4069 = vpop.permute.xlu0 %4068
      %4070 = vrot.lane.b32.xlu0 %v3931, 92
      %v4071 = vpop.permute.xlu0 %4070
      %4072 = vrot.lane.b32.xlu0 %v3932, 92
      %v4073 = vpop.permute.xlu0 %4072
      %4074 = vrot.lane.b32.xlu0 %v3933, 92
      %v4075 = vpop.permute.xlu0 %4074
      %4076 = vrot.lane.b32.xlu0 %v3934, 92
      %v4077 = vpop.permute.xlu0 %4076
      %4078 = vrot.lane.b32.xlu0 %v3935, 92
      %v4079 = vpop.permute.xlu0 %4078
      %4080 = vrot.lane.b32.xlu0 %v3936, 92
      %v4081 = vpop.permute.xlu0 %4080
      %4082 = vrot.lane.b32.xlu0 %v3937, 92
      %v4083 = vpop.permute.xlu0 %4082
      %4084 = vrot.lane.b32.xlu0 %v3938, 92
      %v4085 = vpop.permute.xlu0 %4084
      %4086 = vrot.lane.b32.xlu0 %v3939, 92
      %v4087 = vpop.permute.xlu0 %4086
      %4088 = vrot.lane.b32.xlu0 %v3940, 92
      %v4089 = vpop.permute.xlu0 %4088
      %4090 = vrot.lane.b32.xlu0 %v3941, 92
      %v4091 = vpop.permute.xlu0 %4090
      %4092 = vrot.lane.b32.xlu0 %v3942, 92
      %v4093 = vpop.permute.xlu0 %4092
      %4094 = vrot.lane.b32.xlu0 %v3943, 92
      %v4095 = vpop.permute.xlu0 %4094
      %4096 = vrot.lane.b32.xlu0 %v3944, 92
      %v4097 = vpop.permute.xlu0 %4096
      %4098 = vrot.lane.b32.xlu0 %v3945, 92
      %v4099 = vpop.permute.xlu0 %4098
      %4100 = vrot.lane.b32.xlu0 %v3946, 92
      %v4101 = vpop.permute.xlu0 %4100
      %4102 = vrot.lane.b32.xlu0 %v3947, 92
      %v4103 = vpop.permute.xlu0 %4102
      %4104 = vrot.lane.b32.xlu0 %v3948, 92
      %v4105 = vpop.permute.xlu0 %4104
      %4106 = vrot.lane.b32.xlu0 %v3949, 92
      %v4107 = vpop.permute.xlu0 %4106
      %4108 = vrot.lane.b32.xlu0 %v3950, 92
      %v4109 = vpop.permute.xlu0 %4108
      %4110 = vrot.lane.b32.xlu0 %v3951, 92
      %v4111 = vpop.permute.xlu0 %4110
      %4112 = vrot.lane.b32.xlu0 %v3952, 92
      %v4113 = vpop.permute.xlu0 %4112
      %4114 = vrot.lane.b32.xlu0 %v3953, 92
      %v4115 = vpop.permute.xlu0 %4114
      %4116 = vrot.lane.b32.xlu0 %v3954, 92
      %v4117 = vpop.permute.xlu0 %4116
      %4118 = vrot.lane.b32.xlu0 %v3955, 92
      %v4119 = vpop.permute.xlu0 %4118
      %4120 = vrot.lane.b32.xlu0 %v3956, 92
      %v4121 = vpop.permute.xlu0 %4120
      %4122 = vrot.lane.b32.xlu0 %v3957, 92
      %v4123 = vpop.permute.xlu0 %4122
      %4124 = vrot.lane.b32.xlu0 %v3958, 92
      %v4125 = vpop.permute.xlu0 %4124
      %4126 = vrot.lane.b32.xlu0 %v3959, 92
      %v4127 = vpop.permute.xlu0 %4126
      %4128 = vrot.lane.b32.xlu0 %v3960, 92
      %v4129 = vpop.permute.xlu0 %4128
      %4130 = vrot.lane.b32.xlu0 %v3961, 92
      %v4131 = vpop.permute.xlu0 %4130
      %4132 = vrot.lane.b32.xlu0 %v3962, 92
      %v4133 = vpop.permute.xlu0 %4132
      %4134 = vrot.lane.b32.xlu0 %v3963, 92
      %v4135 = vpop.permute.xlu0 %4134
      %4136 = vrot.lane.b32.xlu0 %v3964, 92
      %v4137 = vpop.permute.xlu0 %4136
      %4138 = vrot.lane.b32.xlu0 %v3965, 92
      %v4139 = vpop.permute.xlu0 %4138
      %4140 = vrot.lane.b32.xlu0 %v3966, 92
      %v4141 = vpop.permute.xlu0 %4140
      %4142 = vrot.lane.b32.xlu0 %v3967, 92
      %v4143 = vpop.permute.xlu0 %4142
      %4144 = vrot.lane.b32.xlu0 %v3968, 92
      %v4145 = vpop.permute.xlu0 %4144
      %4146 = vrot.lane.b32.xlu0 %v3969, 92
      %v4147 = vpop.permute.xlu0 %4146
      %4148 = vrot.lane.b32.xlu0 %v3970, 92
      %v4149 = vpop.permute.xlu0 %4148
      %4150 = vrot.lane.b32.xlu0 %v3971, 92
      %v4151 = vpop.permute.xlu0 %4150
      %4152 = vrot.lane.b32.xlu0 %v3972, 92
      %v4153 = vpop.permute.xlu0 %4152
      %4154 = vrot.lane.b32.xlu0 %v3973, 92
      %v4155 = vpop.permute.xlu0 %4154
      %4156 = vrot.lane.b32.xlu0 %v3974, 92
      %v4157 = vpop.permute.xlu0 %4156
      %4158 = vrot.lane.b32.xlu0 %v3975, 92
      %v4159 = vpop.permute.xlu0 %4158
      %4160 = vrot.lane.b32.xlu0 %v3976, 92
      %v4161 = vpop.permute.xlu0 %4160
      %4162 = vrot.lane.b32.xlu0 %v3977, 92
      %v4163 = vpop.permute.xlu0 %4162
      %4164 = vrot.lane.b32.xlu0 %v3978, 92
      %v4165 = vpop.permute.xlu0 %4164
      %4166 = vrot.lane.b32.xlu0 %v3979, 92
      %v4167 = vpop.permute.xlu0 %4166
      %4168 = vrot.lane.b32.xlu0 %v3980, 92
      %v4169 = vpop.permute.xlu0 %4168
      %4170 = vrot.lane.b32.xlu0 %v3981, 92
      %v4171 = vpop.permute.xlu0 %4170
      %4172 = vrot.lane.b32.xlu0 %v3982, 92
      %v4173 = vpop.permute.xlu0 %4172
      %4174 = vrot.lane.b32.xlu0 %v3983, 92
      %v4175 = vpop.permute.xlu0 %4174
      %vm4240 = vcmask 31744
      %v4241 = vsel %vm4240, %v4049, 0.0
      %4242 = vadd.xlane.f32.xlu0 %v4241
      %v4243 = vpop.xlane.xlu0 %4242
      %v4244 = vsel %vm4240, %v4051, 0.0
      %4245 = vadd.xlane.f32.xlu0 %v4244
      %v4246 = vpop.xlane.xlu0 %4245
      %v4247 = vsel %vm4240, %v4053, 0.0
      %4248 = vadd.xlane.f32.xlu0 %v4247
      %v4249 = vpop.xlane.xlu0 %4248
      %v4250 = vsel %vm4240, %v4055, 0.0
      %4251 = vadd.xlane.f32.xlu0 %v4250
      %v4252 = vpop.xlane.xlu0 %4251
      %v4253 = vsel %vm4240, %v4057, 0.0
      %4254 = vadd.xlane.f32.xlu0 %v4253
      %v4255 = vpop.xlane.xlu0 %4254
      %v4256 = vsel %vm4240, %v4059, 0.0
      %4257 = vadd.xlane.f32.xlu0 %v4256
      %v4258 = vpop.xlane.xlu0 %4257
      %v4259 = vsel %vm4240, %v4061, 0.0
      %4260 = vadd.xlane.f32.xlu0 %v4259
      %v4261 = vpop.xlane.xlu0 %4260
      %v4262 = vsel %vm4240, %v4063, 0.0
      %4263 = vadd.xlane.f32.xlu0 %v4262
      %v4264 = vpop.xlane.xlu0 %4263
      %v4265 = vsel %vm4240, %v4065, 0.0
      %4266 = vadd.xlane.f32.xlu0 %v4265
      %v4267 = vpop.xlane.xlu0 %4266
      %v4268 = vsel %vm4240, %v4067, 0.0
      %4269 = vadd.xlane.f32.xlu0 %v4268
      %v4270 = vpop.xlane.xlu0 %4269
      %v4271 = vsel %vm4240, %v4069, 0.0
      %4272 = vadd.xlane.f32.xlu0 %v4271
      %v4273 = vpop.xlane.xlu0 %4272
      %v4274 = vsel %vm4240, %v4071, 0.0
      %4275 = vadd.xlane.f32.xlu0 %v4274
      %v4276 = vpop.xlane.xlu0 %4275
      %v4277 = vsel %vm4240, %v4073, 0.0
      %4278 = vadd.xlane.f32.xlu0 %v4277
      %v4279 = vpop.xlane.xlu0 %4278
      %v4280 = vsel %vm4240, %v4075, 0.0
      %4281 = vadd.xlane.f32.xlu0 %v4280
      %v4282 = vpop.xlane.xlu0 %4281
      %v4283 = vsel %vm4240, %v4077, 0.0
      %4284 = vadd.xlane.f32.xlu0 %v4283
      %v4285 = vpop.xlane.xlu0 %4284
      %v4286 = vsel %vm4240, %v4079, 0.0
      %4287 = vadd.xlane.f32.xlu0 %v4286
      %v4288 = vpop.xlane.xlu0 %4287
      %v4289 = vsel %vm4240, %v4081, 0.0
      %4290 = vadd.xlane.f32.xlu0 %v4289
      %v4291 = vpop.xlane.xlu0 %4290
      %v4292 = vsel %vm4240, %v4083, 0.0
      %4293 = vadd.xlane.f32.xlu0 %v4292
      %v4294 = vpop.xlane.xlu0 %4293
      %v4295 = vsel %vm4240, %v4085, 0.0
      %4296 = vadd.xlane.f32.xlu0 %v4295
      %v4297 = vpop.xlane.xlu0 %4296
      %v4298 = vsel %vm4240, %v4087, 0.0
      %4299 = vadd.xlane.f32.xlu0 %v4298
      %v4300 = vpop.xlane.xlu0 %4299
      %v4301 = vsel %vm4240, %v4089, 0.0
      %4302 = vadd.xlane.f32.xlu0 %v4301
      %v4303 = vpop.xlane.xlu0 %4302
      %v4304 = vsel %vm4240, %v4091, 0.0
      %4305 = vadd.xlane.f32.xlu0 %v4304
      %v4306 = vpop.xlane.xlu0 %4305
      %v4307 = vsel %vm4240, %v4093, 0.0
      %4308 = vadd.xlane.f32.xlu0 %v4307
      %v4309 = vpop.xlane.xlu0 %4308
      %v4310 = vsel %vm4240, %v4095, 0.0
      %4311 = vadd.xlane.f32.xlu0 %v4310
      %v4312 = vpop.xlane.xlu0 %4311
      %v4313 = vsel %vm4240, %v4097, 0.0
      %4314 = vadd.xlane.f32.xlu0 %v4313
      %v4315 = vpop.xlane.xlu0 %4314
      %v4316 = vsel %vm4240, %v4099, 0.0
      %4317 = vadd.xlane.f32.xlu0 %v4316
      %v4318 = vpop.xlane.xlu0 %4317
      %v4319 = vsel %vm4240, %v4101, 0.0
      %4320 = vadd.xlane.f32.xlu0 %v4319
      %v4321 = vpop.xlane.xlu0 %4320
      %v4322 = vsel %vm4240, %v4103, 0.0
      %4323 = vadd.xlane.f32.xlu0 %v4322
      %v4324 = vpop.xlane.xlu0 %4323
      %v4325 = vsel %vm4240, %v4105, 0.0
      %4326 = vadd.xlane.f32.xlu0 %v4325
      %v4327 = vpop.xlane.xlu0 %4326
      %v4328 = vsel %vm4240, %v4107, 0.0
      %4329 = vadd.xlane.f32.xlu0 %v4328
      %v4330 = vpop.xlane.xlu0 %4329
      %v4331 = vsel %vm4240, %v4109, 0.0
      %4332 = vadd.xlane.f32.xlu0 %v4331
      %v4333 = vpop.xlane.xlu0 %4332
      %v4334 = vsel %vm4240, %v4111, 0.0
      %4335 = vadd.xlane.f32.xlu0 %v4334
      %v4336 = vpop.xlane.xlu0 %4335
      %v4337 = vsel %vm4240, %v4113, 0.0
      %4338 = vadd.xlane.f32.xlu0 %v4337
      %v4339 = vpop.xlane.xlu0 %4338
      %v4340 = vsel %vm4240, %v4115, 0.0
      %4341 = vadd.xlane.f32.xlu0 %v4340
      %v4342 = vpop.xlane.xlu0 %4341
      %v4343 = vsel %vm4240, %v4117, 0.0
      %4344 = vadd.xlane.f32.xlu0 %v4343
      %v4345 = vpop.xlane.xlu0 %4344
      %v4346 = vsel %vm4240, %v4119, 0.0
      %4347 = vadd.xlane.f32.xlu0 %v4346
      %v4348 = vpop.xlane.xlu0 %4347
      %v4349 = vsel %vm4240, %v4121, 0.0
      %4350 = vadd.xlane.f32.xlu0 %v4349
      %v4351 = vpop.xlane.xlu0 %4350
      %v4352 = vsel %vm4240, %v4123, 0.0
      %4353 = vadd.xlane.f32.xlu0 %v4352
      %v4354 = vpop.xlane.xlu0 %4353
      %v4355 = vsel %vm4240, %v4125, 0.0
      %4356 = vadd.xlane.f32.xlu0 %v4355
      %v4357 = vpop.xlane.xlu0 %4356
      %v4358 = vsel %vm4240, %v4127, 0.0
      %4359 = vadd.xlane.f32.xlu0 %v4358
      %v4360 = vpop.xlane.xlu0 %4359
      %v4361 = vsel %vm4240, %v4129, 0.0
      %4362 = vadd.xlane.f32.xlu0 %v4361
      %v4363 = vpop.xlane.xlu0 %4362
      %v4364 = vsel %vm4240, %v4131, 0.0
      %4365 = vadd.xlane.f32.xlu0 %v4364
      %v4366 = vpop.xlane.xlu0 %4365
      %v4367 = vsel %vm4240, %v4133, 0.0
      %4368 = vadd.xlane.f32.xlu0 %v4367
      %v4369 = vpop.xlane.xlu0 %4368
      %v4370 = vsel %vm4240, %v4135, 0.0
      %4371 = vadd.xlane.f32.xlu0 %v4370
      %v4372 = vpop.xlane.xlu0 %4371
      %v4373 = vsel %vm4240, %v4137, 0.0
      %4374 = vadd.xlane.f32.xlu0 %v4373
      %v4375 = vpop.xlane.xlu0 %4374
      %v4376 = vsel %vm4240, %v4139, 0.0
      %4377 = vadd.xlane.f32.xlu0 %v4376
      %v4378 = vpop.xlane.xlu0 %4377
      %v4379 = vsel %vm4240, %v4141, 0.0
      %4380 = vadd.xlane.f32.xlu0 %v4379
      %v4381 = vpop.xlane.xlu0 %4380
      %v4382 = vsel %vm4240, %v4143, 0.0
      %4383 = vadd.xlane.f32.xlu0 %v4382
      %v4384 = vpop.xlane.xlu0 %4383
      %v4385 = vsel %vm4240, %v4145, 0.0
      %4386 = vadd.xlane.f32.xlu0 %v4385
      %v4387 = vpop.xlane.xlu0 %4386
      %v4388 = vsel %vm4240, %v4147, 0.0
      %4389 = vadd.xlane.f32.xlu0 %v4388
      %v4390 = vpop.xlane.xlu0 %4389
      %v4391 = vsel %vm4240, %v4149, 0.0
      %4392 = vadd.xlane.f32.xlu0 %v4391
      %v4393 = vpop.xlane.xlu0 %4392
      %v4394 = vsel %vm4240, %v4151, 0.0
      %4395 = vadd.xlane.f32.xlu0 %v4394
      %v4396 = vpop.xlane.xlu0 %4395
      %v4397 = vsel %vm4240, %v4153, 0.0
      %4398 = vadd.xlane.f32.xlu0 %v4397
      %v4399 = vpop.xlane.xlu0 %4398
      %v4400 = vsel %vm4240, %v4155, 0.0
      %4401 = vadd.xlane.f32.xlu0 %v4400
      %v4402 = vpop.xlane.xlu0 %4401
      %v4403 = vsel %vm4240, %v4157, 0.0
      %4404 = vadd.xlane.f32.xlu0 %v4403
      %v4405 = vpop.xlane.xlu0 %4404
      %v4406 = vsel %vm4240, %v4159, 0.0
      %4407 = vadd.xlane.f32.xlu0 %v4406
      %v4408 = vpop.xlane.xlu0 %4407
      %v4409 = vsel %vm4240, %v4161, 0.0
      %4410 = vadd.xlane.f32.xlu0 %v4409
      %v4411 = vpop.xlane.xlu0 %4410
      %v4412 = vsel %vm4240, %v4163, 0.0
      %4413 = vadd.xlane.f32.xlu0 %v4412
      %v4414 = vpop.xlane.xlu0 %4413
      %v4415 = vsel %vm4240, %v4165, 0.0
      %4416 = vadd.xlane.f32.xlu0 %v4415
      %v4417 = vpop.xlane.xlu0 %4416
      %v4418 = vsel %vm4240, %v4167, 0.0
      %4419 = vadd.xlane.f32.xlu0 %v4418
      %v4420 = vpop.xlane.xlu0 %4419
      %v4421 = vsel %vm4240, %v4169, 0.0
      %4422 = vadd.xlane.f32.xlu0 %v4421
      %v4423 = vpop.xlane.xlu0 %4422
      %v4424 = vsel %vm4240, %v4171, 0.0
      %4425 = vadd.xlane.f32.xlu0 %v4424
      %v4426 = vpop.xlane.xlu0 %4425
      %v4427 = vsel %vm4240, %v4173, 0.0
      %4428 = vadd.xlane.f32.xlu0 %v4427
      %v4429 = vpop.xlane.xlu0 %4428
      %v4430 = vsel %vm4240, %v4175, 0.0
      %4431 = vadd.xlane.f32.xlu0 %v4430
      %v4432 = vpop.xlane.xlu0 %4431
      %v4433 = vmul.f32 %v3920, 2.0
      %v4434 = vmul.f32 %v3921, 2.0
      %v4435 = vmul.f32 %v3922, 2.0
      %v4436 = vmul.f32 %v3923, 2.0
      %v4437 = vmul.f32 %v3924, 2.0
      %v4438 = vmul.f32 %v3925, 2.0
      %v4439 = vmul.f32 %v3926, 2.0
      %v4440 = vmul.f32 %v3927, 2.0
      %v4441 = vmul.f32 %v3928, 2.0
      %v4442 = vmul.f32 %v3929, 2.0
      %v4443 = vmul.f32 %v3930, 2.0
      %v4444 = vmul.f32 %v3931, 2.0
      %v4445 = vmul.f32 %v3932, 2.0
      %v4446 = vmul.f32 %v3933, 2.0
      %v4447 = vmul.f32 %v3934, 2.0
      %v4448 = vmul.f32 %v3935, 2.0
      %v4449 = vmul.f32 %v3936, 2.0
      %v4450 = vmul.f32 %v3937, 2.0
      %v4451 = vmul.f32 %v3938, 2.0
      %v4452 = vmul.f32 %v3939, 2.0
      %v4453 = vmul.f32 %v3940, 2.0
      %v4454 = vmul.f32 %v3941, 2.0
      %v4455 = vmul.f32 %v3942, 2.0
      %v4456 = vmul.f32 %v3943, 2.0
      %v4457 = vmul.f32 %v3944, 2.0
      %v4458 = vmul.f32 %v3945, 2.0
      %v4459 = vmul.f32 %v3946, 2.0
      %v4460 = vmul.f32 %v3947, 2.0
      %v4461 = vmul.f32 %v3948, 2.0
      %v4462 = vmul.f32 %v3949, 2.0
      %v4463 = vmul.f32 %v3950, 2.0
      %v4464 = vmul.f32 %v3951, 2.0
      %v4465 = vmul.f32 %v3952, 2.0
      %v4466 = vmul.f32 %v3953, 2.0
      %v4467 = vmul.f32 %v3954, 2.0
      %v4468 = vmul.f32 %v3955, 2.0
      %v4469 = vmul.f32 %v3956, 2.0
      %v4470 = vmul.f32 %v3957, 2.0
      %v4471 = vmul.f32 %v3958, 2.0
      %v4472 = vmul.f32 %v3959, 2.0
      %v4473 = vmul.f32 %v3960, 2.0
      %v4474 = vmul.f32 %v3961, 2.0
      %v4475 = vmul.f32 %v3962, 2.0
      %v4476 = vmul.f32 %v3963, 2.0
      %v4477 = vmul.f32 %v3964, 2.0
      %v4478 = vmul.f32 %v3965, 2.0
      %v4479 = vmul.f32 %v3966, 2.0
      %v4480 = vmul.f32 %v3967, 2.0
      %v4481 = vmul.f32 %v3968, 2.0
      %v4482 = vmul.f32 %v3969, 2.0
      %v4483 = vmul.f32 %v3970, 2.0
      %v4484 = vmul.f32 %v3971, 2.0
      %v4485 = vmul.f32 %v3972, 2.0
      %v4486 = vmul.f32 %v3973, 2.0
      %v4487 = vmul.f32 %v3974, 2.0
      %v4488 = vmul.f32 %v3975, 2.0
      %v4489 = vmul.f32 %v3976, 2.0
      %v4490 = vmul.f32 %v3977, 2.0
      %v4491 = vmul.f32 %v3978, 2.0
      %v4492 = vmul.f32 %v3979, 2.0
      %v4493 = vmul.f32 %v3980, 2.0
      %v4494 = vmul.f32 %v3981, 2.0
      %v4495 = vmul.f32 %v3982, 2.0
      %v4496 = vmul.f32 %v3983, 2.0
      %v4497 = vsub.f32 %v4243, %v4433
      %v4498 = vsub.f32 %v4246, %v4434
      %v4499 = vsub.f32 %v4249, %v4435
      %v4500 = vsub.f32 %v4252, %v4436
      %v4501 = vsub.f32 %v4255, %v4437
      %v4502 = vsub.f32 %v4258, %v4438
      %v4503 = vsub.f32 %v4261, %v4439
      %v4504 = vsub.f32 %v4264, %v4440
      %v4505 = vsub.f32 %v4267, %v4441
      %v4506 = vsub.f32 %v4270, %v4442
      %v4507 = vsub.f32 %v4273, %v4443
      %v4508 = vsub.f32 %v4276, %v4444
      %v4509 = vsub.f32 %v4279, %v4445
      %v4510 = vsub.f32 %v4282, %v4446
      %v4511 = vsub.f32 %v4285, %v4447
      %v4512 = vsub.f32 %v4288, %v4448
      %v4513 = vsub.f32 %v4291, %v4449
      %v4514 = vsub.f32 %v4294, %v4450
      %v4515 = vsub.f32 %v4297, %v4451
      %v4516 = vsub.f32 %v4300, %v4452
      %v4517 = vsub.f32 %v4303, %v4453
      %v4518 = vsub.f32 %v4306, %v4454
      %v4519 = vsub.f32 %v4309, %v4455
      %v4520 = vsub.f32 %v4312, %v4456
      %v4521 = vsub.f32 %v4315, %v4457
      %v4522 = vsub.f32 %v4318, %v4458
      %v4523 = vsub.f32 %v4321, %v4459
      %v4524 = vsub.f32 %v4324, %v4460
      %v4525 = vsub.f32 %v4327, %v4461
      %v4526 = vsub.f32 %v4330, %v4462
      %v4527 = vsub.f32 %v4333, %v4463
      %v4528 = vsub.f32 %v4336, %v4464
      %v4529 = vsub.f32 %v4339, %v4465
      %v4530 = vsub.f32 %v4342, %v4466
      %v4531 = vsub.f32 %v4345, %v4467
      %v4532 = vsub.f32 %v4348, %v4468
      %v4533 = vsub.f32 %v4351, %v4469
      %v4534 = vsub.f32 %v4354, %v4470
      %v4535 = vsub.f32 %v4357, %v4471
      %v4536 = vsub.f32 %v4360, %v4472
      %v4537 = vsub.f32 %v4363, %v4473
      %v4538 = vsub.f32 %v4366, %v4474
      %v4539 = vsub.f32 %v4369, %v4475
      %v4540 = vsub.f32 %v4372, %v4476
      %v4541 = vsub.f32 %v4375, %v4477
      %v4542 = vsub.f32 %v4378, %v4478
      %v4543 = vsub.f32 %v4381, %v4479
      %v4544 = vsub.f32 %v4384, %v4480
      %v4545 = vsub.f32 %v4387, %v4481
      %v4546 = vsub.f32 %v4390, %v4482
      %v4547 = vsub.f32 %v4393, %v4483
      %v4548 = vsub.f32 %v4396, %v4484
      %v4549 = vsub.f32 %v4399, %v4485
      %v4550 = vsub.f32 %v4402, %v4486
      %v4551 = vsub.f32 %v4405, %v4487
      %v4552 = vsub.f32 %v4408, %v4488
      %v4553 = vsub.f32 %v4411, %v4489
      %v4554 = vsub.f32 %v4414, %v4490
      %v4555 = vsub.f32 %v4417, %v4491
      %v4556 = vsub.f32 %v4420, %v4492
      %v4557 = vsub.f32 %v4423, %v4493
      %v4558 = vsub.f32 %v4426, %v4494
      %v4559 = vsub.f32 %v4429, %v4495
      %v4560 = vsub.f32 %v4432, %v4496
      %v4561 = vld [vmem:[%s8] sm:$0x1]
      %4563 = vset.pattern.permute.xlu0 36
      %4564 = vperm.xlu0 %4563, %v4497
      %v4565 = vpop.permute.xlu0 %4564
      %4568 = vset.pattern.permute.xlu0 36
      %4569 = vperm.xlu0 %4568, %v4498
      %v4570 = vpop.permute.xlu0 %4569
      %4573 = vset.pattern.permute.xlu0 36
      %4574 = vperm.xlu0 %4573, %v4499
      %v4575 = vpop.permute.xlu0 %4574
      %4578 = vset.pattern.permute.xlu0 36
      %4579 = vperm.xlu0 %4578, %v4500
      %v4580 = vpop.permute.xlu0 %4579
      %4583 = vset.pattern.permute.xlu0 36
      %4584 = vperm.xlu0 %4583, %v4501
      %v4585 = vpop.permute.xlu0 %4584
      %4588 = vset.pattern.permute.xlu0 36
      %4589 = vperm.xlu0 %4588, %v4502
      %v4590 = vpop.permute.xlu0 %4589
      %4593 = vset.pattern.permute.xlu0 36
      %4594 = vperm.xlu0 %4593, %v4503
      %v4595 = vpop.permute.xlu0 %4594
      %4598 = vset.pattern.permute.xlu0 36
      %4599 = vperm.xlu0 %4598, %v4504
      %v4600 = vpop.permute.xlu0 %4599
      %4603 = vset.pattern.permute.xlu0 36
      %4604 = vperm.xlu0 %4603, %v4505
      %v4605 = vpop.permute.xlu0 %4604
      %4608 = vset.pattern.permute.xlu0 36
      %4609 = vperm.xlu0 %4608, %v4506
      %v4610 = vpop.permute.xlu0 %4609
      %4613 = vset.pattern.permute.xlu0 36
      %4614 = vperm.xlu0 %4613, %v4507
      %v4615 = vpop.permute.xlu0 %4614
      %4618 = vset.pattern.permute.xlu0 36
      %4619 = vperm.xlu0 %4618, %v4508
      %v4620 = vpop.permute.xlu0 %4619
      %4623 = vset.pattern.permute.xlu0 36
      %4624 = vperm.xlu0 %4623, %v4509
      %v4625 = vpop.permute.xlu0 %4624
      %4628 = vset.pattern.permute.xlu0 36
      %4629 = vperm.xlu0 %4628, %v4510
      %v4630 = vpop.permute.xlu0 %4629
      %4633 = vset.pattern.permute.xlu0 36
      %4634 = vperm.xlu0 %4633, %v4511
      %v4635 = vpop.permute.xlu0 %4634
      %4638 = vset.pattern.permute.xlu0 36
      %4639 = vperm.xlu0 %4638, %v4512
      %v4640 = vpop.permute.xlu0 %4639
      %4643 = vset.pattern.permute.xlu0 36
      %4644 = vperm.xlu0 %4643, %v4513
      %v4645 = vpop.permute.xlu0 %4644
      %4648 = vset.pattern.permute.xlu0 36
      %4649 = vperm.xlu0 %4648, %v4514
      %v4650 = vpop.permute.xlu0 %4649
      %4653 = vset.pattern.permute.xlu0 36
      %4654 = vperm.xlu0 %4653, %v4515
      %v4655 = vpop.permute.xlu0 %4654
      %4658 = vset.pattern.permute.xlu0 36
      %4659 = vperm.xlu0 %4658, %v4516
      %v4660 = vpop.permute.xlu0 %4659
      %4663 = vset.pattern.permute.xlu0 36
      %4664 = vperm.xlu0 %4663, %v4517
      %v4665 = vpop.permute.xlu0 %4664
      %4668 = vset.pattern.permute.xlu0 36
      %4669 = vperm.xlu0 %4668, %v4518
      %v4670 = vpop.permute.xlu0 %4669
      %4673 = vset.pattern.permute.xlu0 36
      %4674 = vperm.xlu0 %4673, %v4519
      %v4675 = vpop.permute.xlu0 %4674
      %4678 = vset.pattern.permute.xlu0 36
      %4679 = vperm.xlu0 %4678, %v4520
      %v4680 = vpop.permute.xlu0 %4679
      %4683 = vset.pattern.permute.xlu0 36
      %4684 = vperm.xlu0 %4683, %v4521
      %v4685 = vpop.permute.xlu0 %4684
      %4688 = vset.pattern.permute.xlu0 36
      %4689 = vperm.xlu0 %4688, %v4522
      %v4690 = vpop.permute.xlu0 %4689
      %4693 = vset.pattern.permute.xlu0 36
      %4694 = vperm.xlu0 %4693, %v4523
      %v4695 = vpop.permute.xlu0 %4694
      %4698 = vset.pattern.permute.xlu0 36
      %4699 = vperm.xlu0 %4698, %v4524
      %v4700 = vpop.permute.xlu0 %4699
      %4703 = vset.pattern.permute.xlu0 36
      %4704 = vperm.xlu0 %4703, %v4525
      %v4705 = vpop.permute.xlu0 %4704
      %4708 = vset.pattern.permute.xlu0 36
      %4709 = vperm.xlu0 %4708, %v4526
      %v4710 = vpop.permute.xlu0 %4709
      %4713 = vset.pattern.permute.xlu0 36
      %4714 = vperm.xlu0 %4713, %v4527
      %v4715 = vpop.permute.xlu0 %4714
      %4718 = vset.pattern.permute.xlu0 36
      %4719 = vperm.xlu0 %4718, %v4528
      %v4720 = vpop.permute.xlu0 %4719
      %4723 = vset.pattern.permute.xlu0 36
      %4724 = vperm.xlu0 %4723, %v4529
      %v4725 = vpop.permute.xlu0 %4724
      %4728 = vset.pattern.permute.xlu0 36
      %4729 = vperm.xlu0 %4728, %v4530
      %v4730 = vpop.permute.xlu0 %4729
      %4733 = vset.pattern.permute.xlu0 36
      %4734 = vperm.xlu0 %4733, %v4531
      %v4735 = vpop.permute.xlu0 %4734
      %4738 = vset.pattern.permute.xlu0 36
      %4739 = vperm.xlu0 %4738, %v4532
      %v4740 = vpop.permute.xlu0 %4739
      %4743 = vset.pattern.permute.xlu0 36
      %4744 = vperm.xlu0 %4743, %v4533
      %v4745 = vpop.permute.xlu0 %4744
      %4748 = vset.pattern.permute.xlu0 36
      %4749 = vperm.xlu0 %4748, %v4534
      %v4750 = vpop.permute.xlu0 %4749
      %4753 = vset.pattern.permute.xlu0 36
      %4754 = vperm.xlu0 %4753, %v4535
      %v4755 = vpop.permute.xlu0 %4754
      %4758 = vset.pattern.permute.xlu0 36
      %4759 = vperm.xlu0 %4758, %v4536
      %v4760 = vpop.permute.xlu0 %4759
      %4763 = vset.pattern.permute.xlu0 36
      %4764 = vperm.xlu0 %4763, %v4537
      %v4765 = vpop.permute.xlu0 %4764
      %4768 = vset.pattern.permute.xlu0 36
      %4769 = vperm.xlu0 %4768, %v4538
      %v4770 = vpop.permute.xlu0 %4769
      %4773 = vset.pattern.permute.xlu0 36
      %4774 = vperm.xlu0 %4773, %v4539
      %v4775 = vpop.permute.xlu0 %4774
      %4778 = vset.pattern.permute.xlu0 36
      %4779 = vperm.xlu0 %4778, %v4540
      %v4780 = vpop.permute.xlu0 %4779
      %4783 = vset.pattern.permute.xlu0 36
      %4784 = vperm.xlu0 %4783, %v4541
      %v4785 = vpop.permute.xlu0 %4784
      %4788 = vset.pattern.permute.xlu0 36
      %4789 = vperm.xlu0 %4788, %v4542
      %v4790 = vpop.permute.xlu0 %4789
      %4793 = vset.pattern.permute.xlu0 36
      %4794 = vperm.xlu0 %4793, %v4543
      %v4795 = vpop.permute.xlu0 %4794
      %4798 = vset.pattern.permute.xlu0 36
      %4799 = vperm.xlu0 %4798, %v4544
      %v4800 = vpop.permute.xlu0 %4799
      %4803 = vset.pattern.permute.xlu0 36
      %4804 = vperm.xlu0 %4803, %v4545
      %v4805 = vpop.permute.xlu0 %4804
      %4808 = vset.pattern.permute.xlu0 36
      %4809 = vperm.xlu0 %4808, %v4546
      %v4810 = vpop.permute.xlu0 %4809
      %4813 = vset.pattern.permute.xlu0 36
      %4814 = vperm.xlu0 %4813, %v4547
      %v4815 = vpop.permute.xlu0 %4814
      %4818 = vset.pattern.permute.xlu0 36
      %4819 = vperm.xlu0 %4818, %v4548
      %v4820 = vpop.permute.xlu0 %4819
      %4823 = vset.pattern.permute.xlu0 36
      %4824 = vperm.xlu0 %4823, %v4549
      %v4825 = vpop.permute.xlu0 %4824
      %4828 = vset.pattern.permute.xlu0 36
      %4829 = vperm.xlu0 %4828, %v4550
      %v4830 = vpop.permute.xlu0 %4829
      %4833 = vset.pattern.permute.xlu0 36
      %4834 = vperm.xlu0 %4833, %v4551
      %v4835 = vpop.permute.xlu0 %4834
      %4838 = vset.pattern.permute.xlu0 36
      %4839 = vperm.xlu0 %4838, %v4552
      %v4840 = vpop.permute.xlu0 %4839
      %4843 = vset.pattern.permute.xlu0 36
      %4844 = vperm.xlu0 %4843, %v4553
      %v4845 = vpop.permute.xlu0 %4844
      %4848 = vset.pattern.permute.xlu0 36
      %4849 = vperm.xlu0 %4848, %v4554
      %v4850 = vpop.permute.xlu0 %4849
      %4853 = vset.pattern.permute.xlu0 36
      %4854 = vperm.xlu0 %4853, %v4555
      %v4855 = vpop.permute.xlu0 %4854
      %4858 = vset.pattern.permute.xlu0 36
      %4859 = vperm.xlu0 %4858, %v4556
      %v4860 = vpop.permute.xlu0 %4859
      %4863 = vset.pattern.permute.xlu0 36
      %4864 = vperm.xlu0 %4863, %v4557
      %v4865 = vpop.permute.xlu0 %4864
      %4868 = vset.pattern.permute.xlu0 36
      %4869 = vperm.xlu0 %4868, %v4558
      %v4870 = vpop.permute.xlu0 %4869
      %4873 = vset.pattern.permute.xlu0 36
      %4874 = vperm.xlu0 %4873, %v4559
      %v4875 = vpop.permute.xlu0 %4874
      %4878 = vset.pattern.permute.xlu0 36
      %4879 = vperm.xlu0 %4878, %v4560
      %v4880 = vpop.permute.xlu0 %4879
      %v4883 = vlaneseq
      %v4884 = vshrl.u32 %v4883, 7
      %v4885 = vsub.s32 0, %v4884
      %v4886 = vrot.slane %v4561, %v4885
      %v4888 = vmul.f32 %v4565, %v4886
      %v4889 = vmul.f32 %v4570, %v4886
      %v4890 = vmul.f32 %v4575, %v4886
      %v4891 = vmul.f32 %v4580, %v4886
      %v4892 = vmul.f32 %v4585, %v4886
      %v4893 = vmul.f32 %v4590, %v4886
      %v4894 = vmul.f32 %v4595, %v4886
      %v4895 = vmul.f32 %v4600, %v4886
      %v4896 = vmul.f32 %v4605, %v4886
      %v4897 = vmul.f32 %v4610, %v4886
      %v4898 = vmul.f32 %v4615, %v4886
      %v4899 = vmul.f32 %v4620, %v4886
      %v4900 = vmul.f32 %v4625, %v4886
      %v4901 = vmul.f32 %v4630, %v4886
      %v4902 = vmul.f32 %v4635, %v4886
      %v4903 = vmul.f32 %v4640, %v4886
      %v4904 = vmul.f32 %v4645, %v4886
      %v4905 = vmul.f32 %v4650, %v4886
      %v4906 = vmul.f32 %v4655, %v4886
      %v4907 = vmul.f32 %v4660, %v4886
      %v4908 = vmul.f32 %v4665, %v4886
      %v4909 = vmul.f32 %v4670, %v4886
      %v4910 = vmul.f32 %v4675, %v4886
      %v4911 = vmul.f32 %v4680, %v4886
      %v4912 = vmul.f32 %v4685, %v4886
      %v4913 = vmul.f32 %v4690, %v4886
      %v4914 = vmul.f32 %v4695, %v4886
      %v4915 = vmul.f32 %v4700, %v4886
      %v4916 = vmul.f32 %v4705, %v4886
      %v4917 = vmul.f32 %v4710, %v4886
      %v4918 = vmul.f32 %v4715, %v4886
      %v4919 = vmul.f32 %v4720, %v4886
      %v4920 = vmul.f32 %v4725, %v4886
      %v4921 = vmul.f32 %v4730, %v4886
      %v4922 = vmul.f32 %v4735, %v4886
      %v4923 = vmul.f32 %v4740, %v4886
      %v4924 = vmul.f32 %v4745, %v4886
      %v4925 = vmul.f32 %v4750, %v4886
      %v4926 = vmul.f32 %v4755, %v4886
      %v4927 = vmul.f32 %v4760, %v4886
      %v4928 = vmul.f32 %v4765, %v4886
      %v4929 = vmul.f32 %v4770, %v4886
      %v4930 = vmul.f32 %v4775, %v4886
      %v4931 = vmul.f32 %v4780, %v4886
      %v4932 = vmul.f32 %v4785, %v4886
      %v4933 = vmul.f32 %v4790, %v4886
      %v4934 = vmul.f32 %v4795, %v4886
      %v4935 = vmul.f32 %v4800, %v4886
      %v4936 = vmul.f32 %v4805, %v4886
      %v4937 = vmul.f32 %v4810, %v4886
      %v4938 = vmul.f32 %v4815, %v4886
      %v4939 = vmul.f32 %v4820, %v4886
      %v4940 = vmul.f32 %v4825, %v4886
      %v4941 = vmul.f32 %v4830, %v4886
      %v4942 = vmul.f32 %v4835, %v4886
      %v4943 = vmul.f32 %v4840, %v4886
      %v4944 = vmul.f32 %v4845, %v4886
      %v4945 = vmul.f32 %v4850, %v4886
      %v4946 = vmul.f32 %v4855, %v4886
      %v4947 = vmul.f32 %v4860, %v4886
      %v4948 = vmul.f32 %v4865, %v4886
      %v4949 = vmul.f32 %v4870, %v4886
      %v4950 = vmul.f32 %v4875, %v4886
      %v4951 = vmul.f32 %v4880, %v4886
      %v4952 = vadd.f32 %v3856, %v4888
      %v4953 = vadd.f32 %v3857, %v4889
      %v4954 = vadd.f32 %v3858, %v4890
      %v4955 = vadd.f32 %v3859, %v4891
      %v4956 = vadd.f32 %v3860, %v4892
      %v4957 = vadd.f32 %v3861, %v4893
      %v4958 = vadd.f32 %v3862, %v4894
      %v4959 = vadd.f32 %v3863, %v4895
      %v4960 = vadd.f32 %v3864, %v4896
      %v4961 = vadd.f32 %v3865, %v4897
      %v4962 = vadd.f32 %v3866, %v4898
      %v4963 = vadd.f32 %v3867, %v4899
      %v4964 = vadd.f32 %v3868, %v4900
      %v4965 = vadd.f32 %v3869, %v4901
      %v4966 = vadd.f32 %v3870, %v4902
      %v4967 = vadd.f32 %v3871, %v4903
      %v4968 = vadd.f32 %v3872, %v4904
      %v4969 = vadd.f32 %v3873, %v4905
      %v4970 = vadd.f32 %v3874, %v4906
      %v4971 = vadd.f32 %v3875, %v4907
      %v4972 = vadd.f32 %v3876, %v4908
      %v4973 = vadd.f32 %v3877, %v4909
      %v4974 = vadd.f32 %v3878, %v4910
      %v4975 = vadd.f32 %v3879, %v4911
      %v4976 = vadd.f32 %v3880, %v4912
      %v4977 = vadd.f32 %v3881, %v4913
      %v4978 = vadd.f32 %v3882, %v4914
      %v4979 = vadd.f32 %v3883, %v4915
      %v4980 = vadd.f32 %v3884, %v4916
      %v4981 = vadd.f32 %v3885, %v4917
      %v4982 = vadd.f32 %v3886, %v4918
      %v4983 = vadd.f32 %v3887, %v4919
      %v4984 = vadd.f32 %v3888, %v4920
      %v4985 = vadd.f32 %v3889, %v4921
      %v4986 = vadd.f32 %v3890, %v4922
      %v4987 = vadd.f32 %v3891, %v4923
      %v4988 = vadd.f32 %v3892, %v4924
      %v4989 = vadd.f32 %v3893, %v4925
      %v4990 = vadd.f32 %v3894, %v4926
      %v4991 = vadd.f32 %v3895, %v4927
      %v4992 = vadd.f32 %v3896, %v4928
      %v4993 = vadd.f32 %v3897, %v4929
      %v4994 = vadd.f32 %v3898, %v4930
      %v4995 = vadd.f32 %v3899, %v4931
      %v4996 = vadd.f32 %v3900, %v4932
      %v4997 = vadd.f32 %v3901, %v4933
      %v4998 = vadd.f32 %v3902, %v4934
      %v4999 = vadd.f32 %v3903, %v4935
      %v5000 = vadd.f32 %v3904, %v4936
      %v5001 = vadd.f32 %v3905, %v4937
      %v5002 = vadd.f32 %v3906, %v4938
      %v5003 = vadd.f32 %v3907, %v4939
      %v5004 = vadd.f32 %v3908, %v4940
      %v5005 = vadd.f32 %v3909, %v4941
      %v5006 = vadd.f32 %v3910, %v4942
      %v5007 = vadd.f32 %v3911, %v4943
      %v5008 = vadd.f32 %v3912, %v4944
      %v5009 = vadd.f32 %v3913, %v4945
      %v5010 = vadd.f32 %v3914, %v4946
      %v5011 = vadd.f32 %v3915, %v4947
      %v5012 = vadd.f32 %v3916, %v4948
      %v5013 = vadd.f32 %v3917, %v4949
      %v5014 = vadd.f32 %v3918, %v4950
      %v5015 = vadd.f32 %v3919, %v4951
      %v5016 = vld [vmem:[%s651] sm:$0xff]
      %v5017 = vld [vmem:[%s651 + $0x8] sm:$0xff]
      %v5018 = vld [vmem:[%s651 + $0x10] sm:$0xff]
      %v5019 = vld [vmem:[%s651 + $0x18] sm:$0xff]
      %v5020 = vld [vmem:[%s651 + $0x20] sm:$0xff]
      %v5021 = vld [vmem:[%s651 + $0x28] sm:$0xff]
      %v5022 = vld [vmem:[%s651 + $0x30] sm:$0xff]
      %v5023 = vld [vmem:[%s651 + $0x38] sm:$0xff]
      %v5024 = vld [vmem:[%s651 + $0x40] sm:$0xff]
      %v5025 = vld [vmem:[%s651 + $0x48] sm:$0xff]
      %v5026 = vld [vmem:[%s651 + $0x50] sm:$0xff]
      %v5027 = vld [vmem:[%s651 + $0x58] sm:$0xff]
      %v5028 = vld [vmem:[%s651 + $0x60] sm:$0xff]
      %v5029 = vld [vmem:[%s651 + $0x68] sm:$0xff]
      %v5030 = vld [vmem:[%s651 + $0x70] sm:$0xff]
      %v5031 = vld [vmem:[%s651 + $0x78] sm:$0xff]
      %v5032 = vld [vmem:[%s651 + $0x80] sm:$0xff]
      %v5033 = vld [vmem:[%s651 + $0x88] sm:$0xff]
      %v5034 = vld [vmem:[%s651 + $0x90] sm:$0xff]
      %v5035 = vld [vmem:[%s651 + $0x98] sm:$0xff]
      %v5036 = vld [vmem:[%s651 + $0xa0] sm:$0xff]
      %v5037 = vld [vmem:[%s651 + $0xa8] sm:$0xff]
      %v5038 = vld [vmem:[%s651 + $0xb0] sm:$0xff]
      %v5039 = vld [vmem:[%s651 + $0xb8] sm:$0xff]
      %v5040 = vld [vmem:[%s651 + $0xc0] sm:$0xff]
      %v5041 = vld [vmem:[%s651 + $0xc8] sm:$0xff]
      %v5042 = vld [vmem:[%s651 + $0xd0] sm:$0xff]
      %v5043 = vld [vmem:[%s651 + $0xd8] sm:$0xff]
      %v5044 = vld [vmem:[%s651 + $0xe0] sm:$0xff]
      %v5045 = vld [vmem:[%s651 + $0xe8] sm:$0xff]
      %v5046 = vld [vmem:[%s651 + $0xf0] sm:$0xff]
      %v5047 = vld [vmem:[%s651 + $0xf8] sm:$0xff]
      %v5048 = vld [vmem:[%s651 + $0x100] sm:$0xff]
      %v5049 = vld [vmem:[%s651 + $0x108] sm:$0xff]
      %v5050 = vld [vmem:[%s651 + $0x110] sm:$0xff]
      %v5051 = vld [vmem:[%s651 + $0x118] sm:$0xff]
      %v5052 = vld [vmem:[%s651 + $0x120] sm:$0xff]
      %v5053 = vld [vmem:[%s651 + $0x128] sm:$0xff]
      %v5054 = vld [vmem:[%s651 + $0x130] sm:$0xff]
      %v5055 = vld [vmem:[%s651 + $0x138] sm:$0xff]
      %v5056 = vld [vmem:[%s651 + $0x140] sm:$0xff]
      %v5057 = vld [vmem:[%s651 + $0x148] sm:$0xff]
      %v5058 = vld [vmem:[%s651 + $0x150] sm:$0xff]
      %v5059 = vld [vmem:[%s651 + $0x158] sm:$0xff]
      %v5060 = vld [vmem:[%s651 + $0x160] sm:$0xff]
      %v5061 = vld [vmem:[%s651 + $0x168] sm:$0xff]
      %v5062 = vld [vmem:[%s651 + $0x170] sm:$0xff]
      %v5063 = vld [vmem:[%s651 + $0x178] sm:$0xff]
      %v5064 = vld [vmem:[%s651 + $0x180] sm:$0xff]
      %v5065 = vld [vmem:[%s651 + $0x188] sm:$0xff]
      %v5066 = vld [vmem:[%s651 + $0x190] sm:$0xff]
      %v5067 = vld [vmem:[%s651 + $0x198] sm:$0xff]
      %v5068 = vld [vmem:[%s651 + $0x1a0] sm:$0xff]
      %v5069 = vld [vmem:[%s651 + $0x1a8] sm:$0xff]
      %v5070 = vld [vmem:[%s651 + $0x1b0] sm:$0xff]
      %v5071 = vld [vmem:[%s651 + $0x1b8] sm:$0xff]
      %v5072 = vld [vmem:[%s651 + $0x1c0] sm:$0xff]
      %v5073 = vld [vmem:[%s651 + $0x1c8] sm:$0xff]
      %v5074 = vld [vmem:[%s651 + $0x1d0] sm:$0xff]
      %v5075 = vld [vmem:[%s651 + $0x1d8] sm:$0xff]
      %v5076 = vld [vmem:[%s651 + $0x1e0] sm:$0xff]
      %v5077 = vld [vmem:[%s651 + $0x1e8] sm:$0xff]
      %v5078 = vld [vmem:[%s651 + $0x1f0] sm:$0xff]
      %v5079 = vld [vmem:[%s651 + $0x1f8] sm:$0xff]
      %v5080 = vld [vmem:[%s7] sm:$0xff]
      %vm5081 = vcmask 64512
      %v5083 = vsel %vm5081, %v5016, 0
      %v5086 = vsel %vm5081, %v5017, 0
      %v5089 = vsel %vm5081, %v5018, 0
      %v5092 = vsel %vm5081, %v5019, 0
      %v5095 = vsel %vm5081, %v5020, 0
      %v5098 = vsel %vm5081, %v5021, 0
      %v5101 = vsel %vm5081, %v5022, 0
      %v5104 = vsel %vm5081, %v5023, 0
      %v5107 = vsel %vm5081, %v5024, 0
      %v5110 = vsel %vm5081, %v5025, 0
      %v5113 = vsel %vm5081, %v5026, 0
      %v5116 = vsel %vm5081, %v5027, 0
      %v5119 = vsel %vm5081, %v5028, 0
      %v5122 = vsel %vm5081, %v5029, 0
      %v5125 = vsel %vm5081, %v5030, 0
      %v5128 = vsel %vm5081, %v5031, 0
      %v5131 = vsel %vm5081, %v5032, 0
      %v5134 = vsel %vm5081, %v5033, 0
      %v5137 = vsel %vm5081, %v5034, 0
      %v5140 = vsel %vm5081, %v5035, 0
      %v5143 = vsel %vm5081, %v5036, 0
      %v5146 = vsel %vm5081, %v5037, 0
      %v5149 = vsel %vm5081, %v5038, 0
      %v5152 = vsel %vm5081, %v5039, 0
      %v5155 = vsel %vm5081, %v5040, 0
      %v5158 = vsel %vm5081, %v5041, 0
      %v5161 = vsel %vm5081, %v5042, 0
      %v5164 = vsel %vm5081, %v5043, 0
      %v5167 = vsel %vm5081, %v5044, 0
      %v5170 = vsel %vm5081, %v5045, 0
      %v5173 = vsel %vm5081, %v5046, 0
      %v5176 = vsel %vm5081, %v5047, 0
      %v5179 = vsel %vm5081, %v5048, 0
      %v5182 = vsel %vm5081, %v5049, 0
      %v5185 = vsel %vm5081, %v5050, 0
      %v5188 = vsel %vm5081, %v5051, 0
      %v5191 = vsel %vm5081, %v5052, 0
      %v5194 = vsel %vm5081, %v5053, 0
      %v5197 = vsel %vm5081, %v5054, 0
      %v5200 = vsel %vm5081, %v5055, 0
      %v5203 = vsel %vm5081, %v5056, 0
      %v5206 = vsel %vm5081, %v5057, 0
      %v5209 = vsel %vm5081, %v5058, 0
      %v5212 = vsel %vm5081, %v5059, 0
      %v5215 = vsel %vm5081, %v5060, 0
      %v5218 = vsel %vm5081, %v5061, 0
      %v5221 = vsel %vm5081, %v5062, 0
      %v5224 = vsel %vm5081, %v5063, 0
      %v5227 = vsel %vm5081, %v5064, 0
      %v5230 = vsel %vm5081, %v5065, 0
      %v5233 = vsel %vm5081, %v5066, 0
      %v5236 = vsel %vm5081, %v5067, 0
      %v5239 = vsel %vm5081, %v5068, 0
      %v5242 = vsel %vm5081, %v5069, 0
      %v5245 = vsel %vm5081, %v5070, 0
      %v5248 = vsel %vm5081, %v5071, 0
      %v5251 = vsel %vm5081, %v5072, 0
      %v5254 = vsel %vm5081, %v5073, 0
      %v5257 = vsel %vm5081, %v5074, 0
      %v5260 = vsel %vm5081, %v5075, 0
      %v5263 = vsel %vm5081, %v5076, 0
      %v5266 = vsel %vm5081, %v5077, 0
      %v5269 = vsel %vm5081, %v5078, 0
      %v5272 = vsel %vm5081, %v5079, 0
      %5274 = vmatprep.subr.mxu0 0.0
      %5275 = vmatpush1.msra.mxu0 %v5080
      %5276 = vmatprep.subr.mxu0 0.0
      %5277 = vmatpush1.msra.mxu0 0.0
      %5278 = vmatprep.subr.mxu0 0.0
      %5279 = vmatpush1.msra.mxu0 0.0
      %5280 = vmatprep.subr.mxu0 0.0
      %5281 = vmatpush1.msra.mxu0 0.0
      %5282 = vmatprep.subr.mxu0 0.0
      %5283 = vmatpush1.msra.mxu0 0.0
      %5284 = vmatprep.subr.mxu0 0.0
      %5285 = vmatpush1.msra.mxu0 0.0
      %5286 = vmatprep.subr.mxu0 0.0
      %5287 = vmatpush1.msra.mxu0 0.0
      %5288 = vmatprep.subr.mxu0 0.0
      %5289 = vmatpush1.msra.mxu0 0.0
      %5290 = vmatprep.subr.mxu0 0.0
      %5291 = vmatpush1.msra.mxu0 0.0
      %5292 = vmatprep.subr.mxu0 0.0
      %5293 = vmatpush1.msra.mxu0 0.0
      %5294 = vmatprep.subr.mxu0 0.0
      %5295 = vmatpush1.msra.mxu0 0.0
      %5296 = vmatprep.subr.mxu0 0.0
      %5297 = vmatpush1.msra.mxu0 0.0
      %5298 = vmatprep.subr.mxu0 0.0
      %5299 = vmatpush1.msra.mxu0 0.0
      %5300 = vmatprep.subr.mxu0 0.0
      %5301 = vmatpush1.msra.mxu0 0.0
      %5302 = vmatprep.subr.mxu0 0.0
      %5303 = vmatpush1.msra.mxu0 0.0
      %5304 = vmatprep.subr.mxu0 0.0
      %5305 = vmatpush1.msra.mxu0 0.0
      %5306 = vmatprep.subr.mxu0 0.0
      %5307 = vmatpush1.msra.mxu0 0.0
      %5308 = vmatprep.subr.mxu0 0.0
      %5309 = vmatpush1.msra.mxu0 0.0
      %5310 = vmatprep.subr.mxu0 0.0
      %5311 = vmatpush1.msra.mxu0 0.0
      %5312 = vmatprep.subr.mxu0 0.0
      %5313 = vmatpush1.msra.mxu0 0.0
      %5314 = vmatprep.subr.mxu0 0.0
      %5315 = vmatpush1.msra.mxu0 0.0
      %5316 = vmatprep.subr.mxu0 0.0
      %5317 = vmatpush1.msra.mxu0 0.0
      %5318 = vmatprep.subr.mxu0 0.0
      %5319 = vmatpush1.msra.mxu0 0.0
      %5320 = vmatprep.subr.mxu0 0.0
      %5321 = vmatpush1.msra.mxu0 0.0
      %5322 = vmatprep.subr.mxu0 0.0
      %5323 = vmatpush1.msra.mxu0 0.0
      %5324 = vmatprep.subr.mxu0 0.0
      %5325 = vmatpush1.msra.mxu0 0.0
      %5326 = vmatprep.subr.mxu0 0.0
      %5327 = vmatpush1.msra.mxu0 0.0
      %5328 = vmatprep.subr.mxu0 0.0
      %5329 = vmatpush1.msra.mxu0 0.0
      %5330 = vmatprep.subr.mxu0 0.0
      %5331 = vmatpush1.msra.mxu0 0.0
      %5332 = vmatprep.subr.mxu0 0.0
      %5333 = vmatpush1.msra.mxu0 0.0
      %5334 = vmatprep.subr.mxu0 0.0
      %5335 = vmatpush1.msra.mxu0 0.0
      %5336 = vmatprep.subr.mxu0 0.0
      %5337 = vmatpush1.msra.mxu0 0.0
      %5338 = vmatprep.mubr.f32.mxu0 0.0
      %5339 = vmatmul.mubr.f32.gmra.mrb[0].mxu0 %v5083
      %v5340 = vpop.f32.mrb[0].mxu0
      %v5341 = vadd.f32 0.0, %v5340
      %v5342 = vpop.f32.mrb[0].mxu0
      %5343 = vmatprep.mubr.f32.mxu0 0.0
      %5344 = vmatmul.mubr.f32.gmra.mrb[0].mxu0 %v5086
      %v5345 = vpop.f32.mrb[0].mxu0
      %v5346 = vadd.f32 0.0, %v5345
      %v5347 = vpop.f32.mrb[0].mxu0
      %5348 = vmatprep.mubr.f32.mxu0 0.0
      %5349 = vmatmul.mubr.f32.gmra.mrb[0].mxu0 %v5089
      %v5350 = vpop.f32.mrb[0].mxu0
      %v5351 = vadd.f32 0.0, %v5350
      %v5352 = vpop.f32.mrb[0].mxu0
      %5353 = vmatprep.mubr.f32.mxu0 0.0
      %5354 = vmatmul.mubr.f32.gmra.mrb[0].mxu0 %v5092
      %v5355 = vpop.f32.mrb[0].mxu0
      %v5356 = vadd.f32 0.0, %v5355
      %v5357 = vpop.f32.mrb[0].mxu0
      %5358 = vmatprep.mubr.f32.mxu0 0.0
      %5359 = vmatmul.mubr.f32.gmra.mrb[0].mxu0 %v5095
      %v5360 = vpop.f32.mrb[0].mxu0
      %v5361 = vadd.f32 0.0, %v5360
      %v5362 = vpop.f32.mrb[0].mxu0
      %5363 = vmatprep.mubr.f32.mxu0 0.0
      %5364 = vmatmul.mubr.f32.gmra.mrb[0].mxu0 %v5098
      %v5365 = vpop.f32.mrb[0].mxu0
      %v5366 = vadd.f32 0.0, %v5365
      %v5367 = vpop.f32.mrb[0].mxu0
      %5368 = vmatprep.mubr.f32.mxu0 0.0
      %5369 = vmatmul.mubr.f32.gmra.mrb[0].mxu0 %v5101
      %v5370 = vpop.f32.mrb[0].mxu0
      %v5371 = vadd.f32 0.0, %v5370
      %v5372 = vpop.f32.mrb[0].mxu0
      %5373 = vmatprep.mubr.f32.mxu0 0.0
      %5374 = vmatmul.mubr.f32.gmra.mrb[0].mxu0 %v5104
      %v5375 = vpop.f32.mrb[0].mxu0
      %v5376 = vadd.f32 0.0, %v5375
      %v5377 = vpop.f32.mrb[0].mxu0
      %5378 = vmatprep.mubr.f32.mxu0 0.0
      %5379 = vmatmul.mubr.f32.gmra.mrb[0].mxu0 %v5107
      %v5380 = vpop.f32.mrb[0].mxu0
      %v5381 = vadd.f32 0.0, %v5380
      %v5382 = vpop.f32.mrb[0].mxu0
      %5383 = vmatprep.mubr.f32.mxu0 0.0
      %5384 = vmatmul.mubr.f32.gmra.mrb[0].mxu0 %v5110
      %v5385 = vpop.f32.mrb[0].mxu0
      %v5386 = vadd.f32 0.0, %v5385
      %v5387 = vpop.f32.mrb[0].mxu0
      %5388 = vmatprep.mubr.f32.mxu0 0.0
      %5389 = vmatmul.mubr.f32.gmra.mrb[0].mxu0 %v5113
      %v5390 = vpop.f32.mrb[0].mxu0
      %v5391 = vadd.f32 0.0, %v5390
      %v5392 = vpop.f32.mrb[0].mxu0
      %5393 = vmatprep.mubr.f32.mxu0 0.0
      %5394 = vmatmul.mubr.f32.gmra.mrb[0].mxu0 %v5116
      %v5395 = vpop.f32.mrb[0].mxu0
      %v5396 = vadd.f32 0.0, %v5395
      %v5397 = vpop.f32.mrb[0].mxu0
      %5398 = vmatprep.mubr.f32.mxu0 0.0
      %5399 = vmatmul.mubr.f32.gmra.mrb[0].mxu0 %v5119
      %v5400 = vpop.f32.mrb[0].mxu0
      %v5401 = vadd.f32 0.0, %v5400
      %v5402 = vpop.f32.mrb[0].mxu0
      %5403 = vmatprep.mubr.f32.mxu0 0.0
      %5404 = vmatmul.mubr.f32.gmra.mrb[0].mxu0 %v5122
      %v5405 = vpop.f32.mrb[0].mxu0
      %v5406 = vadd.f32 0.0, %v5405
      %v5407 = vpop.f32.mrb[0].mxu0
      %5408 = vmatprep.mubr.f32.mxu0 0.0
      %5409 = vmatmul.mubr.f32.gmra.mrb[0].mxu0 %v5125
      %v5410 = vpop.f32.mrb[0].mxu0
      %v5411 = vadd.f32 0.0, %v5410
      %v5412 = vpop.f32.mrb[0].mxu0
      %5413 = vmatprep.mubr.f32.mxu0 0.0
      %5414 = vmatmul.mubr.f32.gmra.mrb[0].mxu0 %v5128
      %v5415 = vpop.f32.mrb[0].mxu0
      %v5416 = vadd.f32 0.0, %v5415
      %v5417 = vpop.f32.mrb[0].mxu0
      %5418 = vmatprep.mubr.f32.mxu0 0.0
      %5419 = vmatmul.mubr.f32.gmra.mrb[0].mxu0 %v5131
      %v5420 = vpop.f32.mrb[0].mxu0
      %v5421 = vadd.f32 0.0, %v5420
      %v5422 = vpop.f32.mrb[0].mxu0
      %5423 = vmatprep.mubr.f32.mxu0 0.0
      %5424 = vmatmul.mubr.f32.gmra.mrb[0].mxu0 %v5134
      %v5425 = vpop.f32.mrb[0].mxu0
      %v5426 = vadd.f32 0.0, %v5425
      %v5427 = vpop.f32.mrb[0].mxu0
      %5428 = vmatprep.mubr.f32.mxu0 0.0
      %5429 = vmatmul.mubr.f32.gmra.mrb[0].mxu0 %v5137
      %v5430 = vpop.f32.mrb[0].mxu0
      %v5431 = vadd.f32 0.0, %v5430
      %v5432 = vpop.f32.mrb[0].mxu0
      %5433 = vmatprep.mubr.f32.mxu0 0.0
      %5434 = vmatmul.mubr.f32.gmra.mrb[0].mxu0 %v5140
      %v5435 = vpop.f32.mrb[0].mxu0
      %v5436 = vadd.f32 0.0, %v5435
      %v5437 = vpop.f32.mrb[0].mxu0
      %5438 = vmatprep.mubr.f32.mxu0 0.0
      %5439 = vmatmul.mubr.f32.gmra.mrb[0].mxu0 %v5143
      %v5440 = vpop.f32.mrb[0].mxu0
      %v5441 = vadd.f32 0.0, %v5440
      %v5442 = vpop.f32.mrb[0].mxu0
      %5443 = vmatprep.mubr.f32.mxu0 0.0
      %5444 = vmatmul.mubr.f32.gmra.mrb[0].mxu0 %v5146
      %v5445 = vpop.f32.mrb[0].mxu0
      %v5446 = vadd.f32 0.0, %v5445
      %v5447 = vpop.f32.mrb[0].mxu0
      %5448 = vmatprep.mubr.f32.mxu0 0.0
      %5449 = vmatmul.mubr.f32.gmra.mrb[0].mxu0 %v5149
      %v5450 = vpop.f32.mrb[0].mxu0
      %v5451 = vadd.f32 0.0, %v5450
      %v5452 = vpop.f32.mrb[0].mxu0
      %5453 = vmatprep.mubr.f32.mxu0 0.0
      %5454 = vmatmul.mubr.f32.gmra.mrb[0].mxu0 %v5152
      %v5455 = vpop.f32.mrb[0].mxu0
      %v5456 = vadd.f32 0.0, %v5455
      %v5457 = vpop.f32.mrb[0].mxu0
      %5458 = vmatprep.mubr.f32.mxu0 0.0
      %5459 = vmatmul.mubr.f32.gmra.mrb[0].mxu0 %v5155
      %v5460 = vpop.f32.mrb[0].mxu0
      %v5461 = vadd.f32 0.0, %v5460
      %v5462 = vpop.f32.mrb[0].mxu0
      %5463 = vmatprep.mubr.f32.mxu0 0.0
      %5464 = vmatmul.mubr.f32.gmra.mrb[0].mxu0 %v5158
      %v5465 = vpop.f32.mrb[0].mxu0
      %v5466 = vadd.f32 0.0, %v5465
      %v5467 = vpop.f32.mrb[0].mxu0
      %5468 = vmatprep.mubr.f32.mxu0 0.0
      %5469 = vmatmul.mubr.f32.gmra.mrb[0].mxu0 %v5161
      %v5470 = vpop.f32.mrb[0].mxu0
      %v5471 = vadd.f32 0.0, %v5470
      %v5472 = vpop.f32.mrb[0].mxu0
      %5473 = vmatprep.mubr.f32.mxu0 0.0
      %5474 = vmatmul.mubr.f32.gmra.mrb[0].mxu0 %v5164
      %v5475 = vpop.f32.mrb[0].mxu0
      %v5476 = vadd.f32 0.0, %v5475
      %v5477 = vpop.f32.mrb[0].mxu0
      %5478 = vmatprep.mubr.f32.mxu0 0.0
      %5479 = vmatmul.mubr.f32.gmra.mrb[0].mxu0 %v5167
      %v5480 = vpop.f32.mrb[0].mxu0
      %v5481 = vadd.f32 0.0, %v5480
      %v5482 = vpop.f32.mrb[0].mxu0
      %5483 = vmatprep.mubr.f32.mxu0 0.0
      %5484 = vmatmul.mubr.f32.gmra.mrb[0].mxu0 %v5170
      %v5485 = vpop.f32.mrb[0].mxu0
      %v5486 = vadd.f32 0.0, %v5485
      %v5487 = vpop.f32.mrb[0].mxu0
      %5488 = vmatprep.mubr.f32.mxu0 0.0
      %5489 = vmatmul.mubr.f32.gmra.mrb[0].mxu0 %v5173
      %v5490 = vpop.f32.mrb[0].mxu0
      %v5491 = vadd.f32 0.0, %v5490
      %v5492 = vpop.f32.mrb[0].mxu0
      %5493 = vmatprep.mubr.f32.mxu0 0.0
      %5494 = vmatmul.mubr.f32.gmra.mrb[0].mxu0 %v5176
      %v5495 = vpop.f32.mrb[0].mxu0
      %v5496 = vadd.f32 0.0, %v5495
      %v5497 = vpop.f32.mrb[0].mxu0
      %5498 = vmatprep.mubr.f32.mxu0 0.0
      %5499 = vmatmul.mubr.f32.gmra.mrb[0].mxu0 %v5179
      %v5500 = vpop.f32.mrb[0].mxu0
      %v5501 = vadd.f32 0.0, %v5500
      %v5502 = vpop.f32.mrb[0].mxu0
      %5503 = vmatprep.mubr.f32.mxu0 0.0
      %5504 = vmatmul.mubr.f32.gmra.mrb[0].mxu0 %v5182
      %v5505 = vpop.f32.mrb[0].mxu0
      %v5506 = vadd.f32 0.0, %v5505
      %v5507 = vpop.f32.mrb[0].mxu0
      %5508 = vmatprep.mubr.f32.mxu0 0.0
      %5509 = vmatmul.mubr.f32.gmra.mrb[0].mxu0 %v5185
      %v5510 = vpop.f32.mrb[0].mxu0
      %v5511 = vadd.f32 0.0, %v5510
      %v5512 = vpop.f32.mrb[0].mxu0
      %5513 = vmatprep.mubr.f32.mxu0 0.0
      %5514 = vmatmul.mubr.f32.gmra.mrb[0].mxu0 %v5188
      %v5515 = vpop.f32.mrb[0].mxu0
      %v5516 = vadd.f32 0.0, %v5515
      %v5517 = vpop.f32.mrb[0].mxu0
      %5518 = vmatprep.mubr.f32.mxu0 0.0
      %5519 = vmatmul.mubr.f32.gmra.mrb[0].mxu0 %v5191
      %v5520 = vpop.f32.mrb[0].mxu0
      %v5521 = vadd.f32 0.0, %v5520
      %v5522 = vpop.f32.mrb[0].mxu0
      %5523 = vmatprep.mubr.f32.mxu0 0.0
      %5524 = vmatmul.mubr.f32.gmra.mrb[0].mxu0 %v5194
      %v5525 = vpop.f32.mrb[0].mxu0
      %v5526 = vadd.f32 0.0, %v5525
      %v5527 = vpop.f32.mrb[0].mxu0
      %5528 = vmatprep.mubr.f32.mxu0 0.0
      %5529 = vmatmul.mubr.f32.gmra.mrb[0].mxu0 %v5197
      %v5530 = vpop.f32.mrb[0].mxu0
      %v5531 = vadd.f32 0.0, %v5530
      %v5532 = vpop.f32.mrb[0].mxu0
      %5533 = vmatprep.mubr.f32.mxu0 0.0
      %5534 = vmatmul.mubr.f32.gmra.mrb[0].mxu0 %v5200
      %v5535 = vpop.f32.mrb[0].mxu0
      %v5536 = vadd.f32 0.0, %v5535
      %v5537 = vpop.f32.mrb[0].mxu0
      %5538 = vmatprep.mubr.f32.mxu0 0.0
      %5539 = vmatmul.mubr.f32.gmra.mrb[0].mxu0 %v5203
      %v5540 = vpop.f32.mrb[0].mxu0
      %v5541 = vadd.f32 0.0, %v5540
      %v5542 = vpop.f32.mrb[0].mxu0
      %5543 = vmatprep.mubr.f32.mxu0 0.0
      %5544 = vmatmul.mubr.f32.gmra.mrb[0].mxu0 %v5206
      %v5545 = vpop.f32.mrb[0].mxu0
      %v5546 = vadd.f32 0.0, %v5545
      %v5547 = vpop.f32.mrb[0].mxu0
      %5548 = vmatprep.mubr.f32.mxu0 0.0
      %5549 = vmatmul.mubr.f32.gmra.mrb[0].mxu0 %v5209
      %v5550 = vpop.f32.mrb[0].mxu0
      %v5551 = vadd.f32 0.0, %v5550
      %v5552 = vpop.f32.mrb[0].mxu0
      %5553 = vmatprep.mubr.f32.mxu0 0.0
      %5554 = vmatmul.mubr.f32.gmra.mrb[0].mxu0 %v5212
      %v5555 = vpop.f32.mrb[0].mxu0
      %v5556 = vadd.f32 0.0, %v5555
      %v5557 = vpop.f32.mrb[0].mxu0
      %5558 = vmatprep.mubr.f32.mxu0 0.0
      %5559 = vmatmul.mubr.f32.gmra.mrb[0].mxu0 %v5215
      %v5560 = vpop.f32.mrb[0].mxu0
      %v5561 = vadd.f32 0.0, %v5560
      %v5562 = vpop.f32.mrb[0].mxu0
      %5563 = vmatprep.mubr.f32.mxu0 0.0
      %5564 = vmatmul.mubr.f32.gmra.mrb[0].mxu0 %v5218
      %v5565 = vpop.f32.mrb[0].mxu0
      %v5566 = vadd.f32 0.0, %v5565
      %v5567 = vpop.f32.mrb[0].mxu0
      %5568 = vmatprep.mubr.f32.mxu0 0.0
      %5569 = vmatmul.mubr.f32.gmra.mrb[0].mxu0 %v5221
      %v5570 = vpop.f32.mrb[0].mxu0
      %v5571 = vadd.f32 0.0, %v5570
      %v5572 = vpop.f32.mrb[0].mxu0
      %5573 = vmatprep.mubr.f32.mxu0 0.0
      %5574 = vmatmul.mubr.f32.gmra.mrb[0].mxu0 %v5224
      %v5575 = vpop.f32.mrb[0].mxu0
      %v5576 = vadd.f32 0.0, %v5575
      %v5577 = vpop.f32.mrb[0].mxu0
      %5578 = vmatprep.mubr.f32.mxu0 0.0
      %5579 = vmatmul.mubr.f32.gmra.mrb[0].mxu0 %v5227
      %v5580 = vpop.f32.mrb[0].mxu0
      %v5581 = vadd.f32 0.0, %v5580
      %v5582 = vpop.f32.mrb[0].mxu0
      %5583 = vmatprep.mubr.f32.mxu0 0.0
      %5584 = vmatmul.mubr.f32.gmra.mrb[0].mxu0 %v5230
      %v5585 = vpop.f32.mrb[0].mxu0
      %v5586 = vadd.f32 0.0, %v5585
      %v5587 = vpop.f32.mrb[0].mxu0
      %5588 = vmatprep.mubr.f32.mxu0 0.0
      %5589 = vmatmul.mubr.f32.gmra.mrb[0].mxu0 %v5233
      %v5590 = vpop.f32.mrb[0].mxu0
      %v5591 = vadd.f32 0.0, %v5590
      %v5592 = vpop.f32.mrb[0].mxu0
      %5593 = vmatprep.mubr.f32.mxu0 0.0
      %5594 = vmatmul.mubr.f32.gmra.mrb[0].mxu0 %v5236
      %v5595 = vpop.f32.mrb[0].mxu0
      %v5596 = vadd.f32 0.0, %v5595
      %v5597 = vpop.f32.mrb[0].mxu0
      %5598 = vmatprep.mubr.f32.mxu0 0.0
      %5599 = vmatmul.mubr.f32.gmra.mrb[0].mxu0 %v5239
      %v5600 = vpop.f32.mrb[0].mxu0
      %v5601 = vadd.f32 0.0, %v5600
      %v5602 = vpop.f32.mrb[0].mxu0
      %5603 = vmatprep.mubr.f32.mxu0 0.0
      %5604 = vmatmul.mubr.f32.gmra.mrb[0].mxu0 %v5242
      %v5605 = vpop.f32.mrb[0].mxu0
      %v5606 = vadd.f32 0.0, %v5605
      %v5607 = vpop.f32.mrb[0].mxu0
      %5608 = vmatprep.mubr.f32.mxu0 0.0
      %5609 = vmatmul.mubr.f32.gmra.mrb[0].mxu0 %v5245
      %v5610 = vpop.f32.mrb[0].mxu0
      %v5611 = vadd.f32 0.0, %v5610
      %v5612 = vpop.f32.mrb[0].mxu0
      %5613 = vmatprep.mubr.f32.mxu0 0.0
      %5614 = vmatmul.mubr.f32.gmra.mrb[0].mxu0 %v5248
      %v5615 = vpop.f32.mrb[0].mxu0
      %v5616 = vadd.f32 0.0, %v5615
      %v5617 = vpop.f32.mrb[0].mxu0
      %5618 = vmatprep.mubr.f32.mxu0 0.0
      %5619 = vmatmul.mubr.f32.gmra.mrb[0].mxu0 %v5251
      %v5620 = vpop.f32.mrb[0].mxu0
      %v5621 = vadd.f32 0.0, %v5620
      %v5622 = vpop.f32.mrb[0].mxu0
      %5623 = vmatprep.mubr.f32.mxu0 0.0
      %5624 = vmatmul.mubr.f32.gmra.mrb[0].mxu0 %v5254
      %v5625 = vpop.f32.mrb[0].mxu0
      %v5626 = vadd.f32 0.0, %v5625
      %v5627 = vpop.f32.mrb[0].mxu0
      %5628 = vmatprep.mubr.f32.mxu0 0.0
      %5629 = vmatmul.mubr.f32.gmra.mrb[0].mxu0 %v5257
      %v5630 = vpop.f32.mrb[0].mxu0
      %v5631 = vadd.f32 0.0, %v5630
      %v5632 = vpop.f32.mrb[0].mxu0
      %5633 = vmatprep.mubr.f32.mxu0 0.0
      %5634 = vmatmul.mubr.f32.gmra.mrb[0].mxu0 %v5260
      %v5635 = vpop.f32.mrb[0].mxu0
      %v5636 = vadd.f32 0.0, %v5635
      %v5637 = vpop.f32.mrb[0].mxu0
      %5638 = vmatprep.mubr.f32.mxu0 0.0
      %5639 = vmatmul.mubr.f32.gmra.mrb[0].mxu0 %v5263
      %v5640 = vpop.f32.mrb[0].mxu0
      %v5641 = vadd.f32 0.0, %v5640
      %v5642 = vpop.f32.mrb[0].mxu0
      %5643 = vmatprep.mubr.f32.mxu0 0.0
      %5644 = vmatmul.mubr.f32.gmra.mrb[0].mxu0 %v5266
      %v5645 = vpop.f32.mrb[0].mxu0
      %v5646 = vadd.f32 0.0, %v5645
      %v5647 = vpop.f32.mrb[0].mxu0
      %5648 = vmatprep.mubr.f32.mxu0 0.0
      %5649 = vmatmul.mubr.f32.gmra.mrb[0].mxu0 %v5269
      %v5650 = vpop.f32.mrb[0].mxu0
      %v5651 = vadd.f32 0.0, %v5650
      %v5652 = vpop.f32.mrb[0].mxu0
      %5653 = vmatprep.mubr.f32.mxu0 0.0
      %5654 = vmatmul.mubr.f32.gmra.mrb[0].mxu0 %v5272
      %v5655 = vpop.f32.mrb[0].mxu0
      %v5656 = vadd.f32 0.0, %v5655
      %v5657 = vpop.f32.mrb[0].mxu0
      %5658 = vdwg.mxu0
      %v5659 = vadd.f32 %v4952, %v5341
      %v5660 = vadd.f32 %v4953, %v5346
      %v5661 = vadd.f32 %v4954, %v5351
      %v5662 = vadd.f32 %v4955, %v5356
      %v5663 = vadd.f32 %v4956, %v5361
      %v5664 = vadd.f32 %v4957, %v5366
      %v5665 = vadd.f32 %v4958, %v5371
      %v5666 = vadd.f32 %v4959, %v5376
      %v5667 = vadd.f32 %v4960, %v5381
      %v5668 = vadd.f32 %v4961, %v5386
      %v5669 = vadd.f32 %v4962, %v5391
      %v5670 = vadd.f32 %v4963, %v5396
      %v5671 = vadd.f32 %v4964, %v5401
      %v5672 = vadd.f32 %v4965, %v5406
      %v5673 = vadd.f32 %v4966, %v5411
      %v5674 = vadd.f32 %v4967, %v5416
      %v5675 = vadd.f32 %v4968, %v5421
      %v5676 = vadd.f32 %v4969, %v5426
      %v5677 = vadd.f32 %v4970, %v5431
      %v5678 = vadd.f32 %v4971, %v5436
      %v5679 = vadd.f32 %v4972, %v5441
      %v5680 = vadd.f32 %v4973, %v5446
      %v5681 = vadd.f32 %v4974, %v5451
      %v5682 = vadd.f32 %v4975, %v5456
      %v5683 = vadd.f32 %v4976, %v5461
      %v5684 = vadd.f32 %v4977, %v5466
      %v5685 = vadd.f32 %v4978, %v5471
      %v5686 = vadd.f32 %v4979, %v5476
      %v5687 = vadd.f32 %v4980, %v5481
      %v5688 = vadd.f32 %v4981, %v5486
      %v5689 = vadd.f32 %v4982, %v5491
      %v5690 = vadd.f32 %v4983, %v5496
      %v5691 = vadd.f32 %v4984, %v5501
      %v5692 = vadd.f32 %v4985, %v5506
      %v5693 = vadd.f32 %v4986, %v5511
      %v5694 = vadd.f32 %v4987, %v5516
      %v5695 = vadd.f32 %v4988, %v5521
      %v5696 = vadd.f32 %v4989, %v5526
      %v5697 = vadd.f32 %v4990, %v5531
      %v5698 = vadd.f32 %v4991, %v5536
      %v5699 = vadd.f32 %v4992, %v5541
      %v5700 = vadd.f32 %v4993, %v5546
      %v5701 = vadd.f32 %v4994, %v5551
      %v5702 = vadd.f32 %v4995, %v5556
      %v5703 = vadd.f32 %v4996, %v5561
      %v5704 = vadd.f32 %v4997, %v5566
      %v5705 = vadd.f32 %v4998, %v5571
      %v5706 = vadd.f32 %v4999, %v5576
      %v5707 = vadd.f32 %v5000, %v5581
      %v5708 = vadd.f32 %v5001, %v5586
      %v5709 = vadd.f32 %v5002, %v5591
      %v5710 = vadd.f32 %v5003, %v5596
      %v5711 = vadd.f32 %v5004, %v5601
      %v5712 = vadd.f32 %v5005, %v5606
      %v5713 = vadd.f32 %v5006, %v5611
      %v5714 = vadd.f32 %v5007, %v5616
      %v5715 = vadd.f32 %v5008, %v5621
      %v5716 = vadd.f32 %v5009, %v5626
      %v5717 = vadd.f32 %v5010, %v5631
      %v5718 = vadd.f32 %v5011, %v5636
      %v5719 = vadd.f32 %v5012, %v5641
      %v5720 = vadd.f32 %v5013, %v5646
      %v5721 = vadd.f32 %v5014, %v5651
      %v5722 = vadd.f32 %v5015, %v5656
      %v5723 = vld [vmem:[%s9] sm:$0x1]
      %v5725 = vlaneseq
      %v5726 = vshrl.u32 %v5725, 7
      %v5727 = vsub.s32 0, %v5726
      %v5728 = vrot.slane %v5723, %v5727
      %v5730 = vadd.f32 %v5659, %v5728
      %v5731 = vadd.f32 %v5660, %v5728
      %v5732 = vadd.f32 %v5661, %v5728
      %v5733 = vadd.f32 %v5662, %v5728
      %v5734 = vadd.f32 %v5663, %v5728
      %v5735 = vadd.f32 %v5664, %v5728
      %v5736 = vadd.f32 %v5665, %v5728
      %v5737 = vadd.f32 %v5666, %v5728
      %v5738 = vadd.f32 %v5667, %v5728
      %v5739 = vadd.f32 %v5668, %v5728
      %v5740 = vadd.f32 %v5669, %v5728
      %v5741 = vadd.f32 %v5670, %v5728
      %v5742 = vadd.f32 %v5671, %v5728
      %v5743 = vadd.f32 %v5672, %v5728
      %v5744 = vadd.f32 %v5673, %v5728
      %v5745 = vadd.f32 %v5674, %v5728
      %v5746 = vadd.f32 %v5675, %v5728
      %v5747 = vadd.f32 %v5676, %v5728
      %v5748 = vadd.f32 %v5677, %v5728
      %v5749 = vadd.f32 %v5678, %v5728
      %v5750 = vadd.f32 %v5679, %v5728
      %v5751 = vadd.f32 %v5680, %v5728
      %v5752 = vadd.f32 %v5681, %v5728
      %v5753 = vadd.f32 %v5682, %v5728
      %v5754 = vadd.f32 %v5683, %v5728
      %v5755 = vadd.f32 %v5684, %v5728
      %v5756 = vadd.f32 %v5685, %v5728
      %v5757 = vadd.f32 %v5686, %v5728
      %v5758 = vadd.f32 %v5687, %v5728
      %v5759 = vadd.f32 %v5688, %v5728
      %v5760 = vadd.f32 %v5689, %v5728
      %v5761 = vadd.f32 %v5690, %v5728
      %v5762 = vadd.f32 %v5691, %v5728
      %v5763 = vadd.f32 %v5692, %v5728
      %v5764 = vadd.f32 %v5693, %v5728
      %v5765 = vadd.f32 %v5694, %v5728
      %v5766 = vadd.f32 %v5695, %v5728
      %v5767 = vadd.f32 %v5696, %v5728
      %v5768 = vadd.f32 %v5697, %v5728
      %v5769 = vadd.f32 %v5698, %v5728
      %v5770 = vadd.f32 %v5699, %v5728
      %v5771 = vadd.f32 %v5700, %v5728
      %v5772 = vadd.f32 %v5701, %v5728
      %v5773 = vadd.f32 %v5702, %v5728
      %v5774 = vadd.f32 %v5703, %v5728
      %v5775 = vadd.f32 %v5704, %v5728
      %v5776 = vadd.f32 %v5705, %v5728
      %v5777 = vadd.f32 %v5706, %v5728
      %v5778 = vadd.f32 %v5707, %v5728
      %v5779 = vadd.f32 %v5708, %v5728
      %v5780 = vadd.f32 %v5709, %v5728
      %v5781 = vadd.f32 %v5710, %v5728
      %v5782 = vadd.f32 %v5711, %v5728
      %v5783 = vadd.f32 %v5712, %v5728
      %v5784 = vadd.f32 %v5713, %v5728
      %v5785 = vadd.f32 %v5714, %v5728
      %v5786 = vadd.f32 %v5715, %v5728
      %v5787 = vadd.f32 %v5716, %v5728
      %v5788 = vadd.f32 %v5717, %v5728
      %v5789 = vadd.f32 %v5718, %v5728
      %v5790 = vadd.f32 %v5719, %v5728
      %v5791 = vadd.f32 %v5720, %v5728
      %v5792 = vadd.f32 %v5721, %v5728
      %v5793 = vadd.f32 %v5722, %v5728
      %v5794 = vxor.u32 %v5730, 2147483648
      %v5795 = vxor.u32 %v5731, 2147483648
      %v5796 = vxor.u32 %v5732, 2147483648
      %v5797 = vxor.u32 %v5733, 2147483648
      %v5798 = vxor.u32 %v5734, 2147483648
      %v5799 = vxor.u32 %v5735, 2147483648
      %v5800 = vxor.u32 %v5736, 2147483648
      %v5801 = vxor.u32 %v5737, 2147483648
      %v5802 = vxor.u32 %v5738, 2147483648
      %v5803 = vxor.u32 %v5739, 2147483648
      %v5804 = vxor.u32 %v5740, 2147483648
      %v5805 = vxor.u32 %v5741, 2147483648
      %v5806 = vxor.u32 %v5742, 2147483648
      %v5807 = vxor.u32 %v5743, 2147483648
      %v5808 = vxor.u32 %v5744, 2147483648
      %v5809 = vxor.u32 %v5745, 2147483648
      %v5810 = vxor.u32 %v5746, 2147483648
      %v5811 = vxor.u32 %v5747, 2147483648
      %v5812 = vxor.u32 %v5748, 2147483648
      %v5813 = vxor.u32 %v5749, 2147483648
      %v5814 = vxor.u32 %v5750, 2147483648
      %v5815 = vxor.u32 %v5751, 2147483648
      %v5816 = vxor.u32 %v5752, 2147483648
      %v5817 = vxor.u32 %v5753, 2147483648
      %v5818 = vxor.u32 %v5754, 2147483648
      %v5819 = vxor.u32 %v5755, 2147483648
      %v5820 = vxor.u32 %v5756, 2147483648
      %v5821 = vxor.u32 %v5757, 2147483648
      %v5822 = vxor.u32 %v5758, 2147483648
      %v5823 = vxor.u32 %v5759, 2147483648
      %v5824 = vxor.u32 %v5760, 2147483648
      %v5825 = vxor.u32 %v5761, 2147483648
      %v5826 = vxor.u32 %v5762, 2147483648
      %v5827 = vxor.u32 %v5763, 2147483648
      %v5828 = vxor.u32 %v5764, 2147483648
      %v5829 = vxor.u32 %v5765, 2147483648
      %v5830 = vxor.u32 %v5766, 2147483648
      %v5831 = vxor.u32 %v5767, 2147483648
      %v5832 = vxor.u32 %v5768, 2147483648
      %v5833 = vxor.u32 %v5769, 2147483648
      %v5834 = vxor.u32 %v5770, 2147483648
      %v5835 = vxor.u32 %v5771, 2147483648
      %v5836 = vxor.u32 %v5772, 2147483648
      %v5837 = vxor.u32 %v5773, 2147483648
      %v5838 = vxor.u32 %v5774, 2147483648
      %v5839 = vxor.u32 %v5775, 2147483648
      %v5840 = vxor.u32 %v5776, 2147483648
      %v5841 = vxor.u32 %v5777, 2147483648
      %v5842 = vxor.u32 %v5778, 2147483648
      %v5843 = vxor.u32 %v5779, 2147483648
      %v5844 = vxor.u32 %v5780, 2147483648
      %v5845 = vxor.u32 %v5781, 2147483648
      %v5846 = vxor.u32 %v5782, 2147483648
      %v5847 = vxor.u32 %v5783, 2147483648
      %v5848 = vxor.u32 %v5784, 2147483648
      %v5849 = vxor.u32 %v5785, 2147483648
      %v5850 = vxor.u32 %v5786, 2147483648
      %v5851 = vxor.u32 %v5787, 2147483648
      %v5852 = vxor.u32 %v5788, 2147483648
      %v5853 = vxor.u32 %v5789, 2147483648
      %v5854 = vxor.u32 %v5790, 2147483648
      %v5855 = vxor.u32 %v5791, 2147483648
      %v5856 = vxor.u32 %v5792, 2147483648
      %v5857 = vxor.u32 %v5793, 2147483648
      %v5858 = vmul.f32 %v5794, 1.442695
      %v5859 = vpow.pop %v5858
      %v5860 = vmul.f32 %v5795, 1.442695
      %v5861 = vpow.pop %v5860
      %v5862 = vmul.f32 %v5796, 1.442695
      %v5863 = vpow.pop %v5862
      %v5864 = vmul.f32 %v5797, 1.442695
      %v5865 = vpow.pop %v5864
      %v5866 = vmul.f32 %v5798, 1.442695
      %v5867 = vpow.pop %v5866
      %v5868 = vmul.f32 %v5799, 1.442695
      %v5869 = vpow.pop %v5868
      %v5870 = vmul.f32 %v5800, 1.442695
      %v5871 = vpow.pop %v5870
      %v5872 = vmul.f32 %v5801, 1.442695
      %v5873 = vpow.pop %v5872
      %v5874 = vmul.f32 %v5802, 1.442695
      %v5875 = vpow.pop %v5874
      %v5876 = vmul.f32 %v5803, 1.442695
      %v5877 = vpow.pop %v5876
      %v5878 = vmul.f32 %v5804, 1.442695
      %v5879 = vpow.pop %v5878
      %v5880 = vmul.f32 %v5805, 1.442695
      %v5881 = vpow.pop %v5880
      %v5882 = vmul.f32 %v5806, 1.442695
      %v5883 = vpow.pop %v5882
      %v5884 = vmul.f32 %v5807, 1.442695
      %v5885 = vpow.pop %v5884
      %v5886 = vmul.f32 %v5808, 1.442695
      %v5887 = vpow.pop %v5886
      %v5888 = vmul.f32 %v5809, 1.442695
      %v5889 = vpow.pop %v5888
      %v5890 = vmul.f32 %v5810, 1.442695
      %v5891 = vpow.pop %v5890
      %v5892 = vmul.f32 %v5811, 1.442695
      %v5893 = vpow.pop %v5892
      %v5894 = vmul.f32 %v5812, 1.442695
      %v5895 = vpow.pop %v5894
      %v5896 = vmul.f32 %v5813, 1.442695
      %v5897 = vpow.pop %v5896
      %v5898 = vmul.f32 %v5814, 1.442695
      %v5899 = vpow.pop %v5898
      %v5900 = vmul.f32 %v5815, 1.442695
      %v5901 = vpow.pop %v5900
      %v5902 = vmul.f32 %v5816, 1.442695
      %v5903 = vpow.pop %v5902
      %v5904 = vmul.f32 %v5817, 1.442695
      %v5905 = vpow.pop %v5904
      %v5906 = vmul.f32 %v5818, 1.442695
      %v5907 = vpow.pop %v5906
      %v5908 = vmul.f32 %v5819, 1.442695
      %v5909 = vpow.pop %v5908
      %v5910 = vmul.f32 %v5820, 1.442695
      %v5911 = vpow.pop %v5910
      %v5912 = vmul.f32 %v5821, 1.442695
      %v5913 = vpow.pop %v5912
      %v5914 = vmul.f32 %v5822, 1.442695
      %v5915 = vpow.pop %v5914
      %v5916 = vmul.f32 %v5823, 1.442695
      %v5917 = vpow.pop %v5916
      %v5918 = vmul.f32 %v5824, 1.442695
      %v5919 = vpow.pop %v5918
      %v5920 = vmul.f32 %v5825, 1.442695
      %v5921 = vpow.pop %v5920
      %v5922 = vmul.f32 %v5826, 1.442695
      %v5923 = vpow.pop %v5922
      %v5924 = vmul.f32 %v5827, 1.442695
      %v5925 = vpow.pop %v5924
      %v5926 = vmul.f32 %v5828, 1.442695
      %v5927 = vpow.pop %v5926
      %v5928 = vmul.f32 %v5829, 1.442695
      %v5929 = vpow.pop %v5928
      %v5930 = vmul.f32 %v5830, 1.442695
      %v5931 = vpow.pop %v5930
      %v5932 = vmul.f32 %v5831, 1.442695
      %v5933 = vpow.pop %v5932
      %v5934 = vmul.f32 %v5832, 1.442695
      %v5935 = vpow.pop %v5934
      %v5936 = vmul.f32 %v5833, 1.442695
      %v5937 = vpow.pop %v5936
      %v5938 = vmul.f32 %v5834, 1.442695
      %v5939 = vpow.pop %v5938
      %v5940 = vmul.f32 %v5835, 1.442695
      %v5941 = vpow.pop %v5940
      %v5942 = vmul.f32 %v5836, 1.442695
      %v5943 = vpow.pop %v5942
      %v5944 = vmul.f32 %v5837, 1.442695
      %v5945 = vpow.pop %v5944
      %v5946 = vmul.f32 %v5838, 1.442695
      %v5947 = vpow.pop %v5946
      %v5948 = vmul.f32 %v5839, 1.442695
      %v5949 = vpow.pop %v5948
      %v5950 = vmul.f32 %v5840, 1.442695
      %v5951 = vpow.pop %v5950
      %v5952 = vmul.f32 %v5841, 1.442695
      %v5953 = vpow.pop %v5952
      %v5954 = vmul.f32 %v5842, 1.442695
      %v5955 = vpow.pop %v5954
      %v5956 = vmul.f32 %v5843, 1.442695
      %v5957 = vpow.pop %v5956
      %v5958 = vmul.f32 %v5844, 1.442695
      %v5959 = vpow.pop %v5958
      %v5960 = vmul.f32 %v5845, 1.442695
      %v5961 = vpow.pop %v5960
      %v5962 = vmul.f32 %v5846, 1.442695
      %v5963 = vpow.pop %v5962
      %v5964 = vmul.f32 %v5847, 1.442695
      %v5965 = vpow.pop %v5964
      %v5966 = vmul.f32 %v5848, 1.442695
      %v5967 = vpow.pop %v5966
      %v5968 = vmul.f32 %v5849, 1.442695
      %v5969 = vpow.pop %v5968
      %v5970 = vmul.f32 %v5850, 1.442695
      %v5971 = vpow.pop %v5970
      %v5972 = vmul.f32 %v5851, 1.442695
      %v5973 = vpow.pop %v5972
      %v5974 = vmul.f32 %v5852, 1.442695
      %v5975 = vpow.pop %v5974
      %v5976 = vmul.f32 %v5853, 1.442695
      %v5977 = vpow.pop %v5976
      %v5978 = vmul.f32 %v5854, 1.442695
      %v5979 = vpow.pop %v5978
      %v5980 = vmul.f32 %v5855, 1.442695
      %v5981 = vpow.pop %v5980
      %v5982 = vmul.f32 %v5856, 1.442695
      %v5983 = vpow.pop %v5982
      %v5984 = vmul.f32 %v5857, 1.442695
      %v5985 = vpow.pop %v5984
      %v5986 = vadd.f32 %v5859, 1.0
      %v5987 = vadd.f32 %v5861, 1.0
      %v5988 = vadd.f32 %v5863, 1.0
      %v5989 = vadd.f32 %v5865, 1.0
      %v5990 = vadd.f32 %v5867, 1.0
      %v5991 = vadd.f32 %v5869, 1.0
      %v5992 = vadd.f32 %v5871, 1.0
      %v5993 = vadd.f32 %v5873, 1.0
      %v5994 = vadd.f32 %v5875, 1.0
      %v5995 = vadd.f32 %v5877, 1.0
      %v5996 = vadd.f32 %v5879, 1.0
      %v5997 = vadd.f32 %v5881, 1.0
      %v5998 = vadd.f32 %v5883, 1.0
      %v5999 = vadd.f32 %v5885, 1.0
      %v6000 = vadd.f32 %v5887, 1.0
      %v6001 = vadd.f32 %v5889, 1.0
      %v6002 = vadd.f32 %v5891, 1.0
      %v6003 = vadd.f32 %v5893, 1.0
      %v6004 = vadd.f32 %v5895, 1.0
      %v6005 = vadd.f32 %v5897, 1.0
      %v6006 = vadd.f32 %v5899, 1.0
      %v6007 = vadd.f32 %v5901, 1.0
      %v6008 = vadd.f32 %v5903, 1.0
      %v6009 = vadd.f32 %v5905, 1.0
      %v6010 = vadd.f32 %v5907, 1.0
      %v6011 = vadd.f32 %v5909, 1.0
      %v6012 = vadd.f32 %v5911, 1.0
      %v6013 = vadd.f32 %v5913, 1.0
      %v6014 = vadd.f32 %v5915, 1.0
      %v6015 = vadd.f32 %v5917, 1.0
      %v6016 = vadd.f32 %v5919, 1.0
      %v6017 = vadd.f32 %v5921, 1.0
      %v6018 = vadd.f32 %v5923, 1.0
      %v6019 = vadd.f32 %v5925, 1.0
      %v6020 = vadd.f32 %v5927, 1.0
      %v6021 = vadd.f32 %v5929, 1.0
      %v6022 = vadd.f32 %v5931, 1.0
      %v6023 = vadd.f32 %v5933, 1.0
      %v6024 = vadd.f32 %v5935, 1.0
      %v6025 = vadd.f32 %v5937, 1.0
      %v6026 = vadd.f32 %v5939, 1.0
      %v6027 = vadd.f32 %v5941, 1.0
      %v6028 = vadd.f32 %v5943, 1.0
      %v6029 = vadd.f32 %v5945, 1.0
      %v6030 = vadd.f32 %v5947, 1.0
      %v6031 = vadd.f32 %v5949, 1.0
      %v6032 = vadd.f32 %v5951, 1.0
      %v6033 = vadd.f32 %v5953, 1.0
      %v6034 = vadd.f32 %v5955, 1.0
      %v6035 = vadd.f32 %v5957, 1.0
      %v6036 = vadd.f32 %v5959, 1.0
      %v6037 = vadd.f32 %v5961, 1.0
      %v6038 = vadd.f32 %v5963, 1.0
      %v6039 = vadd.f32 %v5965, 1.0
      %v6040 = vadd.f32 %v5967, 1.0
      %v6041 = vadd.f32 %v5969, 1.0
      %v6042 = vadd.f32 %v5971, 1.0
      %v6043 = vadd.f32 %v5973, 1.0
      %v6044 = vadd.f32 %v5975, 1.0
      %v6045 = vadd.f32 %v5977, 1.0
      %v6046 = vadd.f32 %v5979, 1.0
      %v6047 = vadd.f32 %v5981, 1.0
      %v6048 = vadd.f32 %v5983, 1.0
      %v6049 = vadd.f32 %v5985, 1.0
      %v6050 = vrcp.pop %v5986
      %v6051 = vmul.f32 1.0, %v6050
      %v6052 = vrcp.pop %v5987
      %v6053 = vmul.f32 1.0, %v6052
      %v6054 = vrcp.pop %v5988
      %v6055 = vmul.f32 1.0, %v6054
      %v6056 = vrcp.pop %v5989
      %v6057 = vmul.f32 1.0, %v6056
      %v6058 = vrcp.pop %v5990
      %v6059 = vmul.f32 1.0, %v6058
      %v6060 = vrcp.pop %v5991
      %v6061 = vmul.f32 1.0, %v6060
      %v6062 = vrcp.pop %v5992
      %v6063 = vmul.f32 1.0, %v6062
      %v6064 = vrcp.pop %v5993
      %v6065 = vmul.f32 1.0, %v6064
      %v6066 = vrcp.pop %v5994
      %v6067 = vmul.f32 1.0, %v6066
      %v6068 = vrcp.pop %v5995
      %v6069 = vmul.f32 1.0, %v6068
      %v6070 = vrcp.pop %v5996
      %v6071 = vmul.f32 1.0, %v6070
      %v6072 = vrcp.pop %v5997
      %v6073 = vmul.f32 1.0, %v6072
      %v6074 = vrcp.pop %v5998
      %v6075 = vmul.f32 1.0, %v6074
      %v6076 = vrcp.pop %v5999
      %v6077 = vmul.f32 1.0, %v6076
      %v6078 = vrcp.pop %v6000
      %v6079 = vmul.f32 1.0, %v6078
      %v6080 = vrcp.pop %v6001
      %v6081 = vmul.f32 1.0, %v6080
      %v6082 = vrcp.pop %v6002
      %v6083 = vmul.f32 1.0, %v6082
      %v6084 = vrcp.pop %v6003
      %v6085 = vmul.f32 1.0, %v6084
      %v6086 = vrcp.pop %v6004
      %v6087 = vmul.f32 1.0, %v6086
      %v6088 = vrcp.pop %v6005
      %v6089 = vmul.f32 1.0, %v6088
      %v6090 = vrcp.pop %v6006
      %v6091 = vmul.f32 1.0, %v6090
      %v6092 = vrcp.pop %v6007
      %v6093 = vmul.f32 1.0, %v6092
      %v6094 = vrcp.pop %v6008
      %v6095 = vmul.f32 1.0, %v6094
      %v6096 = vrcp.pop %v6009
      %v6097 = vmul.f32 1.0, %v6096
      %v6098 = vrcp.pop %v6010
      %v6099 = vmul.f32 1.0, %v6098
      %v6100 = vrcp.pop %v6011
      %v6101 = vmul.f32 1.0, %v6100
      %v6102 = vrcp.pop %v6012
      %v6103 = vmul.f32 1.0, %v6102
      %v6104 = vrcp.pop %v6013
      %v6105 = vmul.f32 1.0, %v6104
      %v6106 = vrcp.pop %v6014
      %v6107 = vmul.f32 1.0, %v6106
      %v6108 = vrcp.pop %v6015
      %v6109 = vmul.f32 1.0, %v6108
      %v6110 = vrcp.pop %v6016
      %v6111 = vmul.f32 1.0, %v6110
      %v6112 = vrcp.pop %v6017
      %v6113 = vmul.f32 1.0, %v6112
      %v6114 = vrcp.pop %v6018
      %v6115 = vmul.f32 1.0, %v6114
      %v6116 = vrcp.pop %v6019
      %v6117 = vmul.f32 1.0, %v6116
      %v6118 = vrcp.pop %v6020
      %v6119 = vmul.f32 1.0, %v6118
      %v6120 = vrcp.pop %v6021
      %v6121 = vmul.f32 1.0, %v6120
      %v6122 = vrcp.pop %v6022
      %v6123 = vmul.f32 1.0, %v6122
      %v6124 = vrcp.pop %v6023
      %v6125 = vmul.f32 1.0, %v6124
      %v6126 = vrcp.pop %v6024
      %v6127 = vmul.f32 1.0, %v6126
      %v6128 = vrcp.pop %v6025
      %v6129 = vmul.f32 1.0, %v6128
      %v6130 = vrcp.pop %v6026
      %v6131 = vmul.f32 1.0, %v6130
      %v6132 = vrcp.pop %v6027
      %v6133 = vmul.f32 1.0, %v6132
      %v6134 = vrcp.pop %v6028
      %v6135 = vmul.f32 1.0, %v6134
      %v6136 = vrcp.pop %v6029
      %v6137 = vmul.f32 1.0, %v6136
      %v6138 = vrcp.pop %v6030
      %v6139 = vmul.f32 1.0, %v6138
      %v6140 = vrcp.pop %v6031
      %v6141 = vmul.f32 1.0, %v6140
      %v6142 = vrcp.pop %v6032
      %v6143 = vmul.f32 1.0, %v6142
      %v6144 = vrcp.pop %v6033
      %v6145 = vmul.f32 1.0, %v6144
      %v6146 = vrcp.pop %v6034
      %v6147 = vmul.f32 1.0, %v6146
      %v6148 = vrcp.pop %v6035
      %v6149 = vmul.f32 1.0, %v6148
      %v6150 = vrcp.pop %v6036
      %v6151 = vmul.f32 1.0, %v6150
      %v6152 = vrcp.pop %v6037
      %v6153 = vmul.f32 1.0, %v6152
      %v6154 = vrcp.pop %v6038
      %v6155 = vmul.f32 1.0, %v6154
      %v6156 = vrcp.pop %v6039
      %v6157 = vmul.f32 1.0, %v6156
      %v6158 = vrcp.pop %v6040
      %v6159 = vmul.f32 1.0, %v6158
      %v6160 = vrcp.pop %v6041
      %v6161 = vmul.f32 1.0, %v6160
      %v6162 = vrcp.pop %v6042
      %v6163 = vmul.f32 1.0, %v6162
      %v6164 = vrcp.pop %v6043
      %v6165 = vmul.f32 1.0, %v6164
      %v6166 = vrcp.pop %v6044
      %v6167 = vmul.f32 1.0, %v6166
      %v6168 = vrcp.pop %v6045
      %v6169 = vmul.f32 1.0, %v6168
      %v6170 = vrcp.pop %v6046
      %v6171 = vmul.f32 1.0, %v6170
      %v6172 = vrcp.pop %v6047
      %v6173 = vmul.f32 1.0, %v6172
      %v6174 = vrcp.pop %v6048
      %v6175 = vmul.f32 1.0, %v6174
      %v6176 = vrcp.pop %v6049
      %v6177 = vmul.f32 1.0, %v6176
      %v6178 = vmul.f32 %v5730, %v6051
      %v6179 = vmul.f32 %v5731, %v6053
      %v6180 = vmul.f32 %v5732, %v6055
      %v6181 = vmul.f32 %v5733, %v6057
      %v6182 = vmul.f32 %v5734, %v6059
      %v6183 = vmul.f32 %v5735, %v6061
      %v6184 = vmul.f32 %v5736, %v6063
      %v6185 = vmul.f32 %v5737, %v6065
      %v6186 = vmul.f32 %v5738, %v6067
      %v6187 = vmul.f32 %v5739, %v6069
      %v6188 = vmul.f32 %v5740, %v6071
      %v6189 = vmul.f32 %v5741, %v6073
      %v6190 = vmul.f32 %v5742, %v6075
      %v6191 = vmul.f32 %v5743, %v6077
      %v6192 = vmul.f32 %v5744, %v6079
      %v6193 = vmul.f32 %v5745, %v6081
      %v6194 = vmul.f32 %v5746, %v6083
      %v6195 = vmul.f32 %v5747, %v6085
      %v6196 = vmul.f32 %v5748, %v6087
      %v6197 = vmul.f32 %v5749, %v6089
      %v6198 = vmul.f32 %v5750, %v6091
      %v6199 = vmul.f32 %v5751, %v6093
      %v6200 = vmul.f32 %v5752, %v6095
      %v6201 = vmul.f32 %v5753, %v6097
      %v6202 = vmul.f32 %v5754, %v6099
      %v6203 = vmul.f32 %v5755, %v6101
      %v6204 = vmul.f32 %v5756, %v6103
      %v6205 = vmul.f32 %v5757, %v6105
      %v6206 = vmul.f32 %v5758, %v6107
      %v6207 = vmul.f32 %v5759, %v6109
      %v6208 = vmul.f32 %v5760, %v6111
      %v6209 = vmul.f32 %v5761, %v6113
      %v6210 = vmul.f32 %v5762, %v6115
      %v6211 = vmul.f32 %v5763, %v6117
      %v6212 = vmul.f32 %v5764, %v6119
      %v6213 = vmul.f32 %v5765, %v6121
      %v6214 = vmul.f32 %v5766, %v6123
      %v6215 = vmul.f32 %v5767, %v6125
      %v6216 = vmul.f32 %v5768, %v6127
      %v6217 = vmul.f32 %v5769, %v6129
      %v6218 = vmul.f32 %v5770, %v6131
      %v6219 = vmul.f32 %v5771, %v6133
      %v6220 = vmul.f32 %v5772, %v6135
      %v6221 = vmul.f32 %v5773, %v6137
      %v6222 = vmul.f32 %v5774, %v6139
      %v6223 = vmul.f32 %v5775, %v6141
      %v6224 = vmul.f32 %v5776, %v6143
      %v6225 = vmul.f32 %v5777, %v6145
      %v6226 = vmul.f32 %v5778, %v6147
      %v6227 = vmul.f32 %v5779, %v6149
      %v6228 = vmul.f32 %v5780, %v6151
      %v6229 = vmul.f32 %v5781, %v6153
      %v6230 = vmul.f32 %v5782, %v6155
      %v6231 = vmul.f32 %v5783, %v6157
      %v6232 = vmul.f32 %v5784, %v6159
      %v6233 = vmul.f32 %v5785, %v6161
      %v6234 = vmul.f32 %v5786, %v6163
      %v6235 = vmul.f32 %v5787, %v6165
      %v6236 = vmul.f32 %v5788, %v6167
      %v6237 = vmul.f32 %v5789, %v6169
      %v6238 = vmul.f32 %v5790, %v6171
      %v6239 = vmul.f32 %v5791, %v6173
      %v6240 = vmul.f32 %v5792, %v6175
      %v6241 = vmul.f32 %v5793, %v6177
      %v6242 = vld [vmem:[%s10] sm:$0xff]
      %v6243 = vld [vmem:[%s10 + $0x8] sm:$0xff]
      %v6244 = vld [vmem:[%s10 + $0x10] sm:$0xff]
      %v6245 = vld [vmem:[%s10 + $0x18] sm:$0xff]
      %v6246 = vld [vmem:[%s11] sm:$0x1]
      %v6248 = vlaneseq
      %v6249 = vshrl.u32 %v6248, 7
      %v6250 = vsub.s32 0, %v6249
      %v6251 = vrot.slane %v6246, %v6250
      %vm6253 = vcmask 261120
      %v6255 = vsel %vm6253, %v6178, 0
      %v6258 = vsel %vm6253, %v6179, 0
      %v6261 = vsel %vm6253, %v6180, 0
      %v6264 = vsel %vm6253, %v6181, 0
      %v6267 = vsel %vm6253, %v6182, 0
      %v6270 = vsel %vm6253, %v6183, 0
      %v6273 = vsel %vm6253, %v6184, 0
      %v6276 = vsel %vm6253, %v6185, 0
      %v6279 = vsel %vm6253, %v6186, 0
      %v6282 = vsel %vm6253, %v6187, 0
      %v6285 = vsel %vm6253, %v6188, 0
      %v6288 = vsel %vm6253, %v6189, 0
      %v6291 = vsel %vm6253, %v6190, 0
      %v6294 = vsel %vm6253, %v6191, 0
      %v6297 = vsel %vm6253, %v6192, 0
      %v6300 = vsel %vm6253, %v6193, 0
      %v6303 = vsel %vm6253, %v6194, 0
      %v6306 = vsel %vm6253, %v6195, 0
      %v6309 = vsel %vm6253, %v6196, 0
      %v6312 = vsel %vm6253, %v6197, 0
      %v6315 = vsel %vm6253, %v6198, 0
      %v6318 = vsel %vm6253, %v6199, 0
      %v6321 = vsel %vm6253, %v6200, 0
      %v6324 = vsel %vm6253, %v6201, 0
      %v6327 = vsel %vm6253, %v6202, 0
      %v6330 = vsel %vm6253, %v6203, 0
      %v6333 = vsel %vm6253, %v6204, 0
      %v6336 = vsel %vm6253, %v6205, 0
      %v6339 = vsel %vm6253, %v6206, 0
      %v6342 = vsel %vm6253, %v6207, 0
      %v6345 = vsel %vm6253, %v6208, 0
      %v6348 = vsel %vm6253, %v6209, 0
      %v6351 = vsel %vm6253, %v6210, 0
      %v6354 = vsel %vm6253, %v6211, 0
      %v6357 = vsel %vm6253, %v6212, 0
      %v6360 = vsel %vm6253, %v6213, 0
      %v6363 = vsel %vm6253, %v6214, 0
      %v6366 = vsel %vm6253, %v6215, 0
      %v6369 = vsel %vm6253, %v6216, 0
      %v6372 = vsel %vm6253, %v6217, 0
      %v6375 = vsel %vm6253, %v6218, 0
      %v6378 = vsel %vm6253, %v6219, 0
      %v6381 = vsel %vm6253, %v6220, 0
      %v6384 = vsel %vm6253, %v6221, 0
      %v6387 = vsel %vm6253, %v6222, 0
      %v6390 = vsel %vm6253, %v6223, 0
      %v6393 = vsel %vm6253, %v6224, 0
      %v6396 = vsel %vm6253, %v6225, 0
      %v6399 = vsel %vm6253, %v6226, 0
      %v6402 = vsel %vm6253, %v6227, 0
      %v6405 = vsel %vm6253, %v6228, 0
      %v6408 = vsel %vm6253, %v6229, 0
      %v6411 = vsel %vm6253, %v6230, 0
      %v6414 = vsel %vm6253, %v6231, 0
      %v6417 = vsel %vm6253, %v6232, 0
      %v6420 = vsel %vm6253, %v6233, 0
      %v6423 = vsel %vm6253, %v6234, 0
      %v6426 = vsel %vm6253, %v6235, 0
      %v6429 = vsel %vm6253, %v6236, 0
      %v6432 = vsel %vm6253, %v6237, 0
      %v6435 = vsel %vm6253, %v6238, 0
      %v6438 = vsel %vm6253, %v6239, 0
      %v6441 = vsel %vm6253, %v6240, 0
      %v6444 = vsel %vm6253, %v6241, 0
      %6446 = vmatprep.subr.mxu0 0.0
      %6447 = vmatpush1.msra.mxu0 %v6242
      %6448 = vmatprep.subr.mxu0 0.0
      %6449 = vmatpush1.msra.mxu0 %v6243
      %6450 = vmatprep.subr.mxu0 0.0
      %6451 = vmatpush1.msra.mxu0 %v6244
      %6452 = vmatprep.subr.mxu0 0.0
      %6453 = vmatpush1.msra.mxu0 %v6245
      %6454 = vmatprep.subr.mxu0 0.0
      %6455 = vmatpush1.msra.mxu0 0.0
      %6456 = vmatprep.subr.mxu0 0.0
      %6457 = vmatpush1.msra.mxu0 0.0
      %6458 = vmatprep.subr.mxu0 0.0
      %6459 = vmatpush1.msra.mxu0 0.0
      %6460 = vmatprep.subr.mxu0 0.0
      %6461 = vmatpush1.msra.mxu0 0.0
      %6462 = vmatprep.subr.mxu0 0.0
      %6463 = vmatpush1.msra.mxu0 0.0
      %6464 = vmatprep.subr.mxu0 0.0
      %6465 = vmatpush1.msra.mxu0 0.0
      %6466 = vmatprep.subr.mxu0 0.0
      %6467 = vmatpush1.msra.mxu0 0.0
      %6468 = vmatprep.subr.mxu0 0.0
      %6469 = vmatpush1.msra.mxu0 0.0
      %6470 = vmatprep.subr.mxu0 0.0
      %6471 = vmatpush1.msra.mxu0 0.0
      %6472 = vmatprep.subr.mxu0 0.0
      %6473 = vmatpush1.msra.mxu0 0.0
      %6474 = vmatprep.subr.mxu0 0.0
      %6475 = vmatpush1.msra.mxu0 0.0
      %6476 = vmatprep.subr.mxu0 0.0
      %6477 = vmatpush1.msra.mxu0 0.0
      %6478 = vmatprep.subr.mxu0 0.0
      %6479 = vmatpush1.msra.mxu0 0.0
      %6480 = vmatprep.subr.mxu0 0.0
      %6481 = vmatpush1.msra.mxu0 0.0
      %6482 = vmatprep.subr.mxu0 0.0
      %6483 = vmatpush1.msra.mxu0 0.0
      %6484 = vmatprep.subr.mxu0 0.0
      %6485 = vmatpush1.msra.mxu0 0.0
      %6486 = vmatprep.subr.mxu0 0.0
      %6487 = vmatpush1.msra.mxu0 0.0
      %6488 = vmatprep.subr.mxu0 0.0
      %6489 = vmatpush1.msra.mxu0 0.0
      %6490 = vmatprep.subr.mxu0 0.0
      %6491 = vmatpush1.msra.mxu0 0.0
      %6492 = vmatprep.subr.mxu0 0.0
      %6493 = vmatpush1.msra.mxu0 0.0
      %6494 = vmatprep.subr.mxu0 0.0
      %6495 = vmatpush1.msra.mxu0 0.0
      %6496 = vmatprep.subr.mxu0 0.0
      %6497 = vmatpush1.msra.mxu0 0.0
      %6498 = vmatprep.subr.mxu0 0.0
      %6499 = vmatpush1.msra.mxu0 0.0
      %6500 = vmatprep.subr.mxu0 0.0
      %6501 = vmatpush1.msra.mxu0 0.0
      %6502 = vmatprep.subr.mxu0 0.0
      %6503 = vmatpush1.msra.mxu0 0.0
      %6504 = vmatprep.subr.mxu0 0.0
      %6505 = vmatpush1.msra.mxu0 0.0
      %6506 = vmatprep.subr.mxu0 0.0
      %6507 = vmatpush1.msra.mxu0 0.0
      %6508 = vmatprep.subr.mxu0 0.0
      %6509 = vmatpush1.msra.mxu0 0.0
      %6510 = vmatprep.mubr.f32.mxu0 0.0
      %6511 = vmatmul.mubr.f32.gmra.mrb[0].mxu0 %v6255
      %v6512 = vpop.f32.mrb[0].mxu0
      %v6513 = vadd.f32 %v6251, %v6512
      %v6514 = vpop.f32.mrb[0].mxu0
      %6515 = vmatprep.mubr.f32.mxu0 0.0
      %6516 = vmatmul.mubr.f32.gmra.mrb[0].mxu0 %v6258
      %v6517 = vpop.f32.mrb[0].mxu0
      %v6518 = vadd.f32 %v6251, %v6517
      %v6519 = vpop.f32.mrb[0].mxu0
      %6520 = vmatprep.mubr.f32.mxu0 0.0
      %6521 = vmatmul.mubr.f32.gmra.mrb[0].mxu0 %v6261
      %v6522 = vpop.f32.mrb[0].mxu0
      %v6523 = vadd.f32 %v6251, %v6522
      %v6524 = vpop.f32.mrb[0].mxu0
      %6525 = vmatprep.mubr.f32.mxu0 0.0
      %6526 = vmatmul.mubr.f32.gmra.mrb[0].mxu0 %v6264
      %v6527 = vpop.f32.mrb[0].mxu0
      %v6528 = vadd.f32 %v6251, %v6527
      %v6529 = vpop.f32.mrb[0].mxu0
      %6530 = vmatprep.mubr.f32.mxu0 0.0
      %6531 = vmatmul.mubr.f32.gmra.mrb[0].mxu0 %v6267
      %v6532 = vpop.f32.mrb[0].mxu0
      %v6533 = vadd.f32 %v6251, %v6532
      %v6534 = vpop.f32.mrb[0].mxu0
      %6535 = vmatprep.mubr.f32.mxu0 0.0
      %6536 = vmatmul.mubr.f32.gmra.mrb[0].mxu0 %v6270
      %v6537 = vpop.f32.mrb[0].mxu0
      %v6538 = vadd.f32 %v6251, %v6537
      %v6539 = vpop.f32.mrb[0].mxu0
      %6540 = vmatprep.mubr.f32.mxu0 0.0
      %6541 = vmatmul.mubr.f32.gmra.mrb[0].mxu0 %v6273
      %v6542 = vpop.f32.mrb[0].mxu0
      %v6543 = vadd.f32 %v6251, %v6542
      %v6544 = vpop.f32.mrb[0].mxu0
      %6545 = vmatprep.mubr.f32.mxu0 0.0
      %6546 = vmatmul.mubr.f32.gmra.mrb[0].mxu0 %v6276
      %v6547 = vpop.f32.mrb[0].mxu0
      %v6548 = vadd.f32 %v6251, %v6547
      %v6549 = vpop.f32.mrb[0].mxu0
      %6550 = vmatprep.mubr.f32.mxu0 0.0
      %6551 = vmatmul.mubr.f32.gmra.mrb[0].mxu0 %v6279
      %v6552 = vpop.f32.mrb[0].mxu0
      %v6553 = vadd.f32 %v6251, %v6552
      %v6554 = vpop.f32.mrb[0].mxu0
      %6555 = vmatprep.mubr.f32.mxu0 0.0
      %6556 = vmatmul.mubr.f32.gmra.mrb[0].mxu0 %v6282
      %v6557 = vpop.f32.mrb[0].mxu0
      %v6558 = vadd.f32 %v6251, %v6557
      %v6559 = vpop.f32.mrb[0].mxu0
      %6560 = vmatprep.mubr.f32.mxu0 0.0
      %6561 = vmatmul.mubr.f32.gmra.mrb[0].mxu0 %v6285
      %v6562 = vpop.f32.mrb[0].mxu0
      %v6563 = vadd.f32 %v6251, %v6562
      %v6564 = vpop.f32.mrb[0].mxu0
      %6565 = vmatprep.mubr.f32.mxu0 0.0
      %6566 = vmatmul.mubr.f32.gmra.mrb[0].mxu0 %v6288
      %v6567 = vpop.f32.mrb[0].mxu0
      %v6568 = vadd.f32 %v6251, %v6567
      %v6569 = vpop.f32.mrb[0].mxu0
      %6570 = vmatprep.mubr.f32.mxu0 0.0
      %6571 = vmatmul.mubr.f32.gmra.mrb[0].mxu0 %v6291
      %v6572 = vpop.f32.mrb[0].mxu0
      %v6573 = vadd.f32 %v6251, %v6572
      %v6574 = vpop.f32.mrb[0].mxu0
      %6575 = vmatprep.mubr.f32.mxu0 0.0
      %6576 = vmatmul.mubr.f32.gmra.mrb[0].mxu0 %v6294
      %v6577 = vpop.f32.mrb[0].mxu0
      %v6578 = vadd.f32 %v6251, %v6577
      %v6579 = vpop.f32.mrb[0].mxu0
      %6580 = vmatprep.mubr.f32.mxu0 0.0
      %6581 = vmatmul.mubr.f32.gmra.mrb[0].mxu0 %v6297
      %v6582 = vpop.f32.mrb[0].mxu0
      %v6583 = vadd.f32 %v6251, %v6582
      %v6584 = vpop.f32.mrb[0].mxu0
      %6585 = vmatprep.mubr.f32.mxu0 0.0
      %6586 = vmatmul.mubr.f32.gmra.mrb[0].mxu0 %v6300
      %v6587 = vpop.f32.mrb[0].mxu0
      %v6588 = vadd.f32 %v6251, %v6587
      %v6589 = vpop.f32.mrb[0].mxu0
      %6590 = vmatprep.mubr.f32.mxu0 0.0
      %6591 = vmatmul.mubr.f32.gmra.mrb[0].mxu0 %v6303
      %v6592 = vpop.f32.mrb[0].mxu0
      %v6593 = vadd.f32 %v6251, %v6592
      %v6594 = vpop.f32.mrb[0].mxu0
      %6595 = vmatprep.mubr.f32.mxu0 0.0
      %6596 = vmatmul.mubr.f32.gmra.mrb[0].mxu0 %v6306
      %v6597 = vpop.f32.mrb[0].mxu0
      %v6598 = vadd.f32 %v6251, %v6597
      %v6599 = vpop.f32.mrb[0].mxu0
      %6600 = vmatprep.mubr.f32.mxu0 0.0
      %6601 = vmatmul.mubr.f32.gmra.mrb[0].mxu0 %v6309
      %v6602 = vpop.f32.mrb[0].mxu0
      %v6603 = vadd.f32 %v6251, %v6602
      %v6604 = vpop.f32.mrb[0].mxu0
      %6605 = vmatprep.mubr.f32.mxu0 0.0
      %6606 = vmatmul.mubr.f32.gmra.mrb[0].mxu0 %v6312
      %v6607 = vpop.f32.mrb[0].mxu0
      %v6608 = vadd.f32 %v6251, %v6607
      %v6609 = vpop.f32.mrb[0].mxu0
      %6610 = vmatprep.mubr.f32.mxu0 0.0
      %6611 = vmatmul.mubr.f32.gmra.mrb[0].mxu0 %v6315
      %v6612 = vpop.f32.mrb[0].mxu0
      %v6613 = vadd.f32 %v6251, %v6612
      %v6614 = vpop.f32.mrb[0].mxu0
      %6615 = vmatprep.mubr.f32.mxu0 0.0
      %6616 = vmatmul.mubr.f32.gmra.mrb[0].mxu0 %v6318
      %v6617 = vpop.f32.mrb[0].mxu0
      %v6618 = vadd.f32 %v6251, %v6617
      %v6619 = vpop.f32.mrb[0].mxu0
      %6620 = vmatprep.mubr.f32.mxu0 0.0
      %6621 = vmatmul.mubr.f32.gmra.mrb[0].mxu0 %v6321
      %v6622 = vpop.f32.mrb[0].mxu0
      %v6623 = vadd.f32 %v6251, %v6622
      %v6624 = vpop.f32.mrb[0].mxu0
      %6625 = vmatprep.mubr.f32.mxu0 0.0
      %6626 = vmatmul.mubr.f32.gmra.mrb[0].mxu0 %v6324
      %v6627 = vpop.f32.mrb[0].mxu0
      %v6628 = vadd.f32 %v6251, %v6627
      %v6629 = vpop.f32.mrb[0].mxu0
      %6630 = vmatprep.mubr.f32.mxu0 0.0
      %6631 = vmatmul.mubr.f32.gmra.mrb[0].mxu0 %v6327
      %v6632 = vpop.f32.mrb[0].mxu0
      %v6633 = vadd.f32 %v6251, %v6632
      %v6634 = vpop.f32.mrb[0].mxu0
      %6635 = vmatprep.mubr.f32.mxu0 0.0
      %6636 = vmatmul.mubr.f32.gmra.mrb[0].mxu0 %v6330
      %v6637 = vpop.f32.mrb[0].mxu0
      %v6638 = vadd.f32 %v6251, %v6637
      %v6639 = vpop.f32.mrb[0].mxu0
      %6640 = vmatprep.mubr.f32.mxu0 0.0
      %6641 = vmatmul.mubr.f32.gmra.mrb[0].mxu0 %v6333
      %v6642 = vpop.f32.mrb[0].mxu0
      %v6643 = vadd.f32 %v6251, %v6642
      %v6644 = vpop.f32.mrb[0].mxu0
      %6645 = vmatprep.mubr.f32.mxu0 0.0
      %6646 = vmatmul.mubr.f32.gmra.mrb[0].mxu0 %v6336
      %v6647 = vpop.f32.mrb[0].mxu0
      %v6648 = vadd.f32 %v6251, %v6647
      %v6649 = vpop.f32.mrb[0].mxu0
      %6650 = vmatprep.mubr.f32.mxu0 0.0
      %6651 = vmatmul.mubr.f32.gmra.mrb[0].mxu0 %v6339
      %v6652 = vpop.f32.mrb[0].mxu0
      %v6653 = vadd.f32 %v6251, %v6652
      %v6654 = vpop.f32.mrb[0].mxu0
      %6655 = vmatprep.mubr.f32.mxu0 0.0
      %6656 = vmatmul.mubr.f32.gmra.mrb[0].mxu0 %v6342
      %v6657 = vpop.f32.mrb[0].mxu0
      %v6658 = vadd.f32 %v6251, %v6657
      %v6659 = vpop.f32.mrb[0].mxu0
      %6660 = vmatprep.mubr.f32.mxu0 0.0
      %6661 = vmatmul.mubr.f32.gmra.mrb[0].mxu0 %v6345
      %v6662 = vpop.f32.mrb[0].mxu0
      %v6663 = vadd.f32 %v6251, %v6662
      %v6664 = vpop.f32.mrb[0].mxu0
      %6665 = vmatprep.mubr.f32.mxu0 0.0
      %6666 = vmatmul.mubr.f32.gmra.mrb[0].mxu0 %v6348
      %v6667 = vpop.f32.mrb[0].mxu0
      %v6668 = vadd.f32 %v6251, %v6667
      %v6669 = vpop.f32.mrb[0].mxu0
      %6670 = vmatprep.mubr.f32.mxu0 0.0
      %6671 = vmatmul.mubr.f32.gmra.mrb[0].mxu0 %v6351
      %v6672 = vpop.f32.mrb[0].mxu0
      %v6673 = vadd.f32 %v6251, %v6672
      %v6674 = vpop.f32.mrb[0].mxu0
      %6675 = vmatprep.mubr.f32.mxu0 0.0
      %6676 = vmatmul.mubr.f32.gmra.mrb[0].mxu0 %v6354
      %v6677 = vpop.f32.mrb[0].mxu0
      %v6678 = vadd.f32 %v6251, %v6677
      %v6679 = vpop.f32.mrb[0].mxu0
      %6680 = vmatprep.mubr.f32.mxu0 0.0
      %6681 = vmatmul.mubr.f32.gmra.mrb[0].mxu0 %v6357
      %v6682 = vpop.f32.mrb[0].mxu0
      %v6683 = vadd.f32 %v6251, %v6682
      %v6684 = vpop.f32.mrb[0].mxu0
      %6685 = vmatprep.mubr.f32.mxu0 0.0
      %6686 = vmatmul.mubr.f32.gmra.mrb[0].mxu0 %v6360
      %v6687 = vpop.f32.mrb[0].mxu0
      %v6688 = vadd.f32 %v6251, %v6687
      %v6689 = vpop.f32.mrb[0].mxu0
      %6690 = vmatprep.mubr.f32.mxu0 0.0
      %6691 = vmatmul.mubr.f32.gmra.mrb[0].mxu0 %v6363
      %v6692 = vpop.f32.mrb[0].mxu0
      %v6693 = vadd.f32 %v6251, %v6692
      %v6694 = vpop.f32.mrb[0].mxu0
      %6695 = vmatprep.mubr.f32.mxu0 0.0
      %6696 = vmatmul.mubr.f32.gmra.mrb[0].mxu0 %v6366
      %v6697 = vpop.f32.mrb[0].mxu0
      %v6698 = vadd.f32 %v6251, %v6697
      %v6699 = vpop.f32.mrb[0].mxu0
      %6700 = vmatprep.mubr.f32.mxu0 0.0
      %6701 = vmatmul.mubr.f32.gmra.mrb[0].mxu0 %v6369
      %v6702 = vpop.f32.mrb[0].mxu0
      %v6703 = vadd.f32 %v6251, %v6702
      %v6704 = vpop.f32.mrb[0].mxu0
      %6705 = vmatprep.mubr.f32.mxu0 0.0
      %6706 = vmatmul.mubr.f32.gmra.mrb[0].mxu0 %v6372
      %v6707 = vpop.f32.mrb[0].mxu0
      %v6708 = vadd.f32 %v6251, %v6707
      %v6709 = vpop.f32.mrb[0].mxu0
      %6710 = vmatprep.mubr.f32.mxu0 0.0
      %6711 = vmatmul.mubr.f32.gmra.mrb[0].mxu0 %v6375
      %v6712 = vpop.f32.mrb[0].mxu0
      %v6713 = vadd.f32 %v6251, %v6712
      %v6714 = vpop.f32.mrb[0].mxu0
      %6715 = vmatprep.mubr.f32.mxu0 0.0
      %6716 = vmatmul.mubr.f32.gmra.mrb[0].mxu0 %v6378
      %v6717 = vpop.f32.mrb[0].mxu0
      %v6718 = vadd.f32 %v6251, %v6717
      %v6719 = vpop.f32.mrb[0].mxu0
      %6720 = vmatprep.mubr.f32.mxu0 0.0
      %6721 = vmatmul.mubr.f32.gmra.mrb[0].mxu0 %v6381
      %v6722 = vpop.f32.mrb[0].mxu0
      %v6723 = vadd.f32 %v6251, %v6722
      %v6724 = vpop.f32.mrb[0].mxu0
      %6725 = vmatprep.mubr.f32.mxu0 0.0
      %6726 = vmatmul.mubr.f32.gmra.mrb[0].mxu0 %v6384
      %v6727 = vpop.f32.mrb[0].mxu0
      %v6728 = vadd.f32 %v6251, %v6727
      %v6729 = vpop.f32.mrb[0].mxu0
      %6730 = vmatprep.mubr.f32.mxu0 0.0
      %6731 = vmatmul.mubr.f32.gmra.mrb[0].mxu0 %v6387
      %v6732 = vpop.f32.mrb[0].mxu0
      %v6733 = vadd.f32 %v6251, %v6732
      %v6734 = vpop.f32.mrb[0].mxu0
      %6735 = vmatprep.mubr.f32.mxu0 0.0
      %6736 = vmatmul.mubr.f32.gmra.mrb[0].mxu0 %v6390
      %v6737 = vpop.f32.mrb[0].mxu0
      %v6738 = vadd.f32 %v6251, %v6737
      %v6739 = vpop.f32.mrb[0].mxu0
      %6740 = vmatprep.mubr.f32.mxu0 0.0
      %6741 = vmatmul.mubr.f32.gmra.mrb[0].mxu0 %v6393
      %v6742 = vpop.f32.mrb[0].mxu0
      %v6743 = vadd.f32 %v6251, %v6742
      %v6744 = vpop.f32.mrb[0].mxu0
      %6745 = vmatprep.mubr.f32.mxu0 0.0
      %6746 = vmatmul.mubr.f32.gmra.mrb[0].mxu0 %v6396
      %v6747 = vpop.f32.mrb[0].mxu0
      %v6748 = vadd.f32 %v6251, %v6747
      %v6749 = vpop.f32.mrb[0].mxu0
      %6750 = vmatprep.mubr.f32.mxu0 0.0
      %6751 = vmatmul.mubr.f32.gmra.mrb[0].mxu0 %v6399
      %v6752 = vpop.f32.mrb[0].mxu0
      %v6753 = vadd.f32 %v6251, %v6752
      %v6754 = vpop.f32.mrb[0].mxu0
      %6755 = vmatprep.mubr.f32.mxu0 0.0
      %6756 = vmatmul.mubr.f32.gmra.mrb[0].mxu0 %v6402
      %v6757 = vpop.f32.mrb[0].mxu0
      %v6758 = vadd.f32 %v6251, %v6757
      %v6759 = vpop.f32.mrb[0].mxu0
      %6760 = vmatprep.mubr.f32.mxu0 0.0
      %6761 = vmatmul.mubr.f32.gmra.mrb[0].mxu0 %v6405
      %v6762 = vpop.f32.mrb[0].mxu0
      %v6763 = vadd.f32 %v6251, %v6762
      %v6764 = vpop.f32.mrb[0].mxu0
      %6765 = vmatprep.mubr.f32.mxu0 0.0
      %6766 = vmatmul.mubr.f32.gmra.mrb[0].mxu0 %v6408
      %v6767 = vpop.f32.mrb[0].mxu0
      %v6768 = vadd.f32 %v6251, %v6767
      %v6769 = vpop.f32.mrb[0].mxu0
      %6770 = vmatprep.mubr.f32.mxu0 0.0
      %6771 = vmatmul.mubr.f32.gmra.mrb[0].mxu0 %v6411
      %v6772 = vpop.f32.mrb[0].mxu0
      %v6773 = vadd.f32 %v6251, %v6772
      %v6774 = vpop.f32.mrb[0].mxu0
      %6775 = vmatprep.mubr.f32.mxu0 0.0
      %6776 = vmatmul.mubr.f32.gmra.mrb[0].mxu0 %v6414
      %v6777 = vpop.f32.mrb[0].mxu0
      %v6778 = vadd.f32 %v6251, %v6777
      %v6779 = vpop.f32.mrb[0].mxu0
      %6780 = vmatprep.mubr.f32.mxu0 0.0
      %6781 = vmatmul.mubr.f32.gmra.mrb[0].mxu0 %v6417
      %v6782 = vpop.f32.mrb[0].mxu0
      %v6783 = vadd.f32 %v6251, %v6782
      %v6784 = vpop.f32.mrb[0].mxu0
      %6785 = vmatprep.mubr.f32.mxu0 0.0
      %6786 = vmatmul.mubr.f32.gmra.mrb[0].mxu0 %v6420
      %v6787 = vpop.f32.mrb[0].mxu0
      %v6788 = vadd.f32 %v6251, %v6787
      %v6789 = vpop.f32.mrb[0].mxu0
      %6790 = vmatprep.mubr.f32.mxu0 0.0
      %6791 = vmatmul.mubr.f32.gmra.mrb[0].mxu0 %v6423
      %v6792 = vpop.f32.mrb[0].mxu0
      %v6793 = vadd.f32 %v6251, %v6792
      %v6794 = vpop.f32.mrb[0].mxu0
      %6795 = vmatprep.mubr.f32.mxu0 0.0
      %6796 = vmatmul.mubr.f32.gmra.mrb[0].mxu0 %v6426
      %v6797 = vpop.f32.mrb[0].mxu0
      %v6798 = vadd.f32 %v6251, %v6797
      %v6799 = vpop.f32.mrb[0].mxu0
      %6800 = vmatprep.mubr.f32.mxu0 0.0
      %6801 = vmatmul.mubr.f32.gmra.mrb[0].mxu0 %v6429
      %v6802 = vpop.f32.mrb[0].mxu0
      %v6803 = vadd.f32 %v6251, %v6802
      %v6804 = vpop.f32.mrb[0].mxu0
      %6805 = vmatprep.mubr.f32.mxu0 0.0
      %6806 = vmatmul.mubr.f32.gmra.mrb[0].mxu0 %v6432
      %v6807 = vpop.f32.mrb[0].mxu0
      %v6808 = vadd.f32 %v6251, %v6807
      %v6809 = vpop.f32.mrb[0].mxu0
      %6810 = vmatprep.mubr.f32.mxu0 0.0
      %6811 = vmatmul.mubr.f32.gmra.mrb[0].mxu0 %v6435
      %v6812 = vpop.f32.mrb[0].mxu0
      %v6813 = vadd.f32 %v6251, %v6812
      %v6814 = vpop.f32.mrb[0].mxu0
      %6815 = vmatprep.mubr.f32.mxu0 0.0
      %6816 = vmatmul.mubr.f32.gmra.mrb[0].mxu0 %v6438
      %v6817 = vpop.f32.mrb[0].mxu0
      %v6818 = vadd.f32 %v6251, %v6817
      %v6819 = vpop.f32.mrb[0].mxu0
      %6820 = vmatprep.mubr.f32.mxu0 0.0
      %6821 = vmatmul.mubr.f32.gmra.mrb[0].mxu0 %v6441
      %v6822 = vpop.f32.mrb[0].mxu0
      %v6823 = vadd.f32 %v6251, %v6822
      %v6824 = vpop.f32.mrb[0].mxu0
      %6825 = vmatprep.mubr.f32.mxu0 0.0
      %6826 = vmatmul.mubr.f32.gmra.mrb[0].mxu0 %v6444
      %v6827 = vpop.f32.mrb[0].mxu0
      %v6828 = vadd.f32 %v6251, %v6827
      %v6829 = vpop.f32.mrb[0].mxu0
      %6830 = vdwg.mxu0
      %v6831 = vand.u32 2147483647, %v6513
      %v6832 = vand.u32 2147483647, %v6518
      %v6833 = vand.u32 2147483647, %v6523
      %v6834 = vand.u32 2147483647, %v6528
      %v6835 = vand.u32 2147483647, %v6533
      %v6836 = vand.u32 2147483647, %v6538
      %v6837 = vand.u32 2147483647, %v6543
      %v6838 = vand.u32 2147483647, %v6548
      %v6839 = vand.u32 2147483647, %v6553
      %v6840 = vand.u32 2147483647, %v6558
      %v6841 = vand.u32 2147483647, %v6563
      %v6842 = vand.u32 2147483647, %v6568
      %v6843 = vand.u32 2147483647, %v6573
      %v6844 = vand.u32 2147483647, %v6578
      %v6845 = vand.u32 2147483647, %v6583
      %v6846 = vand.u32 2147483647, %v6588
      %v6847 = vand.u32 2147483647, %v6593
      %v6848 = vand.u32 2147483647, %v6598
      %v6849 = vand.u32 2147483647, %v6603
      %v6850 = vand.u32 2147483647, %v6608
      %v6851 = vand.u32 2147483647, %v6613
      %v6852 = vand.u32 2147483647, %v6618
      %v6853 = vand.u32 2147483647, %v6623
      %v6854 = vand.u32 2147483647, %v6628
      %v6855 = vand.u32 2147483647, %v6633
      %v6856 = vand.u32 2147483647, %v6638
      %v6857 = vand.u32 2147483647, %v6643
      %v6858 = vand.u32 2147483647, %v6648
      %v6859 = vand.u32 2147483647, %v6653
      %v6860 = vand.u32 2147483647, %v6658
      %v6861 = vand.u32 2147483647, %v6663
      %v6862 = vand.u32 2147483647, %v6668
      %v6863 = vand.u32 2147483647, %v6673
      %v6864 = vand.u32 2147483647, %v6678
      %v6865 = vand.u32 2147483647, %v6683
      %v6866 = vand.u32 2147483647, %v6688
      %v6867 = vand.u32 2147483647, %v6693
      %v6868 = vand.u32 2147483647, %v6698
      %v6869 = vand.u32 2147483647, %v6703
      %v6870 = vand.u32 2147483647, %v6708
      %v6871 = vand.u32 2147483647, %v6713
      %v6872 = vand.u32 2147483647, %v6718
      %v6873 = vand.u32 2147483647, %v6723
      %v6874 = vand.u32 2147483647, %v6728
      %v6875 = vand.u32 2147483647, %v6733
      %v6876 = vand.u32 2147483647, %v6738
      %v6877 = vand.u32 2147483647, %v6743
      %v6878 = vand.u32 2147483647, %v6748
      %v6879 = vand.u32 2147483647, %v6753
      %v6880 = vand.u32 2147483647, %v6758
      %v6881 = vand.u32 2147483647, %v6763
      %v6882 = vand.u32 2147483647, %v6768
      %v6883 = vand.u32 2147483647, %v6773
      %v6884 = vand.u32 2147483647, %v6778
      %v6885 = vand.u32 2147483647, %v6783
      %v6886 = vand.u32 2147483647, %v6788
      %v6887 = vand.u32 2147483647, %v6793
      %v6888 = vand.u32 2147483647, %v6798
      %v6889 = vand.u32 2147483647, %v6803
      %v6890 = vand.u32 2147483647, %v6808
      %v6891 = vand.u32 2147483647, %v6813
      %v6892 = vand.u32 2147483647, %v6818
      %v6893 = vand.u32 2147483647, %v6823
      %v6894 = vand.u32 2147483647, %v6828
      %v6895 = vadd.f32 %v6831, 1.0
      %v6896 = vadd.f32 %v6832, 1.0
      %v6897 = vadd.f32 %v6833, 1.0
      %v6898 = vadd.f32 %v6834, 1.0
      %v6899 = vadd.f32 %v6835, 1.0
      %v6900 = vadd.f32 %v6836, 1.0
      %v6901 = vadd.f32 %v6837, 1.0
      %v6902 = vadd.f32 %v6838, 1.0
      %v6903 = vadd.f32 %v6839, 1.0
      %v6904 = vadd.f32 %v6840, 1.0
      %v6905 = vadd.f32 %v6841, 1.0
      %v6906 = vadd.f32 %v6842, 1.0
      %v6907 = vadd.f32 %v6843, 1.0
      %v6908 = vadd.f32 %v6844, 1.0
      %v6909 = vadd.f32 %v6845, 1.0
      %v6910 = vadd.f32 %v6846, 1.0
      %v6911 = vadd.f32 %v6847, 1.0
      %v6912 = vadd.f32 %v6848, 1.0
      %v6913 = vadd.f32 %v6849, 1.0
      %v6914 = vadd.f32 %v6850, 1.0
      %v6915 = vadd.f32 %v6851, 1.0
      %v6916 = vadd.f32 %v6852, 1.0
      %v6917 = vadd.f32 %v6853, 1.0
      %v6918 = vadd.f32 %v6854, 1.0
      %v6919 = vadd.f32 %v6855, 1.0
      %v6920 = vadd.f32 %v6856, 1.0
      %v6921 = vadd.f32 %v6857, 1.0
      %v6922 = vadd.f32 %v6858, 1.0
      %v6923 = vadd.f32 %v6859, 1.0
      %v6924 = vadd.f32 %v6860, 1.0
      %v6925 = vadd.f32 %v6861, 1.0
      %v6926 = vadd.f32 %v6862, 1.0
      %v6927 = vadd.f32 %v6863, 1.0
      %v6928 = vadd.f32 %v6864, 1.0
      %v6929 = vadd.f32 %v6865, 1.0
      %v6930 = vadd.f32 %v6866, 1.0
      %v6931 = vadd.f32 %v6867, 1.0
      %v6932 = vadd.f32 %v6868, 1.0
      %v6933 = vadd.f32 %v6869, 1.0
      %v6934 = vadd.f32 %v6870, 1.0
      %v6935 = vadd.f32 %v6871, 1.0
      %v6936 = vadd.f32 %v6872, 1.0
      %v6937 = vadd.f32 %v6873, 1.0
      %v6938 = vadd.f32 %v6874, 1.0
      %v6939 = vadd.f32 %v6875, 1.0
      %v6940 = vadd.f32 %v6876, 1.0
      %v6941 = vadd.f32 %v6877, 1.0
      %v6942 = vadd.f32 %v6878, 1.0
      %v6943 = vadd.f32 %v6879, 1.0
      %v6944 = vadd.f32 %v6880, 1.0
      %v6945 = vadd.f32 %v6881, 1.0
      %v6946 = vadd.f32 %v6882, 1.0
      %v6947 = vadd.f32 %v6883, 1.0
      %v6948 = vadd.f32 %v6884, 1.0
      %v6949 = vadd.f32 %v6885, 1.0
      %v6950 = vadd.f32 %v6886, 1.0
      %v6951 = vadd.f32 %v6887, 1.0
      %v6952 = vadd.f32 %v6888, 1.0
      %v6953 = vadd.f32 %v6889, 1.0
      %v6954 = vadd.f32 %v6890, 1.0
      %v6955 = vadd.f32 %v6891, 1.0
      %v6956 = vadd.f32 %v6892, 1.0
      %v6957 = vadd.f32 %v6893, 1.0
      %v6958 = vadd.f32 %v6894, 1.0
      %v6959 = vrcp.pop %v6895
      %v6960 = vmul.f32 %v6513, %v6959
      %v6961 = vrcp.pop %v6896
      %v6962 = vmul.f32 %v6518, %v6961
      %v6963 = vrcp.pop %v6897
      %v6964 = vmul.f32 %v6523, %v6963
      %v6965 = vrcp.pop %v6898
      %v6966 = vmul.f32 %v6528, %v6965
      %v6967 = vrcp.pop %v6899
      %v6968 = vmul.f32 %v6533, %v6967
      %v6969 = vrcp.pop %v6900
      %v6970 = vmul.f32 %v6538, %v6969
      %v6971 = vrcp.pop %v6901
      %v6972 = vmul.f32 %v6543, %v6971
      %v6973 = vrcp.pop %v6902
      %v6974 = vmul.f32 %v6548, %v6973
      %v6975 = vrcp.pop %v6903
      %v6976 = vmul.f32 %v6553, %v6975
      %v6977 = vrcp.pop %v6904
      %v6978 = vmul.f32 %v6558, %v6977
      %v6979 = vrcp.pop %v6905
      %v6980 = vmul.f32 %v6563, %v6979
      %v6981 = vrcp.pop %v6906
      %v6982 = vmul.f32 %v6568, %v6981
      %v6983 = vrcp.pop %v6907
      %v6984 = vmul.f32 %v6573, %v6983
      %v6985 = vrcp.pop %v6908
      %v6986 = vmul.f32 %v6578, %v6985
      %v6987 = vrcp.pop %v6909
      %v6988 = vmul.f32 %v6583, %v6987
      %v6989 = vrcp.pop %v6910
      %v6990 = vmul.f32 %v6588, %v6989
      %v6991 = vrcp.pop %v6911
      %v6992 = vmul.f32 %v6593, %v6991
      %v6993 = vrcp.pop %v6912
      %v6994 = vmul.f32 %v6598, %v6993
      %v6995 = vrcp.pop %v6913
      %v6996 = vmul.f32 %v6603, %v6995
      %v6997 = vrcp.pop %v6914
      %v6998 = vmul.f32 %v6608, %v6997
      %v6999 = vrcp.pop %v6915
      %v7000 = vmul.f32 %v6613, %v6999
      %v7001 = vrcp.pop %v6916
      %v7002 = vmul.f32 %v6618, %v7001
      %v7003 = vrcp.pop %v6917
      %v7004 = vmul.f32 %v6623, %v7003
      %v7005 = vrcp.pop %v6918
      %v7006 = vmul.f32 %v6628, %v7005
      %v7007 = vrcp.pop %v6919
      %v7008 = vmul.f32 %v6633, %v7007
      %v7009 = vrcp.pop %v6920
      %v7010 = vmul.f32 %v6638, %v7009
      %v7011 = vrcp.pop %v6921
      %v7012 = vmul.f32 %v6643, %v7011
      %v7013 = vrcp.pop %v6922
      %v7014 = vmul.f32 %v6648, %v7013
      %v7015 = vrcp.pop %v6923
      %v7016 = vmul.f32 %v6653, %v7015
      %v7017 = vrcp.pop %v6924
      %v7018 = vmul.f32 %v6658, %v7017
      %v7019 = vrcp.pop %v6925
      %v7020 = vmul.f32 %v6663, %v7019
      %v7021 = vrcp.pop %v6926
      %v7022 = vmul.f32 %v6668, %v7021
      %v7023 = vrcp.pop %v6927
      %v7024 = vmul.f32 %v6673, %v7023
      %v7025 = vrcp.pop %v6928
      %v7026 = vmul.f32 %v6678, %v7025
      %v7027 = vrcp.pop %v6929
      %v7028 = vmul.f32 %v6683, %v7027
      %v7029 = vrcp.pop %v6930
      %v7030 = vmul.f32 %v6688, %v7029
      %v7031 = vrcp.pop %v6931
      %v7032 = vmul.f32 %v6693, %v7031
      %v7033 = vrcp.pop %v6932
      %v7034 = vmul.f32 %v6698, %v7033
      %v7035 = vrcp.pop %v6933
      %v7036 = vmul.f32 %v6703, %v7035
      %v7037 = vrcp.pop %v6934
      %v7038 = vmul.f32 %v6708, %v7037
      %v7039 = vrcp.pop %v6935
      %v7040 = vmul.f32 %v6713, %v7039
      %v7041 = vrcp.pop %v6936
      %v7042 = vmul.f32 %v6718, %v7041
      %v7043 = vrcp.pop %v6937
      %v7044 = vmul.f32 %v6723, %v7043
      %v7045 = vrcp.pop %v6938
      %v7046 = vmul.f32 %v6728, %v7045
      %v7047 = vrcp.pop %v6939
      %v7048 = vmul.f32 %v6733, %v7047
      %v7049 = vrcp.pop %v6940
      %v7050 = vmul.f32 %v6738, %v7049
      %v7051 = vrcp.pop %v6941
      %v7052 = vmul.f32 %v6743, %v7051
      %v7053 = vrcp.pop %v6942
      %v7054 = vmul.f32 %v6748, %v7053
      %v7055 = vrcp.pop %v6943
      %v7056 = vmul.f32 %v6753, %v7055
      %v7057 = vrcp.pop %v6944
      %v7058 = vmul.f32 %v6758, %v7057
      %v7059 = vrcp.pop %v6945
      %v7060 = vmul.f32 %v6763, %v7059
      %v7061 = vrcp.pop %v6946
      %v7062 = vmul.f32 %v6768, %v7061
      %v7063 = vrcp.pop %v6947
      %v7064 = vmul.f32 %v6773, %v7063
      %v7065 = vrcp.pop %v6948
      %v7066 = vmul.f32 %v6778, %v7065
      %v7067 = vrcp.pop %v6949
      %v7068 = vmul.f32 %v6783, %v7067
      %v7069 = vrcp.pop %v6950
      %v7070 = vmul.f32 %v6788, %v7069
      %v7071 = vrcp.pop %v6951
      %v7072 = vmul.f32 %v6793, %v7071
      %v7073 = vrcp.pop %v6952
      %v7074 = vmul.f32 %v6798, %v7073
      %v7075 = vrcp.pop %v6953
      %v7076 = vmul.f32 %v6803, %v7075
      %v7077 = vrcp.pop %v6954
      %v7078 = vmul.f32 %v6808, %v7077
      %v7079 = vrcp.pop %v6955
      %v7080 = vmul.f32 %v6813, %v7079
      %v7081 = vrcp.pop %v6956
      %v7082 = vmul.f32 %v6818, %v7081
      %v7083 = vrcp.pop %v6957
      %v7084 = vmul.f32 %v6823, %v7083
      %v7085 = vrcp.pop %v6958
      %v7086 = vmul.f32 %v6828, %v7085
      %v7087 = vld [vmem:[%s16] sm:$0xff]
      %v7088 = vld [vmem:[%s16 + $0x8] sm:$0xff]
      %v7089 = vld [vmem:[%s16 + $0x10] sm:$0xff]
      %v7090 = vld [vmem:[%s16 + $0x18] sm:$0xff]
      %v7091 = vld [vmem:[%s17] sm:$0x1]
      %v7093 = vlaneseq
      %v7094 = vshrl.u32 %v7093, 7
      %v7095 = vsub.s32 0, %v7094
      %v7096 = vrot.slane %v7091, %v7095
      %v7099 = vsel %vm6253, %v6960, 0
      %v7102 = vsel %vm6253, %v6962, 0
      %v7105 = vsel %vm6253, %v6964, 0
      %v7108 = vsel %vm6253, %v6966, 0
      %v7111 = vsel %vm6253, %v6968, 0
      %v7114 = vsel %vm6253, %v6970, 0
      %v7117 = vsel %vm6253, %v6972, 0
      %v7120 = vsel %vm6253, %v6974, 0
      %v7123 = vsel %vm6253, %v6976, 0
      %v7126 = vsel %vm6253, %v6978, 0
      %v7129 = vsel %vm6253, %v6980, 0
      %v7132 = vsel %vm6253, %v6982, 0
      %v7135 = vsel %vm6253, %v6984, 0
      %v7138 = vsel %vm6253, %v6986, 0
      %v7141 = vsel %vm6253, %v6988, 0
      %v7144 = vsel %vm6253, %v6990, 0
      %v7147 = vsel %vm6253, %v6992, 0
      %v7150 = vsel %vm6253, %v6994, 0
      %v7153 = vsel %vm6253, %v6996, 0
      %v7156 = vsel %vm6253, %v6998, 0
      %v7159 = vsel %vm6253, %v7000, 0
      %v7162 = vsel %vm6253, %v7002, 0
      %v7165 = vsel %vm6253, %v7004, 0
      %v7168 = vsel %vm6253, %v7006, 0
      %v7171 = vsel %vm6253, %v7008, 0
      %v7174 = vsel %vm6253, %v7010, 0
      %v7177 = vsel %vm6253, %v7012, 0
      %v7180 = vsel %vm6253, %v7014, 0
      %v7183 = vsel %vm6253, %v7016, 0
      %v7186 = vsel %vm6253, %v7018, 0
      %v7189 = vsel %vm6253, %v7020, 0
      %v7192 = vsel %vm6253, %v7022, 0
      %v7195 = vsel %vm6253, %v7024, 0
      %v7198 = vsel %vm6253, %v7026, 0
      %v7201 = vsel %vm6253, %v7028, 0
      %v7204 = vsel %vm6253, %v7030, 0
      %v7207 = vsel %vm6253, %v7032, 0
      %v7210 = vsel %vm6253, %v7034, 0
      %v7213 = vsel %vm6253, %v7036, 0
      %v7216 = vsel %vm6253, %v7038, 0
      %v7219 = vsel %vm6253, %v7040, 0
      %v7222 = vsel %vm6253, %v7042, 0
      %v7225 = vsel %vm6253, %v7044, 0
      %v7228 = vsel %vm6253, %v7046, 0
      %v7231 = vsel %vm6253, %v7048, 0
      %v7234 = vsel %vm6253, %v7050, 0
      %v7237 = vsel %vm6253, %v7052, 0
      %v7240 = vsel %vm6253, %v7054, 0
      %v7243 = vsel %vm6253, %v7056, 0
      %v7246 = vsel %vm6253, %v7058, 0
      %v7249 = vsel %vm6253, %v7060, 0
      %v7252 = vsel %vm6253, %v7062, 0
      %v7255 = vsel %vm6253, %v7064, 0
      %v7258 = vsel %vm6253, %v7066, 0
      %v7261 = vsel %vm6253, %v7068, 0
      %v7264 = vsel %vm6253, %v7070, 0
      %v7267 = vsel %vm6253, %v7072, 0
      %v7270 = vsel %vm6253, %v7074, 0
      %v7273 = vsel %vm6253, %v7076, 0
      %v7276 = vsel %vm6253, %v7078, 0
      %v7279 = vsel %vm6253, %v7080, 0
      %v7282 = vsel %vm6253, %v7082, 0
      %v7285 = vsel %vm6253, %v7084, 0
      %v7288 = vsel %vm6253, %v7086, 0
      %7290 = vmatprep.subr.mxu0 0.0
      %7291 = vmatpush1.msra.mxu0 %v7087
      %7292 = vmatprep.subr.mxu0 0.0
      %7293 = vmatpush1.msra.mxu0 %v7088
      %7294 = vmatprep.subr.mxu0 0.0
      %7295 = vmatpush1.msra.mxu0 %v7089
      %7296 = vmatprep.subr.mxu0 0.0
      %7297 = vmatpush1.msra.mxu0 %v7090
      %7298 = vmatprep.subr.mxu0 0.0
      %7299 = vmatpush1.msra.mxu0 0.0
      %7300 = vmatprep.subr.mxu0 0.0
      %7301 = vmatpush1.msra.mxu0 0.0
      %7302 = vmatprep.subr.mxu0 0.0
      %7303 = vmatpush1.msra.mxu0 0.0
      %7304 = vmatprep.subr.mxu0 0.0
      %7305 = vmatpush1.msra.mxu0 0.0
      %7306 = vmatprep.subr.mxu0 0.0
      %7307 = vmatpush1.msra.mxu0 0.0
      %7308 = vmatprep.subr.mxu0 0.0
      %7309 = vmatpush1.msra.mxu0 0.0
      %7310 = vmatprep.subr.mxu0 0.0
      %7311 = vmatpush1.msra.mxu0 0.0
      %7312 = vmatprep.subr.mxu0 0.0
      %7313 = vmatpush1.msra.mxu0 0.0
      %7314 = vmatprep.subr.mxu0 0.0
      %7315 = vmatpush1.msra.mxu0 0.0
      %7316 = vmatprep.subr.mxu0 0.0
      %7317 = vmatpush1.msra.mxu0 0.0
      %7318 = vmatprep.subr.mxu0 0.0
      %7319 = vmatpush1.msra.mxu0 0.0
      %7320 = vmatprep.subr.mxu0 0.0
      %7321 = vmatpush1.msra.mxu0 0.0
      %7322 = vmatprep.subr.mxu0 0.0
      %7323 = vmatpush1.msra.mxu0 0.0
      %7324 = vmatprep.subr.mxu0 0.0
      %7325 = vmatpush1.msra.mxu0 0.0
      %7326 = vmatprep.subr.mxu0 0.0
      %7327 = vmatpush1.msra.mxu0 0.0
      %7328 = vmatprep.subr.mxu0 0.0
      %7329 = vmatpush1.msra.mxu0 0.0
      %7330 = vmatprep.subr.mxu0 0.0
      %7331 = vmatpush1.msra.mxu0 0.0
      %7332 = vmatprep.subr.mxu0 0.0
      %7333 = vmatpush1.msra.mxu0 0.0
      %7334 = vmatprep.subr.mxu0 0.0
      %7335 = vmatpush1.msra.mxu0 0.0
      %7336 = vmatprep.subr.mxu0 0.0
      %7337 = vmatpush1.msra.mxu0 0.0
      %7338 = vmatprep.subr.mxu0 0.0
      %7339 = vmatpush1.msra.mxu0 0.0
      %7340 = vmatprep.subr.mxu0 0.0
      %7341 = vmatpush1.msra.mxu0 0.0
      %7342 = vmatprep.subr.mxu0 0.0
      %7343 = vmatpush1.msra.mxu0 0.0
      %7344 = vmatprep.subr.mxu0 0.0
      %7345 = vmatpush1.msra.mxu0 0.0
      %7346 = vmatprep.subr.mxu0 0.0
      %7347 = vmatpush1.msra.mxu0 0.0
      %7348 = vmatprep.subr.mxu0 0.0
      %7349 = vmatpush1.msra.mxu0 0.0
      %7350 = vmatprep.subr.mxu0 0.0
      %7351 = vmatpush1.msra.mxu0 0.0
      %7352 = vmatprep.subr.mxu0 0.0
      %7353 = vmatpush1.msra.mxu0 0.0
      %7354 = vmatprep.mubr.f32.mxu0 0.0
      %7355 = vmatmul.mubr.f32.gmra.mrb[0].mxu0 %v7099
      %v7356 = vpop.f32.mrb[0].mxu0
      %v7357 = vadd.f32 %v7096, %v7356
      %v7358 = vpop.f32.mrb[0].mxu0
      %7359 = vmatprep.mubr.f32.mxu0 0.0
      %7360 = vmatmul.mubr.f32.gmra.mrb[0].mxu0 %v7102
      %v7361 = vpop.f32.mrb[0].mxu0
      %v7362 = vadd.f32 %v7096, %v7361
      %v7363 = vpop.f32.mrb[0].mxu0
      %7364 = vmatprep.mubr.f32.mxu0 0.0
      %7365 = vmatmul.mubr.f32.gmra.mrb[0].mxu0 %v7105
      %v7366 = vpop.f32.mrb[0].mxu0
      %v7367 = vadd.f32 %v7096, %v7366
      %v7368 = vpop.f32.mrb[0].mxu0
      %7369 = vmatprep.mubr.f32.mxu0 0.0
      %7370 = vmatmul.mubr.f32.gmra.mrb[0].mxu0 %v7108
      %v7371 = vpop.f32.mrb[0].mxu0
      %v7372 = vadd.f32 %v7096, %v7371
      %v7373 = vpop.f32.mrb[0].mxu0
      %7374 = vmatprep.mubr.f32.mxu0 0.0
      %7375 = vmatmul.mubr.f32.gmra.mrb[0].mxu0 %v7111
      %v7376 = vpop.f32.mrb[0].mxu0
      %v7377 = vadd.f32 %v7096, %v7376
      %v7378 = vpop.f32.mrb[0].mxu0
      %7379 = vmatprep.mubr.f32.mxu0 0.0
      %7380 = vmatmul.mubr.f32.gmra.mrb[0].mxu0 %v7114
      %v7381 = vpop.f32.mrb[0].mxu0
      %v7382 = vadd.f32 %v7096, %v7381
      %v7383 = vpop.f32.mrb[0].mxu0
      %7384 = vmatprep.mubr.f32.mxu0 0.0
      %7385 = vmatmul.mubr.f32.gmra.mrb[0].mxu0 %v7117
      %v7386 = vpop.f32.mrb[0].mxu0
      %v7387 = vadd.f32 %v7096, %v7386
      %v7388 = vpop.f32.mrb[0].mxu0
      %7389 = vmatprep.mubr.f32.mxu0 0.0
      %7390 = vmatmul.mubr.f32.gmra.mrb[0].mxu0 %v7120
      %v7391 = vpop.f32.mrb[0].mxu0
      %v7392 = vadd.f32 %v7096, %v7391
      %v7393 = vpop.f32.mrb[0].mxu0
      %7394 = vmatprep.mubr.f32.mxu0 0.0
      %7395 = vmatmul.mubr.f32.gmra.mrb[0].mxu0 %v7123
      %v7396 = vpop.f32.mrb[0].mxu0
      %v7397 = vadd.f32 %v7096, %v7396
      %v7398 = vpop.f32.mrb[0].mxu0
      %7399 = vmatprep.mubr.f32.mxu0 0.0
      %7400 = vmatmul.mubr.f32.gmra.mrb[0].mxu0 %v7126
      %v7401 = vpop.f32.mrb[0].mxu0
      %v7402 = vadd.f32 %v7096, %v7401
      %v7403 = vpop.f32.mrb[0].mxu0
      %7404 = vmatprep.mubr.f32.mxu0 0.0
      %7405 = vmatmul.mubr.f32.gmra.mrb[0].mxu0 %v7129
      %v7406 = vpop.f32.mrb[0].mxu0
      %v7407 = vadd.f32 %v7096, %v7406
      %v7408 = vpop.f32.mrb[0].mxu0
      %7409 = vmatprep.mubr.f32.mxu0 0.0
      %7410 = vmatmul.mubr.f32.gmra.mrb[0].mxu0 %v7132
      %v7411 = vpop.f32.mrb[0].mxu0
      %v7412 = vadd.f32 %v7096, %v7411
      %v7413 = vpop.f32.mrb[0].mxu0
      %7414 = vmatprep.mubr.f32.mxu0 0.0
      %7415 = vmatmul.mubr.f32.gmra.mrb[0].mxu0 %v7135
      %v7416 = vpop.f32.mrb[0].mxu0
      %v7417 = vadd.f32 %v7096, %v7416
      %v7418 = vpop.f32.mrb[0].mxu0
      %7419 = vmatprep.mubr.f32.mxu0 0.0
      %7420 = vmatmul.mubr.f32.gmra.mrb[0].mxu0 %v7138
      %v7421 = vpop.f32.mrb[0].mxu0
      %v7422 = vadd.f32 %v7096, %v7421
      %v7423 = vpop.f32.mrb[0].mxu0
      %7424 = vmatprep.mubr.f32.mxu0 0.0
      %7425 = vmatmul.mubr.f32.gmra.mrb[0].mxu0 %v7141
      %v7426 = vpop.f32.mrb[0].mxu0
      %v7427 = vadd.f32 %v7096, %v7426
      %v7428 = vpop.f32.mrb[0].mxu0
      %7429 = vmatprep.mubr.f32.mxu0 0.0
      %7430 = vmatmul.mubr.f32.gmra.mrb[0].mxu0 %v7144
      %v7431 = vpop.f32.mrb[0].mxu0
      %v7432 = vadd.f32 %v7096, %v7431
      %v7433 = vpop.f32.mrb[0].mxu0
      %7434 = vmatprep.mubr.f32.mxu0 0.0
      %7435 = vmatmul.mubr.f32.gmra.mrb[0].mxu0 %v7147
      %v7436 = vpop.f32.mrb[0].mxu0
      %v7437 = vadd.f32 %v7096, %v7436
      %v7438 = vpop.f32.mrb[0].mxu0
      %7439 = vmatprep.mubr.f32.mxu0 0.0
      %7440 = vmatmul.mubr.f32.gmra.mrb[0].mxu0 %v7150
      %v7441 = vpop.f32.mrb[0].mxu0
      %v7442 = vadd.f32 %v7096, %v7441
      %v7443 = vpop.f32.mrb[0].mxu0
      %7444 = vmatprep.mubr.f32.mxu0 0.0
      %7445 = vmatmul.mubr.f32.gmra.mrb[0].mxu0 %v7153
      %v7446 = vpop.f32.mrb[0].mxu0
      %v7447 = vadd.f32 %v7096, %v7446
      %v7448 = vpop.f32.mrb[0].mxu0
      %7449 = vmatprep.mubr.f32.mxu0 0.0
      %7450 = vmatmul.mubr.f32.gmra.mrb[0].mxu0 %v7156
      %v7451 = vpop.f32.mrb[0].mxu0
      %v7452 = vadd.f32 %v7096, %v7451
      %v7453 = vpop.f32.mrb[0].mxu0
      %7454 = vmatprep.mubr.f32.mxu0 0.0
      %7455 = vmatmul.mubr.f32.gmra.mrb[0].mxu0 %v7159
      %v7456 = vpop.f32.mrb[0].mxu0
      %v7457 = vadd.f32 %v7096, %v7456
      %v7458 = vpop.f32.mrb[0].mxu0
      %7459 = vmatprep.mubr.f32.mxu0 0.0
      %7460 = vmatmul.mubr.f32.gmra.mrb[0].mxu0 %v7162
      %v7461 = vpop.f32.mrb[0].mxu0
      %v7462 = vadd.f32 %v7096, %v7461
      %v7463 = vpop.f32.mrb[0].mxu0
      %7464 = vmatprep.mubr.f32.mxu0 0.0
      %7465 = vmatmul.mubr.f32.gmra.mrb[0].mxu0 %v7165
      %v7466 = vpop.f32.mrb[0].mxu0
      %v7467 = vadd.f32 %v7096, %v7466
      %v7468 = vpop.f32.mrb[0].mxu0
      %7469 = vmatprep.mubr.f32.mxu0 0.0
      %7470 = vmatmul.mubr.f32.gmra.mrb[0].mxu0 %v7168
      %v7471 = vpop.f32.mrb[0].mxu0
      %v7472 = vadd.f32 %v7096, %v7471
      %v7473 = vpop.f32.mrb[0].mxu0
      %7474 = vmatprep.mubr.f32.mxu0 0.0
      %7475 = vmatmul.mubr.f32.gmra.mrb[0].mxu0 %v7171
      %v7476 = vpop.f32.mrb[0].mxu0
      %v7477 = vadd.f32 %v7096, %v7476
      %v7478 = vpop.f32.mrb[0].mxu0
      %7479 = vmatprep.mubr.f32.mxu0 0.0
      %7480 = vmatmul.mubr.f32.gmra.mrb[0].mxu0 %v7174
      %v7481 = vpop.f32.mrb[0].mxu0
      %v7482 = vadd.f32 %v7096, %v7481
      %v7483 = vpop.f32.mrb[0].mxu0
      %7484 = vmatprep.mubr.f32.mxu0 0.0
      %7485 = vmatmul.mubr.f32.gmra.mrb[0].mxu0 %v7177
      %v7486 = vpop.f32.mrb[0].mxu0
      %v7487 = vadd.f32 %v7096, %v7486
      %v7488 = vpop.f32.mrb[0].mxu0
      %7489 = vmatprep.mubr.f32.mxu0 0.0
      %7490 = vmatmul.mubr.f32.gmra.mrb[0].mxu0 %v7180
      %v7491 = vpop.f32.mrb[0].mxu0
      %v7492 = vadd.f32 %v7096, %v7491
      %v7493 = vpop.f32.mrb[0].mxu0
      %7494 = vmatprep.mubr.f32.mxu0 0.0
      %7495 = vmatmul.mubr.f32.gmra.mrb[0].mxu0 %v7183
      %v7496 = vpop.f32.mrb[0].mxu0
      %v7497 = vadd.f32 %v7096, %v7496
      %v7498 = vpop.f32.mrb[0].mxu0
      %7499 = vmatprep.mubr.f32.mxu0 0.0
      %7500 = vmatmul.mubr.f32.gmra.mrb[0].mxu0 %v7186
      %v7501 = vpop.f32.mrb[0].mxu0
      %v7502 = vadd.f32 %v7096, %v7501
      %v7503 = vpop.f32.mrb[0].mxu0
      %7504 = vmatprep.mubr.f32.mxu0 0.0
      %7505 = vmatmul.mubr.f32.gmra.mrb[0].mxu0 %v7189
      %v7506 = vpop.f32.mrb[0].mxu0
      %v7507 = vadd.f32 %v7096, %v7506
      %v7508 = vpop.f32.mrb[0].mxu0
      %7509 = vmatprep.mubr.f32.mxu0 0.0
      %7510 = vmatmul.mubr.f32.gmra.mrb[0].mxu0 %v7192
      %v7511 = vpop.f32.mrb[0].mxu0
      %v7512 = vadd.f32 %v7096, %v7511
      %v7513 = vpop.f32.mrb[0].mxu0
      %7514 = vmatprep.mubr.f32.mxu0 0.0
      %7515 = vmatmul.mubr.f32.gmra.mrb[0].mxu0 %v7195
      %v7516 = vpop.f32.mrb[0].mxu0
      %v7517 = vadd.f32 %v7096, %v7516
      %v7518 = vpop.f32.mrb[0].mxu0
      %7519 = vmatprep.mubr.f32.mxu0 0.0
      %7520 = vmatmul.mubr.f32.gmra.mrb[0].mxu0 %v7198
      %v7521 = vpop.f32.mrb[0].mxu0
      %v7522 = vadd.f32 %v7096, %v7521
      %v7523 = vpop.f32.mrb[0].mxu0
      %7524 = vmatprep.mubr.f32.mxu0 0.0
      %7525 = vmatmul.mubr.f32.gmra.mrb[0].mxu0 %v7201
      %v7526 = vpop.f32.mrb[0].mxu0
      %v7527 = vadd.f32 %v7096, %v7526
      %v7528 = vpop.f32.mrb[0].mxu0
      %7529 = vmatprep.mubr.f32.mxu0 0.0
      %7530 = vmatmul.mubr.f32.gmra.mrb[0].mxu0 %v7204
      %v7531 = vpop.f32.mrb[0].mxu0
      %v7532 = vadd.f32 %v7096, %v7531
      %v7533 = vpop.f32.mrb[0].mxu0
      %7534 = vmatprep.mubr.f32.mxu0 0.0
      %7535 = vmatmul.mubr.f32.gmra.mrb[0].mxu0 %v7207
      %v7536 = vpop.f32.mrb[0].mxu0
      %v7537 = vadd.f32 %v7096, %v7536
      %v7538 = vpop.f32.mrb[0].mxu0
      %7539 = vmatprep.mubr.f32.mxu0 0.0
      %7540 = vmatmul.mubr.f32.gmra.mrb[0].mxu0 %v7210
      %v7541 = vpop.f32.mrb[0].mxu0
      %v7542 = vadd.f32 %v7096, %v7541
      %v7543 = vpop.f32.mrb[0].mxu0
      %7544 = vmatprep.mubr.f32.mxu0 0.0
      %7545 = vmatmul.mubr.f32.gmra.mrb[0].mxu0 %v7213
      %v7546 = vpop.f32.mrb[0].mxu0
      %v7547 = vadd.f32 %v7096, %v7546
      %v7548 = vpop.f32.mrb[0].mxu0
      %7549 = vmatprep.mubr.f32.mxu0 0.0
      %7550 = vmatmul.mubr.f32.gmra.mrb[0].mxu0 %v7216
      %v7551 = vpop.f32.mrb[0].mxu0
      %v7552 = vadd.f32 %v7096, %v7551
      %v7553 = vpop.f32.mrb[0].mxu0
      %7554 = vmatprep.mubr.f32.mxu0 0.0
      %7555 = vmatmul.mubr.f32.gmra.mrb[0].mxu0 %v7219
      %v7556 = vpop.f32.mrb[0].mxu0
      %v7557 = vadd.f32 %v7096, %v7556
      %v7558 = vpop.f32.mrb[0].mxu0
      %7559 = vmatprep.mubr.f32.mxu0 0.0
      %7560 = vmatmul.mubr.f32.gmra.mrb[0].mxu0 %v7222
      %v7561 = vpop.f32.mrb[0].mxu0
      %v7562 = vadd.f32 %v7096, %v7561
      %v7563 = vpop.f32.mrb[0].mxu0
      %7564 = vmatprep.mubr.f32.mxu0 0.0
      %7565 = vmatmul.mubr.f32.gmra.mrb[0].mxu0 %v7225
      %v7566 = vpop.f32.mrb[0].mxu0
      %v7567 = vadd.f32 %v7096, %v7566
      %v7568 = vpop.f32.mrb[0].mxu0
      %7569 = vmatprep.mubr.f32.mxu0 0.0
      %7570 = vmatmul.mubr.f32.gmra.mrb[0].mxu0 %v7228
      %v7571 = vpop.f32.mrb[0].mxu0
      %v7572 = vadd.f32 %v7096, %v7571
      %v7573 = vpop.f32.mrb[0].mxu0
      %7574 = vmatprep.mubr.f32.mxu0 0.0
      %7575 = vmatmul.mubr.f32.gmra.mrb[0].mxu0 %v7231
      %v7576 = vpop.f32.mrb[0].mxu0
      %v7577 = vadd.f32 %v7096, %v7576
      %v7578 = vpop.f32.mrb[0].mxu0
      %7579 = vmatprep.mubr.f32.mxu0 0.0
      %7580 = vmatmul.mubr.f32.gmra.mrb[0].mxu0 %v7234
      %v7581 = vpop.f32.mrb[0].mxu0
      %v7582 = vadd.f32 %v7096, %v7581
      %v7583 = vpop.f32.mrb[0].mxu0
      %7584 = vmatprep.mubr.f32.mxu0 0.0
      %7585 = vmatmul.mubr.f32.gmra.mrb[0].mxu0 %v7237
      %v7586 = vpop.f32.mrb[0].mxu0
      %v7587 = vadd.f32 %v7096, %v7586
      %v7588 = vpop.f32.mrb[0].mxu0
      %7589 = vmatprep.mubr.f32.mxu0 0.0
      %7590 = vmatmul.mubr.f32.gmra.mrb[0].mxu0 %v7240
      %v7591 = vpop.f32.mrb[0].mxu0
      %v7592 = vadd.f32 %v7096, %v7591
      %v7593 = vpop.f32.mrb[0].mxu0
      %7594 = vmatprep.mubr.f32.mxu0 0.0
      %7595 = vmatmul.mubr.f32.gmra.mrb[0].mxu0 %v7243
      %v7596 = vpop.f32.mrb[0].mxu0
      %v7597 = vadd.f32 %v7096, %v7596
      %v7598 = vpop.f32.mrb[0].mxu0
      %7599 = vmatprep.mubr.f32.mxu0 0.0
      %7600 = vmatmul.mubr.f32.gmra.mrb[0].mxu0 %v7246
      %v7601 = vpop.f32.mrb[0].mxu0
      %v7602 = vadd.f32 %v7096, %v7601
      %v7603 = vpop.f32.mrb[0].mxu0
      %7604 = vmatprep.mubr.f32.mxu0 0.0
      %7605 = vmatmul.mubr.f32.gmra.mrb[0].mxu0 %v7249
      %v7606 = vpop.f32.mrb[0].mxu0
      %v7607 = vadd.f32 %v7096, %v7606
      %v7608 = vpop.f32.mrb[0].mxu0
      %7609 = vmatprep.mubr.f32.mxu0 0.0
      %7610 = vmatmul.mubr.f32.gmra.mrb[0].mxu0 %v7252
      %v7611 = vpop.f32.mrb[0].mxu0
      %v7612 = vadd.f32 %v7096, %v7611
      %v7613 = vpop.f32.mrb[0].mxu0
      %7614 = vmatprep.mubr.f32.mxu0 0.0
      %7615 = vmatmul.mubr.f32.gmra.mrb[0].mxu0 %v7255
      %v7616 = vpop.f32.mrb[0].mxu0
      %v7617 = vadd.f32 %v7096, %v7616
      %v7618 = vpop.f32.mrb[0].mxu0
      %7619 = vmatprep.mubr.f32.mxu0 0.0
      %7620 = vmatmul.mubr.f32.gmra.mrb[0].mxu0 %v7258
      %v7621 = vpop.f32.mrb[0].mxu0
      %v7622 = vadd.f32 %v7096, %v7621
      %v7623 = vpop.f32.mrb[0].mxu0
      %7624 = vmatprep.mubr.f32.mxu0 0.0
      %7625 = vmatmul.mubr.f32.gmra.mrb[0].mxu0 %v7261
      %v7626 = vpop.f32.mrb[0].mxu0
      %v7627 = vadd.f32 %v7096, %v7626
      %v7628 = vpop.f32.mrb[0].mxu0
      %7629 = vmatprep.mubr.f32.mxu0 0.0
      %7630 = vmatmul.mubr.f32.gmra.mrb[0].mxu0 %v7264
      %v7631 = vpop.f32.mrb[0].mxu0
      %v7632 = vadd.f32 %v7096, %v7631
      %v7633 = vpop.f32.mrb[0].mxu0
      %7634 = vmatprep.mubr.f32.mxu0 0.0
      %7635 = vmatmul.mubr.f32.gmra.mrb[0].mxu0 %v7267
      %v7636 = vpop.f32.mrb[0].mxu0
      %v7637 = vadd.f32 %v7096, %v7636
      %v7638 = vpop.f32.mrb[0].mxu0
      %7639 = vmatprep.mubr.f32.mxu0 0.0
      %7640 = vmatmul.mubr.f32.gmra.mrb[0].mxu0 %v7270
      %v7641 = vpop.f32.mrb[0].mxu0
      %v7642 = vadd.f32 %v7096, %v7641
      %v7643 = vpop.f32.mrb[0].mxu0
      %7644 = vmatprep.mubr.f32.mxu0 0.0
      %7645 = vmatmul.mubr.f32.gmra.mrb[0].mxu0 %v7273
      %v7646 = vpop.f32.mrb[0].mxu0
      %v7647 = vadd.f32 %v7096, %v7646
      %v7648 = vpop.f32.mrb[0].mxu0
      %7649 = vmatprep.mubr.f32.mxu0 0.0
      %7650 = vmatmul.mubr.f32.gmra.mrb[0].mxu0 %v7276
      %v7651 = vpop.f32.mrb[0].mxu0
      %v7652 = vadd.f32 %v7096, %v7651
      %v7653 = vpop.f32.mrb[0].mxu0
      %7654 = vmatprep.mubr.f32.mxu0 0.0
      %7655 = vmatmul.mubr.f32.gmra.mrb[0].mxu0 %v7279
      %v7656 = vpop.f32.mrb[0].mxu0
      %v7657 = vadd.f32 %v7096, %v7656
      %v7658 = vpop.f32.mrb[0].mxu0
      %7659 = vmatprep.mubr.f32.mxu0 0.0
      %7660 = vmatmul.mubr.f32.gmra.mrb[0].mxu0 %v7282
      %v7661 = vpop.f32.mrb[0].mxu0
      %v7662 = vadd.f32 %v7096, %v7661
      %v7663 = vpop.f32.mrb[0].mxu0
      %7664 = vmatprep.mubr.f32.mxu0 0.0
      %7665 = vmatmul.mubr.f32.gmra.mrb[0].mxu0 %v7285
      %v7666 = vpop.f32.mrb[0].mxu0
      %v7667 = vadd.f32 %v7096, %v7666
      %v7668 = vpop.f32.mrb[0].mxu0
      %7669 = vmatprep.mubr.f32.mxu0 0.0
      %7670 = vmatmul.mubr.f32.gmra.mrb[0].mxu0 %v7288
      %v7671 = vpop.f32.mrb[0].mxu0
      %v7672 = vadd.f32 %v7096, %v7671
      %v7673 = vpop.f32.mrb[0].mxu0
      %7674 = vdwg.mxu0
      %v7675 = vxor.u32 %v7357, 2147483648
      %v7676 = vxor.u32 %v7362, 2147483648
      %v7677 = vxor.u32 %v7367, 2147483648
      %v7678 = vxor.u32 %v7372, 2147483648
      %v7679 = vxor.u32 %v7377, 2147483648
      %v7680 = vxor.u32 %v7382, 2147483648
      %v7681 = vxor.u32 %v7387, 2147483648
      %v7682 = vxor.u32 %v7392, 2147483648
      %v7683 = vxor.u32 %v7397, 2147483648
      %v7684 = vxor.u32 %v7402, 2147483648
      %v7685 = vxor.u32 %v7407, 2147483648
      %v7686 = vxor.u32 %v7412, 2147483648
      %v7687 = vxor.u32 %v7417, 2147483648
      %v7688 = vxor.u32 %v7422, 2147483648
      %v7689 = vxor.u32 %v7427, 2147483648
      %v7690 = vxor.u32 %v7432, 2147483648
      %v7691 = vxor.u32 %v7437, 2147483648
      %v7692 = vxor.u32 %v7442, 2147483648
      %v7693 = vxor.u32 %v7447, 2147483648
      %v7694 = vxor.u32 %v7452, 2147483648
      %v7695 = vxor.u32 %v7457, 2147483648
      %v7696 = vxor.u32 %v7462, 2147483648
      %v7697 = vxor.u32 %v7467, 2147483648
      %v7698 = vxor.u32 %v7472, 2147483648
      %v7699 = vxor.u32 %v7477, 2147483648
      %v7700 = vxor.u32 %v7482, 2147483648
      %v7701 = vxor.u32 %v7487, 2147483648
      %v7702 = vxor.u32 %v7492, 2147483648
      %v7703 = vxor.u32 %v7497, 2147483648
      %v7704 = vxor.u32 %v7502, 2147483648
      %v7705 = vxor.u32 %v7507, 2147483648
      %v7706 = vxor.u32 %v7512, 2147483648
      %v7707 = vxor.u32 %v7517, 2147483648
      %v7708 = vxor.u32 %v7522, 2147483648
      %v7709 = vxor.u32 %v7527, 2147483648
      %v7710 = vxor.u32 %v7532, 2147483648
      %v7711 = vxor.u32 %v7537, 2147483648
      %v7712 = vxor.u32 %v7542, 2147483648
      %v7713 = vxor.u32 %v7547, 2147483648
      %v7714 = vxor.u32 %v7552, 2147483648
      %v7715 = vxor.u32 %v7557, 2147483648
      %v7716 = vxor.u32 %v7562, 2147483648
      %v7717 = vxor.u32 %v7567, 2147483648
      %v7718 = vxor.u32 %v7572, 2147483648
      %v7719 = vxor.u32 %v7577, 2147483648
      %v7720 = vxor.u32 %v7582, 2147483648
      %v7721 = vxor.u32 %v7587, 2147483648
      %v7722 = vxor.u32 %v7592, 2147483648
      %v7723 = vxor.u32 %v7597, 2147483648
      %v7724 = vxor.u32 %v7602, 2147483648
      %v7725 = vxor.u32 %v7607, 2147483648
      %v7726 = vxor.u32 %v7612, 2147483648
      %v7727 = vxor.u32 %v7617, 2147483648
      %v7728 = vxor.u32 %v7622, 2147483648
      %v7729 = vxor.u32 %v7627, 2147483648
      %v7730 = vxor.u32 %v7632, 2147483648
      %v7731 = vxor.u32 %v7637, 2147483648
      %v7732 = vxor.u32 %v7642, 2147483648
      %v7733 = vxor.u32 %v7647, 2147483648
      %v7734 = vxor.u32 %v7652, 2147483648
      %v7735 = vxor.u32 %v7657, 2147483648
      %v7736 = vxor.u32 %v7662, 2147483648
      %v7737 = vxor.u32 %v7667, 2147483648
      %v7738 = vxor.u32 %v7672, 2147483648
      %v7739 = vmul.f32 %v7675, 1.442695
      %v7740 = vpow.pop %v7739
      %v7741 = vmul.f32 %v7676, 1.442695
      %v7742 = vpow.pop %v7741
      %v7743 = vmul.f32 %v7677, 1.442695
      %v7744 = vpow.pop %v7743
      %v7745 = vmul.f32 %v7678, 1.442695
      %v7746 = vpow.pop %v7745
      %v7747 = vmul.f32 %v7679, 1.442695
      %v7748 = vpow.pop %v7747
      %v7749 = vmul.f32 %v7680, 1.442695
      %v7750 = vpow.pop %v7749
      %v7751 = vmul.f32 %v7681, 1.442695
      %v7752 = vpow.pop %v7751
      %v7753 = vmul.f32 %v7682, 1.442695
      %v7754 = vpow.pop %v7753
      %v7755 = vmul.f32 %v7683, 1.442695
      %v7756 = vpow.pop %v7755
      %v7757 = vmul.f32 %v7684, 1.442695
      %v7758 = vpow.pop %v7757
      %v7759 = vmul.f32 %v7685, 1.442695
      %v7760 = vpow.pop %v7759
      %v7761 = vmul.f32 %v7686, 1.442695
      %v7762 = vpow.pop %v7761
      %v7763 = vmul.f32 %v7687, 1.442695
      %v7764 = vpow.pop %v7763
      %v7765 = vmul.f32 %v7688, 1.442695
      %v7766 = vpow.pop %v7765
      %v7767 = vmul.f32 %v7689, 1.442695
      %v7768 = vpow.pop %v7767
      %v7769 = vmul.f32 %v7690, 1.442695
      %v7770 = vpow.pop %v7769
      %v7771 = vmul.f32 %v7691, 1.442695
      %v7772 = vpow.pop %v7771
      %v7773 = vmul.f32 %v7692, 1.442695
      %v7774 = vpow.pop %v7773
      %v7775 = vmul.f32 %v7693, 1.442695
      %v7776 = vpow.pop %v7775
      %v7777 = vmul.f32 %v7694, 1.442695
      %v7778 = vpow.pop %v7777
      %v7779 = vmul.f32 %v7695, 1.442695
      %v7780 = vpow.pop %v7779
      %v7781 = vmul.f32 %v7696, 1.442695
      %v7782 = vpow.pop %v7781
      %v7783 = vmul.f32 %v7697, 1.442695
      %v7784 = vpow.pop %v7783
      %v7785 = vmul.f32 %v7698, 1.442695
      %v7786 = vpow.pop %v7785
      %v7787 = vmul.f32 %v7699, 1.442695
      %v7788 = vpow.pop %v7787
      %v7789 = vmul.f32 %v7700, 1.442695
      %v7790 = vpow.pop %v7789
      %v7791 = vmul.f32 %v7701, 1.442695
      %v7792 = vpow.pop %v7791
      %v7793 = vmul.f32 %v7702, 1.442695
      %v7794 = vpow.pop %v7793
      %v7795 = vmul.f32 %v7703, 1.442695
      %v7796 = vpow.pop %v7795
      %v7797 = vmul.f32 %v7704, 1.442695
      %v7798 = vpow.pop %v7797
      %v7799 = vmul.f32 %v7705, 1.442695
      %v7800 = vpow.pop %v7799
      %v7801 = vmul.f32 %v7706, 1.442695
      %v7802 = vpow.pop %v7801
      %v7803 = vmul.f32 %v7707, 1.442695
      %v7804 = vpow.pop %v7803
      %v7805 = vmul.f32 %v7708, 1.442695
      %v7806 = vpow.pop %v7805
      %v7807 = vmul.f32 %v7709, 1.442695
      %v7808 = vpow.pop %v7807
      %v7809 = vmul.f32 %v7710, 1.442695
      %v7810 = vpow.pop %v7809
      %v7811 = vmul.f32 %v7711, 1.442695
      %v7812 = vpow.pop %v7811
      %v7813 = vmul.f32 %v7712, 1.442695
      %v7814 = vpow.pop %v7813
      %v7815 = vmul.f32 %v7713, 1.442695
      %v7816 = vpow.pop %v7815
      %v7817 = vmul.f32 %v7714, 1.442695
      %v7818 = vpow.pop %v7817
      %v7819 = vmul.f32 %v7715, 1.442695
      %v7820 = vpow.pop %v7819
      %v7821 = vmul.f32 %v7716, 1.442695
      %v7822 = vpow.pop %v7821
      %v7823 = vmul.f32 %v7717, 1.442695
      %v7824 = vpow.pop %v7823
      %v7825 = vmul.f32 %v7718, 1.442695
      %v7826 = vpow.pop %v7825
      %v7827 = vmul.f32 %v7719, 1.442695
      %v7828 = vpow.pop %v7827
      %v7829 = vmul.f32 %v7720, 1.442695
      %v7830 = vpow.pop %v7829
      %v7831 = vmul.f32 %v7721, 1.442695
      %v7832 = vpow.pop %v7831
      %v7833 = vmul.f32 %v7722, 1.442695
      %v7834 = vpow.pop %v7833
      %v7835 = vmul.f32 %v7723, 1.442695
      %v7836 = vpow.pop %v7835
      %v7837 = vmul.f32 %v7724, 1.442695
      %v7838 = vpow.pop %v7837
      %v7839 = vmul.f32 %v7725, 1.442695
      %v7840 = vpow.pop %v7839
      %v7841 = vmul.f32 %v7726, 1.442695
      %v7842 = vpow.pop %v7841
      %v7843 = vmul.f32 %v7727, 1.442695
      %v7844 = vpow.pop %v7843
      %v7845 = vmul.f32 %v7728, 1.442695
      %v7846 = vpow.pop %v7845
      %v7847 = vmul.f32 %v7729, 1.442695
      %v7848 = vpow.pop %v7847
      %v7849 = vmul.f32 %v7730, 1.442695
      %v7850 = vpow.pop %v7849
      %v7851 = vmul.f32 %v7731, 1.442695
      %v7852 = vpow.pop %v7851
      %v7853 = vmul.f32 %v7732, 1.442695
      %v7854 = vpow.pop %v7853
      %v7855 = vmul.f32 %v7733, 1.442695
      %v7856 = vpow.pop %v7855
      %v7857 = vmul.f32 %v7734, 1.442695
      %v7858 = vpow.pop %v7857
      %v7859 = vmul.f32 %v7735, 1.442695
      %v7860 = vpow.pop %v7859
      %v7861 = vmul.f32 %v7736, 1.442695
      %v7862 = vpow.pop %v7861
      %v7863 = vmul.f32 %v7737, 1.442695
      %v7864 = vpow.pop %v7863
      %v7865 = vmul.f32 %v7738, 1.442695
      %v7866 = vpow.pop %v7865
      %v7867 = vadd.f32 %v7740, 1.0
      %v7868 = vadd.f32 %v7742, 1.0
      %v7869 = vadd.f32 %v7744, 1.0
      %v7870 = vadd.f32 %v7746, 1.0
      %v7871 = vadd.f32 %v7748, 1.0
      %v7872 = vadd.f32 %v7750, 1.0
      %v7873 = vadd.f32 %v7752, 1.0
      %v7874 = vadd.f32 %v7754, 1.0
      %v7875 = vadd.f32 %v7756, 1.0
      %v7876 = vadd.f32 %v7758, 1.0
      %v7877 = vadd.f32 %v7760, 1.0
      %v7878 = vadd.f32 %v7762, 1.0
      %v7879 = vadd.f32 %v7764, 1.0
      %v7880 = vadd.f32 %v7766, 1.0
      %v7881 = vadd.f32 %v7768, 1.0
      %v7882 = vadd.f32 %v7770, 1.0
      %v7883 = vadd.f32 %v7772, 1.0
      %v7884 = vadd.f32 %v7774, 1.0
      %v7885 = vadd.f32 %v7776, 1.0
      %v7886 = vadd.f32 %v7778, 1.0
      %v7887 = vadd.f32 %v7780, 1.0
      %v7888 = vadd.f32 %v7782, 1.0
      %v7889 = vadd.f32 %v7784, 1.0
      %v7890 = vadd.f32 %v7786, 1.0
      %v7891 = vadd.f32 %v7788, 1.0
      %v7892 = vadd.f32 %v7790, 1.0
      %v7893 = vadd.f32 %v7792, 1.0
      %v7894 = vadd.f32 %v7794, 1.0
      %v7895 = vadd.f32 %v7796, 1.0
      %v7896 = vadd.f32 %v7798, 1.0
      %v7897 = vadd.f32 %v7800, 1.0
      %v7898 = vadd.f32 %v7802, 1.0
      %v7899 = vadd.f32 %v7804, 1.0
      %v7900 = vadd.f32 %v7806, 1.0
      %v7901 = vadd.f32 %v7808, 1.0
      %v7902 = vadd.f32 %v7810, 1.0
      %v7903 = vadd.f32 %v7812, 1.0
      %v7904 = vadd.f32 %v7814, 1.0
      %v7905 = vadd.f32 %v7816, 1.0
      %v7906 = vadd.f32 %v7818, 1.0
      %v7907 = vadd.f32 %v7820, 1.0
      %v7908 = vadd.f32 %v7822, 1.0
      %v7909 = vadd.f32 %v7824, 1.0
      %v7910 = vadd.f32 %v7826, 1.0
      %v7911 = vadd.f32 %v7828, 1.0
      %v7912 = vadd.f32 %v7830, 1.0
      %v7913 = vadd.f32 %v7832, 1.0
      %v7914 = vadd.f32 %v7834, 1.0
      %v7915 = vadd.f32 %v7836, 1.0
      %v7916 = vadd.f32 %v7838, 1.0
      %v7917 = vadd.f32 %v7840, 1.0
      %v7918 = vadd.f32 %v7842, 1.0
      %v7919 = vadd.f32 %v7844, 1.0
      %v7920 = vadd.f32 %v7846, 1.0
      %v7921 = vadd.f32 %v7848, 1.0
      %v7922 = vadd.f32 %v7850, 1.0
      %v7923 = vadd.f32 %v7852, 1.0
      %v7924 = vadd.f32 %v7854, 1.0
      %v7925 = vadd.f32 %v7856, 1.0
      %v7926 = vadd.f32 %v7858, 1.0
      %v7927 = vadd.f32 %v7860, 1.0
      %v7928 = vadd.f32 %v7862, 1.0
      %v7929 = vadd.f32 %v7864, 1.0
      %v7930 = vadd.f32 %v7866, 1.0
      %v7931 = vrcp.pop %v7867
      %v7932 = vmul.f32 1.0, %v7931
      %v7933 = vrcp.pop %v7868
      %v7934 = vmul.f32 1.0, %v7933
      %v7935 = vrcp.pop %v7869
      %v7936 = vmul.f32 1.0, %v7935
      %v7937 = vrcp.pop %v7870
      %v7938 = vmul.f32 1.0, %v7937
      %v7939 = vrcp.pop %v7871
      %v7940 = vmul.f32 1.0, %v7939
      %v7941 = vrcp.pop %v7872
      %v7942 = vmul.f32 1.0, %v7941
      %v7943 = vrcp.pop %v7873
      %v7944 = vmul.f32 1.0, %v7943
      %v7945 = vrcp.pop %v7874
      %v7946 = vmul.f32 1.0, %v7945
      %v7947 = vrcp.pop %v7875
      %v7948 = vmul.f32 1.0, %v7947
      %v7949 = vrcp.pop %v7876
      %v7950 = vmul.f32 1.0, %v7949
      %v7951 = vrcp.pop %v7877
      %v7952 = vmul.f32 1.0, %v7951
      %v7953 = vrcp.pop %v7878
      %v7954 = vmul.f32 1.0, %v7953
      %v7955 = vrcp.pop %v7879
      %v7956 = vmul.f32 1.0, %v7955
      %v7957 = vrcp.pop %v7880
      %v7958 = vmul.f32 1.0, %v7957
      %v7959 = vrcp.pop %v7881
      %v7960 = vmul.f32 1.0, %v7959
      %v7961 = vrcp.pop %v7882
      %v7962 = vmul.f32 1.0, %v7961
      %v7963 = vrcp.pop %v7883
      %v7964 = vmul.f32 1.0, %v7963
      %v7965 = vrcp.pop %v7884
      %v7966 = vmul.f32 1.0, %v7965
      %v7967 = vrcp.pop %v7885
      %v7968 = vmul.f32 1.0, %v7967
      %v7969 = vrcp.pop %v7886
      %v7970 = vmul.f32 1.0, %v7969
      %v7971 = vrcp.pop %v7887
      %v7972 = vmul.f32 1.0, %v7971
      %v7973 = vrcp.pop %v7888
      %v7974 = vmul.f32 1.0, %v7973
      %v7975 = vrcp.pop %v7889
      %v7976 = vmul.f32 1.0, %v7975
      %v7977 = vrcp.pop %v7890
      %v7978 = vmul.f32 1.0, %v7977
      %v7979 = vrcp.pop %v7891
      %v7980 = vmul.f32 1.0, %v7979
      %v7981 = vrcp.pop %v7892
      %v7982 = vmul.f32 1.0, %v7981
      %v7983 = vrcp.pop %v7893
      %v7984 = vmul.f32 1.0, %v7983
      %v7985 = vrcp.pop %v7894
      %v7986 = vmul.f32 1.0, %v7985
      %v7987 = vrcp.pop %v7895
      %v7988 = vmul.f32 1.0, %v7987
      %v7989 = vrcp.pop %v7896
      %v7990 = vmul.f32 1.0, %v7989
      %v7991 = vrcp.pop %v7897
      %v7992 = vmul.f32 1.0, %v7991
      %v7993 = vrcp.pop %v7898
      %v7994 = vmul.f32 1.0, %v7993
      %v7995 = vrcp.pop %v7899
      %v7996 = vmul.f32 1.0, %v7995
      %v7997 = vrcp.pop %v7900
      %v7998 = vmul.f32 1.0, %v7997
      %v7999 = vrcp.pop %v7901
      %v8000 = vmul.f32 1.0, %v7999
      %v8001 = vrcp.pop %v7902
      %v8002 = vmul.f32 1.0, %v8001
      %v8003 = vrcp.pop %v7903
      %v8004 = vmul.f32 1.0, %v8003
      %v8005 = vrcp.pop %v7904
      %v8006 = vmul.f32 1.0, %v8005
      %v8007 = vrcp.pop %v7905
      %v8008 = vmul.f32 1.0, %v8007
      %v8009 = vrcp.pop %v7906
      %v8010 = vmul.f32 1.0, %v8009
      %v8011 = vrcp.pop %v7907
      %v8012 = vmul.f32 1.0, %v8011
      %v8013 = vrcp.pop %v7908
      %v8014 = vmul.f32 1.0, %v8013
      %v8015 = vrcp.pop %v7909
      %v8016 = vmul.f32 1.0, %v8015
      %v8017 = vrcp.pop %v7910
      %v8018 = vmul.f32 1.0, %v8017
      %v8019 = vrcp.pop %v7911
      %v8020 = vmul.f32 1.0, %v8019
      %v8021 = vrcp.pop %v7912
      %v8022 = vmul.f32 1.0, %v8021
      %v8023 = vrcp.pop %v7913
      %v8024 = vmul.f32 1.0, %v8023
      %v8025 = vrcp.pop %v7914
      %v8026 = vmul.f32 1.0, %v8025
      %v8027 = vrcp.pop %v7915
      %v8028 = vmul.f32 1.0, %v8027
      %v8029 = vrcp.pop %v7916
      %v8030 = vmul.f32 1.0, %v8029
      %v8031 = vrcp.pop %v7917
      %v8032 = vmul.f32 1.0, %v8031
      %v8033 = vrcp.pop %v7918
      %v8034 = vmul.f32 1.0, %v8033
      %v8035 = vrcp.pop %v7919
      %v8036 = vmul.f32 1.0, %v8035
      %v8037 = vrcp.pop %v7920
      %v8038 = vmul.f32 1.0, %v8037
      %v8039 = vrcp.pop %v7921
      %v8040 = vmul.f32 1.0, %v8039
      %v8041 = vrcp.pop %v7922
      %v8042 = vmul.f32 1.0, %v8041
      %v8043 = vrcp.pop %v7923
      %v8044 = vmul.f32 1.0, %v8043
      %v8045 = vrcp.pop %v7924
      %v8046 = vmul.f32 1.0, %v8045
      %v8047 = vrcp.pop %v7925
      %v8048 = vmul.f32 1.0, %v8047
      %v8049 = vrcp.pop %v7926
      %v8050 = vmul.f32 1.0, %v8049
      %v8051 = vrcp.pop %v7927
      %v8052 = vmul.f32 1.0, %v8051
      %v8053 = vrcp.pop %v7928
      %v8054 = vmul.f32 1.0, %v8053
      %v8055 = vrcp.pop %v7929
      %v8056 = vmul.f32 1.0, %v8055
      %v8057 = vrcp.pop %v7930
      %v8058 = vmul.f32 1.0, %v8057
      %v8059 = vmul.f32 %v7357, %v7932
      %v8060 = vmul.f32 %v7362, %v7934
      %v8061 = vmul.f32 %v7367, %v7936
      %v8062 = vmul.f32 %v7372, %v7938
      %v8063 = vmul.f32 %v7377, %v7940
      %v8064 = vmul.f32 %v7382, %v7942
      %v8065 = vmul.f32 %v7387, %v7944
      %v8066 = vmul.f32 %v7392, %v7946
      %v8067 = vmul.f32 %v7397, %v7948
      %v8068 = vmul.f32 %v7402, %v7950
      %v8069 = vmul.f32 %v7407, %v7952
      %v8070 = vmul.f32 %v7412, %v7954
      %v8071 = vmul.f32 %v7417, %v7956
      %v8072 = vmul.f32 %v7422, %v7958
      %v8073 = vmul.f32 %v7427, %v7960
      %v8074 = vmul.f32 %v7432, %v7962
      %v8075 = vmul.f32 %v7437, %v7964
      %v8076 = vmul.f32 %v7442, %v7966
      %v8077 = vmul.f32 %v7447, %v7968
      %v8078 = vmul.f32 %v7452, %v7970
      %v8079 = vmul.f32 %v7457, %v7972
      %v8080 = vmul.f32 %v7462, %v7974
      %v8081 = vmul.f32 %v7467, %v7976
      %v8082 = vmul.f32 %v7472, %v7978
      %v8083 = vmul.f32 %v7477, %v7980
      %v8084 = vmul.f32 %v7482, %v7982
      %v8085 = vmul.f32 %v7487, %v7984
      %v8086 = vmul.f32 %v7492, %v7986
      %v8087 = vmul.f32 %v7497, %v7988
      %v8088 = vmul.f32 %v7502, %v7990
      %v8089 = vmul.f32 %v7507, %v7992
      %v8090 = vmul.f32 %v7512, %v7994
      %v8091 = vmul.f32 %v7517, %v7996
      %v8092 = vmul.f32 %v7522, %v7998
      %v8093 = vmul.f32 %v7527, %v8000
      %v8094 = vmul.f32 %v7532, %v8002
      %v8095 = vmul.f32 %v7537, %v8004
      %v8096 = vmul.f32 %v7542, %v8006
      %v8097 = vmul.f32 %v7547, %v8008
      %v8098 = vmul.f32 %v7552, %v8010
      %v8099 = vmul.f32 %v7557, %v8012
      %v8100 = vmul.f32 %v7562, %v8014
      %v8101 = vmul.f32 %v7567, %v8016
      %v8102 = vmul.f32 %v7572, %v8018
      %v8103 = vmul.f32 %v7577, %v8020
      %v8104 = vmul.f32 %v7582, %v8022
      %v8105 = vmul.f32 %v7587, %v8024
      %v8106 = vmul.f32 %v7592, %v8026
      %v8107 = vmul.f32 %v7597, %v8028
      %v8108 = vmul.f32 %v7602, %v8030
      %v8109 = vmul.f32 %v7607, %v8032
      %v8110 = vmul.f32 %v7612, %v8034
      %v8111 = vmul.f32 %v7617, %v8036
      %v8112 = vmul.f32 %v7622, %v8038
      %v8113 = vmul.f32 %v7627, %v8040
      %v8114 = vmul.f32 %v7632, %v8042
      %v8115 = vmul.f32 %v7637, %v8044
      %v8116 = vmul.f32 %v7642, %v8046
      %v8117 = vmul.f32 %v7647, %v8048
      %v8118 = vmul.f32 %v7652, %v8050
      %v8119 = vmul.f32 %v7657, %v8052
      %v8120 = vmul.f32 %v7662, %v8054
      %v8121 = vmul.f32 %v7667, %v8056
      %v8122 = vmul.f32 %v7672, %v8058
      %v8123 = vld [vmem:[%s18] sm:$0x1]
      %v8125 = vlaneseq
      %v8126 = vshrl.u32 %v8125, 7
      %v8127 = vsub.s32 0, %v8126
      %v8128 = vrot.slane %v8123, %v8127
      %v8130 = vmul.f32 %v8059, %v8128
      %v8131 = vmul.f32 %v8060, %v8128
      %v8132 = vmul.f32 %v8061, %v8128
      %v8133 = vmul.f32 %v8062, %v8128
      %v8134 = vmul.f32 %v8063, %v8128
      %v8135 = vmul.f32 %v8064, %v8128
      %v8136 = vmul.f32 %v8065, %v8128
      %v8137 = vmul.f32 %v8066, %v8128
      %v8138 = vmul.f32 %v8067, %v8128
      %v8139 = vmul.f32 %v8068, %v8128
      %v8140 = vmul.f32 %v8069, %v8128
      %v8141 = vmul.f32 %v8070, %v8128
      %v8142 = vmul.f32 %v8071, %v8128
      %v8143 = vmul.f32 %v8072, %v8128
      %v8144 = vmul.f32 %v8073, %v8128
      %v8145 = vmul.f32 %v8074, %v8128
      %v8146 = vmul.f32 %v8075, %v8128
      %v8147 = vmul.f32 %v8076, %v8128
      %v8148 = vmul.f32 %v8077, %v8128
      %v8149 = vmul.f32 %v8078, %v8128
      %v8150 = vmul.f32 %v8079, %v8128
      %v8151 = vmul.f32 %v8080, %v8128
      %v8152 = vmul.f32 %v8081, %v8128
      %v8153 = vmul.f32 %v8082, %v8128
      %v8154 = vmul.f32 %v8083, %v8128
      %v8155 = vmul.f32 %v8084, %v8128
      %v8156 = vmul.f32 %v8085, %v8128
      %v8157 = vmul.f32 %v8086, %v8128
      %v8158 = vmul.f32 %v8087, %v8128
      %v8159 = vmul.f32 %v8088, %v8128
      %v8160 = vmul.f32 %v8089, %v8128
      %v8161 = vmul.f32 %v8090, %v8128
      %v8162 = vmul.f32 %v8091, %v8128
      %v8163 = vmul.f32 %v8092, %v8128
      %v8164 = vmul.f32 %v8093, %v8128
      %v8165 = vmul.f32 %v8094, %v8128
      %v8166 = vmul.f32 %v8095, %v8128
      %v8167 = vmul.f32 %v8096, %v8128
      %v8168 = vmul.f32 %v8097, %v8128
      %v8169 = vmul.f32 %v8098, %v8128
      %v8170 = vmul.f32 %v8099, %v8128
      %v8171 = vmul.f32 %v8100, %v8128
      %v8172 = vmul.f32 %v8101, %v8128
      %v8173 = vmul.f32 %v8102, %v8128
      %v8174 = vmul.f32 %v8103, %v8128
      %v8175 = vmul.f32 %v8104, %v8128
      %v8176 = vmul.f32 %v8105, %v8128
      %v8177 = vmul.f32 %v8106, %v8128
      %v8178 = vmul.f32 %v8107, %v8128
      %v8179 = vmul.f32 %v8108, %v8128
      %v8180 = vmul.f32 %v8109, %v8128
      %v8181 = vmul.f32 %v8110, %v8128
      %v8182 = vmul.f32 %v8111, %v8128
      %v8183 = vmul.f32 %v8112, %v8128
      %v8184 = vmul.f32 %v8113, %v8128
      %v8185 = vmul.f32 %v8114, %v8128
      %v8186 = vmul.f32 %v8115, %v8128
      %v8187 = vmul.f32 %v8116, %v8128
      %v8188 = vmul.f32 %v8117, %v8128
      %v8189 = vmul.f32 %v8118, %v8128
      %v8190 = vmul.f32 %v8119, %v8128
      %v8191 = vmul.f32 %v8120, %v8128
      %v8192 = vmul.f32 %v8121, %v8128
      %v8193 = vmul.f32 %v8122, %v8128
      %v8194 = vsel %vm6253, %v8130, 0.0
      %8195 = vadd.xlane.f32.xlu0 %v8194
      %v8196 = vpop.xlane.xlu0 %8195
      %v8197 = vsel %vm6253, %v8131, 0.0
      %8198 = vadd.xlane.f32.xlu0 %v8197
      %v8199 = vpop.xlane.xlu0 %8198
      %v8200 = vsel %vm6253, %v8132, 0.0
      %8201 = vadd.xlane.f32.xlu0 %v8200
      %v8202 = vpop.xlane.xlu0 %8201
      %v8203 = vsel %vm6253, %v8133, 0.0
      %8204 = vadd.xlane.f32.xlu0 %v8203
      %v8205 = vpop.xlane.xlu0 %8204
      %v8206 = vsel %vm6253, %v8134, 0.0
      %8207 = vadd.xlane.f32.xlu0 %v8206
      %v8208 = vpop.xlane.xlu0 %8207
      %v8209 = vsel %vm6253, %v8135, 0.0
      %8210 = vadd.xlane.f32.xlu0 %v8209
      %v8211 = vpop.xlane.xlu0 %8210
      %v8212 = vsel %vm6253, %v8136, 0.0
      %8213 = vadd.xlane.f32.xlu0 %v8212
      %v8214 = vpop.xlane.xlu0 %8213
      %v8215 = vsel %vm6253, %v8137, 0.0
      %8216 = vadd.xlane.f32.xlu0 %v8215
      %v8217 = vpop.xlane.xlu0 %8216
      %v8218 = vsel %vm6253, %v8138, 0.0
      %8219 = vadd.xlane.f32.xlu0 %v8218
      %v8220 = vpop.xlane.xlu0 %8219
      %v8221 = vsel %vm6253, %v8139, 0.0
      %8222 = vadd.xlane.f32.xlu0 %v8221
      %v8223 = vpop.xlane.xlu0 %8222
      %v8224 = vsel %vm6253, %v8140, 0.0
      %8225 = vadd.xlane.f32.xlu0 %v8224
      %v8226 = vpop.xlane.xlu0 %8225
      %v8227 = vsel %vm6253, %v8141, 0.0
      %8228 = vadd.xlane.f32.xlu0 %v8227
      %v8229 = vpop.xlane.xlu0 %8228
      %v8230 = vsel %vm6253, %v8142, 0.0
      %8231 = vadd.xlane.f32.xlu0 %v8230
      %v8232 = vpop.xlane.xlu0 %8231
      %v8233 = vsel %vm6253, %v8143, 0.0
      %8234 = vadd.xlane.f32.xlu0 %v8233
      %v8235 = vpop.xlane.xlu0 %8234
      %v8236 = vsel %vm6253, %v8144, 0.0
      %8237 = vadd.xlane.f32.xlu0 %v8236
      %v8238 = vpop.xlane.xlu0 %8237
      %v8239 = vsel %vm6253, %v8145, 0.0
      %8240 = vadd.xlane.f32.xlu0 %v8239
      %v8241 = vpop.xlane.xlu0 %8240
      %v8242 = vsel %vm6253, %v8146, 0.0
      %8243 = vadd.xlane.f32.xlu0 %v8242
      %v8244 = vpop.xlane.xlu0 %8243
      %v8245 = vsel %vm6253, %v8147, 0.0
      %8246 = vadd.xlane.f32.xlu0 %v8245
      %v8247 = vpop.xlane.xlu0 %8246
      %v8248 = vsel %vm6253, %v8148, 0.0
      %8249 = vadd.xlane.f32.xlu0 %v8248
      %v8250 = vpop.xlane.xlu0 %8249
      %v8251 = vsel %vm6253, %v8149, 0.0
      %8252 = vadd.xlane.f32.xlu0 %v8251
      %v8253 = vpop.xlane.xlu0 %8252
      %v8254 = vsel %vm6253, %v8150, 0.0
      %8255 = vadd.xlane.f32.xlu0 %v8254
      %v8256 = vpop.xlane.xlu0 %8255
      %v8257 = vsel %vm6253, %v8151, 0.0
      %8258 = vadd.xlane.f32.xlu0 %v8257
      %v8259 = vpop.xlane.xlu0 %8258
      %v8260 = vsel %vm6253, %v8152, 0.0
      %8261 = vadd.xlane.f32.xlu0 %v8260
      %v8262 = vpop.xlane.xlu0 %8261
      %v8263 = vsel %vm6253, %v8153, 0.0
      %8264 = vadd.xlane.f32.xlu0 %v8263
      %v8265 = vpop.xlane.xlu0 %8264
      %v8266 = vsel %vm6253, %v8154, 0.0
      %8267 = vadd.xlane.f32.xlu0 %v8266
      %v8268 = vpop.xlane.xlu0 %8267
      %v8269 = vsel %vm6253, %v8155, 0.0
      %8270 = vadd.xlane.f32.xlu0 %v8269
      %v8271 = vpop.xlane.xlu0 %8270
      %v8272 = vsel %vm6253, %v8156, 0.0
      %8273 = vadd.xlane.f32.xlu0 %v8272
      %v8274 = vpop.xlane.xlu0 %8273
      %v8275 = vsel %vm6253, %v8157, 0.0
      %8276 = vadd.xlane.f32.xlu0 %v8275
      %v8277 = vpop.xlane.xlu0 %8276
      %v8278 = vsel %vm6253, %v8158, 0.0
      %8279 = vadd.xlane.f32.xlu0 %v8278
      %v8280 = vpop.xlane.xlu0 %8279
      %v8281 = vsel %vm6253, %v8159, 0.0
      %8282 = vadd.xlane.f32.xlu0 %v8281
      %v8283 = vpop.xlane.xlu0 %8282
      %v8284 = vsel %vm6253, %v8160, 0.0
      %8285 = vadd.xlane.f32.xlu0 %v8284
      %v8286 = vpop.xlane.xlu0 %8285
      %v8287 = vsel %vm6253, %v8161, 0.0
      %8288 = vadd.xlane.f32.xlu0 %v8287
      %v8289 = vpop.xlane.xlu0 %8288
      %v8290 = vsel %vm6253, %v8162, 0.0
      %8291 = vadd.xlane.f32.xlu0 %v8290
      %v8292 = vpop.xlane.xlu0 %8291
      %v8293 = vsel %vm6253, %v8163, 0.0
      %8294 = vadd.xlane.f32.xlu0 %v8293
      %v8295 = vpop.xlane.xlu0 %8294
      %v8296 = vsel %vm6253, %v8164, 0.0
      %8297 = vadd.xlane.f32.xlu0 %v8296
      %v8298 = vpop.xlane.xlu0 %8297
      %v8299 = vsel %vm6253, %v8165, 0.0
      %8300 = vadd.xlane.f32.xlu0 %v8299
      %v8301 = vpop.xlane.xlu0 %8300
      %v8302 = vsel %vm6253, %v8166, 0.0
      %8303 = vadd.xlane.f32.xlu0 %v8302
      %v8304 = vpop.xlane.xlu0 %8303
      %v8305 = vsel %vm6253, %v8167, 0.0
      %8306 = vadd.xlane.f32.xlu0 %v8305
      %v8307 = vpop.xlane.xlu0 %8306
      %v8308 = vsel %vm6253, %v8168, 0.0
      %8309 = vadd.xlane.f32.xlu0 %v8308
      %v8310 = vpop.xlane.xlu0 %8309
      %v8311 = vsel %vm6253, %v8169, 0.0
      %8312 = vadd.xlane.f32.xlu0 %v8311
      %v8313 = vpop.xlane.xlu0 %8312
      %v8314 = vsel %vm6253, %v8170, 0.0
      %8315 = vadd.xlane.f32.xlu0 %v8314
      %v8316 = vpop.xlane.xlu0 %8315
      %v8317 = vsel %vm6253, %v8171, 0.0
      %8318 = vadd.xlane.f32.xlu0 %v8317
      %v8319 = vpop.xlane.xlu0 %8318
      %v8320 = vsel %vm6253, %v8172, 0.0
      %8321 = vadd.xlane.f32.xlu0 %v8320
      %v8322 = vpop.xlane.xlu0 %8321
      %v8323 = vsel %vm6253, %v8173, 0.0
      %8324 = vadd.xlane.f32.xlu0 %v8323
      %v8325 = vpop.xlane.xlu0 %8324
      %v8326 = vsel %vm6253, %v8174, 0.0
      %8327 = vadd.xlane.f32.xlu0 %v8326
      %v8328 = vpop.xlane.xlu0 %8327
      %v8329 = vsel %vm6253, %v8175, 0.0
      %8330 = vadd.xlane.f32.xlu0 %v8329
      %v8331 = vpop.xlane.xlu0 %8330
      %v8332 = vsel %vm6253, %v8176, 0.0
      %8333 = vadd.xlane.f32.xlu0 %v8332
      %v8334 = vpop.xlane.xlu0 %8333
      %v8335 = vsel %vm6253, %v8177, 0.0
      %8336 = vadd.xlane.f32.xlu0 %v8335
      %v8337 = vpop.xlane.xlu0 %8336
      %v8338 = vsel %vm6253, %v8178, 0.0
      %8339 = vadd.xlane.f32.xlu0 %v8338
      %v8340 = vpop.xlane.xlu0 %8339
      %v8341 = vsel %vm6253, %v8179, 0.0
      %8342 = vadd.xlane.f32.xlu0 %v8341
      %v8343 = vpop.xlane.xlu0 %8342
      %v8344 = vsel %vm6253, %v8180, 0.0
      %8345 = vadd.xlane.f32.xlu0 %v8344
      %v8346 = vpop.xlane.xlu0 %8345
      %v8347 = vsel %vm6253, %v8181, 0.0
      %8348 = vadd.xlane.f32.xlu0 %v8347
      %v8349 = vpop.xlane.xlu0 %8348
      %v8350 = vsel %vm6253, %v8182, 0.0
      %8351 = vadd.xlane.f32.xlu0 %v8350
      %v8352 = vpop.xlane.xlu0 %8351
      %v8353 = vsel %vm6253, %v8183, 0.0
      %8354 = vadd.xlane.f32.xlu0 %v8353
      %v8355 = vpop.xlane.xlu0 %8354
      %v8356 = vsel %vm6253, %v8184, 0.0
      %8357 = vadd.xlane.f32.xlu0 %v8356
      %v8358 = vpop.xlane.xlu0 %8357
      %v8359 = vsel %vm6253, %v8185, 0.0
      %8360 = vadd.xlane.f32.xlu0 %v8359
      %v8361 = vpop.xlane.xlu0 %8360
      %v8362 = vsel %vm6253, %v8186, 0.0
      %8363 = vadd.xlane.f32.xlu0 %v8362
      %v8364 = vpop.xlane.xlu0 %8363
      %v8365 = vsel %vm6253, %v8187, 0.0
      %8366 = vadd.xlane.f32.xlu0 %v8365
      %v8367 = vpop.xlane.xlu0 %8366
      %v8368 = vsel %vm6253, %v8188, 0.0
      %8369 = vadd.xlane.f32.xlu0 %v8368
      %v8370 = vpop.xlane.xlu0 %8369
      %v8371 = vsel %vm6253, %v8189, 0.0
      %8372 = vadd.xlane.f32.xlu0 %v8371
      %v8373 = vpop.xlane.xlu0 %8372
      %v8374 = vsel %vm6253, %v8190, 0.0
      %8375 = vadd.xlane.f32.xlu0 %v8374
      %v8376 = vpop.xlane.xlu0 %8375
      %v8377 = vsel %vm6253, %v8191, 0.0
      %8378 = vadd.xlane.f32.xlu0 %v8377
      %v8379 = vpop.xlane.xlu0 %8378
      %v8380 = vsel %vm6253, %v8192, 0.0
      %8381 = vadd.xlane.f32.xlu0 %v8380
      %v8382 = vpop.xlane.xlu0 %8381
      %v8383 = vsel %vm6253, %v8193, 0.0
      %8384 = vadd.xlane.f32.xlu0 %v8383
      %v8385 = vpop.xlane.xlu0 %8384
      %v8386 = vmul.f32 %v3856, %v8196
      %v8387 = vmul.f32 %v3857, %v8199
      %v8388 = vmul.f32 %v3858, %v8202
      %v8389 = vmul.f32 %v3859, %v8205
      %v8390 = vmul.f32 %v3860, %v8208
      %v8391 = vmul.f32 %v3861, %v8211
      %v8392 = vmul.f32 %v3862, %v8214
      %v8393 = vmul.f32 %v3863, %v8217
      %v8394 = vmul.f32 %v3864, %v8220
      %v8395 = vmul.f32 %v3865, %v8223
      %v8396 = vmul.f32 %v3866, %v8226
      %v8397 = vmul.f32 %v3867, %v8229
      %v8398 = vmul.f32 %v3868, %v8232
      %v8399 = vmul.f32 %v3869, %v8235
      %v8400 = vmul.f32 %v3870, %v8238
      %v8401 = vmul.f32 %v3871, %v8241
      %v8402 = vmul.f32 %v3872, %v8244
      %v8403 = vmul.f32 %v3873, %v8247
      %v8404 = vmul.f32 %v3874, %v8250
      %v8405 = vmul.f32 %v3875, %v8253
      %v8406 = vmul.f32 %v3876, %v8256
      %v8407 = vmul.f32 %v3877, %v8259
      %v8408 = vmul.f32 %v3878, %v8262
      %v8409 = vmul.f32 %v3879, %v8265
      %v8410 = vmul.f32 %v3880, %v8268
      %v8411 = vmul.f32 %v3881, %v8271
      %v8412 = vmul.f32 %v3882, %v8274
      %v8413 = vmul.f32 %v3883, %v8277
      %v8414 = vmul.f32 %v3884, %v8280
      %v8415 = vmul.f32 %v3885, %v8283
      %v8416 = vmul.f32 %v3886, %v8286
      %v8417 = vmul.f32 %v3887, %v8289
      %v8418 = vmul.f32 %v3888, %v8292
      %v8419 = vmul.f32 %v3889, %v8295
      %v8420 = vmul.f32 %v3890, %v8298
      %v8421 = vmul.f32 %v3891, %v8301
      %v8422 = vmul.f32 %v3892, %v8304
      %v8423 = vmul.f32 %v3893, %v8307
      %v8424 = vmul.f32 %v3894, %v8310
      %v8425 = vmul.f32 %v3895, %v8313
      %v8426 = vmul.f32 %v3896, %v8316
      %v8427 = vmul.f32 %v3897, %v8319
      %v8428 = vmul.f32 %v3898, %v8322
      %v8429 = vmul.f32 %v3899, %v8325
      %v8430 = vmul.f32 %v3900, %v8328
      %v8431 = vmul.f32 %v3901, %v8331
      %v8432 = vmul.f32 %v3902, %v8334
      %v8433 = vmul.f32 %v3903, %v8337
      %v8434 = vmul.f32 %v3904, %v8340
      %v8435 = vmul.f32 %v3905, %v8343
      %v8436 = vmul.f32 %v3906, %v8346
      %v8437 = vmul.f32 %v3907, %v8349
      %v8438 = vmul.f32 %v3908, %v8352
      %v8439 = vmul.f32 %v3909, %v8355
      %v8440 = vmul.f32 %v3910, %v8358
      %v8441 = vmul.f32 %v3911, %v8361
      %v8442 = vmul.f32 %v3912, %v8364
      %v8443 = vmul.f32 %v3913, %v8367
      %v8444 = vmul.f32 %v3914, %v8370
      %v8445 = vmul.f32 %v3915, %v8373
      %v8446 = vmul.f32 %v3916, %v8376
      %v8447 = vmul.f32 %v3917, %v8379
      %v8448 = vmul.f32 %v3918, %v8382
      %v8449 = vmul.f32 %v3919, %v8385
      %v8450 = vlaneseq
      %v8451 = vshrl.u32 %v8450, 7
      %v8452 = vadd.s32 %v8451, 8
      %v8453 = vadd.s32 %v8451, 16
      %v8454 = vadd.s32 %v8451, 24
      %v8455 = vadd.s32 %v8451, 32
      %v8456 = vadd.s32 %v8451, 40
      %v8457 = vadd.s32 %v8451, 48
      %v8458 = vadd.s32 %v8451, 56
      %v8459 = vadd.s32 %v8451, 64
      %v8460 = vadd.s32 %v8451, 72
      %v8461 = vadd.s32 %v8451, 80
      %v8462 = vadd.s32 %v8451, 88
      %v8463 = vadd.s32 %v8451, 96
      %v8464 = vadd.s32 %v8451, 104
      %v8465 = vadd.s32 %v8451, 112
      %v8466 = vadd.s32 %v8451, 120
      %v8467 = vadd.s32 %v8451, 128
      %v8468 = vadd.s32 %v8451, 136
      %v8469 = vadd.s32 %v8451, 144
      %v8470 = vadd.s32 %v8451, 152
      %v8471 = vadd.s32 %v8451, 160
      %v8472 = vadd.s32 %v8451, 168
      %v8473 = vadd.s32 %v8451, 176
      %v8474 = vadd.s32 %v8451, 184
      %v8475 = vadd.s32 %v8451, 192
      %v8476 = vld [vmem:[%s645] sm:$0xf]
      %v8477 = vlaneseq
      %v8478 = vshrl.u32 %v8477, 7
      %v8479 = vsub.s32 0, %v8478
      %v8480 = vrot.slane %v8476, %v8479
      %v8481 = vlaneseq
      %v8482 = vshrl.u32 %v8481, 7
      %v8483 = vsub.s32 1, %v8482
      %v8484 = vrot.slane %v8476, %v8483
      %v8485 = vlaneseq
      %v8486 = vshrl.u32 %v8485, 7
      %v8487 = vsub.s32 2, %v8486
      %v8488 = vrot.slane %v8476, %v8487
      %v8489 = vlaneseq
      %v8490 = vshrl.u32 %v8489, 7
      %v8491 = vsub.s32 3, %v8490
      %v8492 = vrot.slane %v8476, %v8491
      %vm8493 = vcmp.eq.s32.totalorder %v8451, %v8480
      %vm8494 = vcmp.eq.s32.totalorder %v8451, %v8484
      %vm8495 = vcmp.eq.s32.totalorder %v8451, %v8488
      %vm8496 = vcmp.eq.s32.totalorder %v8451, %v8492
      %vm8497 = vcmp.eq.s32.totalorder %v8452, %v8480
      %vm8498 = vcmp.eq.s32.totalorder %v8452, %v8484
      %vm8499 = vcmp.eq.s32.totalorder %v8452, %v8488
      %vm8500 = vcmp.eq.s32.totalorder %v8452, %v8492
      %vm8501 = vcmp.eq.s32.totalorder %v8453, %v8480
      %vm8502 = vcmp.eq.s32.totalorder %v8453, %v8484
      %vm8503 = vcmp.eq.s32.totalorder %v8453, %v8488
      %vm8504 = vcmp.eq.s32.totalorder %v8453, %v8492
      %vm8505 = vcmp.eq.s32.totalorder %v8454, %v8480
      %vm8506 = vcmp.eq.s32.totalorder %v8454, %v8484
      %vm8507 = vcmp.eq.s32.totalorder %v8454, %v8488
      %vm8508 = vcmp.eq.s32.totalorder %v8454, %v8492
      %vm8509 = vcmp.eq.s32.totalorder %v8455, %v8480
      %vm8510 = vcmp.eq.s32.totalorder %v8455, %v8484
      %vm8511 = vcmp.eq.s32.totalorder %v8455, %v8488
      %vm8512 = vcmp.eq.s32.totalorder %v8455, %v8492
      %vm8513 = vcmp.eq.s32.totalorder %v8456, %v8480
      %vm8514 = vcmp.eq.s32.totalorder %v8456, %v8484
      %vm8515 = vcmp.eq.s32.totalorder %v8456, %v8488
      %vm8516 = vcmp.eq.s32.totalorder %v8456, %v8492
      %vm8517 = vcmp.eq.s32.totalorder %v8457, %v8480
      %vm8518 = vcmp.eq.s32.totalorder %v8457, %v8484
      %vm8519 = vcmp.eq.s32.totalorder %v8457, %v8488
      %vm8520 = vcmp.eq.s32.totalorder %v8457, %v8492
      %vm8521 = vcmp.eq.s32.totalorder %v8458, %v8480
      %vm8522 = vcmp.eq.s32.totalorder %v8458, %v8484
      %vm8523 = vcmp.eq.s32.totalorder %v8458, %v8488
      %vm8524 = vcmp.eq.s32.totalorder %v8458, %v8492
      %vm8525 = vcmp.eq.s32.totalorder %v8459, %v8480
      %vm8526 = vcmp.eq.s32.totalorder %v8459, %v8484
      %vm8527 = vcmp.eq.s32.totalorder %v8459, %v8488
      %vm8528 = vcmp.eq.s32.totalorder %v8459, %v8492
      %vm8529 = vcmp.eq.s32.totalorder %v8460, %v8480
      %vm8530 = vcmp.eq.s32.totalorder %v8460, %v8484
      %vm8531 = vcmp.eq.s32.totalorder %v8460, %v8488
      %vm8532 = vcmp.eq.s32.totalorder %v8460, %v8492
      %vm8533 = vcmp.eq.s32.totalorder %v8461, %v8480
      %vm8534 = vcmp.eq.s32.totalorder %v8461, %v8484
      %vm8535 = vcmp.eq.s32.totalorder %v8461, %v8488
      %vm8536 = vcmp.eq.s32.totalorder %v8461, %v8492
      %vm8537 = vcmp.eq.s32.totalorder %v8462, %v8480
      %vm8538 = vcmp.eq.s32.totalorder %v8462, %v8484
      %vm8539 = vcmp.eq.s32.totalorder %v8462, %v8488
      %vm8540 = vcmp.eq.s32.totalorder %v8462, %v8492
      %vm8541 = vcmp.eq.s32.totalorder %v8463, %v8480
      %vm8542 = vcmp.eq.s32.totalorder %v8463, %v8484
      %vm8543 = vcmp.eq.s32.totalorder %v8463, %v8488
      %vm8544 = vcmp.eq.s32.totalorder %v8463, %v8492
      %vm8545 = vcmp.eq.s32.totalorder %v8464, %v8480
      %vm8546 = vcmp.eq.s32.totalorder %v8464, %v8484
      %vm8547 = vcmp.eq.s32.totalorder %v8464, %v8488
      %vm8548 = vcmp.eq.s32.totalorder %v8464, %v8492
      %vm8549 = vcmp.eq.s32.totalorder %v8465, %v8480
      %vm8550 = vcmp.eq.s32.totalorder %v8465, %v8484
      %vm8551 = vcmp.eq.s32.totalorder %v8465, %v8488
      %vm8552 = vcmp.eq.s32.totalorder %v8465, %v8492
      %vm8553 = vcmp.eq.s32.totalorder %v8466, %v8480
      %vm8554 = vcmp.eq.s32.totalorder %v8466, %v8484
      %vm8555 = vcmp.eq.s32.totalorder %v8466, %v8488
      %vm8556 = vcmp.eq.s32.totalorder %v8466, %v8492
      %vm8557 = vcmp.eq.s32.totalorder %v8467, %v8480
      %vm8558 = vcmp.eq.s32.totalorder %v8467, %v8484
      %vm8559 = vcmp.eq.s32.totalorder %v8467, %v8488
      %vm8560 = vcmp.eq.s32.totalorder %v8467, %v8492
      %vm8561 = vcmp.eq.s32.totalorder %v8468, %v8480
      %vm8562 = vcmp.eq.s32.totalorder %v8468, %v8484
      %vm8563 = vcmp.eq.s32.totalorder %v8468, %v8488
      %vm8564 = vcmp.eq.s32.totalorder %v8468, %v8492
      %vm8565 = vcmp.eq.s32.totalorder %v8469, %v8480
      %vm8566 = vcmp.eq.s32.totalorder %v8469, %v8484
      %vm8567 = vcmp.eq.s32.totalorder %v8469, %v8488
      %vm8568 = vcmp.eq.s32.totalorder %v8469, %v8492
      %vm8569 = vcmp.eq.s32.totalorder %v8470, %v8480
      %vm8570 = vcmp.eq.s32.totalorder %v8470, %v8484
      %vm8571 = vcmp.eq.s32.totalorder %v8470, %v8488
      %vm8572 = vcmp.eq.s32.totalorder %v8470, %v8492
      %vm8573 = vcmp.eq.s32.totalorder %v8471, %v8480
      %vm8574 = vcmp.eq.s32.totalorder %v8471, %v8484
      %vm8575 = vcmp.eq.s32.totalorder %v8471, %v8488
      %vm8576 = vcmp.eq.s32.totalorder %v8471, %v8492
      %vm8577 = vcmp.eq.s32.totalorder %v8472, %v8480
      %vm8578 = vcmp.eq.s32.totalorder %v8472, %v8484
      %vm8579 = vcmp.eq.s32.totalorder %v8472, %v8488
      %vm8580 = vcmp.eq.s32.totalorder %v8472, %v8492
      %vm8581 = vcmp.eq.s32.totalorder %v8473, %v8480
      %vm8582 = vcmp.eq.s32.totalorder %v8473, %v8484
      %vm8583 = vcmp.eq.s32.totalorder %v8473, %v8488
      %vm8584 = vcmp.eq.s32.totalorder %v8473, %v8492
      %vm8585 = vcmp.eq.s32.totalorder %v8474, %v8480
      %vm8586 = vcmp.eq.s32.totalorder %v8474, %v8484
      %vm8587 = vcmp.eq.s32.totalorder %v8474, %v8488
      %vm8588 = vcmp.eq.s32.totalorder %v8474, %v8492
      %vm8589 = vcmp.eq.s32.totalorder %v8475, %v8480
      %vm8590 = vcmp.eq.s32.totalorder %v8475, %v8484
      %vm8591 = vcmp.eq.s32.totalorder %v8475, %v8488
      %vm8592 = vcmp.eq.s32.totalorder %v8475, %v8492
      %v8593 = vsel %vm8493, 1, 0
      %v8594 = vsel %vm8494, 1, 0
      %v8595 = vsel %vm8495, 1, 0
      %v8596 = vsel %vm8496, 1, 0
      %v8597 = vsel %vm8497, 1, 0
      %v8598 = vsel %vm8498, 1, 0
      %v8599 = vsel %vm8499, 1, 0
      %v8600 = vsel %vm8500, 1, 0
      %v8601 = vsel %vm8501, 1, 0
      %v8602 = vsel %vm8502, 1, 0
      %v8603 = vsel %vm8503, 1, 0
      %v8604 = vsel %vm8504, 1, 0
      %v8605 = vsel %vm8505, 1, 0
      %v8606 = vsel %vm8506, 1, 0
      %v8607 = vsel %vm8507, 1, 0
      %v8608 = vsel %vm8508, 1, 0
      %v8609 = vsel %vm8509, 1, 0
      %v8610 = vsel %vm8510, 1, 0
      %v8611 = vsel %vm8511, 1, 0
      %v8612 = vsel %vm8512, 1, 0
      %v8613 = vsel %vm8513, 1, 0
      %v8614 = vsel %vm8514, 1, 0
      %v8615 = vsel %vm8515, 1, 0
      %v8616 = vsel %vm8516, 1, 0
      %v8617 = vsel %vm8517, 1, 0
      %v8618 = vsel %vm8518, 1, 0
      %v8619 = vsel %vm8519, 1, 0
      %v8620 = vsel %vm8520, 1, 0
      %v8621 = vsel %vm8521, 1, 0
      %v8622 = vsel %vm8522, 1, 0
      %v8623 = vsel %vm8523, 1, 0
      %v8624 = vsel %vm8524, 1, 0
      %v8625 = vsel %vm8525, 1, 0
      %v8626 = vsel %vm8526, 1, 0
      %v8627 = vsel %vm8527, 1, 0
      %v8628 = vsel %vm8528, 1, 0
      %v8629 = vsel %vm8529, 1, 0
      %v8630 = vsel %vm8530, 1, 0
      %v8631 = vsel %vm8531, 1, 0
      %v8632 = vsel %vm8532, 1, 0
      %v8633 = vsel %vm8533, 1, 0
      %v8634 = vsel %vm8534, 1, 0
      %v8635 = vsel %vm8535, 1, 0
      %v8636 = vsel %vm8536, 1, 0
      %v8637 = vsel %vm8537, 1, 0
      %v8638 = vsel %vm8538, 1, 0
      %v8639 = vsel %vm8539, 1, 0
      %v8640 = vsel %vm8540, 1, 0
      %v8641 = vsel %vm8541, 1, 0
      %v8642 = vsel %vm8542, 1, 0
      %v8643 = vsel %vm8543, 1, 0
      %v8644 = vsel %vm8544, 1, 0
      %v8645 = vsel %vm8545, 1, 0
      %v8646 = vsel %vm8546, 1, 0
      %v8647 = vsel %vm8547, 1, 0
      %v8648 = vsel %vm8548, 1, 0
      %v8649 = vsel %vm8549, 1, 0
      %v8650 = vsel %vm8550, 1, 0
      %v8651 = vsel %vm8551, 1, 0
      %v8652 = vsel %vm8552, 1, 0
      %v8653 = vsel %vm8553, 1, 0
      %v8654 = vsel %vm8554, 1, 0
      %v8655 = vsel %vm8555, 1, 0
      %v8656 = vsel %vm8556, 1, 0
      %v8657 = vsel %vm8557, 1, 0
      %v8658 = vsel %vm8558, 1, 0
      %v8659 = vsel %vm8559, 1, 0
      %v8660 = vsel %vm8560, 1, 0
      %v8661 = vsel %vm8561, 1, 0
      %v8662 = vsel %vm8562, 1, 0
      %v8663 = vsel %vm8563, 1, 0
      %v8664 = vsel %vm8564, 1, 0
      %v8665 = vsel %vm8565, 1, 0
      %v8666 = vsel %vm8566, 1, 0
      %v8667 = vsel %vm8567, 1, 0
      %v8668 = vsel %vm8568, 1, 0
      %v8669 = vsel %vm8569, 1, 0
      %v8670 = vsel %vm8570, 1, 0
      %v8671 = vsel %vm8571, 1, 0
      %v8672 = vsel %vm8572, 1, 0
      %v8673 = vsel %vm8573, 1, 0
      %v8674 = vsel %vm8574, 1, 0
      %v8675 = vsel %vm8575, 1, 0
      %v8676 = vsel %vm8576, 1, 0
      %v8677 = vsel %vm8577, 1, 0
      %v8678 = vsel %vm8578, 1, 0
      %v8679 = vsel %vm8579, 1, 0
      %v8680 = vsel %vm8580, 1, 0
      %v8681 = vsel %vm8581, 1, 0
      %v8682 = vsel %vm8582, 1, 0
      %v8683 = vsel %vm8583, 1, 0
      %v8684 = vsel %vm8584, 1, 0
      %v8685 = vsel %vm8585, 1, 0
      %v8686 = vsel %vm8586, 1, 0
      %v8687 = vsel %vm8587, 1, 0
      %v8688 = vsel %vm8588, 1, 0
      %v8689 = vsel %vm8589, 1, 0
      %v8690 = vsel %vm8590, 1, 0
      %v8691 = vsel %vm8591, 1, 0
      %v8692 = vsel %vm8592, 1, 0
      %v8693 = vcvt.s32.f32 %v8593
      %v8694 = vcvt.s32.f32 %v8594
      %v8695 = vcvt.s32.f32 %v8595
      %v8696 = vcvt.s32.f32 %v8596
      %v8697 = vcvt.s32.f32 %v8597
      %v8698 = vcvt.s32.f32 %v8598
      %v8699 = vcvt.s32.f32 %v8599
      %v8700 = vcvt.s32.f32 %v8600
      %v8701 = vcvt.s32.f32 %v8601
      %v8702 = vcvt.s32.f32 %v8602
      %v8703 = vcvt.s32.f32 %v8603
      %v8704 = vcvt.s32.f32 %v8604
      %v8705 = vcvt.s32.f32 %v8605
      %v8706 = vcvt.s32.f32 %v8606
      %v8707 = vcvt.s32.f32 %v8607
      %v8708 = vcvt.s32.f32 %v8608
      %v8709 = vcvt.s32.f32 %v8609
      %v8710 = vcvt.s32.f32 %v8610
      %v8711 = vcvt.s32.f32 %v8611
      %v8712 = vcvt.s32.f32 %v8612
      %v8713 = vcvt.s32.f32 %v8613
      %v8714 = vcvt.s32.f32 %v8614
      %v8715 = vcvt.s32.f32 %v8615
      %v8716 = vcvt.s32.f32 %v8616
      %v8717 = vcvt.s32.f32 %v8617
      %v8718 = vcvt.s32.f32 %v8618
      %v8719 = vcvt.s32.f32 %v8619
      %v8720 = vcvt.s32.f32 %v8620
      %v8721 = vcvt.s32.f32 %v8621
      %v8722 = vcvt.s32.f32 %v8622
      %v8723 = vcvt.s32.f32 %v8623
      %v8724 = vcvt.s32.f32 %v8624
      %v8725 = vcvt.s32.f32 %v8625
      %v8726 = vcvt.s32.f32 %v8626
      %v8727 = vcvt.s32.f32 %v8627
      %v8728 = vcvt.s32.f32 %v8628
      %v8729 = vcvt.s32.f32 %v8629
      %v8730 = vcvt.s32.f32 %v8630
      %v8731 = vcvt.s32.f32 %v8631
      %v8732 = vcvt.s32.f32 %v8632
      %v8733 = vcvt.s32.f32 %v8633
      %v8734 = vcvt.s32.f32 %v8634
      %v8735 = vcvt.s32.f32 %v8635
      %v8736 = vcvt.s32.f32 %v8636
      %v8737 = vcvt.s32.f32 %v8637
      %v8738 = vcvt.s32.f32 %v8638
      %v8739 = vcvt.s32.f32 %v8639
      %v8740 = vcvt.s32.f32 %v8640
      %v8741 = vcvt.s32.f32 %v8641
      %v8742 = vcvt.s32.f32 %v8642
      %v8743 = vcvt.s32.f32 %v8643
      %v8744 = vcvt.s32.f32 %v8644
      %v8745 = vcvt.s32.f32 %v8645
      %v8746 = vcvt.s32.f32 %v8646
      %v8747 = vcvt.s32.f32 %v8647
      %v8748 = vcvt.s32.f32 %v8648
      %v8749 = vcvt.s32.f32 %v8649
      %v8750 = vcvt.s32.f32 %v8650
      %v8751 = vcvt.s32.f32 %v8651
      %v8752 = vcvt.s32.f32 %v8652
      %v8753 = vcvt.s32.f32 %v8653
      %v8754 = vcvt.s32.f32 %v8654
      %v8755 = vcvt.s32.f32 %v8655
      %v8756 = vcvt.s32.f32 %v8656
      %v8757 = vcvt.s32.f32 %v8657
      %v8758 = vcvt.s32.f32 %v8658
      %v8759 = vcvt.s32.f32 %v8659
      %v8760 = vcvt.s32.f32 %v8660
      %v8761 = vcvt.s32.f32 %v8661
      %v8762 = vcvt.s32.f32 %v8662
      %v8763 = vcvt.s32.f32 %v8663
      %v8764 = vcvt.s32.f32 %v8664
      %v8765 = vcvt.s32.f32 %v8665
      %v8766 = vcvt.s32.f32 %v8666
      %v8767 = vcvt.s32.f32 %v8667
      %v8768 = vcvt.s32.f32 %v8668
      %v8769 = vcvt.s32.f32 %v8669
      %v8770 = vcvt.s32.f32 %v8670
      %v8771 = vcvt.s32.f32 %v8671
      %v8772 = vcvt.s32.f32 %v8672
      %v8773 = vcvt.s32.f32 %v8673
      %v8774 = vcvt.s32.f32 %v8674
      %v8775 = vcvt.s32.f32 %v8675
      %v8776 = vcvt.s32.f32 %v8676
      %v8777 = vcvt.s32.f32 %v8677
      %v8778 = vcvt.s32.f32 %v8678
      %v8779 = vcvt.s32.f32 %v8679
      %v8780 = vcvt.s32.f32 %v8680
      %v8781 = vcvt.s32.f32 %v8681
      %v8782 = vcvt.s32.f32 %v8682
      %v8783 = vcvt.s32.f32 %v8683
      %v8784 = vcvt.s32.f32 %v8684
      %v8785 = vcvt.s32.f32 %v8685
      %v8786 = vcvt.s32.f32 %v8686
      %v8787 = vcvt.s32.f32 %v8687
      %v8788 = vcvt.s32.f32 %v8688
      %v8789 = vcvt.s32.f32 %v8689
      %v8790 = vcvt.s32.f32 %v8690
      %v8791 = vcvt.s32.f32 %v8691
      %v8792 = vcvt.s32.f32 %v8692
      %v8793 = vld [vmem:[#allocation2] sm:$0xff]
      %v8794 = vld [vmem:[#allocation2 + $0x8] sm:$0xff]
      %v8795 = vld [vmem:[#allocation2 + $0x10] sm:$0xff]
      %v8796 = vld [vmem:[#allocation2 + $0x18] sm:$0xff]
      %v8797 = vld [vmem:[#allocation2 + $0x20] sm:$0xff]
      %v8798 = vld [vmem:[#allocation2 + $0x28] sm:$0xff]
      %v8799 = vld [vmem:[#allocation2 + $0x30] sm:$0xff]
      %v8800 = vld [vmem:[#allocation2 + $0x38] sm:$0xff]
      %v8801 = vld [vmem:[#allocation2 + $0x40] sm:$0xff]
      %v8802 = vld [vmem:[#allocation2 + $0x48] sm:$0xff]
      %v8803 = vld [vmem:[#allocation2 + $0x50] sm:$0xff]
      %v8804 = vld [vmem:[#allocation2 + $0x58] sm:$0xff]
      %v8805 = vld [vmem:[#allocation2 + $0x60] sm:$0xff]
      %v8806 = vld [vmem:[#allocation2 + $0x68] sm:$0xff]
      %v8807 = vld [vmem:[#allocation2 + $0x70] sm:$0xff]
      %v8808 = vld [vmem:[#allocation2 + $0x78] sm:$0xff]
      %v8809 = vld [vmem:[#allocation2 + $0x80] sm:$0xff]
      %v8810 = vld [vmem:[#allocation2 + $0x88] sm:$0xff]
      %v8811 = vld [vmem:[#allocation2 + $0x90] sm:$0xff]
      %v8812 = vld [vmem:[#allocation2 + $0x98] sm:$0xff]
      %v8813 = vld [vmem:[#allocation2 + $0xa0] sm:$0xff]
      %v8814 = vld [vmem:[#allocation2 + $0xa8] sm:$0xff]
      %v8815 = vld [vmem:[#allocation2 + $0xb0] sm:$0xff]
      %v8816 = vld [vmem:[#allocation2 + $0xb8] sm:$0xff]
      %v8817 = vld [vmem:[#allocation2 + $0xc0] sm:$0xff]
      %8818 = vmatprep.subr.mxu0 0.0
      %8819 = vmatpush1.msra.mxu0 %v6960
      %8820 = vmatprep.subr.mxu0 0.0
      %8821 = vmatpush1.msra.mxu0 %v6962
      %8822 = vmatprep.subr.mxu0 0.0
      %8823 = vmatpush1.msra.mxu0 %v6964
      %8824 = vmatprep.subr.mxu0 0.0
      %8825 = vmatpush1.msra.mxu0 %v6966
      %8826 = vmatprep.subr.mxu0 0.0
      %8827 = vmatpush1.msra.mxu0 %v6968
      %8828 = vmatprep.subr.mxu0 0.0
      %8829 = vmatpush1.msra.mxu0 %v6970
      %8830 = vmatprep.subr.mxu0 0.0
      %8831 = vmatpush1.msra.mxu0 %v6972
      %8832 = vmatprep.subr.mxu0 0.0
      %8833 = vmatpush1.msra.mxu0 %v6974
      %8834 = vmatprep.subr.mxu0 0.0
      %8835 = vmatpush1.msra.mxu0 %v6976
      %8836 = vmatprep.subr.mxu0 0.0
      %8837 = vmatpush1.msra.mxu0 %v6978
      %8838 = vmatprep.subr.mxu0 0.0
      %8839 = vmatpush1.msra.mxu0 %v6980
      %8840 = vmatprep.subr.mxu0 0.0
      %8841 = vmatpush1.msra.mxu0 %v6982
      %8842 = vmatprep.subr.mxu0 0.0
      %8843 = vmatpush1.msra.mxu0 %v6984
      %8844 = vmatprep.subr.mxu0 0.0
      %8845 = vmatpush1.msra.mxu0 %v6986
      %8846 = vmatprep.subr.mxu0 0.0
      %8847 = vmatpush1.msra.mxu0 %v6988
      %8848 = vmatprep.subr.mxu0 0.0
      %8849 = vmatpush1.msra.mxu0 %v6990
      %8850 = vmatprep.subr.mxu0 0.0
      %8851 = vmatpush1.msra.mxu0 %v6992
      %8852 = vmatprep.subr.mxu0 0.0
      %8853 = vmatpush1.msra.mxu0 %v6994
      %8854 = vmatprep.subr.mxu0 0.0
      %8855 = vmatpush1.msra.mxu0 %v6996
      %8856 = vmatprep.subr.mxu0 0.0
      %8857 = vmatpush1.msra.mxu0 %v6998
      %8858 = vmatprep.subr.mxu0 0.0
      %8859 = vmatpush1.msra.mxu0 %v7000
      %8860 = vmatprep.subr.mxu0 0.0
      %8861 = vmatpush1.msra.mxu0 %v7002
      %8862 = vmatprep.subr.mxu0 0.0
      %8863 = vmatpush1.msra.mxu0 %v7004
      %8864 = vmatprep.subr.mxu0 0.0
      %8865 = vmatpush1.msra.mxu0 %v7006
      %8866 = vmatprep.subr.mxu0 0.0
      %8867 = vmatpush1.msra.mxu0 %v7008
      %8868 = vmatprep.subr.mxu0 0.0
      %8869 = vmatpush1.msra.mxu0 %v7010
      %8870 = vmatprep.subr.mxu0 0.0
      %8871 = vmatpush1.msra.mxu0 %v7012
      %8872 = vmatprep.subr.mxu0 0.0
      %8873 = vmatpush1.msra.mxu0 %v7014
      %8874 = vmatprep.subr.mxu0 0.0
      %8875 = vmatpush1.msra.mxu0 %v7016
      %8876 = vmatprep.subr.mxu0 0.0
      %8877 = vmatpush1.msra.mxu0 %v7018
      %8878 = vmatprep.subr.mxu0 0.0
      %8879 = vmatpush1.msra.mxu0 %v7020
      %8880 = vmatprep.subr.mxu0 0.0
      %8881 = vmatpush1.msra.mxu0 %v7022
      %8882 = vmatprep.mubr.f32.mxu0 %v8694
      %8883 = vmatmul.mubr.f32.gmra.mrb[0].mxu0 %v8693
      %v8884 = vpop.f32.mrb[0].mxu0
      %v8885 = vadd.f32 0.0, %v8884
      %v8886 = vpop.f32.mrb[0].mxu0
      %8887 = vmatprep.mubr.f32.mxu0 %v8698
      %8888 = vmatmul.mubr.f32.gmra.mrb[0].mxu0 %v8697
      %v8889 = vpop.f32.mrb[0].mxu0
      %v8890 = vadd.f32 0.0, %v8889
      %v8891 = vpop.f32.mrb[0].mxu0
      %8892 = vmatprep.mubr.f32.mxu0 %v8702
      %8893 = vmatmul.mubr.f32.gmra.mrb[0].mxu0 %v8701
      %v8894 = vpop.f32.mrb[0].mxu0
      %v8895 = vadd.f32 0.0, %v8894
      %v8896 = vpop.f32.mrb[0].mxu0
      %8897 = vmatprep.mubr.f32.mxu0 %v8706
      %8898 = vmatmul.mubr.f32.gmra.mrb[0].mxu0 %v8705
      %v8899 = vpop.f32.mrb[0].mxu0
      %v8900 = vadd.f32 0.0, %v8899
      %v8901 = vpop.f32.mrb[0].mxu0
      %8902 = vmatprep.mubr.f32.mxu0 %v8710
      %8903 = vmatmul.mubr.f32.gmra.mrb[0].mxu0 %v8709
      %v8904 = vpop.f32.mrb[0].mxu0
      %v8905 = vadd.f32 0.0, %v8904
      %v8906 = vpop.f32.mrb[0].mxu0
      %8907 = vmatprep.mubr.f32.mxu0 %v8714
      %8908 = vmatmul.mubr.f32.gmra.mrb[0].mxu0 %v8713
      %v8909 = vpop.f32.mrb[0].mxu0
      %v8910 = vadd.f32 0.0, %v8909
      %v8911 = vpop.f32.mrb[0].mxu0
      %8912 = vmatprep.mubr.f32.mxu0 %v8718
      %8913 = vmatmul.mubr.f32.gmra.mrb[0].mxu0 %v8717
      %v8914 = vpop.f32.mrb[0].mxu0
      %v8915 = vadd.f32 0.0, %v8914
      %v8916 = vpop.f32.mrb[0].mxu0
      %8917 = vmatprep.mubr.f32.mxu0 %v8722
      %8918 = vmatmul.mubr.f32.gmra.mrb[0].mxu0 %v8721
      %v8919 = vpop.f32.mrb[0].mxu0
      %v8920 = vadd.f32 0.0, %v8919
      %v8921 = vpop.f32.mrb[0].mxu0
      %8922 = vmatprep.mubr.f32.mxu0 %v8726
      %8923 = vmatmul.mubr.f32.gmra.mrb[0].mxu0 %v8725
      %v8924 = vpop.f32.mrb[0].mxu0
      %v8925 = vadd.f32 0.0, %v8924
      %v8926 = vpop.f32.mrb[0].mxu0
      %8927 = vmatprep.mubr.f32.mxu0 %v8730
      %8928 = vmatmul.mubr.f32.gmra.mrb[0].mxu0 %v8729
      %v8929 = vpop.f32.mrb[0].mxu0
      %v8930 = vadd.f32 0.0, %v8929
      %v8931 = vpop.f32.mrb[0].mxu0
      %8932 = vmatprep.mubr.f32.mxu0 %v8734
      %8933 = vmatmul.mubr.f32.gmra.mrb[0].mxu0 %v8733
      %v8934 = vpop.f32.mrb[0].mxu0
      %v8935 = vadd.f32 0.0, %v8934
      %v8936 = vpop.f32.mrb[0].mxu0
      %8937 = vmatprep.mubr.f32.mxu0 %v8738
      %8938 = vmatmul.mubr.f32.gmra.mrb[0].mxu0 %v8737
      %v8939 = vpop.f32.mrb[0].mxu0
      %v8940 = vadd.f32 0.0, %v8939
      %v8941 = vpop.f32.mrb[0].mxu0
      %8942 = vmatprep.mubr.f32.mxu0 %v8742
      %8943 = vmatmul.mubr.f32.gmra.mrb[0].mxu0 %v8741
      %v8944 = vpop.f32.mrb[0].mxu0
      %v8945 = vadd.f32 0.0, %v8944
      %v8946 = vpop.f32.mrb[0].mxu0
      %8947 = vmatprep.mubr.f32.mxu0 %v8746
      %8948 = vmatmul.mubr.f32.gmra.mrb[0].mxu0 %v8745
      %v8949 = vpop.f32.mrb[0].mxu0
      %v8950 = vadd.f32 0.0, %v8949
      %v8951 = vpop.f32.mrb[0].mxu0
      %8952 = vmatprep.mubr.f32.mxu0 %v8750
      %8953 = vmatmul.mubr.f32.gmra.mrb[0].mxu0 %v8749
      %v8954 = vpop.f32.mrb[0].mxu0
      %v8955 = vadd.f32 0.0, %v8954
      %v8956 = vpop.f32.mrb[0].mxu0
      %8957 = vmatprep.mubr.f32.mxu0 %v8754
      %8958 = vmatmul.mubr.f32.gmra.mrb[0].mxu0 %v8753
      %v8959 = vpop.f32.mrb[0].mxu0
      %v8960 = vadd.f32 0.0, %v8959
      %v8961 = vpop.f32.mrb[0].mxu0
      %8962 = vmatprep.mubr.f32.mxu0 %v8758
      %8963 = vmatmul.mubr.f32.gmra.mrb[0].mxu0 %v8757
      %v8964 = vpop.f32.mrb[0].mxu0
      %v8965 = vadd.f32 0.0, %v8964
      %v8966 = vpop.f32.mrb[0].mxu0
      %8967 = vmatprep.mubr.f32.mxu0 %v8762
      %8968 = vmatmul.mubr.f32.gmra.mrb[0].mxu0 %v8761
      %v8969 = vpop.f32.mrb[0].mxu0
      %v8970 = vadd.f32 0.0, %v8969
      %v8971 = vpop.f32.mrb[0].mxu0
      %8972 = vmatprep.mubr.f32.mxu0 %v8766
      %8973 = vmatmul.mubr.f32.gmra.mrb[0].mxu0 %v8765
      %v8974 = vpop.f32.mrb[0].mxu0
      %v8975 = vadd.f32 0.0, %v8974
      %v8976 = vpop.f32.mrb[0].mxu0
      %8977 = vmatprep.mubr.f32.mxu0 %v8770
      %8978 = vmatmul.mubr.f32.gmra.mrb[0].mxu0 %v8769
      %v8979 = vpop.f32.mrb[0].mxu0
      %v8980 = vadd.f32 0.0, %v8979
      %v8981 = vpop.f32.mrb[0].mxu0
      %8982 = vmatprep.mubr.f32.mxu0 %v8774
      %8983 = vmatmul.mubr.f32.gmra.mrb[0].mxu0 %v8773
      %v8984 = vpop.f32.mrb[0].mxu0
      %v8985 = vadd.f32 0.0, %v8984
      %v8986 = vpop.f32.mrb[0].mxu0
      %8987 = vmatprep.mubr.f32.mxu0 %v8778
      %8988 = vmatmul.mubr.f32.gmra.mrb[0].mxu0 %v8777
      %v8989 = vpop.f32.mrb[0].mxu0
      %v8990 = vadd.f32 0.0, %v8989
      %v8991 = vpop.f32.mrb[0].mxu0
      %8992 = vmatprep.mubr.f32.mxu0 %v8782
      %8993 = vmatmul.mubr.f32.gmra.mrb[0].mxu0 %v8781
      %v8994 = vpop.f32.mrb[0].mxu0
      %v8995 = vadd.f32 0.0, %v8994
      %v8996 = vpop.f32.mrb[0].mxu0
      %8997 = vmatprep.mubr.f32.mxu0 %v8786
      %8998 = vmatmul.mubr.f32.gmra.mrb[0].mxu0 %v8785
      %v8999 = vpop.f32.mrb[0].mxu0
      %v9000 = vadd.f32 0.0, %v8999
      %v9001 = vpop.f32.mrb[0].mxu0
      %9002 = vmatprep.mubr.f32.mxu0 %v8790
      %9003 = vmatmul.mubr.f32.gmra.mrb[0].mxu0 %v8789
      %v9004 = vpop.f32.mrb[0].mxu0
      %v9005 = vadd.f32 0.0, %v9004
      %v9006 = vpop.f32.mrb[0].mxu0
      %9007 = vdwg.mxu0
      %9008 = vmatprep.subr.mxu0 0.0
      %9009 = vmatpush1.msra.mxu0 %v7024
      %9010 = vmatprep.subr.mxu0 0.0
      %9011 = vmatpush1.msra.mxu0 %v7026
      %9012 = vmatprep.subr.mxu0 0.0
      %9013 = vmatpush1.msra.mxu0 %v7028
      %9014 = vmatprep.subr.mxu0 0.0
      %9015 = vmatpush1.msra.mxu0 %v7030
      %9016 = vmatprep.subr.mxu0 0.0
      %9017 = vmatpush1.msra.mxu0 %v7032
      %9018 = vmatprep.subr.mxu0 0.0
      %9019 = vmatpush1.msra.mxu0 %v7034
      %9020 = vmatprep.subr.mxu0 0.0
      %9021 = vmatpush1.msra.mxu0 %v7036
      %9022 = vmatprep.subr.mxu0 0.0
      %9023 = vmatpush1.msra.mxu0 %v7038
      %9024 = vmatprep.subr.mxu0 0.0
      %9025 = vmatpush1.msra.mxu0 %v7040
      %9026 = vmatprep.subr.mxu0 0.0
      %9027 = vmatpush1.msra.mxu0 %v7042
      %9028 = vmatprep.subr.mxu0 0.0
      %9029 = vmatpush1.msra.mxu0 %v7044
      %9030 = vmatprep.subr.mxu0 0.0
      %9031 = vmatpush1.msra.mxu0 %v7046
      %9032 = vmatprep.subr.mxu0 0.0
      %9033 = vmatpush1.msra.mxu0 %v7048
      %9034 = vmatprep.subr.mxu0 0.0
      %9035 = vmatpush1.msra.mxu0 %v7050
      %9036 = vmatprep.subr.mxu0 0.0
      %9037 = vmatpush1.msra.mxu0 %v7052
      %9038 = vmatprep.subr.mxu0 0.0
      %9039 = vmatpush1.msra.mxu0 %v7054
      %9040 = vmatprep.subr.mxu0 0.0
      %9041 = vmatpush1.msra.mxu0 %v7056
      %9042 = vmatprep.subr.mxu0 0.0
      %9043 = vmatpush1.msra.mxu0 %v7058
      %9044 = vmatprep.subr.mxu0 0.0
      %9045 = vmatpush1.msra.mxu0 %v7060
      %9046 = vmatprep.subr.mxu0 0.0
      %9047 = vmatpush1.msra.mxu0 %v7062
      %9048 = vmatprep.subr.mxu0 0.0
      %9049 = vmatpush1.msra.mxu0 %v7064
      %9050 = vmatprep.subr.mxu0 0.0
      %9051 = vmatpush1.msra.mxu0 %v7066
      %9052 = vmatprep.subr.mxu0 0.0
      %9053 = vmatpush1.msra.mxu0 %v7068
      %9054 = vmatprep.subr.mxu0 0.0
      %9055 = vmatpush1.msra.mxu0 %v7070
      %9056 = vmatprep.subr.mxu0 0.0
      %9057 = vmatpush1.msra.mxu0 %v7072
      %9058 = vmatprep.subr.mxu0 0.0
      %9059 = vmatpush1.msra.mxu0 %v7074
      %9060 = vmatprep.subr.mxu0 0.0
      %9061 = vmatpush1.msra.mxu0 %v7076
      %9062 = vmatprep.subr.mxu0 0.0
      %9063 = vmatpush1.msra.mxu0 %v7078
      %9064 = vmatprep.subr.mxu0 0.0
      %9065 = vmatpush1.msra.mxu0 %v7080
      %9066 = vmatprep.subr.mxu0 0.0
      %9067 = vmatpush1.msra.mxu0 %v7082
      %9068 = vmatprep.subr.mxu0 0.0
      %9069 = vmatpush1.msra.mxu0 %v7084
      %9070 = vmatprep.subr.mxu0 0.0
      %9071 = vmatpush1.msra.mxu0 %v7086
      %9072 = vmatprep.mubr.f32.mxu0 %v8696
      %9073 = vmatmul.mubr.f32.gmra.mrb[0].mxu0 %v8695
      %v9074 = vpop.f32.mrb[0].mxu0
      %v9075 = vadd.f32 %v8885, %v9074
      %v9076 = vpop.f32.mrb[0].mxu0
      %9077 = vmatprep.mubr.f32.mxu0 %v8700
      %9078 = vmatmul.mubr.f32.gmra.mrb[0].mxu0 %v8699
      %v9079 = vpop.f32.mrb[0].mxu0
      %v9080 = vadd.f32 %v8890, %v9079
      %v9081 = vpop.f32.mrb[0].mxu0
      %9082 = vmatprep.mubr.f32.mxu0 %v8704
      %9083 = vmatmul.mubr.f32.gmra.mrb[0].mxu0 %v8703
      %v9084 = vpop.f32.mrb[0].mxu0
      %v9085 = vadd.f32 %v8895, %v9084
      %v9086 = vpop.f32.mrb[0].mxu0
      %9087 = vmatprep.mubr.f32.mxu0 %v8708
      %9088 = vmatmul.mubr.f32.gmra.mrb[0].mxu0 %v8707
      %v9089 = vpop.f32.mrb[0].mxu0
      %v9090 = vadd.f32 %v8900, %v9089
      %v9091 = vpop.f32.mrb[0].mxu0
      %9092 = vmatprep.mubr.f32.mxu0 %v8712
      %9093 = vmatmul.mubr.f32.gmra.mrb[0].mxu0 %v8711
      %v9094 = vpop.f32.mrb[0].mxu0
      %v9095 = vadd.f32 %v8905, %v9094
      %v9096 = vpop.f32.mrb[0].mxu0
      %9097 = vmatprep.mubr.f32.mxu0 %v8716
      %9098 = vmatmul.mubr.f32.gmra.mrb[0].mxu0 %v8715
      %v9099 = vpop.f32.mrb[0].mxu0
      %v9100 = vadd.f32 %v8910, %v9099
      %v9101 = vpop.f32.mrb[0].mxu0
      %9102 = vmatprep.mubr.f32.mxu0 %v8720
      %9103 = vmatmul.mubr.f32.gmra.mrb[0].mxu0 %v8719
      %v9104 = vpop.f32.mrb[0].mxu0
      %v9105 = vadd.f32 %v8915, %v9104
      %v9106 = vpop.f32.mrb[0].mxu0
      %9107 = vmatprep.mubr.f32.mxu0 %v8724
      %9108 = vmatmul.mubr.f32.gmra.mrb[0].mxu0 %v8723
      %v9109 = vpop.f32.mrb[0].mxu0
      %v9110 = vadd.f32 %v8920, %v9109
      %v9111 = vpop.f32.mrb[0].mxu0
      %9112 = vmatprep.mubr.f32.mxu0 %v8728
      %9113 = vmatmul.mubr.f32.gmra.mrb[0].mxu0 %v8727
      %v9114 = vpop.f32.mrb[0].mxu0
      %v9115 = vadd.f32 %v8925, %v9114
      %v9116 = vpop.f32.mrb[0].mxu0
      %9117 = vmatprep.mubr.f32.mxu0 %v8732
      %9118 = vmatmul.mubr.f32.gmra.mrb[0].mxu0 %v8731
      %v9119 = vpop.f32.mrb[0].mxu0
      %v9120 = vadd.f32 %v8930, %v9119
      %v9121 = vpop.f32.mrb[0].mxu0
      %9122 = vmatprep.mubr.f32.mxu0 %v8736
      %9123 = vmatmul.mubr.f32.gmra.mrb[0].mxu0 %v8735
      %v9124 = vpop.f32.mrb[0].mxu0
      %v9125 = vadd.f32 %v8935, %v9124
      %v9126 = vpop.f32.mrb[0].mxu0
      %9127 = vmatprep.mubr.f32.mxu0 %v8740
      %9128 = vmatmul.mubr.f32.gmra.mrb[0].mxu0 %v8739
      %v9129 = vpop.f32.mrb[0].mxu0
      %v9130 = vadd.f32 %v8940, %v9129
      %v9131 = vpop.f32.mrb[0].mxu0
      %9132 = vmatprep.mubr.f32.mxu0 %v8744
      %9133 = vmatmul.mubr.f32.gmra.mrb[0].mxu0 %v8743
      %v9134 = vpop.f32.mrb[0].mxu0
      %v9135 = vadd.f32 %v8945, %v9134
      %v9136 = vpop.f32.mrb[0].mxu0
      %9137 = vmatprep.mubr.f32.mxu0 %v8748
      %9138 = vmatmul.mubr.f32.gmra.mrb[0].mxu0 %v8747
      %v9139 = vpop.f32.mrb[0].mxu0
      %v9140 = vadd.f32 %v8950, %v9139
      %v9141 = vpop.f32.mrb[0].mxu0
      %9142 = vmatprep.mubr.f32.mxu0 %v8752
      %9143 = vmatmul.mubr.f32.gmra.mrb[0].mxu0 %v8751
      %v9144 = vpop.f32.mrb[0].mxu0
      %v9145 = vadd.f32 %v8955, %v9144
      %v9146 = vpop.f32.mrb[0].mxu0
      %9147 = vmatprep.mubr.f32.mxu0 %v8756
      %9148 = vmatmul.mubr.f32.gmra.mrb[0].mxu0 %v8755
      %v9149 = vpop.f32.mrb[0].mxu0
      %v9150 = vadd.f32 %v8960, %v9149
      %v9151 = vpop.f32.mrb[0].mxu0
      %9152 = vmatprep.mubr.f32.mxu0 %v8760
      %9153 = vmatmul.mubr.f32.gmra.mrb[0].mxu0 %v8759
      %v9154 = vpop.f32.mrb[0].mxu0
      %v9155 = vadd.f32 %v8965, %v9154
      %v9156 = vpop.f32.mrb[0].mxu0
      %9157 = vmatprep.mubr.f32.mxu0 %v8764
      %9158 = vmatmul.mubr.f32.gmra.mrb[0].mxu0 %v8763
      %v9159 = vpop.f32.mrb[0].mxu0
      %v9160 = vadd.f32 %v8970, %v9159
      %v9161 = vpop.f32.mrb[0].mxu0
      %9162 = vmatprep.mubr.f32.mxu0 %v8768
      %9163 = vmatmul.mubr.f32.gmra.mrb[0].mxu0 %v8767
      %v9164 = vpop.f32.mrb[0].mxu0
      %v9165 = vadd.f32 %v8975, %v9164
      %v9166 = vpop.f32.mrb[0].mxu0
      %9167 = vmatprep.mubr.f32.mxu0 %v8772
      %9168 = vmatmul.mubr.f32.gmra.mrb[0].mxu0 %v8771
      %v9169 = vpop.f32.mrb[0].mxu0
      %v9170 = vadd.f32 %v8980, %v9169
      %v9171 = vpop.f32.mrb[0].mxu0
      %9172 = vmatprep.mubr.f32.mxu0 %v8776
      %9173 = vmatmul.mubr.f32.gmra.mrb[0].mxu0 %v8775
      %v9174 = vpop.f32.mrb[0].mxu0
      %v9175 = vadd.f32 %v8985, %v9174
      %v9176 = vpop.f32.mrb[0].mxu0
      %9177 = vmatprep.mubr.f32.mxu0 %v8780
      %9178 = vmatmul.mubr.f32.gmra.mrb[0].mxu0 %v8779
      %v9179 = vpop.f32.mrb[0].mxu0
      %v9180 = vadd.f32 %v8990, %v9179
      %v9181 = vpop.f32.mrb[0].mxu0
      %9182 = vmatprep.mubr.f32.mxu0 %v8784
      %9183 = vmatmul.mubr.f32.gmra.mrb[0].mxu0 %v8783
      %v9184 = vpop.f32.mrb[0].mxu0
      %v9185 = vadd.f32 %v8995, %v9184
      %v9186 = vpop.f32.mrb[0].mxu0
      %9187 = vmatprep.mubr.f32.mxu0 %v8788
      %9188 = vmatmul.mubr.f32.gmra.mrb[0].mxu0 %v8787
      %v9189 = vpop.f32.mrb[0].mxu0
      %v9190 = vadd.f32 %v9000, %v9189
      %v9191 = vpop.f32.mrb[0].mxu0
      %9192 = vmatprep.mubr.f32.mxu0 %v8792
      %9193 = vmatmul.mubr.f32.gmra.mrb[0].mxu0 %v8791
      %v9194 = vpop.f32.mrb[0].mxu0
      %v9195 = vadd.f32 %v9005, %v9194
      %v9196 = vpop.f32.mrb[0].mxu0
      %9197 = vdwg.mxu0
      %v9198 = vadd.f32 %v8793, %v9075
      %v9199 = vadd.f32 %v8794, %v9080
      %v9200 = vadd.f32 %v8795, %v9085
      %v9201 = vadd.f32 %v8796, %v9090
      %v9202 = vadd.f32 %v8797, %v9095
      %v9203 = vadd.f32 %v8798, %v9100
      %v9204 = vadd.f32 %v8799, %v9105
      %v9205 = vadd.f32 %v8800, %v9110
      %v9206 = vadd.f32 %v8801, %v9115
      %v9207 = vadd.f32 %v8802, %v9120
      %v9208 = vadd.f32 %v8803, %v9125
      %v9209 = vadd.f32 %v8804, %v9130
      %v9210 = vadd.f32 %v8805, %v9135
      %v9211 = vadd.f32 %v8806, %v9140
      %v9212 = vadd.f32 %v8807, %v9145
      %v9213 = vadd.f32 %v8808, %v9150
      %v9214 = vadd.f32 %v8809, %v9155
      %v9215 = vadd.f32 %v8810, %v9160
      %v9216 = vadd.f32 %v8811, %v9165
      %v9217 = vadd.f32 %v8812, %v9170
      %v9218 = vadd.f32 %v8813, %v9175
      %v9219 = vadd.f32 %v8814, %v9180
      %v9220 = vadd.f32 %v8815, %v9185
      %v9221 = vadd.f32 %v8816, %v9190
      %v9222 = vadd.f32 %v8817, %v9195
      %9223 = vst.msk [vmem:[#allocation2] sm:$0xff] %vm6253, %v9198
      %9224 = vst.msk [vmem:[#allocation2 + $0x8] sm:$0xff] %vm6253, %v9199
      %9225 = vst.msk [vmem:[#allocation2 + $0x10] sm:$0xff] %vm6253, %v9200
      %9226 = vst.msk [vmem:[#allocation2 + $0x18] sm:$0xff] %vm6253, %v9201
      %9227 = vst.msk [vmem:[#allocation2 + $0x20] sm:$0xff] %vm6253, %v9202
      %9228 = vst.msk [vmem:[#allocation2 + $0x28] sm:$0xff] %vm6253, %v9203
      %9229 = vst.msk [vmem:[#allocation2 + $0x30] sm:$0xff] %vm6253, %v9204
      %9230 = vst.msk [vmem:[#allocation2 + $0x38] sm:$0xff] %vm6253, %v9205
      %9231 = vst.msk [vmem:[#allocation2 + $0x40] sm:$0xff] %vm6253, %v9206
      %9232 = vst.msk [vmem:[#allocation2 + $0x48] sm:$0xff] %vm6253, %v9207
      %9233 = vst.msk [vmem:[#allocation2 + $0x50] sm:$0xff] %vm6253, %v9208
      %9234 = vst.msk [vmem:[#allocation2 + $0x58] sm:$0xff] %vm6253, %v9209
      %9235 = vst.msk [vmem:[#allocation2 + $0x60] sm:$0xff] %vm6253, %v9210
      %9236 = vst.msk [vmem:[#allocation2 + $0x68] sm:$0xff] %vm6253, %v9211
      %9237 = vst.msk [vmem:[#allocation2 + $0x70] sm:$0xff] %vm6253, %v9212
      %9238 = vst.msk [vmem:[#allocation2 + $0x78] sm:$0xff] %vm6253, %v9213
      %9239 = vst.msk [vmem:[#allocation2 + $0x80] sm:$0xff] %vm6253, %v9214
      %9240 = vst.msk [vmem:[#allocation2 + $0x88] sm:$0xff] %vm6253, %v9215
      %9241 = vst.msk [vmem:[#allocation2 + $0x90] sm:$0xff] %vm6253, %v9216
      %9242 = vst.msk [vmem:[#allocation2 + $0x98] sm:$0xff] %vm6253, %v9217
      %9243 = vst.msk [vmem:[#allocation2 + $0xa0] sm:$0xff] %vm6253, %v9218
      %9244 = vst.msk [vmem:[#allocation2 + $0xa8] sm:$0xff] %vm6253, %v9219
      %9245 = vst.msk [vmem:[#allocation2 + $0xb0] sm:$0xff] %vm6253, %v9220
      %9246 = vst.msk [vmem:[#allocation2 + $0xb8] sm:$0xff] %vm6253, %v9221
      %9247 = vst.msk [vmem:[#allocation2 + $0xc0] sm:$0xff] %vm6253, %v9222
      %v9248 = vld [vmem:[#allocation3] sm:$0xff]
      %v9249 = vld [vmem:[#allocation3 + $0x8] sm:$0xff]
      %v9250 = vld [vmem:[#allocation3 + $0x10] sm:$0xff]
      %v9251 = vld [vmem:[#allocation3 + $0x18] sm:$0xff]
      %v9252 = vld [vmem:[#allocation3 + $0x20] sm:$0xff]
      %v9253 = vld [vmem:[#allocation3 + $0x28] sm:$0xff]
      %v9254 = vld [vmem:[#allocation3 + $0x30] sm:$0xff]
      %v9255 = vld [vmem:[#allocation3 + $0x38] sm:$0xff]
      %v9256 = vld [vmem:[#allocation3 + $0x40] sm:$0xff]
      %v9257 = vld [vmem:[#allocation3 + $0x48] sm:$0xff]
      %v9258 = vld [vmem:[#allocation3 + $0x50] sm:$0xff]
      %v9259 = vld [vmem:[#allocation3 + $0x58] sm:$0xff]
      %v9260 = vld [vmem:[#allocation3 + $0x60] sm:$0xff]
      %v9261 = vld [vmem:[#allocation3 + $0x68] sm:$0xff]
      %v9262 = vld [vmem:[#allocation3 + $0x70] sm:$0xff]
      %v9263 = vld [vmem:[#allocation3 + $0x78] sm:$0xff]
      %v9264 = vld [vmem:[#allocation3 + $0x80] sm:$0xff]
      %v9265 = vld [vmem:[#allocation3 + $0x88] sm:$0xff]
      %v9266 = vld [vmem:[#allocation3 + $0x90] sm:$0xff]
      %v9267 = vld [vmem:[#allocation3 + $0x98] sm:$0xff]
      %v9268 = vld [vmem:[#allocation3 + $0xa0] sm:$0xff]
      %v9269 = vld [vmem:[#allocation3 + $0xa8] sm:$0xff]
      %v9270 = vld [vmem:[#allocation3 + $0xb0] sm:$0xff]
      %v9271 = vld [vmem:[#allocation3 + $0xb8] sm:$0xff]
      %v9272 = vld [vmem:[#allocation3 + $0xc0] sm:$0xff]
      %9337 = vrot.lane.b32.xlu0 %v8386, 96
      %v9338 = vpop.permute.xlu0 %9337
      %9339 = vrot.lane.b32.xlu0 %v8387, 96
      %v9340 = vpop.permute.xlu0 %9339
      %9341 = vrot.lane.b32.xlu0 %v8388, 96
      %v9342 = vpop.permute.xlu0 %9341
      %9343 = vrot.lane.b32.xlu0 %v8389, 96
      %v9344 = vpop.permute.xlu0 %9343
      %9345 = vrot.lane.b32.xlu0 %v8390, 96
      %v9346 = vpop.permute.xlu0 %9345
      %9347 = vrot.lane.b32.xlu0 %v8391, 96
      %v9348 = vpop.permute.xlu0 %9347
      %9349 = vrot.lane.b32.xlu0 %v8392, 96
      %v9350 = vpop.permute.xlu0 %9349
      %9351 = vrot.lane.b32.xlu0 %v8393, 96
      %v9352 = vpop.permute.xlu0 %9351
      %9353 = vrot.lane.b32.xlu0 %v8394, 96
      %v9354 = vpop.permute.xlu0 %9353
      %9355 = vrot.lane.b32.xlu0 %v8395, 96
      %v9356 = vpop.permute.xlu0 %9355
      %9357 = vrot.lane.b32.xlu0 %v8396, 96
      %v9358 = vpop.permute.xlu0 %9357
      %9359 = vrot.lane.b32.xlu0 %v8397, 96
      %v9360 = vpop.permute.xlu0 %9359
      %9361 = vrot.lane.b32.xlu0 %v8398, 96
      %v9362 = vpop.permute.xlu0 %9361
      %9363 = vrot.lane.b32.xlu0 %v8399, 96
      %v9364 = vpop.permute.xlu0 %9363
      %9365 = vrot.lane.b32.xlu0 %v8400, 96
      %v9366 = vpop.permute.xlu0 %9365
      %9367 = vrot.lane.b32.xlu0 %v8401, 96
      %v9368 = vpop.permute.xlu0 %9367
      %9369 = vrot.lane.b32.xlu0 %v8402, 96
      %v9370 = vpop.permute.xlu0 %9369
      %9371 = vrot.lane.b32.xlu0 %v8403, 96
      %v9372 = vpop.permute.xlu0 %9371
      %9373 = vrot.lane.b32.xlu0 %v8404, 96
      %v9374 = vpop.permute.xlu0 %9373
      %9375 = vrot.lane.b32.xlu0 %v8405, 96
      %v9376 = vpop.permute.xlu0 %9375
      %9377 = vrot.lane.b32.xlu0 %v8406, 96
      %v9378 = vpop.permute.xlu0 %9377
      %9379 = vrot.lane.b32.xlu0 %v8407, 96
      %v9380 = vpop.permute.xlu0 %9379
      %9381 = vrot.lane.b32.xlu0 %v8408, 96
      %v9382 = vpop.permute.xlu0 %9381
      %9383 = vrot.lane.b32.xlu0 %v8409, 96
      %v9384 = vpop.permute.xlu0 %9383
      %9385 = vrot.lane.b32.xlu0 %v8410, 96
      %v9386 = vpop.permute.xlu0 %9385
      %9387 = vrot.lane.b32.xlu0 %v8411, 96
      %v9388 = vpop.permute.xlu0 %9387
      %9389 = vrot.lane.b32.xlu0 %v8412, 96
      %v9390 = vpop.permute.xlu0 %9389
      %9391 = vrot.lane.b32.xlu0 %v8413, 96
      %v9392 = vpop.permute.xlu0 %9391
      %9393 = vrot.lane.b32.xlu0 %v8414, 96
      %v9394 = vpop.permute.xlu0 %9393
      %9395 = vrot.lane.b32.xlu0 %v8415, 96
      %v9396 = vpop.permute.xlu0 %9395
      %9397 = vrot.lane.b32.xlu0 %v8416, 96
      %v9398 = vpop.permute.xlu0 %9397
      %9399 = vrot.lane.b32.xlu0 %v8417, 96
      %v9400 = vpop.permute.xlu0 %9399
      %9401 = vrot.lane.b32.xlu0 %v8418, 96
      %v9402 = vpop.permute.xlu0 %9401
      %9403 = vrot.lane.b32.xlu0 %v8419, 96
      %v9404 = vpop.permute.xlu0 %9403
      %9405 = vrot.lane.b32.xlu0 %v8420, 96
      %v9406 = vpop.permute.xlu0 %9405
      %9407 = vrot.lane.b32.xlu0 %v8421, 96
      %v9408 = vpop.permute.xlu0 %9407
      %9409 = vrot.lane.b32.xlu0 %v8422, 96
      %v9410 = vpop.permute.xlu0 %9409
      %9411 = vrot.lane.b32.xlu0 %v8423, 96
      %v9412 = vpop.permute.xlu0 %9411
      %9413 = vrot.lane.b32.xlu0 %v8424, 96
      %v9414 = vpop.permute.xlu0 %9413
      %9415 = vrot.lane.b32.xlu0 %v8425, 96
      %v9416 = vpop.permute.xlu0 %9415
      %9417 = vrot.lane.b32.xlu0 %v8426, 96
      %v9418 = vpop.permute.xlu0 %9417
      %9419 = vrot.lane.b32.xlu0 %v8427, 96
      %v9420 = vpop.permute.xlu0 %9419
      %9421 = vrot.lane.b32.xlu0 %v8428, 96
      %v9422 = vpop.permute.xlu0 %9421
      %9423 = vrot.lane.b32.xlu0 %v8429, 96
      %v9424 = vpop.permute.xlu0 %9423
      %9425 = vrot.lane.b32.xlu0 %v8430, 96
      %v9426 = vpop.permute.xlu0 %9425
      %9427 = vrot.lane.b32.xlu0 %v8431, 96
      %v9428 = vpop.permute.xlu0 %9427
      %9429 = vrot.lane.b32.xlu0 %v8432, 96
      %v9430 = vpop.permute.xlu0 %9429
      %9431 = vrot.lane.b32.xlu0 %v8433, 96
      %v9432 = vpop.permute.xlu0 %9431
      %9433 = vrot.lane.b32.xlu0 %v8434, 96
      %v9434 = vpop.permute.xlu0 %9433
      %9435 = vrot.lane.b32.xlu0 %v8435, 96
      %v9436 = vpop.permute.xlu0 %9435
      %9437 = vrot.lane.b32.xlu0 %v8436, 96
      %v9438 = vpop.permute.xlu0 %9437
      %9439 = vrot.lane.b32.xlu0 %v8437, 96
      %v9440 = vpop.permute.xlu0 %9439
      %9441 = vrot.lane.b32.xlu0 %v8438, 96
      %v9442 = vpop.permute.xlu0 %9441
      %9443 = vrot.lane.b32.xlu0 %v8439, 96
      %v9444 = vpop.permute.xlu0 %9443
      %9445 = vrot.lane.b32.xlu0 %v8440, 96
      %v9446 = vpop.permute.xlu0 %9445
      %9447 = vrot.lane.b32.xlu0 %v8441, 96
      %v9448 = vpop.permute.xlu0 %9447
      %9449 = vrot.lane.b32.xlu0 %v8442, 96
      %v9450 = vpop.permute.xlu0 %9449
      %9451 = vrot.lane.b32.xlu0 %v8443, 96
      %v9452 = vpop.permute.xlu0 %9451
      %9453 = vrot.lane.b32.xlu0 %v8444, 96
      %v9454 = vpop.permute.xlu0 %9453
      %9455 = vrot.lane.b32.xlu0 %v8445, 96
      %v9456 = vpop.permute.xlu0 %9455
      %9457 = vrot.lane.b32.xlu0 %v8446, 96
      %v9458 = vpop.permute.xlu0 %9457
      %9459 = vrot.lane.b32.xlu0 %v8447, 96
      %v9460 = vpop.permute.xlu0 %9459
      %9461 = vrot.lane.b32.xlu0 %v8448, 96
      %v9462 = vpop.permute.xlu0 %9461
      %9463 = vrot.lane.b32.xlu0 %v8449, 96
      %v9464 = vpop.permute.xlu0 %9463
      %9529 = vmatprep.subr.mxu0 0.0
      %9530 = vmatpush1.msra.mxu0 %v9338
      %9531 = vmatprep.subr.mxu0 0.0
      %9532 = vmatpush1.msra.mxu0 %v9340
      %9533 = vmatprep.subr.mxu0 0.0
      %9534 = vmatpush1.msra.mxu0 %v9342
      %9535 = vmatprep.subr.mxu0 0.0
      %9536 = vmatpush1.msra.mxu0 %v9344
      %9537 = vmatprep.subr.mxu0 0.0
      %9538 = vmatpush1.msra.mxu0 %v9346
      %9539 = vmatprep.subr.mxu0 0.0
      %9540 = vmatpush1.msra.mxu0 %v9348
      %9541 = vmatprep.subr.mxu0 0.0
      %9542 = vmatpush1.msra.mxu0 %v9350
      %9543 = vmatprep.subr.mxu0 0.0
      %9544 = vmatpush1.msra.mxu0 %v9352
      %9545 = vmatprep.subr.mxu0 0.0
      %9546 = vmatpush1.msra.mxu0 %v9354
      %9547 = vmatprep.subr.mxu0 0.0
      %9548 = vmatpush1.msra.mxu0 %v9356
      %9549 = vmatprep.subr.mxu0 0.0
      %9550 = vmatpush1.msra.mxu0 %v9358
      %9551 = vmatprep.subr.mxu0 0.0
      %9552 = vmatpush1.msra.mxu0 %v9360
      %9553 = vmatprep.subr.mxu0 0.0
      %9554 = vmatpush1.msra.mxu0 %v9362
      %9555 = vmatprep.subr.mxu0 0.0
      %9556 = vmatpush1.msra.mxu0 %v9364
      %9557 = vmatprep.subr.mxu0 0.0
      %9558 = vmatpush1.msra.mxu0 %v9366
      %9559 = vmatprep.subr.mxu0 0.0
      %9560 = vmatpush1.msra.mxu0 %v9368
      %9561 = vmatprep.subr.mxu0 0.0
      %9562 = vmatpush1.msra.mxu0 %v9370
      %9563 = vmatprep.subr.mxu0 0.0
      %9564 = vmatpush1.msra.mxu0 %v9372
      %9565 = vmatprep.subr.mxu0 0.0
      %9566 = vmatpush1.msra.mxu0 %v9374
      %9567 = vmatprep.subr.mxu0 0.0
      %9568 = vmatpush1.msra.mxu0 %v9376
      %9569 = vmatprep.subr.mxu0 0.0
      %9570 = vmatpush1.msra.mxu0 %v9378
      %9571 = vmatprep.subr.mxu0 0.0
      %9572 = vmatpush1.msra.mxu0 %v9380
      %9573 = vmatprep.subr.mxu0 0.0
      %9574 = vmatpush1.msra.mxu0 %v9382
      %9575 = vmatprep.subr.mxu0 0.0
      %9576 = vmatpush1.msra.mxu0 %v9384
      %9577 = vmatprep.subr.mxu0 0.0
      %9578 = vmatpush1.msra.mxu0 %v9386
      %9579 = vmatprep.subr.mxu0 0.0
      %9580 = vmatpush1.msra.mxu0 %v9388
      %9581 = vmatprep.subr.mxu0 0.0
      %9582 = vmatpush1.msra.mxu0 %v9390
      %9583 = vmatprep.subr.mxu0 0.0
      %9584 = vmatpush1.msra.mxu0 %v9392
      %9585 = vmatprep.subr.mxu0 0.0
      %9586 = vmatpush1.msra.mxu0 %v9394
      %9587 = vmatprep.subr.mxu0 0.0
      %9588 = vmatpush1.msra.mxu0 %v9396
      %9589 = vmatprep.subr.mxu0 0.0
      %9590 = vmatpush1.msra.mxu0 %v9398
      %9591 = vmatprep.subr.mxu0 0.0
      %9592 = vmatpush1.msra.mxu0 %v9400
      %9593 = vmatprep.mubr.f32.mxu0 %v8694
      %9594 = vmatmul.mubr.f32.gmra.mrb[0].mxu0 %v8693
      %v9595 = vpop.f32.mrb[0].mxu0
      %v9596 = vadd.f32 0.0, %v9595
      %v9597 = vpop.f32.mrb[0].mxu0
      %9598 = vmatprep.mubr.f32.mxu0 %v8698
      %9599 = vmatmul.mubr.f32.gmra.mrb[0].mxu0 %v8697
      %v9600 = vpop.f32.mrb[0].mxu0
      %v9601 = vadd.f32 0.0, %v9600
      %v9602 = vpop.f32.mrb[0].mxu0
      %9603 = vmatprep.mubr.f32.mxu0 %v8702
      %9604 = vmatmul.mubr.f32.gmra.mrb[0].mxu0 %v8701
      %v9605 = vpop.f32.mrb[0].mxu0
      %v9606 = vadd.f32 0.0, %v9605
      %v9607 = vpop.f32.mrb[0].mxu0
      %9608 = vmatprep.mubr.f32.mxu0 %v8706
      %9609 = vmatmul.mubr.f32.gmra.mrb[0].mxu0 %v8705
      %v9610 = vpop.f32.mrb[0].mxu0
      %v9611 = vadd.f32 0.0, %v9610
      %v9612 = vpop.f32.mrb[0].mxu0
      %9613 = vmatprep.mubr.f32.mxu0 %v8710
      %9614 = vmatmul.mubr.f32.gmra.mrb[0].mxu0 %v8709
      %v9615 = vpop.f32.mrb[0].mxu0
      %v9616 = vadd.f32 0.0, %v9615
      %v9617 = vpop.f32.mrb[0].mxu0
      %9618 = vmatprep.mubr.f32.mxu0 %v8714
      %9619 = vmatmul.mubr.f32.gmra.mrb[0].mxu0 %v8713
      %v9620 = vpop.f32.mrb[0].mxu0
      %v9621 = vadd.f32 0.0, %v9620
      %v9622 = vpop.f32.mrb[0].mxu0
      %9623 = vmatprep.mubr.f32.mxu0 %v8718
      %9624 = vmatmul.mubr.f32.gmra.mrb[0].mxu0 %v8717
      %v9625 = vpop.f32.mrb[0].mxu0
      %v9626 = vadd.f32 0.0, %v9625
      %v9627 = vpop.f32.mrb[0].mxu0
      %9628 = vmatprep.mubr.f32.mxu0 %v8722
      %9629 = vmatmul.mubr.f32.gmra.mrb[0].mxu0 %v8721
      %v9630 = vpop.f32.mrb[0].mxu0
      %v9631 = vadd.f32 0.0, %v9630
      %v9632 = vpop.f32.mrb[0].mxu0
      %9633 = vmatprep.mubr.f32.mxu0 %v8726
      %9634 = vmatmul.mubr.f32.gmra.mrb[0].mxu0 %v8725
      %v9635 = vpop.f32.mrb[0].mxu0
      %v9636 = vadd.f32 0.0, %v9635
      %v9637 = vpop.f32.mrb[0].mxu0
      %9638 = vmatprep.mubr.f32.mxu0 %v8730
      %9639 = vmatmul.mubr.f32.gmra.mrb[0].mxu0 %v8729
      %v9640 = vpop.f32.mrb[0].mxu0
      %v9641 = vadd.f32 0.0, %v9640
      %v9642 = vpop.f32.mrb[0].mxu0
      %9643 = vmatprep.mubr.f32.mxu0 %v8734
      %9644 = vmatmul.mubr.f32.gmra.mrb[0].mxu0 %v8733
      %v9645 = vpop.f32.mrb[0].mxu0
      %v9646 = vadd.f32 0.0, %v9645
      %v9647 = vpop.f32.mrb[0].mxu0
      %9648 = vmatprep.mubr.f32.mxu0 %v8738
      %9649 = vmatmul.mubr.f32.gmra.mrb[0].mxu0 %v8737
      %v9650 = vpop.f32.mrb[0].mxu0
      %v9651 = vadd.f32 0.0, %v9650
      %v9652 = vpop.f32.mrb[0].mxu0
      %9653 = vmatprep.mubr.f32.mxu0 %v8742
      %9654 = vmatmul.mubr.f32.gmra.mrb[0].mxu0 %v8741
      %v9655 = vpop.f32.mrb[0].mxu0
      %v9656 = vadd.f32 0.0, %v9655
      %v9657 = vpop.f32.mrb[0].mxu0
      %9658 = vmatprep.mubr.f32.mxu0 %v8746
      %9659 = vmatmul.mubr.f32.gmra.mrb[0].mxu0 %v8745
      %v9660 = vpop.f32.mrb[0].mxu0
      %v9661 = vadd.f32 0.0, %v9660
      %v9662 = vpop.f32.mrb[0].mxu0
      %9663 = vmatprep.mubr.f32.mxu0 %v8750
      %9664 = vmatmul.mubr.f32.gmra.mrb[0].mxu0 %v8749
      %v9665 = vpop.f32.mrb[0].mxu0
      %v9666 = vadd.f32 0.0, %v9665
      %v9667 = vpop.f32.mrb[0].mxu0
      %9668 = vmatprep.mubr.f32.mxu0 %v8754
      %9669 = vmatmul.mubr.f32.gmra.mrb[0].mxu0 %v8753
      %v9670 = vpop.f32.mrb[0].mxu0
      %v9671 = vadd.f32 0.0, %v9670
      %v9672 = vpop.f32.mrb[0].mxu0
      %9673 = vmatprep.mubr.f32.mxu0 %v8758
      %9674 = vmatmul.mubr.f32.gmra.mrb[0].mxu0 %v8757
      %v9675 = vpop.f32.mrb[0].mxu0
      %v9676 = vadd.f32 0.0, %v9675
      %v9677 = vpop.f32.mrb[0].mxu0
      %9678 = vmatprep.mubr.f32.mxu0 %v8762
      %9679 = vmatmul.mubr.f32.gmra.mrb[0].mxu0 %v8761
      %v9680 = vpop.f32.mrb[0].mxu0
      %v9681 = vadd.f32 0.0, %v9680
      %v9682 = vpop.f32.mrb[0].mxu0
      %9683 = vmatprep.mubr.f32.mxu0 %v8766
      %9684 = vmatmul.mubr.f32.gmra.mrb[0].mxu0 %v8765
      %v9685 = vpop.f32.mrb[0].mxu0
      %v9686 = vadd.f32 0.0, %v9685
      %v9687 = vpop.f32.mrb[0].mxu0
      %9688 = vmatprep.mubr.f32.mxu0 %v8770
      %9689 = vmatmul.mubr.f32.gmra.mrb[0].mxu0 %v8769
      %v9690 = vpop.f32.mrb[0].mxu0
      %v9691 = vadd.f32 0.0, %v9690
      %v9692 = vpop.f32.mrb[0].mxu0
      %9693 = vmatprep.mubr.f32.mxu0 %v8774
      %9694 = vmatmul.mubr.f32.gmra.mrb[0].mxu0 %v8773
      %v9695 = vpop.f32.mrb[0].mxu0
      %v9696 = vadd.f32 0.0, %v9695
      %v9697 = vpop.f32.mrb[0].mxu0
      %9698 = vmatprep.mubr.f32.mxu0 %v8778
      %9699 = vmatmul.mubr.f32.gmra.mrb[0].mxu0 %v8777
      %v9700 = vpop.f32.mrb[0].mxu0
      %v9701 = vadd.f32 0.0, %v9700
      %v9702 = vpop.f32.mrb[0].mxu0
      %9703 = vmatprep.mubr.f32.mxu0 %v8782
      %9704 = vmatmul.mubr.f32.gmra.mrb[0].mxu0 %v8781
      %v9705 = vpop.f32.mrb[0].mxu0
      %v9706 = vadd.f32 0.0, %v9705
      %v9707 = vpop.f32.mrb[0].mxu0
      %9708 = vmatprep.mubr.f32.mxu0 %v8786
      %9709 = vmatmul.mubr.f32.gmra.mrb[0].mxu0 %v8785
      %v9710 = vpop.f32.mrb[0].mxu0
      %v9711 = vadd.f32 0.0, %v9710
      %v9712 = vpop.f32.mrb[0].mxu0
      %9713 = vmatprep.mubr.f32.mxu0 %v8790
      %9714 = vmatmul.mubr.f32.gmra.mrb[0].mxu0 %v8789
      %v9715 = vpop.f32.mrb[0].mxu0
      %v9716 = vadd.f32 0.0, %v9715
      %v9717 = vpop.f32.mrb[0].mxu0
      %9718 = vdwg.mxu0
      %9719 = vmatprep.subr.mxu0 0.0
      %9720 = vmatpush1.msra.mxu0 %v9402
      %9721 = vmatprep.subr.mxu0 0.0
      %9722 = vmatpush1.msra.mxu0 %v9404
      %9723 = vmatprep.subr.mxu0 0.0
      %9724 = vmatpush1.msra.mxu0 %v9406
      %9725 = vmatprep.subr.mxu0 0.0
      %9726 = vmatpush1.msra.mxu0 %v9408
      %9727 = vmatprep.subr.mxu0 0.0
      %9728 = vmatpush1.msra.mxu0 %v9410
      %9729 = vmatprep.subr.mxu0 0.0
      %9730 = vmatpush1.msra.mxu0 %v9412
      %9731 = vmatprep.subr.mxu0 0.0
      %9732 = vmatpush1.msra.mxu0 %v9414
      %9733 = vmatprep.subr.mxu0 0.0
      %9734 = vmatpush1.msra.mxu0 %v9416
      %9735 = vmatprep.subr.mxu0 0.0
      %9736 = vmatpush1.msra.mxu0 %v9418
      %9737 = vmatprep.subr.mxu0 0.0
      %9738 = vmatpush1.msra.mxu0 %v9420
      %9739 = vmatprep.subr.mxu0 0.0
      %9740 = vmatpush1.msra.mxu0 %v9422
      %9741 = vmatprep.subr.mxu0 0.0
      %9742 = vmatpush1.msra.mxu0 %v9424
      %9743 = vmatprep.subr.mxu0 0.0
      %9744 = vmatpush1.msra.mxu0 %v9426
      %9745 = vmatprep.subr.mxu0 0.0
      %9746 = vmatpush1.msra.mxu0 %v9428
      %9747 = vmatprep.subr.mxu0 0.0
      %9748 = vmatpush1.msra.mxu0 %v9430
      %9749 = vmatprep.subr.mxu0 0.0
      %9750 = vmatpush1.msra.mxu0 %v9432
      %9751 = vmatprep.subr.mxu0 0.0
      %9752 = vmatpush1.msra.mxu0 %v9434
      %9753 = vmatprep.subr.mxu0 0.0
      %9754 = vmatpush1.msra.mxu0 %v9436
      %9755 = vmatprep.subr.mxu0 0.0
      %9756 = vmatpush1.msra.mxu0 %v9438
      %9757 = vmatprep.subr.mxu0 0.0
      %9758 = vmatpush1.msra.mxu0 %v9440
      %9759 = vmatprep.subr.mxu0 0.0
      %9760 = vmatpush1.msra.mxu0 %v9442
      %9761 = vmatprep.subr.mxu0 0.0
      %9762 = vmatpush1.msra.mxu0 %v9444
      %9763 = vmatprep.subr.mxu0 0.0
      %9764 = vmatpush1.msra.mxu0 %v9446
      %9765 = vmatprep.subr.mxu0 0.0
      %9766 = vmatpush1.msra.mxu0 %v9448
      %9767 = vmatprep.subr.mxu0 0.0
      %9768 = vmatpush1.msra.mxu0 %v9450
      %9769 = vmatprep.subr.mxu0 0.0
      %9770 = vmatpush1.msra.mxu0 %v9452
      %9771 = vmatprep.subr.mxu0 0.0
      %9772 = vmatpush1.msra.mxu0 %v9454
      %9773 = vmatprep.subr.mxu0 0.0
      %9774 = vmatpush1.msra.mxu0 %v9456
      %9775 = vmatprep.subr.mxu0 0.0
      %9776 = vmatpush1.msra.mxu0 %v9458
      %9777 = vmatprep.subr.mxu0 0.0
      %9778 = vmatpush1.msra.mxu0 %v9460
      %9779 = vmatprep.subr.mxu0 0.0
      %9780 = vmatpush1.msra.mxu0 %v9462
      %9781 = vmatprep.subr.mxu0 0.0
      %9782 = vmatpush1.msra.mxu0 %v9464
      %9783 = vmatprep.mubr.f32.mxu0 %v8696
      %9784 = vmatmul.mubr.f32.gmra.mrb[0].mxu0 %v8695
      %v9785 = vpop.f32.mrb[0].mxu0
      %v9786 = vadd.f32 %v9596, %v9785
      %v9787 = vpop.f32.mrb[0].mxu0
      %9788 = vmatprep.mubr.f32.mxu0 %v8700
      %9789 = vmatmul.mubr.f32.gmra.mrb[0].mxu0 %v8699
      %v9790 = vpop.f32.mrb[0].mxu0
      %v9791 = vadd.f32 %v9601, %v9790
      %v9792 = vpop.f32.mrb[0].mxu0
      %9793 = vmatprep.mubr.f32.mxu0 %v8704
      %9794 = vmatmul.mubr.f32.gmra.mrb[0].mxu0 %v8703
      %v9795 = vpop.f32.mrb[0].mxu0
      %v9796 = vadd.f32 %v9606, %v9795
      %v9797 = vpop.f32.mrb[0].mxu0
      %9798 = vmatprep.mubr.f32.mxu0 %v8708
      %9799 = vmatmul.mubr.f32.gmra.mrb[0].mxu0 %v8707
      %v9800 = vpop.f32.mrb[0].mxu0
      %v9801 = vadd.f32 %v9611, %v9800
      %v9802 = vpop.f32.mrb[0].mxu0
      %9803 = vmatprep.mubr.f32.mxu0 %v8712
      %9804 = vmatmul.mubr.f32.gmra.mrb[0].mxu0 %v8711
      %v9805 = vpop.f32.mrb[0].mxu0
      %v9806 = vadd.f32 %v9616, %v9805
      %v9807 = vpop.f32.mrb[0].mxu0
      %9808 = vmatprep.mubr.f32.mxu0 %v8716
      %9809 = vmatmul.mubr.f32.gmra.mrb[0].mxu0 %v8715
      %v9810 = vpop.f32.mrb[0].mxu0
      %v9811 = vadd.f32 %v9621, %v9810
      %v9812 = vpop.f32.mrb[0].mxu0
      %9813 = vmatprep.mubr.f32.mxu0 %v8720
      %9814 = vmatmul.mubr.f32.gmra.mrb[0].mxu0 %v8719
      %v9815 = vpop.f32.mrb[0].mxu0
      %v9816 = vadd.f32 %v9626, %v9815
      %v9817 = vpop.f32.mrb[0].mxu0
      %9818 = vmatprep.mubr.f32.mxu0 %v8724
      %9819 = vmatmul.mubr.f32.gmra.mrb[0].mxu0 %v8723
      %v9820 = vpop.f32.mrb[0].mxu0
      %v9821 = vadd.f32 %v9631, %v9820
      %v9822 = vpop.f32.mrb[0].mxu0
      %9823 = vmatprep.mubr.f32.mxu0 %v8728
      %9824 = vmatmul.mubr.f32.gmra.mrb[0].mxu0 %v8727
      %v9825 = vpop.f32.mrb[0].mxu0
      %v9826 = vadd.f32 %v9636, %v9825
      %v9827 = vpop.f32.mrb[0].mxu0
      %9828 = vmatprep.mubr.f32.mxu0 %v8732
      %9829 = vmatmul.mubr.f32.gmra.mrb[0].mxu0 %v8731
      %v9830 = vpop.f32.mrb[0].mxu0
      %v9831 = vadd.f32 %v9641, %v9830
      %v9832 = vpop.f32.mrb[0].mxu0
      %9833 = vmatprep.mubr.f32.mxu0 %v8736
      %9834 = vmatmul.mubr.f32.gmra.mrb[0].mxu0 %v8735
      %v9835 = vpop.f32.mrb[0].mxu0
      %v9836 = vadd.f32 %v9646, %v9835
      %v9837 = vpop.f32.mrb[0].mxu0
      %9838 = vmatprep.mubr.f32.mxu0 %v8740
      %9839 = vmatmul.mubr.f32.gmra.mrb[0].mxu0 %v8739
      %v9840 = vpop.f32.mrb[0].mxu0
      %v9841 = vadd.f32 %v9651, %v9840
      %v9842 = vpop.f32.mrb[0].mxu0
      %9843 = vmatprep.mubr.f32.mxu0 %v8744
      %9844 = vmatmul.mubr.f32.gmra.mrb[0].mxu0 %v8743
      %v9845 = vpop.f32.mrb[0].mxu0
      %v9846 = vadd.f32 %v9656, %v9845
      %v9847 = vpop.f32.mrb[0].mxu0
      %9848 = vmatprep.mubr.f32.mxu0 %v8748
      %9849 = vmatmul.mubr.f32.gmra.mrb[0].mxu0 %v8747
      %v9850 = vpop.f32.mrb[0].mxu0
      %v9851 = vadd.f32 %v9661, %v9850
      %v9852 = vpop.f32.mrb[0].mxu0
      %9853 = vmatprep.mubr.f32.mxu0 %v8752
      %9854 = vmatmul.mubr.f32.gmra.mrb[0].mxu0 %v8751
      %v9855 = vpop.f32.mrb[0].mxu0
      %v9856 = vadd.f32 %v9666, %v9855
      %v9857 = vpop.f32.mrb[0].mxu0
      %9858 = vmatprep.mubr.f32.mxu0 %v8756
      %9859 = vmatmul.mubr.f32.gmra.mrb[0].mxu0 %v8755
      %v9860 = vpop.f32.mrb[0].mxu0
      %v9861 = vadd.f32 %v9671, %v9860
      %v9862 = vpop.f32.mrb[0].mxu0
      %9863 = vmatprep.mubr.f32.mxu0 %v8760
      %9864 = vmatmul.mubr.f32.gmra.mrb[0].mxu0 %v8759
      %v9865 = vpop.f32.mrb[0].mxu0
      %v9866 = vadd.f32 %v9676, %v9865
      %v9867 = vpop.f32.mrb[0].mxu0
      %9868 = vmatprep.mubr.f32.mxu0 %v8764
      %9869 = vmatmul.mubr.f32.gmra.mrb[0].mxu0 %v8763
      %v9870 = vpop.f32.mrb[0].mxu0
      %v9871 = vadd.f32 %v9681, %v9870
      %v9872 = vpop.f32.mrb[0].mxu0
      %9873 = vmatprep.mubr.f32.mxu0 %v8768
      %9874 = vmatmul.mubr.f32.gmra.mrb[0].mxu0 %v8767
      %v9875 = vpop.f32.mrb[0].mxu0
      %v9876 = vadd.f32 %v9686, %v9875
      %v9877 = vpop.f32.mrb[0].mxu0
      %9878 = vmatprep.mubr.f32.mxu0 %v8772
      %9879 = vmatmul.mubr.f32.gmra.mrb[0].mxu0 %v8771
      %v9880 = vpop.f32.mrb[0].mxu0
      %v9881 = vadd.f32 %v9691, %v9880
      %v9882 = vpop.f32.mrb[0].mxu0
      %9883 = vmatprep.mubr.f32.mxu0 %v8776
      %9884 = vmatmul.mubr.f32.gmra.mrb[0].mxu0 %v8775
      %v9885 = vpop.f32.mrb[0].mxu0
      %v9886 = vadd.f32 %v9696, %v9885
      %v9887 = vpop.f32.mrb[0].mxu0
      %9888 = vmatprep.mubr.f32.mxu0 %v8780
      %9889 = vmatmul.mubr.f32.gmra.mrb[0].mxu0 %v8779
      %v9890 = vpop.f32.mrb[0].mxu0
      %v9891 = vadd.f32 %v9701, %v9890
      %v9892 = vpop.f32.mrb[0].mxu0
      %9893 = vmatprep.mubr.f32.mxu0 %v8784
      %9894 = vmatmul.mubr.f32.gmra.mrb[0].mxu0 %v8783
      %v9895 = vpop.f32.mrb[0].mxu0
      %v9896 = vadd.f32 %v9706, %v9895
      %v9897 = vpop.f32.mrb[0].mxu0
      %9898 = vmatprep.mubr.f32.mxu0 %v8788
      %9899 = vmatmul.mubr.f32.gmra.mrb[0].mxu0 %v8787
      %v9900 = vpop.f32.mrb[0].mxu0
      %v9901 = vadd.f32 %v9711, %v9900
      %v9902 = vpop.f32.mrb[0].mxu0
      %9903 = vmatprep.mubr.f32.mxu0 %v8792
      %9904 = vmatmul.mubr.f32.gmra.mrb[0].mxu0 %v8791
      %v9905 = vpop.f32.mrb[0].mxu0
      %v9906 = vadd.f32 %v9716, %v9905
      %v9907 = vpop.f32.mrb[0].mxu0
      %9908 = vdwg.mxu0
      %v9909 = vadd.f32 %v9248, %v9786
      %v9910 = vadd.f32 %v9249, %v9791
      %v9911 = vadd.f32 %v9250, %v9796
      %v9912 = vadd.f32 %v9251, %v9801
      %v9913 = vadd.f32 %v9252, %v9806
      %v9914 = vadd.f32 %v9253, %v9811
      %v9915 = vadd.f32 %v9254, %v9816
      %v9916 = vadd.f32 %v9255, %v9821
      %v9917 = vadd.f32 %v9256, %v9826
      %v9918 = vadd.f32 %v9257, %v9831
      %v9919 = vadd.f32 %v9258, %v9836
      %v9920 = vadd.f32 %v9259, %v9841
      %v9921 = vadd.f32 %v9260, %v9846
      %v9922 = vadd.f32 %v9261, %v9851
      %v9923 = vadd.f32 %v9262, %v9856
      %v9924 = vadd.f32 %v9263, %v9861
      %v9925 = vadd.f32 %v9264, %v9866
      %v9926 = vadd.f32 %v9265, %v9871
      %v9927 = vadd.f32 %v9266, %v9876
      %v9928 = vadd.f32 %v9267, %v9881
      %v9929 = vadd.f32 %v9268, %v9886
      %v9930 = vadd.f32 %v9269, %v9891
      %v9931 = vadd.f32 %v9270, %v9896
      %v9932 = vadd.f32 %v9271, %v9901
      %v9933 = vadd.f32 %v9272, %v9906
      %9934 = vst.msk [vmem:[#allocation3] sm:$0xff] %vm4240, %v9909
      %9935 = vst.msk [vmem:[#allocation3 + $0x8] sm:$0xff] %vm4240, %v9910
      %9936 = vst.msk [vmem:[#allocation3 + $0x10] sm:$0xff] %vm4240, %v9911
      %9937 = vst.msk [vmem:[#allocation3 + $0x18] sm:$0xff] %vm4240, %v9912
      %9938 = vst.msk [vmem:[#allocation3 + $0x20] sm:$0xff] %vm4240, %v9913
      %9939 = vst.msk [vmem:[#allocation3 + $0x28] sm:$0xff] %vm4240, %v9914
      %9940 = vst.msk [vmem:[#allocation3 + $0x30] sm:$0xff] %vm4240, %v9915
      %9941 = vst.msk [vmem:[#allocation3 + $0x38] sm:$0xff] %vm4240, %v9916
      %9942 = vst.msk [vmem:[#allocation3 + $0x40] sm:$0xff] %vm4240, %v9917
      %9943 = vst.msk [vmem:[#allocation3 + $0x48] sm:$0xff] %vm4240, %v9918
      %9944 = vst.msk [vmem:[#allocation3 + $0x50] sm:$0xff] %vm4240, %v9919
      %9945 = vst.msk [vmem:[#allocation3 + $0x58] sm:$0xff] %vm4240, %v9920
      %9946 = vst.msk [vmem:[#allocation3 + $0x60] sm:$0xff] %vm4240, %v9921
      %9947 = vst.msk [vmem:[#allocation3 + $0x68] sm:$0xff] %vm4240, %v9922
      %9948 = vst.msk [vmem:[#allocation3 + $0x70] sm:$0xff] %vm4240, %v9923
      %9949 = vst.msk [vmem:[#allocation3 + $0x78] sm:$0xff] %vm4240, %v9924
      %9950 = vst.msk [vmem:[#allocation3 + $0x80] sm:$0xff] %vm4240, %v9925
      %9951 = vst.msk [vmem:[#allocation3 + $0x88] sm:$0xff] %vm4240, %v9926
      %9952 = vst.msk [vmem:[#allocation3 + $0x90] sm:$0xff] %vm4240, %v9927
      %9953 = vst.msk [vmem:[#allocation3 + $0x98] sm:$0xff] %vm4240, %v9928
      %9954 = vst.msk [vmem:[#allocation3 + $0xa0] sm:$0xff] %vm4240, %v9929
      %9955 = vst.msk [vmem:[#allocation3 + $0xa8] sm:$0xff] %vm4240, %v9930
      %9956 = vst.msk [vmem:[#allocation3 + $0xb0] sm:$0xff] %vm4240, %v9931
      %9957 = vst.msk [vmem:[#allocation3 + $0xb8] sm:$0xff] %vm4240, %v9932
      %9958 = vst.msk [vmem:[#allocation3 + $0xc0] sm:$0xff] %vm4240, %v9933
      %v9959 = vld [vmem:[#allocation4] sm:$0xff]
      %v9960 = vld [vmem:[#allocation4 + $0x8] sm:$0xff]
      %v9961 = vld [vmem:[#allocation4 + $0x10] sm:$0xff]
      %v9962 = vld [vmem:[#allocation4 + $0x18] sm:$0xff]
      %v9963 = vld [vmem:[#allocation4 + $0x20] sm:$0xff]
      %v9964 = vld [vmem:[#allocation4 + $0x28] sm:$0xff]
      %v9965 = vld [vmem:[#allocation4 + $0x30] sm:$0xff]
      %v9966 = vld [vmem:[#allocation4 + $0x38] sm:$0xff]
      %v9967 = vld [vmem:[#allocation4 + $0x40] sm:$0xff]
      %v9968 = vld [vmem:[#allocation4 + $0x48] sm:$0xff]
      %v9969 = vld [vmem:[#allocation4 + $0x50] sm:$0xff]
      %v9970 = vld [vmem:[#allocation4 + $0x58] sm:$0xff]
      %v9971 = vld [vmem:[#allocation4 + $0x60] sm:$0xff]
      %v9972 = vld [vmem:[#allocation4 + $0x68] sm:$0xff]
      %v9973 = vld [vmem:[#allocation4 + $0x70] sm:$0xff]
      %v9974 = vld [vmem:[#allocation4 + $0x78] sm:$0xff]
      %v9975 = vld [vmem:[#allocation4 + $0x80] sm:$0xff]
      %v9976 = vld [vmem:[#allocation4 + $0x88] sm:$0xff]
      %v9977 = vld [vmem:[#allocation4 + $0x90] sm:$0xff]
      %v9978 = vld [vmem:[#allocation4 + $0x98] sm:$0xff]
      %v9979 = vld [vmem:[#allocation4 + $0xa0] sm:$0xff]
      %v9980 = vld [vmem:[#allocation4 + $0xa8] sm:$0xff]
      %v9981 = vld [vmem:[#allocation4 + $0xb0] sm:$0xff]
      %v9982 = vld [vmem:[#allocation4 + $0xb8] sm:$0xff]
      %v9983 = vld [vmem:[#allocation4 + $0xc0] sm:$0xff]
      %v9984 = vadd.f32 %v8693, %v8694
      %v9985 = vadd.f32 %v9984, %v8695
      %v9986 = vadd.f32 %v9985, %v8696
      %9987 = vadd.xlane.f32.xlu0 %v9986
      %v9988 = vpop.xlane.xlu0 %9987
      %v9989 = vadd.f32 %v8697, %v8698
      %v9990 = vadd.f32 %v9989, %v8699
      %v9991 = vadd.f32 %v9990, %v8700
      %9992 = vadd.xlane.f32.xlu0 %v9991
      %v9993 = vpop.xlane.xlu0 %9992
      %v9994 = vadd.f32 %v8701, %v8702
      %v9995 = vadd.f32 %v9994, %v8703
      %v9996 = vadd.f32 %v9995, %v8704
      %9997 = vadd.xlane.f32.xlu0 %v9996
      %v9998 = vpop.xlane.xlu0 %9997
      %v9999 = vadd.f32 %v8705, %v8706
      %v10000 = vadd.f32 %v9999, %v8707
      %v10001 = vadd.f32 %v10000, %v8708
      %10002 = vadd.xlane.f32.xlu0 %v10001
      %v10003 = vpop.xlane.xlu0 %10002
      %v10004 = vadd.f32 %v8709, %v8710
      %v10005 = vadd.f32 %v10004, %v8711
      %v10006 = vadd.f32 %v10005, %v8712
      %10007 = vadd.xlane.f32.xlu0 %v10006
      %v10008 = vpop.xlane.xlu0 %10007
      %v10009 = vadd.f32 %v8713, %v8714
      %v10010 = vadd.f32 %v10009, %v8715
      %v10011 = vadd.f32 %v10010, %v8716
      %10012 = vadd.xlane.f32.xlu0 %v10011
      %v10013 = vpop.xlane.xlu0 %10012
      %v10014 = vadd.f32 %v8717, %v8718
      %v10015 = vadd.f32 %v10014, %v8719
      %v10016 = vadd.f32 %v10015, %v8720
      %10017 = vadd.xlane.f32.xlu0 %v10016
      %v10018 = vpop.xlane.xlu0 %10017
      %v10019 = vadd.f32 %v8721, %v8722
      %v10020 = vadd.f32 %v10019, %v8723
      %v10021 = vadd.f32 %v10020, %v8724
      %10022 = vadd.xlane.f32.xlu0 %v10021
      %v10023 = vpop.xlane.xlu0 %10022
      %v10024 = vadd.f32 %v8725, %v8726
      %v10025 = vadd.f32 %v10024, %v8727
      %v10026 = vadd.f32 %v10025, %v8728
      %10027 = vadd.xlane.f32.xlu0 %v10026
      %v10028 = vpop.xlane.xlu0 %10027
      %v10029 = vadd.f32 %v8729, %v8730
      %v10030 = vadd.f32 %v10029, %v8731
      %v10031 = vadd.f32 %v10030, %v8732
      %10032 = vadd.xlane.f32.xlu0 %v10031
      %v10033 = vpop.xlane.xlu0 %10032
      %v10034 = vadd.f32 %v8733, %v8734
      %v10035 = vadd.f32 %v10034, %v8735
      %v10036 = vadd.f32 %v10035, %v8736
      %10037 = vadd.xlane.f32.xlu0 %v10036
      %v10038 = vpop.xlane.xlu0 %10037
      %v10039 = vadd.f32 %v8737, %v8738
      %v10040 = vadd.f32 %v10039, %v8739
      %v10041 = vadd.f32 %v10040, %v8740
      %10042 = vadd.xlane.f32.xlu0 %v10041
      %v10043 = vpop.xlane.xlu0 %10042
      %v10044 = vadd.f32 %v8741, %v8742
      %v10045 = vadd.f32 %v10044, %v8743
      %v10046 = vadd.f32 %v10045, %v8744
      %10047 = vadd.xlane.f32.xlu0 %v10046
      %v10048 = vpop.xlane.xlu0 %10047
      %v10049 = vadd.f32 %v8745, %v8746
      %v10050 = vadd.f32 %v10049, %v8747
      %v10051 = vadd.f32 %v10050, %v8748
      %10052 = vadd.xlane.f32.xlu0 %v10051
      %v10053 = vpop.xlane.xlu0 %10052
      %v10054 = vadd.f32 %v8749, %v8750
      %v10055 = vadd.f32 %v10054, %v8751
      %v10056 = vadd.f32 %v10055, %v8752
      %10057 = vadd.xlane.f32.xlu0 %v10056
      %v10058 = vpop.xlane.xlu0 %10057
      %v10059 = vadd.f32 %v8753, %v8754
      %v10060 = vadd.f32 %v10059, %v8755
      %v10061 = vadd.f32 %v10060, %v8756
      %10062 = vadd.xlane.f32.xlu0 %v10061
      %v10063 = vpop.xlane.xlu0 %10062
      %v10064 = vadd.f32 %v8757, %v8758
      %v10065 = vadd.f32 %v10064, %v8759
      %v10066 = vadd.f32 %v10065, %v8760
      %10067 = vadd.xlane.f32.xlu0 %v10066
      %v10068 = vpop.xlane.xlu0 %10067
      %v10069 = vadd.f32 %v8761, %v8762
      %v10070 = vadd.f32 %v10069, %v8763
      %v10071 = vadd.f32 %v10070, %v8764
      %10072 = vadd.xlane.f32.xlu0 %v10071
      %v10073 = vpop.xlane.xlu0 %10072
      %v10074 = vadd.f32 %v8765, %v8766
      %v10075 = vadd.f32 %v10074, %v8767
      %v10076 = vadd.f32 %v10075, %v8768
      %10077 = vadd.xlane.f32.xlu0 %v10076
      %v10078 = vpop.xlane.xlu0 %10077
      %v10079 = vadd.f32 %v8769, %v8770
      %v10080 = vadd.f32 %v10079, %v8771
      %v10081 = vadd.f32 %v10080, %v8772
      %10082 = vadd.xlane.f32.xlu0 %v10081
      %v10083 = vpop.xlane.xlu0 %10082
      %v10084 = vadd.f32 %v8773, %v8774
      %v10085 = vadd.f32 %v10084, %v8775
      %v10086 = vadd.f32 %v10085, %v8776
      %10087 = vadd.xlane.f32.xlu0 %v10086
      %v10088 = vpop.xlane.xlu0 %10087
      %v10089 = vadd.f32 %v8777, %v8778
      %v10090 = vadd.f32 %v10089, %v8779
      %v10091 = vadd.f32 %v10090, %v8780
      %10092 = vadd.xlane.f32.xlu0 %v10091
      %v10093 = vpop.xlane.xlu0 %10092
      %v10094 = vadd.f32 %v8781, %v8782
      %v10095 = vadd.f32 %v10094, %v8783
      %v10096 = vadd.f32 %v10095, %v8784
      %10097 = vadd.xlane.f32.xlu0 %v10096
      %v10098 = vpop.xlane.xlu0 %10097
      %v10099 = vadd.f32 %v8785, %v8786
      %v10100 = vadd.f32 %v10099, %v8787
      %v10101 = vadd.f32 %v10100, %v8788
      %10102 = vadd.xlane.f32.xlu0 %v10101
      %v10103 = vpop.xlane.xlu0 %10102
      %v10104 = vadd.f32 %v8789, %v8790
      %v10105 = vadd.f32 %v10104, %v8791
      %v10106 = vadd.f32 %v10105, %v8792
      %10107 = vadd.xlane.f32.xlu0 %v10106
      %v10108 = vpop.xlane.xlu0 %10107
      %v10109 = vadd.f32 %v9959, %v9988
      %v10110 = vadd.f32 %v9960, %v9993
      %v10111 = vadd.f32 %v9961, %v9998
      %v10112 = vadd.f32 %v9962, %v10003
      %v10113 = vadd.f32 %v9963, %v10008
      %v10114 = vadd.f32 %v9964, %v10013
      %v10115 = vadd.f32 %v9965, %v10018
      %v10116 = vadd.f32 %v9966, %v10023
      %v10117 = vadd.f32 %v9967, %v10028
      %v10118 = vadd.f32 %v9968, %v10033
      %v10119 = vadd.f32 %v9969, %v10038
      %v10120 = vadd.f32 %v9970, %v10043
      %v10121 = vadd.f32 %v9971, %v10048
      %v10122 = vadd.f32 %v9972, %v10053
      %v10123 = vadd.f32 %v9973, %v10058
      %v10124 = vadd.f32 %v9974, %v10063
      %v10125 = vadd.f32 %v9975, %v10068
      %v10126 = vadd.f32 %v9976, %v10073
      %v10127 = vadd.f32 %v9977, %v10078
      %v10128 = vadd.f32 %v9978, %v10083
      %v10129 = vadd.f32 %v9979, %v10088
      %v10130 = vadd.f32 %v9980, %v10093
      %v10131 = vadd.f32 %v9981, %v10098
      %v10132 = vadd.f32 %v9982, %v10103
      %v10133 = vadd.f32 %v9983, %v10108
      %vm10134 = vcmask 7168
      %10135 = vst.msk [vmem:[#allocation4] sm:$0xff] %vm10134, %v10109
      %10136 = vst.msk [vmem:[#allocation4 + $0x8] sm:$0xff] %vm10134, %v10110
      %10137 = vst.msk [vmem:[#allocation4 + $0x10] sm:$0xff] %vm10134, %v10111
      %10138 = vst.msk [vmem:[#allocation4 + $0x18] sm:$0xff] %vm10134, %v10112
      %10139 = vst.msk [vmem:[#allocation4 + $0x20] sm:$0xff] %vm10134, %v10113
      %10140 = vst.msk [vmem:[#allocation4 + $0x28] sm:$0xff] %vm10134, %v10114
      %10141 = vst.msk [vmem:[#allocation4 + $0x30] sm:$0xff] %vm10134, %v10115
      %10142 = vst.msk [vmem:[#allocation4 + $0x38] sm:$0xff] %vm10134, %v10116
      %10143 = vst.msk [vmem:[#allocation4 + $0x40] sm:$0xff] %vm10134, %v10117
      %10144 = vst.msk [vmem:[#allocation4 + $0x48] sm:$0xff] %vm10134, %v10118
      %10145 = vst.msk [vmem:[#allocation4 + $0x50] sm:$0xff] %vm10134, %v10119
      %10146 = vst.msk [vmem:[#allocation4 + $0x58] sm:$0xff] %vm10134, %v10120
      %10147 = vst.msk [vmem:[#allocation4 + $0x60] sm:$0xff] %vm10134, %v10121
      %10148 = vst.msk [vmem:[#allocation4 + $0x68] sm:$0xff] %vm10134, %v10122
      %10149 = vst.msk [vmem:[#allocation4 + $0x70] sm:$0xff] %vm10134, %v10123
      %10150 = vst.msk [vmem:[#allocation4 + $0x78] sm:$0xff] %vm10134, %v10124
      %10151 = vst.msk [vmem:[#allocation4 + $0x80] sm:$0xff] %vm10134, %v10125
      %10152 = vst.msk [vmem:[#allocation4 + $0x88] sm:$0xff] %vm10134, %v10126
      %10153 = vst.msk [vmem:[#allocation4 + $0x90] sm:$0xff] %vm10134, %v10127
      %10154 = vst.msk [vmem:[#allocation4 + $0x98] sm:$0xff] %vm10134, %v10128
      %10155 = vst.msk [vmem:[#allocation4 + $0xa0] sm:$0xff] %vm10134, %v10129
      %10156 = vst.msk [vmem:[#allocation4 + $0xa8] sm:$0xff] %vm10134, %v10130
      %10157 = vst.msk [vmem:[#allocation4 + $0xb0] sm:$0xff] %vm10134, %v10131
      %10158 = vst.msk [vmem:[#allocation4 + $0xb8] sm:$0xff] %vm10134, %v10132
      %10159 = vst.msk [vmem:[#allocation4 + $0xc0] sm:$0xff] %vm10134, %v10133
      %p10160 = scmp.eq.s32.totalorder %s30, 1
      // Predicated region
      $region101: #{l_gcl_forward.1} parent=95 // pred_check
        %p10161 = pneg %p10160
      $region102: #{l_gcl_forward.1} parent=95 // pred_check_branch
        %10163 = sbr.rel (%p10161) target = $region104
      $region103: #{l_gcl_forward.1} parent=95 // pred_region
        %v10164 = vld [vmem:[#allocation4] sm:$0xff]
        %v10165 = vld [vmem:[#allocation4 + $0x8] sm:$0xff]
        %v10166 = vld [vmem:[#allocation4 + $0x10] sm:$0xff]
        %v10167 = vld [vmem:[#allocation4 + $0x18] sm:$0xff]
        %v10168 = vld [vmem:[#allocation4 + $0x20] sm:$0xff]
        %v10169 = vld [vmem:[#allocation4 + $0x28] sm:$0xff]
        %v10170 = vld [vmem:[#allocation4 + $0x30] sm:$0xff]
        %v10171 = vld [vmem:[#allocation4 + $0x38] sm:$0xff]
        %v10172 = vld [vmem:[#allocation4 + $0x40] sm:$0xff]
        %v10173 = vld [vmem:[#allocation4 + $0x48] sm:$0xff]
        %v10174 = vld [vmem:[#allocation4 + $0x50] sm:$0xff]
        %v10175 = vld [vmem:[#allocation4 + $0x58] sm:$0xff]
        %v10176 = vld [vmem:[#allocation4 + $0x60] sm:$0xff]
        %v10177 = vld [vmem:[#allocation4 + $0x68] sm:$0xff]
        %v10178 = vld [vmem:[#allocation4 + $0x70] sm:$0xff]
        %v10179 = vld [vmem:[#allocation4 + $0x78] sm:$0xff]
        %v10180 = vld [vmem:[#allocation4 + $0x80] sm:$0xff]
        %v10181 = vld [vmem:[#allocation4 + $0x88] sm:$0xff]
        %v10182 = vld [vmem:[#allocation4 + $0x90] sm:$0xff]
        %v10183 = vld [vmem:[#allocation4 + $0x98] sm:$0xff]
        %v10184 = vld [vmem:[#allocation4 + $0xa0] sm:$0xff]
        %v10185 = vld [vmem:[#allocation4 + $0xa8] sm:$0xff]
        %v10186 = vld [vmem:[#allocation4 + $0xb0] sm:$0xff]
        %v10187 = vld [vmem:[#allocation4 + $0xb8] sm:$0xff]
        %v10188 = vld [vmem:[#allocation4 + $0xc0] sm:$0xff]
        %v10189 = vmax.f32 %v10164, 1.0
        %v10190 = vmax.f32 %v10165, 1.0
        %v10191 = vmax.f32 %v10166, 1.0
        %v10192 = vmax.f32 %v10167, 1.0
        %v10193 = vmax.f32 %v10168, 1.0
        %v10194 = vmax.f32 %v10169, 1.0
        %v10195 = vmax.f32 %v10170, 1.0
        %v10196 = vmax.f32 %v10171, 1.0
        %v10197 = vmax.f32 %v10172, 1.0
        %v10198 = vmax.f32 %v10173, 1.0
        %v10199 = vmax.f32 %v10174, 1.0
        %v10200 = vmax.f32 %v10175, 1.0
        %v10201 = vmax.f32 %v10176, 1.0
        %v10202 = vmax.f32 %v10177, 1.0
        %v10203 = vmax.f32 %v10178, 1.0
        %v10204 = vmax.f32 %v10179, 1.0
        %v10205 = vmax.f32 %v10180, 1.0
        %v10206 = vmax.f32 %v10181, 1.0
        %v10207 = vmax.f32 %v10182, 1.0
        %v10208 = vmax.f32 %v10183, 1.0
        %v10209 = vmax.f32 %v10184, 1.0
        %v10210 = vmax.f32 %v10185, 1.0
        %v10211 = vmax.f32 %v10186, 1.0
        %v10212 = vmax.f32 %v10187, 1.0
        %v10213 = vmax.f32 %v10188, 1.0
        %v10214 = vrcp.pop %v10189
        %v10215 = vrcp.pop %v10190
        %v10216 = vrcp.pop %v10191
        %v10217 = vrcp.pop %v10192
        %v10218 = vrcp.pop %v10193
        %v10219 = vrcp.pop %v10194
        %v10220 = vrcp.pop %v10195
        %v10221 = vrcp.pop %v10196
        %v10222 = vrcp.pop %v10197
        %v10223 = vrcp.pop %v10198
        %v10224 = vrcp.pop %v10199
        %v10225 = vrcp.pop %v10200
        %v10226 = vrcp.pop %v10201
        %v10227 = vrcp.pop %v10202
        %v10228 = vrcp.pop %v10203
        %v10229 = vrcp.pop %v10204
        %v10230 = vrcp.pop %v10205
        %v10231 = vrcp.pop %v10206
        %v10232 = vrcp.pop %v10207
        %v10233 = vrcp.pop %v10208
        %v10234 = vrcp.pop %v10209
        %v10235 = vrcp.pop %v10210
        %v10236 = vrcp.pop %v10211
        %v10237 = vrcp.pop %v10212
        %v10238 = vrcp.pop %v10213
        %v10239 = vld [vmem:[%s6] sm:$0xff]
        %v10240 = vld [vmem:[%s6 + $0x8] sm:$0xff]
        %v10241 = vld [vmem:[%s6 + $0x10] sm:$0xff]
        %v10242 = vld [vmem:[%s6 + $0x18] sm:$0xff]
        %v10243 = vld [vmem:[%s6 + $0x20] sm:$0xff]
        %v10244 = vld [vmem:[%s6 + $0x28] sm:$0xff]
        %v10245 = vld [vmem:[%s6 + $0x30] sm:$0xff]
        %v10246 = vld [vmem:[%s6 + $0x38] sm:$0xff]
        %v10247 = vld [vmem:[%s6 + $0x40] sm:$0xff]
        %v10248 = vld [vmem:[%s6 + $0x48] sm:$0xff]
        %v10249 = vld [vmem:[%s6 + $0x50] sm:$0xff]
        %v10250 = vld [vmem:[%s6 + $0x58] sm:$0xff]
        %v10251 = vld [vmem:[%s6 + $0x60] sm:$0xff]
        %v10252 = vld [vmem:[%s6 + $0x68] sm:$0xff]
        %v10253 = vld [vmem:[%s6 + $0x70] sm:$0xff]
        %v10254 = vld [vmem:[%s6 + $0x78] sm:$0xff]
        %v10255 = vld [vmem:[%s6 + $0x80] sm:$0xff]
        %v10256 = vld [vmem:[%s6 + $0x88] sm:$0xff]
        %v10257 = vld [vmem:[%s6 + $0x90] sm:$0xff]
        %v10258 = vld [vmem:[%s6 + $0x98] sm:$0xff]
        %v10259 = vld [vmem:[%s6 + $0xa0] sm:$0xff]
        %v10260 = vld [vmem:[%s6 + $0xa8] sm:$0xff]
        %v10261 = vld [vmem:[%s6 + $0xb0] sm:$0xff]
        %v10262 = vld [vmem:[%s6 + $0xb8] sm:$0xff]
        %v10263 = vld [vmem:[%s6 + $0xc0] sm:$0xff]
        %v10264 = vld [vmem:[#allocation3] sm:$0xff]
        %v10265 = vld [vmem:[#allocation3 + $0x8] sm:$0xff]
        %v10266 = vld [vmem:[#allocation3 + $0x10] sm:$0xff]
        %v10267 = vld [vmem:[#allocation3 + $0x18] sm:$0xff]
        %v10268 = vld [vmem:[#allocation3 + $0x20] sm:$0xff]
        %v10269 = vld [vmem:[#allocation3 + $0x28] sm:$0xff]
        %v10270 = vld [vmem:[#allocation3 + $0x30] sm:$0xff]
        %v10271 = vld [vmem:[#allocation3 + $0x38] sm:$0xff]
        %v10272 = vld [vmem:[#allocation3 + $0x40] sm:$0xff]
        %v10273 = vld [vmem:[#allocation3 + $0x48] sm:$0xff]
        %v10274 = vld [vmem:[#allocation3 + $0x50] sm:$0xff]
        %v10275 = vld [vmem:[#allocation3 + $0x58] sm:$0xff]
        %v10276 = vld [vmem:[#allocation3 + $0x60] sm:$0xff]
        %v10277 = vld [vmem:[#allocation3 + $0x68] sm:$0xff]
        %v10278 = vld [vmem:[#allocation3 + $0x70] sm:$0xff]
        %v10279 = vld [vmem:[#allocation3 + $0x78] sm:$0xff]
        %v10280 = vld [vmem:[#allocation3 + $0x80] sm:$0xff]
        %v10281 = vld [vmem:[#allocation3 + $0x88] sm:$0xff]
        %v10282 = vld [vmem:[#allocation3 + $0x90] sm:$0xff]
        %v10283 = vld [vmem:[#allocation3 + $0x98] sm:$0xff]
        %v10284 = vld [vmem:[#allocation3 + $0xa0] sm:$0xff]
        %v10285 = vld [vmem:[#allocation3 + $0xa8] sm:$0xff]
        %v10286 = vld [vmem:[#allocation3 + $0xb0] sm:$0xff]
        %v10287 = vld [vmem:[#allocation3 + $0xb8] sm:$0xff]
        %v10288 = vld [vmem:[#allocation3 + $0xc0] sm:$0xff]
        %10290 = vset.pattern.permute.xlu0 0
        %10291 = vperm.xlu0 %10290, %v10214
        %v10292 = vpop.permute.xlu0 %10291
        %10295 = vset.pattern.permute.xlu0 0
        %10296 = vperm.xlu0 %10295, %v10215
        %v10297 = vpop.permute.xlu0 %10296
        %10300 = vset.pattern.permute.xlu0 0
        %10301 = vperm.xlu0 %10300, %v10216
        %v10302 = vpop.permute.xlu0 %10301
        %10305 = vset.pattern.permute.xlu0 0
        %10306 = vperm.xlu0 %10305, %v10217
        %v10307 = vpop.permute.xlu0 %10306
        %10310 = vset.pattern.permute.xlu0 0
        %10311 = vperm.xlu0 %10310, %v10218
        %v10312 = vpop.permute.xlu0 %10311
        %10315 = vset.pattern.permute.xlu0 0
        %10316 = vperm.xlu0 %10315, %v10219
        %v10317 = vpop.permute.xlu0 %10316
        %10320 = vset.pattern.permute.xlu0 0
        %10321 = vperm.xlu0 %10320, %v10220
        %v10322 = vpop.permute.xlu0 %10321
        %10325 = vset.pattern.permute.xlu0 0
        %10326 = vperm.xlu0 %10325, %v10221
        %v10327 = vpop.permute.xlu0 %10326
        %10330 = vset.pattern.permute.xlu0 0
        %10331 = vperm.xlu0 %10330, %v10222
        %v10332 = vpop.permute.xlu0 %10331
        %10335 = vset.pattern.permute.xlu0 0
        %10336 = vperm.xlu0 %10335, %v10223
        %v10337 = vpop.permute.xlu0 %10336
        %10340 = vset.pattern.permute.xlu0 0
        %10341 = vperm.xlu0 %10340, %v10224
        %v10342 = vpop.permute.xlu0 %10341
        %10345 = vset.pattern.permute.xlu0 0
        %10346 = vperm.xlu0 %10345, %v10225
        %v10347 = vpop.permute.xlu0 %10346
        %10350 = vset.pattern.permute.xlu0 0
        %10351 = vperm.xlu0 %10350, %v10226
        %v10352 = vpop.permute.xlu0 %10351
        %10355 = vset.pattern.permute.xlu0 0
        %10356 = vperm.xlu0 %10355, %v10227
        %v10357 = vpop.permute.xlu0 %10356
        %10360 = vset.pattern.permute.xlu0 0
        %10361 = vperm.xlu0 %10360, %v10228
        %v10362 = vpop.permute.xlu0 %10361
        %10365 = vset.pattern.permute.xlu0 0
        %10366 = vperm.xlu0 %10365, %v10229
        %v10367 = vpop.permute.xlu0 %10366
        %10370 = vset.pattern.permute.xlu0 0
        %10371 = vperm.xlu0 %10370, %v10230
        %v10372 = vpop.permute.xlu0 %10371
        %10375 = vset.pattern.permute.xlu0 0
        %10376 = vperm.xlu0 %10375, %v10231
        %v10377 = vpop.permute.xlu0 %10376
        %10380 = vset.pattern.permute.xlu0 0
        %10381 = vperm.xlu0 %10380, %v10232
        %v10382 = vpop.permute.xlu0 %10381
        %10385 = vset.pattern.permute.xlu0 0
        %10386 = vperm.xlu0 %10385, %v10233
        %v10387 = vpop.permute.xlu0 %10386
        %10390 = vset.pattern.permute.xlu0 0
        %10391 = vperm.xlu0 %10390, %v10234
        %v10392 = vpop.permute.xlu0 %10391
        %10395 = vset.pattern.permute.xlu0 0
        %10396 = vperm.xlu0 %10395, %v10235
        %v10397 = vpop.permute.xlu0 %10396
        %10400 = vset.pattern.permute.xlu0 0
        %10401 = vperm.xlu0 %10400, %v10236
        %v10402 = vpop.permute.xlu0 %10401
        %10405 = vset.pattern.permute.xlu0 0
        %10406 = vperm.xlu0 %10405, %v10237
        %v10407 = vpop.permute.xlu0 %10406
        %10410 = vset.pattern.permute.xlu0 0
        %10411 = vperm.xlu0 %10410, %v10238
        %v10412 = vpop.permute.xlu0 %10411
        %v10414 = vmul.f32 %v10264, %v10292
        %v10415 = vmul.f32 %v10265, %v10297
        %v10416 = vmul.f32 %v10266, %v10302
        %v10417 = vmul.f32 %v10267, %v10307
        %v10418 = vmul.f32 %v10268, %v10312
        %v10419 = vmul.f32 %v10269, %v10317
        %v10420 = vmul.f32 %v10270, %v10322
        %v10421 = vmul.f32 %v10271, %v10327
        %v10422 = vmul.f32 %v10272, %v10332
        %v10423 = vmul.f32 %v10273, %v10337
        %v10424 = vmul.f32 %v10274, %v10342
        %v10425 = vmul.f32 %v10275, %v10347
        %v10426 = vmul.f32 %v10276, %v10352
        %v10427 = vmul.f32 %v10277, %v10357
        %v10428 = vmul.f32 %v10278, %v10362
        %v10429 = vmul.f32 %v10279, %v10367
        %v10430 = vmul.f32 %v10280, %v10372
        %v10431 = vmul.f32 %v10281, %v10377
        %v10432 = vmul.f32 %v10282, %v10382
        %v10433 = vmul.f32 %v10283, %v10387
        %v10434 = vmul.f32 %v10284, %v10392
        %v10435 = vmul.f32 %v10285, %v10397
        %v10436 = vmul.f32 %v10286, %v10402
        %v10437 = vmul.f32 %v10287, %v10407
        %v10438 = vmul.f32 %v10288, %v10412
        %v10439 = vadd.f32 %v10239, %v10414
        %v10440 = vadd.f32 %v10240, %v10415
        %v10441 = vadd.f32 %v10241, %v10416
        %v10442 = vadd.f32 %v10242, %v10417
        %v10443 = vadd.f32 %v10243, %v10418
        %v10444 = vadd.f32 %v10244, %v10419
        %v10445 = vadd.f32 %v10245, %v10420
        %v10446 = vadd.f32 %v10246, %v10421
        %v10447 = vadd.f32 %v10247, %v10422
        %v10448 = vadd.f32 %v10248, %v10423
        %v10449 = vadd.f32 %v10249, %v10424
        %v10450 = vadd.f32 %v10250, %v10425
        %v10451 = vadd.f32 %v10251, %v10426
        %v10452 = vadd.f32 %v10252, %v10427
        %v10453 = vadd.f32 %v10253, %v10428
        %v10454 = vadd.f32 %v10254, %v10429
        %v10455 = vadd.f32 %v10255, %v10430
        %v10456 = vadd.f32 %v10256, %v10431
        %v10457 = vadd.f32 %v10257, %v10432
        %v10458 = vadd.f32 %v10258, %v10433
        %v10459 = vadd.f32 %v10259, %v10434
        %v10460 = vadd.f32 %v10260, %v10435
        %v10461 = vadd.f32 %v10261, %v10436
        %v10462 = vadd.f32 %v10262, %v10437
        %v10463 = vadd.f32 %v10263, %v10438
        %v10464 = vld [vmem:[%s5] sm:$0xff]
        %v10465 = vld [vmem:[%s5 + $0x8] sm:$0xff]
        %v10466 = vld [vmem:[%s5 + $0x10] sm:$0xff]
        %v10467 = vld [vmem:[%s5 + $0x18] sm:$0xff]
        %v10468 = vld [vmem:[%s5 + $0x20] sm:$0xff]
        %v10469 = vld [vmem:[%s5 + $0x28] sm:$0xff]
        %v10470 = vld [vmem:[%s5 + $0x30] sm:$0xff]
        %v10471 = vld [vmem:[%s5 + $0x38] sm:$0xff]
        %v10472 = vld [vmem:[%s5 + $0x40] sm:$0xff]
        %v10473 = vld [vmem:[%s5 + $0x48] sm:$0xff]
        %v10474 = vld [vmem:[%s5 + $0x50] sm:$0xff]
        %v10475 = vld [vmem:[%s5 + $0x58] sm:$0xff]
        %v10476 = vld [vmem:[%s5 + $0x60] sm:$0xff]
        %v10477 = vld [vmem:[%s5 + $0x68] sm:$0xff]
        %v10478 = vld [vmem:[%s5 + $0x70] sm:$0xff]
        %v10479 = vld [vmem:[%s5 + $0x78] sm:$0xff]
        %v10480 = vld [vmem:[%s5 + $0x80] sm:$0xff]
        %v10481 = vld [vmem:[%s5 + $0x88] sm:$0xff]
        %v10482 = vld [vmem:[%s5 + $0x90] sm:$0xff]
        %v10483 = vld [vmem:[%s5 + $0x98] sm:$0xff]
        %v10484 = vld [vmem:[%s5 + $0xa0] sm:$0xff]
        %v10485 = vld [vmem:[%s5 + $0xa8] sm:$0xff]
        %v10486 = vld [vmem:[%s5 + $0xb0] sm:$0xff]
        %v10487 = vld [vmem:[%s5 + $0xb8] sm:$0xff]
        %v10488 = vld [vmem:[%s5 + $0xc0] sm:$0xff]
        %v10489 = vld [vmem:[#allocation2] sm:$0xff]
        %v10490 = vld [vmem:[#allocation2 + $0x8] sm:$0xff]
        %v10491 = vld [vmem:[#allocation2 + $0x10] sm:$0xff]
        %v10492 = vld [vmem:[#allocation2 + $0x18] sm:$0xff]
        %v10493 = vld [vmem:[#allocation2 + $0x20] sm:$0xff]
        %v10494 = vld [vmem:[#allocation2 + $0x28] sm:$0xff]
        %v10495 = vld [vmem:[#allocation2 + $0x30] sm:$0xff]
        %v10496 = vld [vmem:[#allocation2 + $0x38] sm:$0xff]
        %v10497 = vld [vmem:[#allocation2 + $0x40] sm:$0xff]
        %v10498 = vld [vmem:[#allocation2 + $0x48] sm:$0xff]
        %v10499 = vld [vmem:[#allocation2 + $0x50] sm:$0xff]
        %v10500 = vld [vmem:[#allocation2 + $0x58] sm:$0xff]
        %v10501 = vld [vmem:[#allocation2 + $0x60] sm:$0xff]
        %v10502 = vld [vmem:[#allocation2 + $0x68] sm:$0xff]
        %v10503 = vld [vmem:[#allocation2 + $0x70] sm:$0xff]
        %v10504 = vld [vmem:[#allocation2 + $0x78] sm:$0xff]
        %v10505 = vld [vmem:[#allocation2 + $0x80] sm:$0xff]
        %v10506 = vld [vmem:[#allocation2 + $0x88] sm:$0xff]
        %v10507 = vld [vmem:[#allocation2 + $0x90] sm:$0xff]
        %v10508 = vld [vmem:[#allocation2 + $0x98] sm:$0xff]
        %v10509 = vld [vmem:[#allocation2 + $0xa0] sm:$0xff]
        %v10510 = vld [vmem:[#allocation2 + $0xa8] sm:$0xff]
        %v10511 = vld [vmem:[#allocation2 + $0xb0] sm:$0xff]
        %v10512 = vld [vmem:[#allocation2 + $0xb8] sm:$0xff]
        %v10513 = vld [vmem:[#allocation2 + $0xc0] sm:$0xff]
        %v10514 = vld [vmem:[%s12] sm:$0xff]
        %v10515 = vld [vmem:[%s12 + $0x8] sm:$0xff]
        %v10516 = vld [vmem:[%s12 + $0x10] sm:$0xff]
        %v10517 = vld [vmem:[%s12 + $0x18] sm:$0xff]
        %v10519 = vsel %vm6253, %v10489, 0
        %v10522 = vsel %vm6253, %v10490, 0
        %v10525 = vsel %vm6253, %v10491, 0
        %v10528 = vsel %vm6253, %v10492, 0
        %v10531 = vsel %vm6253, %v10493, 0
        %v10534 = vsel %vm6253, %v10494, 0
        %v10537 = vsel %vm6253, %v10495, 0
        %v10540 = vsel %vm6253, %v10496, 0
        %v10543 = vsel %vm6253, %v10497, 0
        %v10546 = vsel %vm6253, %v10498, 0
        %v10549 = vsel %vm6253, %v10499, 0
        %v10552 = vsel %vm6253, %v10500, 0
        %v10555 = vsel %vm6253, %v10501, 0
        %v10558 = vsel %vm6253, %v10502, 0
        %v10561 = vsel %vm6253, %v10503, 0
        %v10564 = vsel %vm6253, %v10504, 0
        %v10567 = vsel %vm6253, %v10505, 0
        %v10570 = vsel %vm6253, %v10506, 0
        %v10573 = vsel %vm6253, %v10507, 0
        %v10576 = vsel %vm6253, %v10508, 0
        %v10579 = vsel %vm6253, %v10509, 0
        %v10582 = vsel %vm6253, %v10510, 0
        %v10585 = vsel %vm6253, %v10511, 0
        %v10588 = vsel %vm6253, %v10512, 0
        %v10591 = vsel %vm6253, %v10513, 0
        %10593 = vmatprep.subr.mxu0 0.0
        %10594 = vmatpush1.msra.mxu0 %v10514
        %10595 = vmatprep.subr.mxu0 0.0
        %10596 = vmatpush1.msra.mxu0 %v10515
        %10597 = vmatprep.subr.mxu0 0.0
        %10598 = vmatpush1.msra.mxu0 %v10516
        %10599 = vmatprep.subr.mxu0 0.0
        %10600 = vmatpush1.msra.mxu0 %v10517
        %10601 = vmatprep.subr.mxu0 0.0
        %10602 = vmatpush1.msra.mxu0 0.0
        %10603 = vmatprep.subr.mxu0 0.0
        %10604 = vmatpush1.msra.mxu0 0.0
        %10605 = vmatprep.subr.mxu0 0.0
        %10606 = vmatpush1.msra.mxu0 0.0
        %10607 = vmatprep.subr.mxu0 0.0
        %10608 = vmatpush1.msra.mxu0 0.0
        %10609 = vmatprep.subr.mxu0 0.0
        %10610 = vmatpush1.msra.mxu0 0.0
        %10611 = vmatprep.subr.mxu0 0.0
        %10612 = vmatpush1.msra.mxu0 0.0
        %10613 = vmatprep.subr.mxu0 0.0
        %10614 = vmatpush1.msra.mxu0 0.0
        %10615 = vmatprep.subr.mxu0 0.0
        %10616 = vmatpush1.msra.mxu0 0.0
        %10617 = vmatprep.subr.mxu0 0.0
        %10618 = vmatpush1.msra.mxu0 0.0
        %10619 = vmatprep.subr.mxu0 0.0
        %10620 = vmatpush1.msra.mxu0 0.0
        %10621 = vmatprep.subr.mxu0 0.0
        %10622 = vmatpush1.msra.mxu0 0.0
        %10623 = vmatprep.subr.mxu0 0.0
        %10624 = vmatpush1.msra.mxu0 0.0
        %10625 = vmatprep.subr.mxu0 0.0
        %10626 = vmatpush1.msra.mxu0 0.0
        %10627 = vmatprep.subr.mxu0 0.0
        %10628 = vmatpush1.msra.mxu0 0.0
        %10629 = vmatprep.subr.mxu0 0.0
        %10630 = vmatpush1.msra.mxu0 0.0
        %10631 = vmatprep.subr.mxu0 0.0
        %10632 = vmatpush1.msra.mxu0 0.0
        %10633 = vmatprep.subr.mxu0 0.0
        %10634 = vmatpush1.msra.mxu0 0.0
        %10635 = vmatprep.subr.mxu0 0.0
        %10636 = vmatpush1.msra.mxu0 0.0
        %10637 = vmatprep.subr.mxu0 0.0
        %10638 = vmatpush1.msra.mxu0 0.0
        %10639 = vmatprep.subr.mxu0 0.0
        %10640 = vmatpush1.msra.mxu0 0.0
        %10641 = vmatprep.subr.mxu0 0.0
        %10642 = vmatpush1.msra.mxu0 0.0
        %10643 = vmatprep.subr.mxu0 0.0
        %10644 = vmatpush1.msra.mxu0 0.0
        %10645 = vmatprep.subr.mxu0 0.0
        %10646 = vmatpush1.msra.mxu0 0.0
        %10647 = vmatprep.subr.mxu0 0.0
        %10648 = vmatpush1.msra.mxu0 0.0
        %10649 = vmatprep.subr.mxu0 0.0
        %10650 = vmatpush1.msra.mxu0 0.0
        %10651 = vmatprep.subr.mxu0 0.0
        %10652 = vmatpush1.msra.mxu0 0.0
        %10653 = vmatprep.subr.mxu0 0.0
        %10654 = vmatpush1.msra.mxu0 0.0
        %10655 = vmatprep.subr.mxu0 0.0
        %10656 = vmatpush1.msra.mxu0 0.0
        %10657 = vmatprep.mubr.f32.mxu0 0.0
        %10658 = vmatmul.mubr.f32.gmra.mrb[0].mxu0 %v10519
        %v10659 = vpop.f32.mrb[0].mxu0
        %v10660 = vadd.f32 0.0, %v10659
        %v10661 = vpop.f32.mrb[0].mxu0
        %10662 = vmatprep.mubr.f32.mxu0 0.0
        %10663 = vmatmul.mubr.f32.gmra.mrb[0].mxu0 %v10522
        %v10664 = vpop.f32.mrb[0].mxu0
        %v10665 = vadd.f32 0.0, %v10664
        %v10666 = vpop.f32.mrb[0].mxu0
        %10667 = vmatprep.mubr.f32.mxu0 0.0
        %10668 = vmatmul.mubr.f32.gmra.mrb[0].mxu0 %v10525
        %v10669 = vpop.f32.mrb[0].mxu0
        %v10670 = vadd.f32 0.0, %v10669
        %v10671 = vpop.f32.mrb[0].mxu0
        %10672 = vmatprep.mubr.f32.mxu0 0.0
        %10673 = vmatmul.mubr.f32.gmra.mrb[0].mxu0 %v10528
        %v10674 = vpop.f32.mrb[0].mxu0
        %v10675 = vadd.f32 0.0, %v10674
        %v10676 = vpop.f32.mrb[0].mxu0
        %10677 = vmatprep.mubr.f32.mxu0 0.0
        %10678 = vmatmul.mubr.f32.gmra.mrb[0].mxu0 %v10531
        %v10679 = vpop.f32.mrb[0].mxu0
        %v10680 = vadd.f32 0.0, %v10679
        %v10681 = vpop.f32.mrb[0].mxu0
        %10682 = vmatprep.mubr.f32.mxu0 0.0
        %10683 = vmatmul.mubr.f32.gmra.mrb[0].mxu0 %v10534
        %v10684 = vpop.f32.mrb[0].mxu0
        %v10685 = vadd.f32 0.0, %v10684
        %v10686 = vpop.f32.mrb[0].mxu0
        %10687 = vmatprep.mubr.f32.mxu0 0.0
        %10688 = vmatmul.mubr.f32.gmra.mrb[0].mxu0 %v10537
        %v10689 = vpop.f32.mrb[0].mxu0
        %v10690 = vadd.f32 0.0, %v10689
        %v10691 = vpop.f32.mrb[0].mxu0
        %10692 = vmatprep.mubr.f32.mxu0 0.0
        %10693 = vmatmul.mubr.f32.gmra.mrb[0].mxu0 %v10540
        %v10694 = vpop.f32.mrb[0].mxu0
        %v10695 = vadd.f32 0.0, %v10694
        %v10696 = vpop.f32.mrb[0].mxu0
        %10697 = vmatprep.mubr.f32.mxu0 0.0
        %10698 = vmatmul.mubr.f32.gmra.mrb[0].mxu0 %v10543
        %v10699 = vpop.f32.mrb[0].mxu0
        %v10700 = vadd.f32 0.0, %v10699
        %v10701 = vpop.f32.mrb[0].mxu0
        %10702 = vmatprep.mubr.f32.mxu0 0.0
        %10703 = vmatmul.mubr.f32.gmra.mrb[0].mxu0 %v10546
        %v10704 = vpop.f32.mrb[0].mxu0
        %v10705 = vadd.f32 0.0, %v10704
        %v10706 = vpop.f32.mrb[0].mxu0
        %10707 = vmatprep.mubr.f32.mxu0 0.0
        %10708 = vmatmul.mubr.f32.gmra.mrb[0].mxu0 %v10549
        %v10709 = vpop.f32.mrb[0].mxu0
        %v10710 = vadd.f32 0.0, %v10709
        %v10711 = vpop.f32.mrb[0].mxu0
        %10712 = vmatprep.mubr.f32.mxu0 0.0
        %10713 = vmatmul.mubr.f32.gmra.mrb[0].mxu0 %v10552
        %v10714 = vpop.f32.mrb[0].mxu0
        %v10715 = vadd.f32 0.0, %v10714
        %v10716 = vpop.f32.mrb[0].mxu0
        %10717 = vmatprep.mubr.f32.mxu0 0.0
        %10718 = vmatmul.mubr.f32.gmra.mrb[0].mxu0 %v10555
        %v10719 = vpop.f32.mrb[0].mxu0
        %v10720 = vadd.f32 0.0, %v10719
        %v10721 = vpop.f32.mrb[0].mxu0
        %10722 = vmatprep.mubr.f32.mxu0 0.0
        %10723 = vmatmul.mubr.f32.gmra.mrb[0].mxu0 %v10558
        %v10724 = vpop.f32.mrb[0].mxu0
        %v10725 = vadd.f32 0.0, %v10724
        %v10726 = vpop.f32.mrb[0].mxu0
        %10727 = vmatprep.mubr.f32.mxu0 0.0
        %10728 = vmatmul.mubr.f32.gmra.mrb[0].mxu0 %v10561
        %v10729 = vpop.f32.mrb[0].mxu0
        %v10730 = vadd.f32 0.0, %v10729
        %v10731 = vpop.f32.mrb[0].mxu0
        %10732 = vmatprep.mubr.f32.mxu0 0.0
        %10733 = vmatmul.mubr.f32.gmra.mrb[0].mxu0 %v10564
        %v10734 = vpop.f32.mrb[0].mxu0
        %v10735 = vadd.f32 0.0, %v10734
        %v10736 = vpop.f32.mrb[0].mxu0
        %10737 = vmatprep.mubr.f32.mxu0 0.0
        %10738 = vmatmul.mubr.f32.gmra.mrb[0].mxu0 %v10567
        %v10739 = vpop.f32.mrb[0].mxu0
        %v10740 = vadd.f32 0.0, %v10739
        %v10741 = vpop.f32.mrb[0].mxu0
        %10742 = vmatprep.mubr.f32.mxu0 0.0
        %10743 = vmatmul.mubr.f32.gmra.mrb[0].mxu0 %v10570
        %v10744 = vpop.f32.mrb[0].mxu0
        %v10745 = vadd.f32 0.0, %v10744
        %v10746 = vpop.f32.mrb[0].mxu0
        %10747 = vmatprep.mubr.f32.mxu0 0.0
        %10748 = vmatmul.mubr.f32.gmra.mrb[0].mxu0 %v10573
        %v10749 = vpop.f32.mrb[0].mxu0
        %v10750 = vadd.f32 0.0, %v10749
        %v10751 = vpop.f32.mrb[0].mxu0
        %10752 = vmatprep.mubr.f32.mxu0 0.0
        %10753 = vmatmul.mubr.f32.gmra.mrb[0].mxu0 %v10576
        %v10754 = vpop.f32.mrb[0].mxu0
        %v10755 = vadd.f32 0.0, %v10754
        %v10756 = vpop.f32.mrb[0].mxu0
        %10757 = vmatprep.mubr.f32.mxu0 0.0
        %10758 = vmatmul.mubr.f32.gmra.mrb[0].mxu0 %v10579
        %v10759 = vpop.f32.mrb[0].mxu0
        %v10760 = vadd.f32 0.0, %v10759
        %v10761 = vpop.f32.mrb[0].mxu0
        %10762 = vmatprep.mubr.f32.mxu0 0.0
        %10763 = vmatmul.mubr.f32.gmra.mrb[0].mxu0 %v10582
        %v10764 = vpop.f32.mrb[0].mxu0
        %v10765 = vadd.f32 0.0, %v10764
        %v10766 = vpop.f32.mrb[0].mxu0
        %10767 = vmatprep.mubr.f32.mxu0 0.0
        %10768 = vmatmul.mubr.f32.gmra.mrb[0].mxu0 %v10585
        %v10769 = vpop.f32.mrb[0].mxu0
        %v10770 = vadd.f32 0.0, %v10769
        %v10771 = vpop.f32.mrb[0].mxu0
        %10772 = vmatprep.mubr.f32.mxu0 0.0
        %10773 = vmatmul.mubr.f32.gmra.mrb[0].mxu0 %v10588
        %v10774 = vpop.f32.mrb[0].mxu0
        %v10775 = vadd.f32 0.0, %v10774
        %v10776 = vpop.f32.mrb[0].mxu0
        %10777 = vmatprep.mubr.f32.mxu0 0.0
        %10778 = vmatmul.mubr.f32.gmra.mrb[0].mxu0 %v10591
        %v10779 = vpop.f32.mrb[0].mxu0
        %v10780 = vadd.f32 0.0, %v10779
        %v10781 = vpop.f32.mrb[0].mxu0
        %10782 = vdwg.mxu0
        %v10783 = vadd.f32 %v10464, %v10660
        %v10784 = vadd.f32 %v10465, %v10665
        %v10785 = vadd.f32 %v10466, %v10670
        %v10786 = vadd.f32 %v10467, %v10675
        %v10787 = vadd.f32 %v10468, %v10680
        %v10788 = vadd.f32 %v10469, %v10685
        %v10789 = vadd.f32 %v10470, %v10690
        %v10790 = vadd.f32 %v10471, %v10695
        %v10791 = vadd.f32 %v10472, %v10700
        %v10792 = vadd.f32 %v10473, %v10705
        %v10793 = vadd.f32 %v10474, %v10710
        %v10794 = vadd.f32 %v10475, %v10715
        %v10795 = vadd.f32 %v10476, %v10720
        %v10796 = vadd.f32 %v10477, %v10725
        %v10797 = vadd.f32 %v10478, %v10730
        %v10798 = vadd.f32 %v10479, %v10735
        %v10799 = vadd.f32 %v10480, %v10740
        %v10800 = vadd.f32 %v10481, %v10745
        %v10801 = vadd.f32 %v10482, %v10750
        %v10802 = vadd.f32 %v10483, %v10755
        %v10803 = vadd.f32 %v10484, %v10760
        %v10804 = vadd.f32 %v10485, %v10765
        %v10805 = vadd.f32 %v10486, %v10770
        %v10806 = vadd.f32 %v10487, %v10775
        %v10807 = vadd.f32 %v10488, %v10780
        %v10808 = vld [vmem:[%s13] sm:$0x1]
        %v10810 = vlaneseq
        %v10811 = vshrl.u32 %v10810, 7
        %v10812 = vsub.s32 0, %v10811
        %v10813 = vrot.slane %v10808, %v10812
        %v10815 = vadd.f32 %v10783, %v10813
        %v10816 = vadd.f32 %v10784, %v10813
        %v10817 = vadd.f32 %v10785, %v10813
        %v10818 = vadd.f32 %v10786, %v10813
        %v10819 = vadd.f32 %v10787, %v10813
        %v10820 = vadd.f32 %v10788, %v10813
        %v10821 = vadd.f32 %v10789, %v10813
        %v10822 = vadd.f32 %v10790, %v10813
        %v10823 = vadd.f32 %v10791, %v10813
        %v10824 = vadd.f32 %v10792, %v10813
        %v10825 = vadd.f32 %v10793, %v10813
        %v10826 = vadd.f32 %v10794, %v10813
        %v10827 = vadd.f32 %v10795, %v10813
        %v10828 = vadd.f32 %v10796, %v10813
        %v10829 = vadd.f32 %v10797, %v10813
        %v10830 = vadd.f32 %v10798, %v10813
        %v10831 = vadd.f32 %v10799, %v10813
        %v10832 = vadd.f32 %v10800, %v10813
        %v10833 = vadd.f32 %v10801, %v10813
        %v10834 = vadd.f32 %v10802, %v10813
        %v10835 = vadd.f32 %v10803, %v10813
        %v10836 = vadd.f32 %v10804, %v10813
        %v10837 = vadd.f32 %v10805, %v10813
        %v10838 = vadd.f32 %v10806, %v10813
        %v10839 = vadd.f32 %v10807, %v10813
        %v10840 = vxor.u32 %v10815, 2147483648
        %v10841 = vxor.u32 %v10816, 2147483648
        %v10842 = vxor.u32 %v10817, 2147483648
        %v10843 = vxor.u32 %v10818, 2147483648
        %v10844 = vxor.u32 %v10819, 2147483648
        %v10845 = vxor.u32 %v10820, 2147483648
        %v10846 = vxor.u32 %v10821, 2147483648
        %v10847 = vxor.u32 %v10822, 2147483648
        %v10848 = vxor.u32 %v10823, 2147483648
        %v10849 = vxor.u32 %v10824, 2147483648
        %v10850 = vxor.u32 %v10825, 2147483648
        %v10851 = vxor.u32 %v10826, 2147483648
        %v10852 = vxor.u32 %v10827, 2147483648
        %v10853 = vxor.u32 %v10828, 2147483648
        %v10854 = vxor.u32 %v10829, 2147483648
        %v10855 = vxor.u32 %v10830, 2147483648
        %v10856 = vxor.u32 %v10831, 2147483648
        %v10857 = vxor.u32 %v10832, 2147483648
        %v10858 = vxor.u32 %v10833, 2147483648
        %v10859 = vxor.u32 %v10834, 2147483648
        %v10860 = vxor.u32 %v10835, 2147483648
        %v10861 = vxor.u32 %v10836, 2147483648
        %v10862 = vxor.u32 %v10837, 2147483648
        %v10863 = vxor.u32 %v10838, 2147483648
        %v10864 = vxor.u32 %v10839, 2147483648
        %v10865 = vmul.f32 %v10840, 1.442695
        %v10866 = vpow.pop %v10865
        %v10867 = vmul.f32 %v10841, 1.442695
        %v10868 = vpow.pop %v10867
        %v10869 = vmul.f32 %v10842, 1.442695
        %v10870 = vpow.pop %v10869
        %v10871 = vmul.f32 %v10843, 1.442695
        %v10872 = vpow.pop %v10871
        %v10873 = vmul.f32 %v10844, 1.442695
        %v10874 = vpow.pop %v10873
        %v10875 = vmul.f32 %v10845, 1.442695
        %v10876 = vpow.pop %v10875
        %v10877 = vmul.f32 %v10846, 1.442695
        %v10878 = vpow.pop %v10877
        %v10879 = vmul.f32 %v10847, 1.442695
        %v10880 = vpow.pop %v10879
        %v10881 = vmul.f32 %v10848, 1.442695
        %v10882 = vpow.pop %v10881
        %v10883 = vmul.f32 %v10849, 1.442695
        %v10884 = vpow.pop %v10883
        %v10885 = vmul.f32 %v10850, 1.442695
        %v10886 = vpow.pop %v10885
        %v10887 = vmul.f32 %v10851, 1.442695
        %v10888 = vpow.pop %v10887
        %v10889 = vmul.f32 %v10852, 1.442695
        %v10890 = vpow.pop %v10889
        %v10891 = vmul.f32 %v10853, 1.442695
        %v10892 = vpow.pop %v10891
        %v10893 = vmul.f32 %v10854, 1.442695
        %v10894 = vpow.pop %v10893
        %v10895 = vmul.f32 %v10855, 1.442695
        %v10896 = vpow.pop %v10895
        %v10897 = vmul.f32 %v10856, 1.442695
        %v10898 = vpow.pop %v10897
        %v10899 = vmul.f32 %v10857, 1.442695
        %v10900 = vpow.pop %v10899
        %v10901 = vmul.f32 %v10858, 1.442695
        %v10902 = vpow.pop %v10901
        %v10903 = vmul.f32 %v10859, 1.442695
        %v10904 = vpow.pop %v10903
        %v10905 = vmul.f32 %v10860, 1.442695
        %v10906 = vpow.pop %v10905
        %v10907 = vmul.f32 %v10861, 1.442695
        %v10908 = vpow.pop %v10907
        %v10909 = vmul.f32 %v10862, 1.442695
        %v10910 = vpow.pop %v10909
        %v10911 = vmul.f32 %v10863, 1.442695
        %v10912 = vpow.pop %v10911
        %v10913 = vmul.f32 %v10864, 1.442695
        %v10914 = vpow.pop %v10913
        %v10915 = vadd.f32 %v10866, 1.0
        %v10916 = vadd.f32 %v10868, 1.0
        %v10917 = vadd.f32 %v10870, 1.0
        %v10918 = vadd.f32 %v10872, 1.0
        %v10919 = vadd.f32 %v10874, 1.0
        %v10920 = vadd.f32 %v10876, 1.0
        %v10921 = vadd.f32 %v10878, 1.0
        %v10922 = vadd.f32 %v10880, 1.0
        %v10923 = vadd.f32 %v10882, 1.0
        %v10924 = vadd.f32 %v10884, 1.0
        %v10925 = vadd.f32 %v10886, 1.0
        %v10926 = vadd.f32 %v10888, 1.0
        %v10927 = vadd.f32 %v10890, 1.0
        %v10928 = vadd.f32 %v10892, 1.0
        %v10929 = vadd.f32 %v10894, 1.0
        %v10930 = vadd.f32 %v10896, 1.0
        %v10931 = vadd.f32 %v10898, 1.0
        %v10932 = vadd.f32 %v10900, 1.0
        %v10933 = vadd.f32 %v10902, 1.0
        %v10934 = vadd.f32 %v10904, 1.0
        %v10935 = vadd.f32 %v10906, 1.0
        %v10936 = vadd.f32 %v10908, 1.0
        %v10937 = vadd.f32 %v10910, 1.0
        %v10938 = vadd.f32 %v10912, 1.0
        %v10939 = vadd.f32 %v10914, 1.0
        %v10940 = vrcp.pop %v10915
        %v10941 = vmul.f32 1.0, %v10940
        %v10942 = vrcp.pop %v10916
        %v10943 = vmul.f32 1.0, %v10942
        %v10944 = vrcp.pop %v10917
        %v10945 = vmul.f32 1.0, %v10944
        %v10946 = vrcp.pop %v10918
        %v10947 = vmul.f32 1.0, %v10946
        %v10948 = vrcp.pop %v10919
        %v10949 = vmul.f32 1.0, %v10948
        %v10950 = vrcp.pop %v10920
        %v10951 = vmul.f32 1.0, %v10950
        %v10952 = vrcp.pop %v10921
        %v10953 = vmul.f32 1.0, %v10952
        %v10954 = vrcp.pop %v10922
        %v10955 = vmul.f32 1.0, %v10954
        %v10956 = vrcp.pop %v10923
        %v10957 = vmul.f32 1.0, %v10956
        %v10958 = vrcp.pop %v10924
        %v10959 = vmul.f32 1.0, %v10958
        %v10960 = vrcp.pop %v10925
        %v10961 = vmul.f32 1.0, %v10960
        %v10962 = vrcp.pop %v10926
        %v10963 = vmul.f32 1.0, %v10962
        %v10964 = vrcp.pop %v10927
        %v10965 = vmul.f32 1.0, %v10964
        %v10966 = vrcp.pop %v10928
        %v10967 = vmul.f32 1.0, %v10966
        %v10968 = vrcp.pop %v10929
        %v10969 = vmul.f32 1.0, %v10968
        %v10970 = vrcp.pop %v10930
        %v10971 = vmul.f32 1.0, %v10970
        %v10972 = vrcp.pop %v10931
        %v10973 = vmul.f32 1.0, %v10972
        %v10974 = vrcp.pop %v10932
        %v10975 = vmul.f32 1.0, %v10974
        %v10976 = vrcp.pop %v10933
        %v10977 = vmul.f32 1.0, %v10976
        %v10978 = vrcp.pop %v10934
        %v10979 = vmul.f32 1.0, %v10978
        %v10980 = vrcp.pop %v10935
        %v10981 = vmul.f32 1.0, %v10980
        %v10982 = vrcp.pop %v10936
        %v10983 = vmul.f32 1.0, %v10982
        %v10984 = vrcp.pop %v10937
        %v10985 = vmul.f32 1.0, %v10984
        %v10986 = vrcp.pop %v10938
        %v10987 = vmul.f32 1.0, %v10986
        %v10988 = vrcp.pop %v10939
        %v10989 = vmul.f32 1.0, %v10988
        %v10990 = vmul.f32 %v10815, %v10941
        %v10991 = vmul.f32 %v10816, %v10943
        %v10992 = vmul.f32 %v10817, %v10945
        %v10993 = vmul.f32 %v10818, %v10947
        %v10994 = vmul.f32 %v10819, %v10949
        %v10995 = vmul.f32 %v10820, %v10951
        %v10996 = vmul.f32 %v10821, %v10953
        %v10997 = vmul.f32 %v10822, %v10955
        %v10998 = vmul.f32 %v10823, %v10957
        %v10999 = vmul.f32 %v10824, %v10959
        %v11000 = vmul.f32 %v10825, %v10961
        %v11001 = vmul.f32 %v10826, %v10963
        %v11002 = vmul.f32 %v10827, %v10965
        %v11003 = vmul.f32 %v10828, %v10967
        %v11004 = vmul.f32 %v10829, %v10969
        %v11005 = vmul.f32 %v10830, %v10971
        %v11006 = vmul.f32 %v10831, %v10973
        %v11007 = vmul.f32 %v10832, %v10975
        %v11008 = vmul.f32 %v10833, %v10977
        %v11009 = vmul.f32 %v10834, %v10979
        %v11010 = vmul.f32 %v10835, %v10981
        %v11011 = vmul.f32 %v10836, %v10983
        %v11012 = vmul.f32 %v10837, %v10985
        %v11013 = vmul.f32 %v10838, %v10987
        %v11014 = vmul.f32 %v10839, %v10989
        %v11015 = vld [vmem:[%s14] sm:$0xff]
        %v11016 = vld [vmem:[%s14 + $0x8] sm:$0xff]
        %v11017 = vld [vmem:[%s14 + $0x10] sm:$0xff]
        %v11018 = vld [vmem:[%s14 + $0x18] sm:$0xff]
        %v11019 = vld [vmem:[%s15] sm:$0x1]
        %v11021 = vlaneseq
        %v11022 = vshrl.u32 %v11021, 7
        %v11023 = vsub.s32 0, %v11022
        %v11024 = vrot.slane %v11019, %v11023
        %v11027 = vsel %vm6253, %v10990, 0
        %v11030 = vsel %vm6253, %v10991, 0
        %v11033 = vsel %vm6253, %v10992, 0
        %v11036 = vsel %vm6253, %v10993, 0
        %v11039 = vsel %vm6253, %v10994, 0
        %v11042 = vsel %vm6253, %v10995, 0
        %v11045 = vsel %vm6253, %v10996, 0
        %v11048 = vsel %vm6253, %v10997, 0
        %v11051 = vsel %vm6253, %v10998, 0
        %v11054 = vsel %vm6253, %v10999, 0
        %v11057 = vsel %vm6253, %v11000, 0
        %v11060 = vsel %vm6253, %v11001, 0
        %v11063 = vsel %vm6253, %v11002, 0
        %v11066 = vsel %vm6253, %v11003, 0
        %v11069 = vsel %vm6253, %v11004, 0
        %v11072 = vsel %vm6253, %v11005, 0
        %v11075 = vsel %vm6253, %v11006, 0
        %v11078 = vsel %vm6253, %v11007, 0
        %v11081 = vsel %vm6253, %v11008, 0
        %v11084 = vsel %vm6253, %v11009, 0
        %v11087 = vsel %vm6253, %v11010, 0
        %v11090 = vsel %vm6253, %v11011, 0
        %v11093 = vsel %vm6253, %v11012, 0
        %v11096 = vsel %vm6253, %v11013, 0
        %v11099 = vsel %vm6253, %v11014, 0
        %11101 = vmatprep.subr.mxu0 0.0
        %11102 = vmatpush1.msra.mxu0 %v11015
        %11103 = vmatprep.subr.mxu0 0.0
        %11104 = vmatpush1.msra.mxu0 %v11016
        %11105 = vmatprep.subr.mxu0 0.0
        %11106 = vmatpush1.msra.mxu0 %v11017
        %11107 = vmatprep.subr.mxu0 0.0
        %11108 = vmatpush1.msra.mxu0 %v11018
        %11109 = vmatprep.subr.mxu0 0.0
        %11110 = vmatpush1.msra.mxu0 0.0
        %11111 = vmatprep.subr.mxu0 0.0
        %11112 = vmatpush1.msra.mxu0 0.0
        %11113 = vmatprep.subr.mxu0 0.0
        %11114 = vmatpush1.msra.mxu0 0.0
        %11115 = vmatprep.subr.mxu0 0.0
        %11116 = vmatpush1.msra.mxu0 0.0
        %11117 = vmatprep.subr.mxu0 0.0
        %11118 = vmatpush1.msra.mxu0 0.0
        %11119 = vmatprep.subr.mxu0 0.0
        %11120 = vmatpush1.msra.mxu0 0.0
        %11121 = vmatprep.subr.mxu0 0.0
        %11122 = vmatpush1.msra.mxu0 0.0
        %11123 = vmatprep.subr.mxu0 0.0
        %11124 = vmatpush1.msra.mxu0 0.0
        %11125 = vmatprep.subr.mxu0 0.0
        %11126 = vmatpush1.msra.mxu0 0.0
        %11127 = vmatprep.subr.mxu0 0.0
        %11128 = vmatpush1.msra.mxu0 0.0
        %11129 = vmatprep.subr.mxu0 0.0
        %11130 = vmatpush1.msra.mxu0 0.0
        %11131 = vmatprep.subr.mxu0 0.0
        %11132 = vmatpush1.msra.mxu0 0.0
        %11133 = vmatprep.subr.mxu0 0.0
        %11134 = vmatpush1.msra.mxu0 0.0
        %11135 = vmatprep.subr.mxu0 0.0
        %11136 = vmatpush1.msra.mxu0 0.0
        %11137 = vmatprep.subr.mxu0 0.0
        %11138 = vmatpush1.msra.mxu0 0.0
        %11139 = vmatprep.subr.mxu0 0.0
        %11140 = vmatpush1.msra.mxu0 0.0
        %11141 = vmatprep.subr.mxu0 0.0
        %11142 = vmatpush1.msra.mxu0 0.0
        %11143 = vmatprep.subr.mxu0 0.0
        %11144 = vmatpush1.msra.mxu0 0.0
        %11145 = vmatprep.subr.mxu0 0.0
        %11146 = vmatpush1.msra.mxu0 0.0
        %11147 = vmatprep.subr.mxu0 0.0
        %11148 = vmatpush1.msra.mxu0 0.0
        %11149 = vmatprep.subr.mxu0 0.0
        %11150 = vmatpush1.msra.mxu0 0.0
        %11151 = vmatprep.subr.mxu0 0.0
        %11152 = vmatpush1.msra.mxu0 0.0
        %11153 = vmatprep.subr.mxu0 0.0
        %11154 = vmatpush1.msra.mxu0 0.0
        %11155 = vmatprep.subr.mxu0 0.0
        %11156 = vmatpush1.msra.mxu0 0.0
        %11157 = vmatprep.subr.mxu0 0.0
        %11158 = vmatpush1.msra.mxu0 0.0
        %11159 = vmatprep.subr.mxu0 0.0
        %11160 = vmatpush1.msra.mxu0 0.0
        %11161 = vmatprep.subr.mxu0 0.0
        %11162 = vmatpush1.msra.mxu0 0.0
        %11163 = vmatprep.subr.mxu0 0.0
        %11164 = vmatpush1.msra.mxu0 0.0
        %11165 = vmatprep.mubr.f32.mxu0 0.0
        %11166 = vmatmul.mubr.f32.gmra.mrb[0].mxu0 %v11027
        %v11167 = vpop.f32.mrb[0].mxu0
        %v11168 = vadd.f32 %v11024, %v11167
        %v11169 = vpop.f32.mrb[0].mxu0
        %11170 = vmatprep.mubr.f32.mxu0 0.0
        %11171 = vmatmul.mubr.f32.gmra.mrb[0].mxu0 %v11030
        %v11172 = vpop.f32.mrb[0].mxu0
        %v11173 = vadd.f32 %v11024, %v11172
        %v11174 = vpop.f32.mrb[0].mxu0
        %11175 = vmatprep.mubr.f32.mxu0 0.0
        %11176 = vmatmul.mubr.f32.gmra.mrb[0].mxu0 %v11033
        %v11177 = vpop.f32.mrb[0].mxu0
        %v11178 = vadd.f32 %v11024, %v11177
        %v11179 = vpop.f32.mrb[0].mxu0
        %11180 = vmatprep.mubr.f32.mxu0 0.0
        %11181 = vmatmul.mubr.f32.gmra.mrb[0].mxu0 %v11036
        %v11182 = vpop.f32.mrb[0].mxu0
        %v11183 = vadd.f32 %v11024, %v11182
        %v11184 = vpop.f32.mrb[0].mxu0
        %11185 = vmatprep.mubr.f32.mxu0 0.0
        %11186 = vmatmul.mubr.f32.gmra.mrb[0].mxu0 %v11039
        %v11187 = vpop.f32.mrb[0].mxu0
        %v11188 = vadd.f32 %v11024, %v11187
        %v11189 = vpop.f32.mrb[0].mxu0
        %11190 = vmatprep.mubr.f32.mxu0 0.0
        %11191 = vmatmul.mubr.f32.gmra.mrb[0].mxu0 %v11042
        %v11192 = vpop.f32.mrb[0].mxu0
        %v11193 = vadd.f32 %v11024, %v11192
        %v11194 = vpop.f32.mrb[0].mxu0
        %11195 = vmatprep.mubr.f32.mxu0 0.0
        %11196 = vmatmul.mubr.f32.gmra.mrb[0].mxu0 %v11045
        %v11197 = vpop.f32.mrb[0].mxu0
        %v11198 = vadd.f32 %v11024, %v11197
        %v11199 = vpop.f32.mrb[0].mxu0
        %11200 = vmatprep.mubr.f32.mxu0 0.0
        %11201 = vmatmul.mubr.f32.gmra.mrb[0].mxu0 %v11048
        %v11202 = vpop.f32.mrb[0].mxu0
        %v11203 = vadd.f32 %v11024, %v11202
        %v11204 = vpop.f32.mrb[0].mxu0
        %11205 = vmatprep.mubr.f32.mxu0 0.0
        %11206 = vmatmul.mubr.f32.gmra.mrb[0].mxu0 %v11051
        %v11207 = vpop.f32.mrb[0].mxu0
        %v11208 = vadd.f32 %v11024, %v11207
        %v11209 = vpop.f32.mrb[0].mxu0
        %11210 = vmatprep.mubr.f32.mxu0 0.0
        %11211 = vmatmul.mubr.f32.gmra.mrb[0].mxu0 %v11054
        %v11212 = vpop.f32.mrb[0].mxu0
        %v11213 = vadd.f32 %v11024, %v11212
        %v11214 = vpop.f32.mrb[0].mxu0
        %11215 = vmatprep.mubr.f32.mxu0 0.0
        %11216 = vmatmul.mubr.f32.gmra.mrb[0].mxu0 %v11057
        %v11217 = vpop.f32.mrb[0].mxu0
        %v11218 = vadd.f32 %v11024, %v11217
        %v11219 = vpop.f32.mrb[0].mxu0
        %11220 = vmatprep.mubr.f32.mxu0 0.0
        %11221 = vmatmul.mubr.f32.gmra.mrb[0].mxu0 %v11060
        %v11222 = vpop.f32.mrb[0].mxu0
        %v11223 = vadd.f32 %v11024, %v11222
        %v11224 = vpop.f32.mrb[0].mxu0
        %11225 = vmatprep.mubr.f32.mxu0 0.0
        %11226 = vmatmul.mubr.f32.gmra.mrb[0].mxu0 %v11063
        %v11227 = vpop.f32.mrb[0].mxu0
        %v11228 = vadd.f32 %v11024, %v11227
        %v11229 = vpop.f32.mrb[0].mxu0
        %11230 = vmatprep.mubr.f32.mxu0 0.0
        %11231 = vmatmul.mubr.f32.gmra.mrb[0].mxu0 %v11066
        %v11232 = vpop.f32.mrb[0].mxu0
        %v11233 = vadd.f32 %v11024, %v11232
        %v11234 = vpop.f32.mrb[0].mxu0
        %11235 = vmatprep.mubr.f32.mxu0 0.0
        %11236 = vmatmul.mubr.f32.gmra.mrb[0].mxu0 %v11069
        %v11237 = vpop.f32.mrb[0].mxu0
        %v11238 = vadd.f32 %v11024, %v11237
        %v11239 = vpop.f32.mrb[0].mxu0
        %11240 = vmatprep.mubr.f32.mxu0 0.0
        %11241 = vmatmul.mubr.f32.gmra.mrb[0].mxu0 %v11072
        %v11242 = vpop.f32.mrb[0].mxu0
        %v11243 = vadd.f32 %v11024, %v11242
        %v11244 = vpop.f32.mrb[0].mxu0
        %11245 = vmatprep.mubr.f32.mxu0 0.0
        %11246 = vmatmul.mubr.f32.gmra.mrb[0].mxu0 %v11075
        %v11247 = vpop.f32.mrb[0].mxu0
        %v11248 = vadd.f32 %v11024, %v11247
        %v11249 = vpop.f32.mrb[0].mxu0
        %11250 = vmatprep.mubr.f32.mxu0 0.0
        %11251 = vmatmul.mubr.f32.gmra.mrb[0].mxu0 %v11078
        %v11252 = vpop.f32.mrb[0].mxu0
        %v11253 = vadd.f32 %v11024, %v11252
        %v11254 = vpop.f32.mrb[0].mxu0
        %11255 = vmatprep.mubr.f32.mxu0 0.0
        %11256 = vmatmul.mubr.f32.gmra.mrb[0].mxu0 %v11081
        %v11257 = vpop.f32.mrb[0].mxu0
        %v11258 = vadd.f32 %v11024, %v11257
        %v11259 = vpop.f32.mrb[0].mxu0
        %11260 = vmatprep.mubr.f32.mxu0 0.0
        %11261 = vmatmul.mubr.f32.gmra.mrb[0].mxu0 %v11084
        %v11262 = vpop.f32.mrb[0].mxu0
        %v11263 = vadd.f32 %v11024, %v11262
        %v11264 = vpop.f32.mrb[0].mxu0
        %11265 = vmatprep.mubr.f32.mxu0 0.0
        %11266 = vmatmul.mubr.f32.gmra.mrb[0].mxu0 %v11087
        %v11267 = vpop.f32.mrb[0].mxu0
        %v11268 = vadd.f32 %v11024, %v11267
        %v11269 = vpop.f32.mrb[0].mxu0
        %11270 = vmatprep.mubr.f32.mxu0 0.0
        %11271 = vmatmul.mubr.f32.gmra.mrb[0].mxu0 %v11090
        %v11272 = vpop.f32.mrb[0].mxu0
        %v11273 = vadd.f32 %v11024, %v11272
        %v11274 = vpop.f32.mrb[0].mxu0
        %11275 = vmatprep.mubr.f32.mxu0 0.0
        %11276 = vmatmul.mubr.f32.gmra.mrb[0].mxu0 %v11093
        %v11277 = vpop.f32.mrb[0].mxu0
        %v11278 = vadd.f32 %v11024, %v11277
        %v11279 = vpop.f32.mrb[0].mxu0
        %11280 = vmatprep.mubr.f32.mxu0 0.0
        %11281 = vmatmul.mubr.f32.gmra.mrb[0].mxu0 %v11096
        %v11282 = vpop.f32.mrb[0].mxu0
        %v11283 = vadd.f32 %v11024, %v11282
        %v11284 = vpop.f32.mrb[0].mxu0
        %11285 = vmatprep.mubr.f32.mxu0 0.0
        %11286 = vmatmul.mubr.f32.gmra.mrb[0].mxu0 %v11099
        %v11287 = vpop.f32.mrb[0].mxu0
        %v11288 = vadd.f32 %v11024, %v11287
        %v11289 = vpop.f32.mrb[0].mxu0
        %11290 = vdwg.mxu0
        %v11291 = vand.u32 2147483647, %v11168
        %v11292 = vand.u32 2147483647, %v11173
        %v11293 = vand.u32 2147483647, %v11178
        %v11294 = vand.u32 2147483647, %v11183
        %v11295 = vand.u32 2147483647, %v11188
        %v11296 = vand.u32 2147483647, %v11193
        %v11297 = vand.u32 2147483647, %v11198
        %v11298 = vand.u32 2147483647, %v11203
        %v11299 = vand.u32 2147483647, %v11208
        %v11300 = vand.u32 2147483647, %v11213
        %v11301 = vand.u32 2147483647, %v11218
        %v11302 = vand.u32 2147483647, %v11223
        %v11303 = vand.u32 2147483647, %v11228
        %v11304 = vand.u32 2147483647, %v11233
        %v11305 = vand.u32 2147483647, %v11238
        %v11306 = vand.u32 2147483647, %v11243
        %v11307 = vand.u32 2147483647, %v11248
        %v11308 = vand.u32 2147483647, %v11253
        %v11309 = vand.u32 2147483647, %v11258
        %v11310 = vand.u32 2147483647, %v11263
        %v11311 = vand.u32 2147483647, %v11268
        %v11312 = vand.u32 2147483647, %v11273
        %v11313 = vand.u32 2147483647, %v11278
        %v11314 = vand.u32 2147483647, %v11283
        %v11315 = vand.u32 2147483647, %v11288
        %v11316 = vadd.f32 %v11291, 1.0
        %v11317 = vadd.f32 %v11292, 1.0
        %v11318 = vadd.f32 %v11293, 1.0
        %v11319 = vadd.f32 %v11294, 1.0
        %v11320 = vadd.f32 %v11295, 1.0
        %v11321 = vadd.f32 %v11296, 1.0
        %v11322 = vadd.f32 %v11297, 1.0
        %v11323 = vadd.f32 %v11298, 1.0
        %v11324 = vadd.f32 %v11299, 1.0
        %v11325 = vadd.f32 %v11300, 1.0
        %v11326 = vadd.f32 %v11301, 1.0
        %v11327 = vadd.f32 %v11302, 1.0
        %v11328 = vadd.f32 %v11303, 1.0
        %v11329 = vadd.f32 %v11304, 1.0
        %v11330 = vadd.f32 %v11305, 1.0
        %v11331 = vadd.f32 %v11306, 1.0
        %v11332 = vadd.f32 %v11307, 1.0
        %v11333 = vadd.f32 %v11308, 1.0
        %v11334 = vadd.f32 %v11309, 1.0
        %v11335 = vadd.f32 %v11310, 1.0
        %v11336 = vadd.f32 %v11311, 1.0
        %v11337 = vadd.f32 %v11312, 1.0
        %v11338 = vadd.f32 %v11313, 1.0
        %v11339 = vadd.f32 %v11314, 1.0
        %v11340 = vadd.f32 %v11315, 1.0
        %v11341 = vrcp.pop %v11316
        %v11342 = vmul.f32 %v11168, %v11341
        %v11343 = vrcp.pop %v11317
        %v11344 = vmul.f32 %v11173, %v11343
        %v11345 = vrcp.pop %v11318
        %v11346 = vmul.f32 %v11178, %v11345
        %v11347 = vrcp.pop %v11319
        %v11348 = vmul.f32 %v11183, %v11347
        %v11349 = vrcp.pop %v11320
        %v11350 = vmul.f32 %v11188, %v11349
        %v11351 = vrcp.pop %v11321
        %v11352 = vmul.f32 %v11193, %v11351
        %v11353 = vrcp.pop %v11322
        %v11354 = vmul.f32 %v11198, %v11353
        %v11355 = vrcp.pop %v11323
        %v11356 = vmul.f32 %v11203, %v11355
        %v11357 = vrcp.pop %v11324
        %v11358 = vmul.f32 %v11208, %v11357
        %v11359 = vrcp.pop %v11325
        %v11360 = vmul.f32 %v11213, %v11359
        %v11361 = vrcp.pop %v11326
        %v11362 = vmul.f32 %v11218, %v11361
        %v11363 = vrcp.pop %v11327
        %v11364 = vmul.f32 %v11223, %v11363
        %v11365 = vrcp.pop %v11328
        %v11366 = vmul.f32 %v11228, %v11365
        %v11367 = vrcp.pop %v11329
        %v11368 = vmul.f32 %v11233, %v11367
        %v11369 = vrcp.pop %v11330
        %v11370 = vmul.f32 %v11238, %v11369
        %v11371 = vrcp.pop %v11331
        %v11372 = vmul.f32 %v11243, %v11371
        %v11373 = vrcp.pop %v11332
        %v11374 = vmul.f32 %v11248, %v11373
        %v11375 = vrcp.pop %v11333
        %v11376 = vmul.f32 %v11253, %v11375
        %v11377 = vrcp.pop %v11334
        %v11378 = vmul.f32 %v11258, %v11377
        %v11379 = vrcp.pop %v11335
        %v11380 = vmul.f32 %v11263, %v11379
        %v11381 = vrcp.pop %v11336
        %v11382 = vmul.f32 %v11268, %v11381
        %v11383 = vrcp.pop %v11337
        %v11384 = vmul.f32 %v11273, %v11383
        %v11385 = vrcp.pop %v11338
        %v11386 = vmul.f32 %v11278, %v11385
        %v11387 = vrcp.pop %v11339
        %v11388 = vmul.f32 %v11283, %v11387
        %v11389 = vrcp.pop %v11340
        %v11390 = vmul.f32 %v11288, %v11389
        %11416 = vrot.lane.b32.xlu0 %v10439, 16
        %v11417 = vpop.permute.xlu0 %11416
        %11418 = vrot.lane.b32.xlu0 %v10440, 16
        %v11419 = vpop.permute.xlu0 %11418
        %11420 = vrot.lane.b32.xlu0 %v10441, 16
        %v11421 = vpop.permute.xlu0 %11420
        %11422 = vrot.lane.b32.xlu0 %v10442, 16
        %v11423 = vpop.permute.xlu0 %11422
        %11424 = vrot.lane.b32.xlu0 %v10443, 16
        %v11425 = vpop.permute.xlu0 %11424
        %11426 = vrot.lane.b32.xlu0 %v10444, 16
        %v11427 = vpop.permute.xlu0 %11426
        %11428 = vrot.lane.b32.xlu0 %v10445, 16
        %v11429 = vpop.permute.xlu0 %11428
        %11430 = vrot.lane.b32.xlu0 %v10446, 16
        %v11431 = vpop.permute.xlu0 %11430
        %11432 = vrot.lane.b32.xlu0 %v10447, 16
        %v11433 = vpop.permute.xlu0 %11432
        %11434 = vrot.lane.b32.xlu0 %v10448, 16
        %v11435 = vpop.permute.xlu0 %11434
        %11436 = vrot.lane.b32.xlu0 %v10449, 16
        %v11437 = vpop.permute.xlu0 %11436
        %11438 = vrot.lane.b32.xlu0 %v10450, 16
        %v11439 = vpop.permute.xlu0 %11438
        %11440 = vrot.lane.b32.xlu0 %v10451, 16
        %v11441 = vpop.permute.xlu0 %11440
        %11442 = vrot.lane.b32.xlu0 %v10452, 16
        %v11443 = vpop.permute.xlu0 %11442
        %11444 = vrot.lane.b32.xlu0 %v10453, 16
        %v11445 = vpop.permute.xlu0 %11444
        %11446 = vrot.lane.b32.xlu0 %v10454, 16
        %v11447 = vpop.permute.xlu0 %11446
        %11448 = vrot.lane.b32.xlu0 %v10455, 16
        %v11449 = vpop.permute.xlu0 %11448
        %11450 = vrot.lane.b32.xlu0 %v10456, 16
        %v11451 = vpop.permute.xlu0 %11450
        %11452 = vrot.lane.b32.xlu0 %v10457, 16
        %v11453 = vpop.permute.xlu0 %11452
        %11454 = vrot.lane.b32.xlu0 %v10458, 16
        %v11455 = vpop.permute.xlu0 %11454
        %11456 = vrot.lane.b32.xlu0 %v10459, 16
        %v11457 = vpop.permute.xlu0 %11456
        %11458 = vrot.lane.b32.xlu0 %v10460, 16
        %v11459 = vpop.permute.xlu0 %11458
        %11460 = vrot.lane.b32.xlu0 %v10461, 16
        %v11461 = vpop.permute.xlu0 %11460
        %11462 = vrot.lane.b32.xlu0 %v10462, 16
        %v11463 = vpop.permute.xlu0 %11462
        %11464 = vrot.lane.b32.xlu0 %v10463, 16
        %v11465 = vpop.permute.xlu0 %11464
        %v11491 = vsel %vm2925, %v11342, %v11417
        %v11492 = vsel %vm2925, %v11344, %v11419
        %v11493 = vsel %vm2925, %v11346, %v11421
        %v11494 = vsel %vm2925, %v11348, %v11423
        %v11495 = vsel %vm2925, %v11350, %v11425
        %v11496 = vsel %vm2925, %v11352, %v11427
        %v11497 = vsel %vm2925, %v11354, %v11429
        %v11498 = vsel %vm2925, %v11356, %v11431
        %v11499 = vsel %vm2925, %v11358, %v11433
        %v11500 = vsel %vm2925, %v11360, %v11435
        %v11501 = vsel %vm2925, %v11362, %v11437
        %v11502 = vsel %vm2925, %v11364, %v11439
        %v11503 = vsel %vm2925, %v11366, %v11441
        %v11504 = vsel %vm2925, %v11368, %v11443
        %v11505 = vsel %vm2925, %v11370, %v11445
        %v11506 = vsel %vm2925, %v11372, %v11447
        %v11507 = vsel %vm2925, %v11374, %v11449
        %v11508 = vsel %vm2925, %v11376, %v11451
        %v11509 = vsel %vm2925, %v11378, %v11453
        %v11510 = vsel %vm2925, %v11380, %v11455
        %v11511 = vsel %vm2925, %v11382, %v11457
        %v11512 = vsel %vm2925, %v11384, %v11459
        %v11513 = vsel %vm2925, %v11386, %v11461
        %v11514 = vsel %vm2925, %v11388, %v11463
        %v11515 = vsel %vm2925, %v11390, %v11465
        %vm11516 = vcmask 162816
        %v11517 = vsel %vm11516, %v11491, 0.0
        %v11518 = vsel %vm11516, %v11492, 0.0
        %v11519 = vsel %vm11516, %v11493, 0.0
        %v11520 = vsel %vm11516, %v11494, 0.0
        %v11521 = vsel %vm11516, %v11495, 0.0
        %v11522 = vsel %vm11516, %v11496, 0.0
        %v11523 = vsel %vm11516, %v11497, 0.0
        %v11524 = vsel %vm11516, %v11498, 0.0
        %v11525 = vsel %vm11516, %v11499, 0.0
        %v11526 = vsel %vm11516, %v11500, 0.0
        %v11527 = vsel %vm11516, %v11501, 0.0
        %v11528 = vsel %vm11516, %v11502, 0.0
        %v11529 = vsel %vm11516, %v11503, 0.0
        %v11530 = vsel %vm11516, %v11504, 0.0
        %v11531 = vsel %vm11516, %v11505, 0.0
        %v11532 = vsel %vm11516, %v11506, 0.0
        %v11533 = vsel %vm11516, %v11507, 0.0
        %v11534 = vsel %vm11516, %v11508, 0.0
        %v11535 = vsel %vm11516, %v11509, 0.0
        %v11536 = vsel %vm11516, %v11510, 0.0
        %v11537 = vsel %vm11516, %v11511, 0.0
        %v11538 = vsel %vm11516, %v11512, 0.0
        %v11539 = vsel %vm11516, %v11513, 0.0
        %v11540 = vsel %vm11516, %v11514, 0.0
        %v11541 = vsel %vm11516, %v11515, 0.0
        %11542 = vst [vmem:[%s19] sm:$0xff] %v11517
        %11543 = vst [vmem:[%s19 + $0x8] sm:$0xff] %v11518
        %11544 = vst [vmem:[%s19 + $0x10] sm:$0xff] %v11519
        %11545 = vst [vmem:[%s19 + $0x18] sm:$0xff] %v11520
        %11546 = vst [vmem:[%s19 + $0x20] sm:$0xff] %v11521
        %11547 = vst [vmem:[%s19 + $0x28] sm:$0xff] %v11522
        %11548 = vst [vmem:[%s19 + $0x30] sm:$0xff] %v11523
        %11549 = vst [vmem:[%s19 + $0x38] sm:$0xff] %v11524
        %11550 = vst [vmem:[%s19 + $0x40] sm:$0xff] %v11525
        %11551 = vst [vmem:[%s19 + $0x48] sm:$0xff] %v11526
        %11552 = vst [vmem:[%s19 + $0x50] sm:$0xff] %v11527
        %11553 = vst [vmem:[%s19 + $0x58] sm:$0xff] %v11528
        %11554 = vst [vmem:[%s19 + $0x60] sm:$0xff] %v11529
        %11555 = vst [vmem:[%s19 + $0x68] sm:$0xff] %v11530
        %11556 = vst [vmem:[%s19 + $0x70] sm:$0xff] %v11531
        %11557 = vst [vmem:[%s19 + $0x78] sm:$0xff] %v11532
        %11558 = vst [vmem:[%s19 + $0x80] sm:$0xff] %v11533
        %11559 = vst [vmem:[%s19 + $0x88] sm:$0xff] %v11534
        %11560 = vst [vmem:[%s19 + $0x90] sm:$0xff] %v11535
        %11561 = vst [vmem:[%s19 + $0x98] sm:$0xff] %v11536
        %11562 = vst [vmem:[%s19 + $0xa0] sm:$0xff] %v11537
        %11563 = vst [vmem:[%s19 + $0xa8] sm:$0xff] %v11538
        %11564 = vst [vmem:[%s19 + $0xb0] sm:$0xff] %v11539
        %11565 = vst [vmem:[%s19 + $0xb8] sm:$0xff] %v11540
        %11566 = vst [vmem:[%s19 + $0xc0] sm:$0xff] %v11541
      $region104: #{l_gcl_forward.1} parent=95 // pred_fallthru
        _
      // Predicated region
      $region105: #{l_gcl_forward.1} parent=95 // pred_check
        %p11567 = pneg %p462
      $region106: #{l_gcl_forward.1} parent=95 // pred_check_branch
        %11569 = sbr.rel (%p11567) target = $region108
      $region107: #{l_gcl_forward.1} parent=95 // pred_region
        _
      $region108: #{l_gcl_forward.1} parent=95 // pred_fallthru
        _
      // Predicated region
      $region109: #{l_gcl_forward.1} parent=95 // pred_check
        %p11570 = pneg %p462
      $region110: #{l_gcl_forward.1} parent=95 // pred_check_branch
        %11572 = sbr.rel (%p11570) target = $region112
      $region111: #{l_gcl_forward.1} parent=95 // pred_region
        _
      $region112: #{l_gcl_forward.1} parent=95 // pred_fallthru
        _
    $region96: #{l_gcl_forward.1} parent=5 // pred_fallthru
      _
    %p11573 = scmp.le.s32.totalorder 2, %s25
    // Predicated region
    $region113: #{l_gcl_forward.1} parent=5 // pred_check
      %p11574 = pneg %p11573
    $region114: #{l_gcl_forward.1} parent=5 // pred_check_branch
      %11576 = sbr.rel (%p11574) target = $region116
    $region115: #{l_gcl_forward.1} parent=5 // pred_region
      %s11577 = ssub.s32 %s25, 2
    $region116: #{l_gcl_forward.1} parent=5 // pred_fallthru
      _
  $region6: #{l_gcl_forward.1} parent=0 // loop_footer
    %s29 = sadd.s32 1, %s25
  $region7: #{l_gcl_forward.1} parent=0 // loop_footer_branch
    %24 = sbr.rel target = $region3
  $region8: #{l_gcl_forward.1} parent=0 // loop_exit
    _

</llo_original>
